<compile_context>
chip_gen: v5e
topology: v5e:2x2
jax: 0.10.0
libtpu: 0.0.40
codegen_flags: <defaults>
</compile_context>

<pallas_src>
import functools

import jax
import jax.numpy as jnp
import numpy as np
from jax import lax
from jax.experimental import pallas as pl
from jax.experimental.pallas import tpu as pltpu

EPS = 1e-5


# ----------------------------- Pallas kernel ------------------------------- #

def _block_kernel(xm_ref, prm_ref, o_ref, *, cin, w_dim, pad):
    """Fused Conv3x3(pad=1) -> BN1 -> ReLU -> BN2(pre-shuffle) -> ReLU.

    xm_ref : (cin+4, R+2*pad) f32.  Rows [0,cin): activation, flat (n,h,w) on
             the lane axis, zero-padded by `pad` lanes on both sides.
             Rows [cin,cin+4): boundary masks [h>0, h<H-1, w>0, w<W-1], valid
             at lane offset pad+p (they implement the conv zero padding).
    prm_ref: (c_out, 9*cin + 4 + c_out) f32.  [0,9cin): tap-major conv weights,
             next 4: g1,b1,g2(rep r^2),b2(rep r^2), last c_out: r^2-group
             indicator pre-divided by R*r^2 (for BN2 batch stats).
    o_ref  : (c_out, R) f32, pre-PixelShuffle output (the shuffle itself is a
             pure permutation done in the XLA glue).
    """
    c_out, rr = o_ref.shape

    mh_neg = xm_ref[pl.ds(cin + 0, 1), pl.ds(pad, rr)]   # h-1 >= 0
    mh_pos = xm_ref[pl.ds(cin + 1, 1), pl.ds(pad, rr)]   # h+1 <  H
    mw_neg = xm_ref[pl.ds(cin + 2, 1), pl.ds(pad, rr)]   # w-1 >= 0
    mw_pos = xm_ref[pl.ds(cin + 3, 1), pl.ds(pad, rr)]   # w+1 <  W

    def tap_mask(dh, dw):
        m = None
        if dh == -1:
            m = mh_neg
        elif dh == 1:
            m = mh_pos
        if dw == -1:
            m = mw_neg if m is None else m * mw_neg
        elif dw == 1:
            m = mw_pos if m is None else m * mw_pos
        return m

    # --- 3x3 conv as 9 shifted, masked, accumulating matmuls (no im2col) ---
    y = None
    tap = 0
    for dh in (-1, 0, 1):
        for dw in (-1, 0, 1):
            xt = xm_ref[pl.ds(0, cin), pl.ds(pad + dh * w_dim + dw, rr)]
            m = tap_mask(dh, dw)
            if m is not None:
                xt = xt * m                                # zero-pad semantics
            wt = prm_ref[:, pl.ds(tap * cin, cin)]          # (c_out, cin)
            contrib = jnp.dot(wt, xt, preferred_element_type=jnp.float32)
            y = contrib if y is None else y + contrib
            tap += 1
    # Conv bias intentionally omitted: cancelled by the BN1 mean subtraction.

    a_off = 9 * cin
    g1 = prm_ref[:, pl.ds(a_off + 0, 1)]
    b1 = prm_ref[:, pl.ds(a_off + 1, 1)]
    g2 = prm_ref[:, pl.ds(a_off + 2, 1)]
    b2 = prm_ref[:, pl.ds(a_off + 3, 1)]
    gsel = prm_ref[:, pl.ds(a_off + 4, c_out)]              # already /(R*r^2)

    # --- BatchNorm1 (training-mode batch stats, biased variance) + ReLU ----
    inv_n = 1.0 / rr
    mean1 = jnp.sum(y, axis=1, keepdims=True) * inv_n
    ex2_1 = jnp.sum(y * y, axis=1, keepdims=True) * inv_n
    var1 = jnp.maximum(ex2_1 - mean1 * mean1, 0.0)          # clamp cancellation
    scale1 = g1 * lax.rsqrt(var1 + EPS)
    shift1 = b1 - mean1 * scale1
    z = jnp.maximum(y * scale1 + shift1, 0.0)

    # --- BatchNorm2 (post-PixelShuffle channels) + ReLU, applied pre-shuffle.
    # PixelShuffle maps pre-shuffle channels [c*r^2, (c+1)*r^2) onto channel c,
    # so its batch stats are r^2-grouped sums of the per-channel sums below.
    zs = jnp.sum(z, axis=1, keepdims=True)                   # (c_out, 1)
    zs2 = jnp.sum(z * z, axis=1, keepdims=True)
    mean2 = jnp.dot(gsel, zs, preferred_element_type=jnp.float32)
    ex2_2 = jnp.dot(gsel, zs2, preferred_element_type=jnp.float32)
    var2 = jnp.maximum(ex2_2 - mean2 * mean2, 0.0)
    scale2 = g2 * lax.rsqrt(var2 + EPS)
    shift2 = b2 - mean2 * scale2
    o_ref[...] = jnp.maximum(z * scale2 + shift2, 0.0).astype(o_ref.dtype)


def fused_block(xm, prm, *, cin, w_dim, pad):
    n_rows, rp = xm.shape
    c_out, n_prm = prm.shape
    rr = rp - 2 * pad

    # Whole-array blocks: double-buffered operand DMAs plus ~4 live full-width
    # f32 intermediates stay far below the scoped VMEM limit at these shapes.
    vmem_est = 4 * (2 * (n_rows * rp + c_out * n_prm + c_out * rr) + 4 * c_out * rr)
    assert vmem_est < 12 * 1024 * 1024, (
        "shapes too large for the single-step path; tile over the lane axis "
        "with two-pass BN statistics")

    kern = functools.partial(_block_kernel, cin=cin, w_dim=w_dim, pad=pad)
    return pl.pallas_call(
        kern,
        out_shape=jax.ShapeDtypeStruct((c_out, rr), jnp.float32),
        grid_spec=pltpu.PrefetchScalarGridSpec(
            num_scalar_prefetch=0,
            grid=(1,),
            in_specs=[
                pl.BlockSpec((n_rows, rp), lambda i: (0, 0)),
                pl.BlockSpec((c_out, n_prm), lambda i: (0, 0)),
            ],
            out_specs=pl.BlockSpec((c_out, rr), lambda i: (0, 0)),
        ),
        compiler_params=pltpu.CompilerParams(
            dimension_semantics=("arbitrary",),
            vmem_limit_bytes=32 * 1024 * 1024,
        ),
    )(xm, prm)


# ------------------------------- JAX glue ---------------------------------- #

def _build_block_inputs(xT, w, g1, b1, g2, b2, *, r2, H, W):
    """Pack the two kernel operands for one block (see _block_kernel docstring)."""
    Cin, R = xT.shape
    C_out = w.shape[0]
    pad = ((W + 1 + 127) // 128) * 128                 # covers every tap shift

    xp = jnp.pad(xT, ((0, 0), (pad, pad)))
    p = jnp.arange(R, dtype=jnp.int32)
    hpos = (p // W) % H
    wpos = p % W
    masks = jnp.stack(
        [hpos >= 1, hpos < H - 1, wpos >= 1, wpos < W - 1], axis=0
    ).astype(xT.dtype)
    masks = jnp.pad(masks, ((0, 0), (pad, pad)))
    xm = jnp.concatenate([xp, masks], axis=0)          # (Cin+4, R+2*pad)

    w2d = jnp.transpose(w, (0, 2, 3, 1)).reshape(C_out, 9 * Cin)  # (co, kh,kw,ci)
    aff = jnp.stack([g1, b1, jnp.repeat(g2, r2), jnp.repeat(b2, r2)], axis=1)
    grp = jnp.arange(C_out) // r2
    gsel = (grp[:, None] == grp[None, :]).astype(jnp.float32) / float(R * r2)
    prm = jnp.concatenate([w2d, aff, gsel], axis=1)    # (C_out, 9*Cin+4+C_out)
    return xm, prm, pad


@functools.partial(jax.jit, static_argnames=("ratio",))
def conv_pixel_shuf_forward(x_nchw, params_list, ratio):
    N, C, H, W = x_nchw.shape
    r, r2 = ratio, ratio * ratio
    # Lane-dense working layout: channels on sublanes, (n,h,w) flat on lanes.
    xT = jnp.transpose(x_nchw, (1, 0, 2, 3)).reshape(C, N * H * W)

    out = None
    last = len(params_list) - 1
    for idx, (w, _bias, g1, be1, g2, be2) in enumerate(params_list):
        xm, prm, pad = _build_block_inputs(xT, w, g1, be1, g2, be2, r2=r2, H=H, W=W)
        o = fused_block(xm, prm, cin=C, w_dim=W, pad=pad)        # (C*r^2, N*H*W)

        # PixelShuffle (pure channel->space permutation) fused with the next
        # block's (C, N*H'*W') layout (or the final NCHW): a single transpose.
        o6 = o.reshape(C, r, r, N, H, W)                          # (c,i,j,n,h,w)
        H, W = H * r, W * r
        if idx != last:
            xT = jnp.transpose(o6, (0, 3, 4, 1, 5, 2)).reshape(C, N * H * W)
        else:
            out = jnp.transpose(o6, (3, 0, 4, 1, 5, 2)).reshape(N, C, H, W)
    return out


def init_params(key, in_channels, ratio, blocks):
    params = []
    c_out = in_channels * ratio * ratio
    for _ in range(blocks):
        key, kw, kb = jax.random.split(key, 3)
        w = jax.random.normal(kw, (c_out, in_channels, 3, 3), jnp.float32)
        w = w * np.sqrt(2.0 / (9 * in_channels))
        b = 0.1 * jax.random.normal(kb, (c_out,), jnp.float32)
        g1 = jnp.ones((c_out,), jnp.float32)          # BatchNorm2d default affine
        be1 = jnp.zeros((c_out,), jnp.float32)
        g2 = jnp.ones((in_channels,), jnp.float32)
        be2 = jnp.zeros((in_channels,), jnp.float32)
        params.append((w, b, g1, be1, g2, be2))
    return params


# -------------------------- pure-JAX reference ------------------------------ #

def reference_forward(x_nchw, params_list, ratio):
    y = x_nchw
    for (w, b, g1, be1, g2, be2) in params_list:
        y = lax.conv_general_dilated(
            y, w, window_strides=(1, 1), padding="SAME",
            dimension_numbers=("NCHW", "OIHW", "NCHW"),
        ) + b[None, :, None, None]
        m = y.mean(axis=(0, 2, 3)); v = y.var(axis=(0, 2, 3))
        y = (y - m[None, :, None, None]) / jnp.sqrt(v + EPS)[None, :, None, None]
        y = jnp.maximum(y * g1[None, :, None, None] + be1[None, :, None, None], 0.0)
        N, Cr2, H, W = y.shape
        C = Cr2 // (ratio * ratio)
        y = y.reshape(N, C, ratio, ratio, H, W)
        y = jnp.transpose(y, (0, 1, 4, 2, 5, 3)).reshape(N, C, H * ratio, W * ratio)
        m = y.mean(axis=(0, 2, 3)); v = y.var(axis=(0, 2, 3))
        y = (y - m[None, :, None, None]) / jnp.sqrt(v + EPS)[None, :, None, None]
        y = jnp.maximum(y * g2[None, :, None, None] + be2[None, :, None, None], 0.0)
    return y


# ---------------------------------- main ------------------------------------ #

if __name__ == "__main__":
    in_channels, ratio, blocks = 4, 2, 2
    N, H, W = 2, 16, 16

    key = jax.random.PRNGKey(0)
    key, kx = jax.random.split(key)
    x = jax.random.normal(kx, (N, in_channels, H, W), jnp.float32)
    params = init_params(key, in_channels, ratio, blocks)

    out = jax.block_until_ready(conv_pixel_shuf_forward(x, params, ratio=ratio))

    expected_shape = (N, in_channels, H * ratio ** blocks, W * ratio ** blocks)
    assert out.shape == expected_shape, (out.shape, expected_shape)

    ref = jax.block_until_ready(reference_forward(x, params, ratio))
    np.testing.assert_allclose(np.asarray(out), np.asarray(ref), rtol=1e-3, atol=1e-3)

    print("KERNEL_OK")
</pallas_src>

<mosaic_0001>
module attributes {stable_mosaic.version = 11 : i64} {
  func.func @_block_kernel(%arg0: i32, %arg1: memref<8x768xf32, #tpu.memory_space<vmem>>, %arg2: memref<16x56xf32, #tpu.memory_space<vmem>>, %arg3: memref<16x512xf32, #tpu.memory_space<vmem>>) attributes {dimension_semantics = [#tpu.dimension_semantics<arbitrary>], iteration_bounds = array<i64: 1>, scalar_prefetch = 0 : i64, scratch_operands = 0 : i64, tpu.core_type = #tpu.core_type<tc>, window_params = [{pipeline_mode = #tpu.pipeline_mode<synchronous>, transform_indices = @transform_0, window_bounds = array<i64: 8, 768>}, {pipeline_mode = #tpu.pipeline_mode<synchronous>, transform_indices = @transform_1, window_bounds = array<i64: 16, 56>}, {pipeline_mode = #tpu.pipeline_mode<synchronous>, transform_indices = @transform_2, window_bounds = array<i64: 16, 512>}]} {
    %c4 = arith.constant 4 : index
    %c128 = arith.constant 128 : index
    %0 = vector.load %arg1[%c4, %c128] : memref<8x768xf32, #tpu.memory_space<vmem>>, vector<1x512xf32>
    %c5 = arith.constant 5 : index
    %c128_0 = arith.constant 128 : index
    %1 = vector.load %arg1[%c5, %c128_0] : memref<8x768xf32, #tpu.memory_space<vmem>>, vector<1x512xf32>
    %c6 = arith.constant 6 : index
    %c128_1 = arith.constant 128 : index
    %2 = vector.load %arg1[%c6, %c128_1] : memref<8x768xf32, #tpu.memory_space<vmem>>, vector<1x512xf32>
    %c7 = arith.constant 7 : index
    %c128_2 = arith.constant 128 : index
    %3 = vector.load %arg1[%c7, %c128_2] : memref<8x768xf32, #tpu.memory_space<vmem>>, vector<1x512xf32>
    %c0 = arith.constant 0 : index
    %c111 = arith.constant 111 : index
    %4 = vector.load %arg1[%c0, %c111] : memref<8x768xf32, #tpu.memory_space<vmem>>, vector<4x512xf32>
    %5 = arith.mulf %0, %2 : vector<1x512xf32>
    %6 = vector.broadcast %5 : vector<1x512xf32> to vector<4x512xf32>
    %7 = arith.mulf %4, %6 : vector<4x512xf32>
    %c0_3 = arith.constant 0 : index
    %c0_4 = arith.constant 0 : index
    %8 = vector.load %arg2[%c0_3, %c0_4] : memref<16x56xf32, #tpu.memory_space<vmem>>, vector<16x4xf32>
    %cst = arith.constant dense<0.000000e+00> : vector<16x512xf32>
    %9 = tpu.matmul %8, %7, %cst {dimension_numbers = #tpu.dot_dimension_numbers<[1], [0], [0], [1], [0, 0, 1, 1], [], []>} : vector<16x4xf32>, vector<4x512xf32>, vector<16x512xf32> -> vector<16x512xf32>
    %c0_5 = arith.constant 0 : index
    %c112 = arith.constant 112 : index
    %10 = vector.load %arg1[%c0_5, %c112] : memref<8x768xf32, #tpu.memory_space<vmem>>, vector<4x512xf32>
    %11 = vector.broadcast %0 : vector<1x512xf32> to vector<4x512xf32>
    %12 = arith.mulf %10, %11 : vector<4x512xf32>
    %c0_6 = arith.constant 0 : index
    %c4_7 = arith.constant 4 : index
    %13 = vector.load %arg2[%c0_6, %c4_7] : memref<16x56xf32, #tpu.memory_space<vmem>>, vector<16x4xf32>
    %cst_8 = arith.constant dense<0.000000e+00> : vector<16x512xf32>
    %14 = tpu.matmul %13, %12, %cst_8 {dimension_numbers = #tpu.dot_dimension_numbers<[1], [0], [0], [1], [0, 0, 1, 1], [], []>} : vector<16x4xf32>, vector<4x512xf32>, vector<16x512xf32> -> vector<16x512xf32>
    %15 = arith.addf %9, %14 : vector<16x512xf32>
    %c0_9 = arith.constant 0 : index
    %c113 = arith.constant 113 : index
    %16 = vector.load %arg1[%c0_9, %c113] : memref<8x768xf32, #tpu.memory_space<vmem>>, vector<4x512xf32>
    %17 = arith.mulf %0, %3 : vector<1x512xf32>
    %18 = vector.broadcast %17 : vector<1x512xf32> to vector<4x512xf32>
    %19 = arith.mulf %16, %18 : vector<4x512xf32>
    %c0_10 = arith.constant 0 : index
    %c8 = arith.constant 8 : index
    %20 = vector.load %arg2[%c0_10, %c8] : memref<16x56xf32, #tpu.memory_space<vmem>>, vector<16x4xf32>
    %cst_11 = arith.constant dense<0.000000e+00> : vector<16x512xf32>
    %21 = tpu.matmul %20, %19, %cst_11 {dimension_numbers = #tpu.dot_dimension_numbers<[1], [0], [0], [1], [0, 0, 1, 1], [], []>} : vector<16x4xf32>, vector<4x512xf32>, vector<16x512xf32> -> vector<16x512xf32>
    %22 = arith.addf %15, %21 : vector<16x512xf32>
    %c0_12 = arith.constant 0 : index
    %c127 = arith.constant 127 : index
    %23 = vector.load %arg1[%c0_12, %c127] : memref<8x768xf32, #tpu.memory_space<vmem>>, vector<4x512xf32>
    %24 = vector.broadcast %2 : vector<1x512xf32> to vector<4x512xf32>
    %25 = arith.mulf %23, %24 : vector<4x512xf32>
    %c0_13 = arith.constant 0 : index
    %c12 = arith.constant 12 : index
    %26 = vector.load %arg2[%c0_13, %c12] : memref<16x56xf32, #tpu.memory_space<vmem>>, vector<16x4xf32>
    %cst_14 = arith.constant dense<0.000000e+00> : vector<16x512xf32>
    %27 = tpu.matmul %26, %25, %cst_14 {dimension_numbers = #tpu.dot_dimension_numbers<[1], [0], [0], [1], [0, 0, 1, 1], [], []>} : vector<16x4xf32>, vector<4x512xf32>, vector<16x512xf32> -> vector<16x512xf32>
    %28 = arith.addf %22, %27 : vector<16x512xf32>
    %c0_15 = arith.constant 0 : index
    %c128_16 = arith.constant 128 : index
    %29 = vector.load %arg1[%c0_15, %c128_16] : memref<8x768xf32, #tpu.memory_space<vmem>>, vector<4x512xf32>
    %c0_17 = arith.constant 0 : index
    %c16 = arith.constant 16 : index
    %30 = vector.load %arg2[%c0_17, %c16] : memref<16x56xf32, #tpu.memory_space<vmem>>, vector<16x4xf32>
    %cst_18 = arith.constant dense<0.000000e+00> : vector<16x512xf32>
    %31 = tpu.matmul %30, %29, %cst_18 {dimension_numbers = #tpu.dot_dimension_numbers<[1], [0], [0], [1], [0, 0, 1, 1], [], []>} : vector<16x4xf32>, vector<4x512xf32>, vector<16x512xf32> -> vector<16x512xf32>
    %32 = arith.addf %28, %31 : vector<16x512xf32>
    %c0_19 = arith.constant 0 : index
    %c129 = arith.constant 129 : index
    %33 = vector.load %arg1[%c0_19, %c129] : memref<8x768xf32, #tpu.memory_space<vmem>>, vector<4x512xf32>
    %34 = vector.broadcast %3 : vector<1x512xf32> to vector<4x512xf32>
    %35 = arith.mulf %33, %34 : vector<4x512xf32>
    %c0_20 = arith.constant 0 : index
    %c20 = arith.constant 20 : index
    %36 = vector.load %arg2[%c0_20, %c20] : memref<16x56xf32, #tpu.memory_space<vmem>>, vector<16x4xf32>
    %cst_21 = arith.constant dense<0.000000e+00> : vector<16x512xf32>
    %37 = tpu.matmul %36, %35, %cst_21 {dimension_numbers = #tpu.dot_dimension_numbers<[1], [0], [0], [1], [0, 0, 1, 1], [], []>} : vector<16x4xf32>, vector<4x512xf32>, vector<16x512xf32> -> vector<16x512xf32>
    %38 = arith.addf %32, %37 : vector<16x512xf32>
    %c0_22 = arith.constant 0 : index
    %c143 = arith.constant 143 : index
    %39 = vector.load %arg1[%c0_22, %c143] : memref<8x768xf32, #tpu.memory_space<vmem>>, vector<4x512xf32>
    %40 = arith.mulf %1, %2 : vector<1x512xf32>
    %41 = vector.broadcast %40 : vector<1x512xf32> to vector<4x512xf32>
    %42 = arith.mulf %39, %41 : vector<4x512xf32>
    %c0_23 = arith.constant 0 : index
    %c24 = arith.constant 24 : index
    %43 = vector.load %arg2[%c0_23, %c24] : memref<16x56xf32, #tpu.memory_space<vmem>>, vector<16x4xf32>
    %cst_24 = arith.constant dense<0.000000e+00> : vector<16x512xf32>
    %44 = tpu.matmul %43, %42, %cst_24 {dimension_numbers = #tpu.dot_dimension_numbers<[1], [0], [0], [1], [0, 0, 1, 1], [], []>} : vector<16x4xf32>, vector<4x512xf32>, vector<16x512xf32> -> vector<16x512xf32>
    %45 = arith.addf %38, %44 : vector<16x512xf32>
    %c0_25 = arith.constant 0 : index
    %c144 = arith.constant 144 : index
    %46 = vector.load %arg1[%c0_25, %c144] : memref<8x768xf32, #tpu.memory_space<vmem>>, vector<4x512xf32>
    %47 = vector.broadcast %1 : vector<1x512xf32> to vector<4x512xf32>
    %48 = arith.mulf %46, %47 : vector<4x512xf32>
    %c0_26 = arith.constant 0 : index
    %c28 = arith.constant 28 : index
    %49 = vector.load %arg2[%c0_26, %c28] : memref<16x56xf32, #tpu.memory_space<vmem>>, vector<16x4xf32>
    %cst_27 = arith.constant dense<0.000000e+00> : vector<16x512xf32>
    %50 = tpu.matmul %49, %48, %cst_27 {dimension_numbers = #tpu.dot_dimension_numbers<[1], [0], [0], [1], [0, 0, 1, 1], [], []>} : vector<16x4xf32>, vector<4x512xf32>, vector<16x512xf32> -> vector<16x512xf32>
    %51 = arith.addf %45, %50 : vector<16x512xf32>
    %c0_28 = arith.constant 0 : index
    %c145 = arith.constant 145 : index
    %52 = vector.load %arg1[%c0_28, %c145] : memref<8x768xf32, #tpu.memory_space<vmem>>, vector<4x512xf32>
    %53 = arith.mulf %1, %3 : vector<1x512xf32>
    %54 = vector.broadcast %53 : vector<1x512xf32> to vector<4x512xf32>
    %55 = arith.mulf %52, %54 : vector<4x512xf32>
    %c0_29 = arith.constant 0 : index
    %c32 = arith.constant 32 : index
    %56 = vector.load %arg2[%c0_29, %c32] : memref<16x56xf32, #tpu.memory_space<vmem>>, vector<16x4xf32>
    %cst_30 = arith.constant dense<0.000000e+00> : vector<16x512xf32>
    %57 = tpu.matmul %56, %55, %cst_30 {dimension_numbers = #tpu.dot_dimension_numbers<[1], [0], [0], [1], [0, 0, 1, 1], [], []>} : vector<16x4xf32>, vector<4x512xf32>, vector<16x512xf32> -> vector<16x512xf32>
    %58 = arith.addf %51, %57 : vector<16x512xf32>
    %c0_31 = arith.constant 0 : index
    %c36 = arith.constant 36 : index
    %59 = vector.load %arg2[%c0_31, %c36] : memref<16x56xf32, #tpu.memory_space<vmem>>, vector<16x1xf32>
    %c0_32 = arith.constant 0 : index
    %c37 = arith.constant 37 : index
    %60 = vector.load %arg2[%c0_32, %c37] : memref<16x56xf32, #tpu.memory_space<vmem>>, vector<16x1xf32>
    %c0_33 = arith.constant 0 : index
    %c38 = arith.constant 38 : index
    %61 = vector.load %arg2[%c0_33, %c38] : memref<16x56xf32, #tpu.memory_space<vmem>>, vector<16x1xf32>
    %c0_34 = arith.constant 0 : index
    %c39 = arith.constant 39 : index
    %62 = vector.load %arg2[%c0_34, %c39] : memref<16x56xf32, #tpu.memory_space<vmem>>, vector<16x1xf32>
    %c0_35 = arith.constant 0 : index
    %c40 = arith.constant 40 : index
    %63 = vector.load %arg2[%c0_35, %c40] : memref<16x56xf32, #tpu.memory_space<vmem>>, vector<16x16xf32>
    %cst_36 = arith.constant dense<0.000000e+00> : vector<16xf32>
    %64 = vector.multi_reduction <add>, %58, %cst_36 [1] : vector<16x512xf32> to vector<16xf32>
    %65 = vector.shape_cast %64 : vector<16xf32> to vector<16x1xf32>
    %cst_37 = arith.constant 0.001953125 : f32
    %66 = vector.broadcast %cst_37 : f32 to vector<16x1xf32>
    %67 = arith.mulf %65, %66 : vector<16x1xf32>
    %68 = arith.mulf %58, %58 : vector<16x512xf32>
    %cst_38 = arith.constant dense<0.000000e+00> : vector<16xf32>
    %69 = vector.multi_reduction <add>, %68, %cst_38 [1] : vector<16x512xf32> to vector<16xf32>
    %70 = vector.shape_cast %69 : vector<16xf32> to vector<16x1xf32>
    %cst_39 = arith.constant 0.001953125 : f32
    %71 = vector.broadcast %cst_39 : f32 to vector<16x1xf32>
    %72 = arith.mulf %70, %71 : vector<16x1xf32>
    %73 = arith.mulf %67, %67 : vector<16x1xf32>
    %74 = arith.subf %72, %73 : vector<16x1xf32>
    %cst_40 = arith.constant 0.000000e+00 : f32
    %75 = vector.broadcast %cst_40 : f32 to vector<16x1xf32>
    %76 = arith.maximumf %74, %75 : vector<16x1xf32>
    %cst_41 = arith.constant 9.99999974E-6 : f32
    %77 = vector.broadcast %cst_41 : f32 to vector<16x1xf32>
    %78 = arith.addf %76, %77 : vector<16x1xf32>
    %79 = math.rsqrt %78 : vector<16x1xf32>
    %80 = arith.mulf %59, %79 : vector<16x1xf32>
    %81 = arith.mulf %67, %80 : vector<16x1xf32>
    %82 = arith.subf %60, %81 : vector<16x1xf32>
    %83 = vector.broadcast %80 : vector<16x1xf32> to vector<16x512xf32>
    %84 = arith.mulf %58, %83 : vector<16x512xf32>
    %85 = vector.broadcast %82 : vector<16x1xf32> to vector<16x512xf32>
    %86 = arith.addf %84, %85 : vector<16x512xf32>
    %cst_42 = arith.constant 0.000000e+00 : f32
    %87 = vector.broadcast %cst_42 : f32 to vector<16x512xf32>
    %88 = arith.maximumf %86, %87 : vector<16x512xf32>
    %cst_43 = arith.constant dense<0.000000e+00> : vector<16xf32>
    %89 = vector.multi_reduction <add>, %88, %cst_43 [1] : vector<16x512xf32> to vector<16xf32>
    %90 = vector.shape_cast %89 : vector<16xf32> to vector<16x1xf32>
    %91 = arith.mulf %88, %88 : vector<16x512xf32>
    %cst_44 = arith.constant dense<0.000000e+00> : vector<16xf32>
    %92 = vector.multi_reduction <add>, %91, %cst_44 [1] : vector<16x512xf32> to vector<16xf32>
    %93 = vector.shape_cast %92 : vector<16xf32> to vector<16x1xf32>
    %cst_45 = arith.constant dense<0.000000e+00> : vector<16x1xf32>
    %94 = tpu.matmul %63, %90, %cst_45 {dimension_numbers = #tpu.dot_dimension_numbers<[1], [0], [0], [1], [0, 0, 1, 1], [], []>} : vector<16x16xf32>, vector<16x1xf32>, vector<16x1xf32> -> vector<16x1xf32>
    %cst_46 = arith.constant dense<0.000000e+00> : vector<16x1xf32>
    %95 = tpu.matmul %63, %93, %cst_46 {dimension_numbers = #tpu.dot_dimension_numbers<[1], [0], [0], [1], [0, 0, 1, 1], [], []>} : vector<16x16xf32>, vector<16x1xf32>, vector<16x1xf32> -> vector<16x1xf32>
    %96 = arith.mulf %94, %94 : vector<16x1xf32>
    %97 = arith.subf %95, %96 : vector<16x1xf32>
    %cst_47 = arith.constant 0.000000e+00 : f32
    %98 = vector.broadcast %cst_47 : f32 to vector<16x1xf32>
    %99 = arith.maximumf %97, %98 : vector<16x1xf32>
    %cst_48 = arith.constant 9.99999974E-6 : f32
    %100 = vector.broadcast %cst_48 : f32 to vector<16x1xf32>
    %101 = arith.addf %99, %100 : vector<16x1xf32>
    %102 = math.rsqrt %101 : vector<16x1xf32>
    %103 = arith.mulf %61, %102 : vector<16x1xf32>
    %104 = arith.mulf %94, %103 : vector<16x1xf32>
    %105 = arith.subf %62, %104 : vector<16x1xf32>
    %106 = vector.broadcast %103 : vector<16x1xf32> to vector<16x512xf32>
    %107 = arith.mulf %88, %106 : vector<16x512xf32>
    %108 = vector.broadcast %105 : vector<16x1xf32> to vector<16x512xf32>
    %109 = arith.addf %107, %108 : vector<16x512xf32>
    %cst_49 = arith.constant 0.000000e+00 : f32
    %110 = vector.broadcast %cst_49 : f32 to vector<16x512xf32>
    %111 = arith.maximumf %109, %110 : vector<16x512xf32>
    %c0_50 = arith.constant 0 : index
    %c0_51 = arith.constant 0 : index
    %112 = vector.load %arg3[%c0_50, %c0_51] : memref<16x512xf32, #tpu.memory_space<vmem>>, vector<16x512xf32>
    tpu.vector_store %arg3[%c0_50, %c0_51], %111 {strides = array<i32>} : memref<16x512xf32, #tpu.memory_space<vmem>>, vector<16x512xf32>,
    return
  }
  func.func @transform_0(%arg0: i32) -> (i32, i32) {
    %c0_i32 = arith.constant 0 : i32
    %c0_i32_0 = arith.constant 0 : i32
    %c0_i32_1 = arith.constant 0 : i32
    return %c0_i32, %c0_i32_0 : i32, i32
  }
  func.func @transform_1(%arg0: i32) -> (i32, i32) {
    %c0_i32 = arith.constant 0 : i32
    %c0_i32_0 = arith.constant 0 : i32
    %c0_i32_1 = arith.constant 0 : i32
    return %c0_i32, %c0_i32_0 : i32, i32
  }
  func.func @transform_2(%arg0: i32) -> (i32, i32) {
    %c0_i32 = arith.constant 0 : i32
    %c0_i32_0 = arith.constant 0 : i32
    %c0_i32_1 = arith.constant 0 : i32
    return %c0_i32, %c0_i32_0 : i32, i32
  }
}

module attributes {stable_mosaic.version = 11 : i64} {
  func.func @_block_kernel(%arg0: i32, %arg1: memref<8x2304xf32, #tpu.memory_space<vmem>>, %arg2: memref<16x56xf32, #tpu.memory_space<vmem>>, %arg3: memref<16x2048xf32, #tpu.memory_space<vmem>>) attributes {dimension_semantics = [#tpu.dimension_semantics<arbitrary>], iteration_bounds = array<i64: 1>, scalar_prefetch = 0 : i64, scratch_operands = 0 : i64, tpu.core_type = #tpu.core_type<tc>, window_params = [{pipeline_mode = #tpu.pipeline_mode<synchronous>, transform_indices = @transform_0, window_bounds = array<i64: 8, 2304>}, {pipeline_mode = #tpu.pipeline_mode<synchronous>, transform_indices = @transform_1, window_bounds = array<i64: 16, 56>}, {pipeline_mode = #tpu.pipeline_mode<synchronous>, transform_indices = @transform_2, window_bounds = array<i64: 16, 2048>}]} {
    %c4 = arith.constant 4 : index
    %c128 = arith.constant 128 : index
    %0 = vector.load %arg1[%c4, %c128] : memref<8x2304xf32, #tpu.memory_space<vmem>>, vector<1x2048xf32>
    %c5 = arith.constant 5 : index
    %c128_0 = arith.constant 128 : index
    %1 = vector.load %arg1[%c5, %c128_0] : memref<8x2304xf32, #tpu.memory_space<vmem>>, vector<1x2048xf32>
    %c6 = arith.constant 6 : index
    %c128_1 = arith.constant 128 : index
    %2 = vector.load %arg1[%c6, %c128_1] : memref<8x2304xf32, #tpu.memory_space<vmem>>, vector<1x2048xf32>
    %c7 = arith.constant 7 : index
    %c128_2 = arith.constant 128 : index
    %3 = vector.load %arg1[%c7, %c128_2] : memref<8x2304xf32, #tpu.memory_space<vmem>>, vector<1x2048xf32>
    %c0 = arith.constant 0 : index
    %c95 = arith.constant 95 : index
    %4 = vector.load %arg1[%c0, %c95] : memref<8x2304xf32, #tpu.memory_space<vmem>>, vector<4x2048xf32>
    %5 = arith.mulf %0, %2 : vector<1x2048xf32>
    %6 = vector.broadcast %5 : vector<1x2048xf32> to vector<4x2048xf32>
    %7 = arith.mulf %4, %6 : vector<4x2048xf32>
    %c0_3 = arith.constant 0 : index
    %c0_4 = arith.constant 0 : index
    %8 = vector.load %arg2[%c0_3, %c0_4] : memref<16x56xf32, #tpu.memory_space<vmem>>, vector<16x4xf32>
    %cst = arith.constant dense<0.000000e+00> : vector<16x2048xf32>
    %9 = tpu.matmul %8, %7, %cst {dimension_numbers = #tpu.dot_dimension_numbers<[1], [0], [0], [1], [0, 0, 1, 1], [], []>} : vector<16x4xf32>, vector<4x2048xf32>, vector<16x2048xf32> -> vector<16x2048xf32>
    %c0_5 = arith.constant 0 : index
    %c96 = arith.constant 96 : index
    %10 = vector.load %arg1[%c0_5, %c96] : memref<8x2304xf32, #tpu.memory_space<vmem>>, vector<4x2048xf32>
    %11 = vector.broadcast %0 : vector<1x2048xf32> to vector<4x2048xf32>
    %12 = arith.mulf %10, %11 : vector<4x2048xf32>
    %c0_6 = arith.constant 0 : index
    %c4_7 = arith.constant 4 : index
    %13 = vector.load %arg2[%c0_6, %c4_7] : memref<16x56xf32, #tpu.memory_space<vmem>>, vector<16x4xf32>
    %cst_8 = arith.constant dense<0.000000e+00> : vector<16x2048xf32>
    %14 = tpu.matmul %13, %12, %cst_8 {dimension_numbers = #tpu.dot_dimension_numbers<[1], [0], [0], [1], [0, 0, 1, 1], [], []>} : vector<16x4xf32>, vector<4x2048xf32>, vector<16x2048xf32> -> vector<16x2048xf32>
    %15 = arith.addf %9, %14 : vector<16x2048xf32>
    %c0_9 = arith.constant 0 : index
    %c97 = arith.constant 97 : index
    %16 = vector.load %arg1[%c0_9, %c97] : memref<8x2304xf32, #tpu.memory_space<vmem>>, vector<4x2048xf32>
    %17 = arith.mulf %0, %3 : vector<1x2048xf32>
    %18 = vector.broadcast %17 : vector<1x2048xf32> to vector<4x2048xf32>
    %19 = arith.mulf %16, %18 : vector<4x2048xf32>
    %c0_10 = arith.constant 0 : index
    %c8 = arith.constant 8 : index
    %20 = vector.load %arg2[%c0_10, %c8] : memref<16x56xf32, #tpu.memory_space<vmem>>, vector<16x4xf32>
    %cst_11 = arith.constant dense<0.000000e+00> : vector<16x2048xf32>
    %21 = tpu.matmul %20, %19, %cst_11 {dimension_numbers = #tpu.dot_dimension_numbers<[1], [0], [0], [1], [0, 0, 1, 1], [], []>} : vector<16x4xf32>, vector<4x2048xf32>, vector<16x2048xf32> -> vector<16x2048xf32>
    %22 = arith.addf %15, %21 : vector<16x2048xf32>
    %c0_12 = arith.constant 0 : index
    %c127 = arith.constant 127 : index
    %23 = vector.load %arg1[%c0_12, %c127] : memref<8x2304xf32, #tpu.memory_space<vmem>>, vector<4x2048xf32>
    %24 = vector.broadcast %2 : vector<1x2048xf32> to vector<4x2048xf32>
    %25 = arith.mulf %23, %24 : vector<4x2048xf32>
    %c0_13 = arith.constant 0 : index
    %c12 = arith.constant 12 : index
    %26 = vector.load %arg2[%c0_13, %c12] : memref<16x56xf32, #tpu.memory_space<vmem>>, vector<16x4xf32>
    %cst_14 = arith.constant dense<0.000000e+00> : vector<16x2048xf32>
    %27 = tpu.matmul %26, %25, %cst_14 {dimension_numbers = #tpu.dot_dimension_numbers<[1], [0], [0], [1], [0, 0, 1, 1], [], []>} : vector<16x4xf32>, vector<4x2048xf32>, vector<16x2048xf32> -> vector<16x2048xf32>
    %28 = arith.addf %22, %27 : vector<16x2048xf32>
    %c0_15 = arith.constant 0 : index
    %c128_16 = arith.constant 128 : index
    %29 = vector.load %arg1[%c0_15, %c128_16] : memref<8x2304xf32, #tpu.memory_space<vmem>>, vector<4x2048xf32>
    %c0_17 = arith.constant 0 : index
    %c16 = arith.constant 16 : index
    %30 = vector.load %arg2[%c0_17, %c16] : memref<16x56xf32, #tpu.memory_space<vmem>>, vector<16x4xf32>
    %cst_18 = arith.constant dense<0.000000e+00> : vector<16x2048xf32>
    %31 = tpu.matmul %30, %29, %cst_18 {dimension_numbers = #tpu.dot_dimension_numbers<[1], [0], [0], [1], [0, 0, 1, 1], [], []>} : vector<16x4xf32>, vector<4x2048xf32>, vector<16x2048xf32> -> vector<16x2048xf32>
    %32 = arith.addf %28, %31 : vector<16x2048xf32>
    %c0_19 = arith.constant 0 : index
    %c129 = arith.constant 129 : index
    %33 = vector.load %arg1[%c0_19, %c129] : memref<8x2304xf32, #tpu.memory_space<vmem>>, vector<4x2048xf32>
    %34 = vector.broadcast %3 : vector<1x2048xf32> to vector<4x2048xf32>
    %35 = arith.mulf %33, %34 : vector<4x2048xf32>
    %c0_20 = arith.constant 0 : index
    %c20 = arith.constant 20 : index
    %36 = vector.load %arg2[%c0_20, %c20] : memref<16x56xf32, #tpu.memory_space<vmem>>, vector<16x4xf32>
    %cst_21 = arith.constant dense<0.000000e+00> : vector<16x2048xf32>
    %37 = tpu.matmul %36, %35, %cst_21 {dimension_numbers = #tpu.dot_dimension_numbers<[1], [0], [0], [1], [0, 0, 1, 1], [], []>} : vector<16x4xf32>, vector<4x2048xf32>, vector<16x2048xf32> -> vector<16x2048xf32>
    %38 = arith.addf %32, %37 : vector<16x2048xf32>
    %c0_22 = arith.constant 0 : index
    %c159 = arith.constant 159 : index
    %39 = vector.load %arg1[%c0_22, %c159] : memref<8x2304xf32, #tpu.memory_space<vmem>>, vector<4x2048xf32>
    %40 = arith.mulf %1, %2 : vector<1x2048xf32>
    %41 = vector.broadcast %40 : vector<1x2048xf32> to vector<4x2048xf32>
    %42 = arith.mulf %39, %41 : vector<4x2048xf32>
    %c0_23 = arith.constant 0 : index
    %c24 = arith.constant 24 : index
    %43 = vector.load %arg2[%c0_23, %c24] : memref<16x56xf32, #tpu.memory_space<vmem>>, vector<16x4xf32>
    %cst_24 = arith.constant dense<0.000000e+00> : vector<16x2048xf32>
    %44 = tpu.matmul %43, %42, %cst_24 {dimension_numbers = #tpu.dot_dimension_numbers<[1], [0], [0], [1], [0, 0, 1, 1], [], []>} : vector<16x4xf32>, vector<4x2048xf32>, vector<16x2048xf32> -> vector<16x2048xf32>
    %45 = arith.addf %38, %44 : vector<16x2048xf32>
    %c0_25 = arith.constant 0 : index
    %c160 = arith.constant 160 : index
    %46 = vector.load %arg1[%c0_25, %c160] : memref<8x2304xf32, #tpu.memory_space<vmem>>, vector<4x2048xf32>
    %47 = vector.broadcast %1 : vector<1x2048xf32> to vector<4x2048xf32>
    %48 = arith.mulf %46, %47 : vector<4x2048xf32>
    %c0_26 = arith.constant 0 : index
    %c28 = arith.constant 28 : index
    %49 = vector.load %arg2[%c0_26, %c28] : memref<16x56xf32, #tpu.memory_space<vmem>>, vector<16x4xf32>
    %cst_27 = arith.constant dense<0.000000e+00> : vector<16x2048xf32>
    %50 = tpu.matmul %49, %48, %cst_27 {dimension_numbers = #tpu.dot_dimension_numbers<[1], [0], [0], [1], [0, 0, 1, 1], [], []>} : vector<16x4xf32>, vector<4x2048xf32>, vector<16x2048xf32> -> vector<16x2048xf32>
    %51 = arith.addf %45, %50 : vector<16x2048xf32>
    %c0_28 = arith.constant 0 : index
    %c161 = arith.constant 161 : index
    %52 = vector.load %arg1[%c0_28, %c161] : memref<8x2304xf32, #tpu.memory_space<vmem>>, vector<4x2048xf32>
    %53 = arith.mulf %1, %3 : vector<1x2048xf32>
    %54 = vector.broadcast %53 : vector<1x2048xf32> to vector<4x2048xf32>
    %55 = arith.mulf %52, %54 : vector<4x2048xf32>
    %c0_29 = arith.constant 0 : index
    %c32 = arith.constant 32 : index
    %56 = vector.load %arg2[%c0_29, %c32] : memref<16x56xf32, #tpu.memory_space<vmem>>, vector<16x4xf32>
    %cst_30 = arith.constant dense<0.000000e+00> : vector<16x2048xf32>
    %57 = tpu.matmul %56, %55, %cst_30 {dimension_numbers = #tpu.dot_dimension_numbers<[1], [0], [0], [1], [0, 0, 1, 1], [], []>} : vector<16x4xf32>, vector<4x2048xf32>, vector<16x2048xf32> -> vector<16x2048xf32>
    %58 = arith.addf %51, %57 : vector<16x2048xf32>
    %c0_31 = arith.constant 0 : index
    %c36 = arith.constant 36 : index
    %59 = vector.load %arg2[%c0_31, %c36] : memref<16x56xf32, #tpu.memory_space<vmem>>, vector<16x1xf32>
    %c0_32 = arith.constant 0 : index
    %c37 = arith.constant 37 : index
    %60 = vector.load %arg2[%c0_32, %c37] : memref<16x56xf32, #tpu.memory_space<vmem>>, vector<16x1xf32>
    %c0_33 = arith.constant 0 : index
    %c38 = arith.constant 38 : index
    %61 = vector.load %arg2[%c0_33, %c38] : memref<16x56xf32, #tpu.memory_space<vmem>>, vector<16x1xf32>
    %c0_34 = arith.constant 0 : index
    %c39 = arith.constant 39 : index
    %62 = vector.load %arg2[%c0_34, %c39] : memref<16x56xf32, #tpu.memory_space<vmem>>, vector<16x1xf32>
    %c0_35 = arith.constant 0 : index
    %c40 = arith.constant 40 : index
    %63 = vector.load %arg2[%c0_35, %c40] : memref<16x56xf32, #tpu.memory_space<vmem>>, vector<16x16xf32>
    %cst_36 = arith.constant dense<0.000000e+00> : vector<16xf32>
    %64 = vector.multi_reduction <add>, %58, %cst_36 [1] : vector<16x2048xf32> to vector<16xf32>
    %65 = vector.shape_cast %64 : vector<16xf32> to vector<16x1xf32>
    %cst_37 = arith.constant 4.8828125E-4 : f32
    %66 = vector.broadcast %cst_37 : f32 to vector<16x1xf32>
    %67 = arith.mulf %65, %66 : vector<16x1xf32>
    %68 = arith.mulf %58, %58 : vector<16x2048xf32>
    %cst_38 = arith.constant dense<0.000000e+00> : vector<16xf32>
    %69 = vector.multi_reduction <add>, %68, %cst_38 [1] : vector<16x2048xf32> to vector<16xf32>
    %70 = vector.shape_cast %69 : vector<16xf32> to vector<16x1xf32>
    %cst_39 = arith.constant 4.8828125E-4 : f32
    %71 = vector.broadcast %cst_39 : f32 to vector<16x1xf32>
    %72 = arith.mulf %70, %71 : vector<16x1xf32>
    %73 = arith.mulf %67, %67 : vector<16x1xf32>
    %74 = arith.subf %72, %73 : vector<16x1xf32>
    %cst_40 = arith.constant 0.000000e+00 : f32
    %75 = vector.broadcast %cst_40 : f32 to vector<16x1xf32>
    %76 = arith.maximumf %74, %75 : vector<16x1xf32>
    %cst_41 = arith.constant 9.99999974E-6 : f32
    %77 = vector.broadcast %cst_41 : f32 to vector<16x1xf32>
    %78 = arith.addf %76, %77 : vector<16x1xf32>
    %79 = math.rsqrt %78 : vector<16x1xf32>
    %80 = arith.mulf %59, %79 : vector<16x1xf32>
    %81 = arith.mulf %67, %80 : vector<16x1xf32>
    %82 = arith.subf %60, %81 : vector<16x1xf32>
    %83 = vector.broadcast %80 : vector<16x1xf32> to vector<16x2048xf32>
    %84 = arith.mulf %58, %83 : vector<16x2048xf32>
    %85 = vector.broadcast %82 : vector<16x1xf32> to vector<16x2048xf32>
    %86 = arith.addf %84, %85 : vector<16x2048xf32>
    %cst_42 = arith.constant 0.000000e+00 : f32
    %87 = vector.broadcast %cst_42 : f32 to vector<16x2048xf32>
    %88 = arith.maximumf %86, %87 : vector<16x2048xf32>
    %cst_43 = arith.constant dense<0.000000e+00> : vector<16xf32>
    %89 = vector.multi_reduction <add>, %88, %cst_43 [1] : vector<16x2048xf32> to vector<16xf32>
    %90 = vector.shape_cast %89 : vector<16xf32> to vector<16x1xf32>
    %91 = arith.mulf %88, %88 : vector<16x2048xf32>
    %cst_44 = arith.constant dense<0.000000e+00> : vector<16xf32>
    %92 = vector.multi_reduction <add>, %91, %cst_44 [1] : vector<16x2048xf32> to vector<16xf32>
    %93 = vector.shape_cast %92 : vector<16xf32> to vector<16x1xf32>
    %cst_45 = arith.constant dense<0.000000e+00> : vector<16x1xf32>
    %94 = tpu.matmul %63, %90, %cst_45 {dimension_numbers = #tpu.dot_dimension_numbers<[1], [0], [0], [1], [0, 0, 1, 1], [], []>} : vector<16x16xf32>, vector<16x1xf32>, vector<16x1xf32> -> vector<16x1xf32>
    %cst_46 = arith.constant dense<0.000000e+00> : vector<16x1xf32>
    %95 = tpu.matmul %63, %93, %cst_46 {dimension_numbers = #tpu.dot_dimension_numbers<[1], [0], [0], [1], [0, 0, 1, 1], [], []>} : vector<16x16xf32>, vector<16x1xf32>, vector<16x1xf32> -> vector<16x1xf32>
    %96 = arith.mulf %94, %94 : vector<16x1xf32>
    %97 = arith.subf %95, %96 : vector<16x1xf32>
    %cst_47 = arith.constant 0.000000e+00 : f32
    %98 = vector.broadcast %cst_47 : f32 to vector<16x1xf32>
    %99 = arith.maximumf %97, %98 : vector<16x1xf32>
    %cst_48 = arith.constant 9.99999974E-6 : f32
    %100 = vector.broadcast %cst_48 : f32 to vector<16x1xf32>
    %101 = arith.addf %99, %100 : vector<16x1xf32>
    %102 = math.rsqrt %101 : vector<16x1xf32>
    %103 = arith.mulf %61, %102 : vector<16x1xf32>
    %104 = arith.mulf %94, %103 : vector<16x1xf32>
    %105 = arith.subf %62, %104 : vector<16x1xf32>
    %106 = vector.broadcast %103 : vector<16x1xf32> to vector<16x2048xf32>
    %107 = arith.mulf %88, %106 : vector<16x2048xf32>
    %108 = vector.broadcast %105 : vector<16x1xf32> to vector<16x2048xf32>
    %109 = arith.addf %107, %108 : vector<16x2048xf32>
    %cst_49 = arith.constant 0.000000e+00 : f32
    %110 = vector.broadcast %cst_49 : f32 to vector<16x2048xf32>
    %111 = arith.maximumf %109, %110 : vector<16x2048xf32>
    %c0_50 = arith.constant 0 : index
    %c0_51 = arith.constant 0 : index
    %112 = vector.load %arg3[%c0_50, %c0_51] : memref<16x2048xf32, #tpu.memory_space<vmem>>, vector<16x2048xf32>
    tpu.vector_store %arg3[%c0_50, %c0_51], %111 {strides = array<i32>} : memref<16x2048xf32, #tpu.memory_space<vmem>>, vector<16x2048xf32>,
    return
  }
  func.func @transform_0(%arg0: i32) -> (i32, i32) {
    %c0_i32 = arith.constant 0 : i32
    %c0_i32_0 = arith.constant 0 : i32
    %c0_i32_1 = arith.constant 0 : i32
    return %c0_i32, %c0_i32_0 : i32, i32
  }
  func.func @transform_1(%arg0: i32) -> (i32, i32) {
    %c0_i32 = arith.constant 0 : i32
    %c0_i32_0 = arith.constant 0 : i32
    %c0_i32_1 = arith.constant 0 : i32
    return %c0_i32, %c0_i32_0 : i32, i32
  }
  func.func @transform_2(%arg0: i32) -> (i32, i32) {
    %c0_i32 = arith.constant 0 : i32
    %c0_i32_0 = arith.constant 0 : i32
    %c0_i32_1 = arith.constant 0 : i32
    return %c0_i32, %c0_i32_0 : i32, i32
  }
}

</mosaic_0001>

<llo_original>
// kernel: conv_pixel_shuf_forward.2
$region0: #{conv_pixel_shuf_forward.2}
  #allocation0 [shape = 'u32[]', space=smem, size = 0x4, offset = 0x4, fixed_abs, tag = 'smem constant byte address 0x4 - core index']
  #allocation1 [shape = 'u32[72,128]{1,0:T(1,128)}', space=vmem, size = 0x9000, scoped, tag = 'internal scratch']
  %s0 = inlined_call_operand.vmem [shape: f32[8,768], index: 0, kind: input, shape index: {}]
  %s1 = inlined_call_operand.vmem [shape: f32[16,56], index: 1, kind: input, shape index: {}]
  %s2 = inlined_call_operand.vmem [shape: f32[16,512], index: 2, kind: output, shape index: {}]
  %s3 = sld [smem:[#allocation0]]
  $region18: #{conv_pixel_shuf_forward.2} parent=0
    _
  %s5 = ssub.s32 1, %s3
  %s6 = scalar_select 0, %s5, %s3
  // Predicated region
  $region2: #{conv_pixel_shuf_forward.2} parent=0 // pred_check
    _
  $region3: #{conv_pixel_shuf_forward.2} parent=0 // pred_check_branch
    %8 = sbr.rel (0) target = $region5
  $region4: #{conv_pixel_shuf_forward.2} parent=0 // pred_region
    _
  $region5: #{conv_pixel_shuf_forward.2} parent=0 // pred_fallthru
    _
  // Predicated region
  $region6: #{conv_pixel_shuf_forward.2} parent=0 // pred_check
    _
  $region7: #{conv_pixel_shuf_forward.2} parent=0 // pred_check_branch
    %10 = sbr.rel (0) target = $region9
  $region8: #{conv_pixel_shuf_forward.2} parent=0 // pred_region
    _
  $region9: #{conv_pixel_shuf_forward.2} parent=0 // pred_fallthru
    _
  %s11 = scalar_lea.vmem %s0, 12
  %v12 = vld [vmem:[%s11] ss:$8 sm:$0xf]
  %s13 = scalar_lea.vmem %s0, 13
  %v14 = vld [vmem:[%s13] ss:$8 sm:$0xf]
  %s15 = scalar_lea.vmem %s0, 14
  %v16 = vld [vmem:[%s15] ss:$8 sm:$0xf]
  %s17 = scalar_lea.vmem %s0, 15
  %v18 = vld [vmem:[%s17] ss:$8 sm:$0xf]
  %v19 = vld [vmem:[%s0] sm:$0xf]
  %v20 = vld [vmem:[%s0 + $0x8] sm:$0xf]
  %v21 = vld [vmem:[%s0 + $0x10] sm:$0xf]
  %v22 = vld [vmem:[%s0 + $0x18] sm:$0xf]
  %v23 = vld [vmem:[%s0 + $0x20] sm:$0xf]
  %v24 = vmul.f32 %v12, %v16
  %v26 = vperm.slane %v24, 0
  %v27 = vperm.slane %v24, 1
  %v28 = vperm.slane %v24, 2
  %v29 = vperm.slane %v24, 3
  %30 = vrot.lane.b32.xlu0 %v26, 111
  %v31 = vpop.permute.xlu0 %30
  %32 = vrot.lane.b32.xlu0 %v27, 111
  %v33 = vpop.permute.xlu0 %32
  %34 = vrot.lane.b32.xlu0 %v28, 111
  %v35 = vpop.permute.xlu0 %34
  %36 = vrot.lane.b32.xlu0 %v29, 111
  %v37 = vpop.permute.xlu0 %36
  %vm38 = vcmask 908288
  %v39 = vsel %vm38, %v31, %v33
  %v40 = vsel %vm38, %v33, %v35
  %v41 = vsel %vm38, %v35, %v37
  %v47 = vmul.f32 %v19, %v31
  %v48 = vmul.f32 %v20, %v39
  %v49 = vmul.f32 %v21, %v40
  %v50 = vmul.f32 %v22, %v41
  %v51 = vmul.f32 %v23, %v37
  %v52 = vld [vmem:[%s1] sm:$0xff]
  %v53 = vld [vmem:[%s1 + $0x8] sm:$0xff]
  %v55 = vperm.slane %v12, 0
  %v56 = vperm.slane %v12, 1
  %v57 = vperm.slane %v12, 2
  %v58 = vperm.slane %v12, 3
  %59 = vrot.lane.b32.xlu0 %v55, 112
  %v60 = vpop.permute.xlu0 %59
  %61 = vrot.lane.b32.xlu0 %v56, 112
  %v62 = vpop.permute.xlu0 %61
  %63 = vrot.lane.b32.xlu0 %v57, 112
  %v64 = vpop.permute.xlu0 %63
  %65 = vrot.lane.b32.xlu0 %v58, 112
  %v66 = vpop.permute.xlu0 %65
  %vm67 = vcmask 916480
  %v68 = vsel %vm67, %v60, %v62
  %v69 = vsel %vm67, %v62, %v64
  %v70 = vsel %vm67, %v64, %v66
  %v76 = vmul.f32 %v19, %v60
  %v77 = vmul.f32 %v20, %v68
  %v78 = vmul.f32 %v21, %v69
  %v79 = vmul.f32 %v22, %v70
  %v80 = vmul.f32 %v23, %v66
  %83 = vrot.lane.b32.xlu0 %v52, 124
  %v84 = vpop.permute.xlu0 %83
  %85 = vrot.lane.b32.xlu0 %v53, 124
  %v86 = vpop.permute.xlu0 %85
  %92 = vrot.lane.b32.xlu0 %v76, 16
  %v93 = vpop.permute.xlu0 %92
  %94 = vrot.lane.b32.xlu0 %v77, 16
  %v95 = vpop.permute.xlu0 %94
  %96 = vrot.lane.b32.xlu0 %v78, 16
  %v97 = vpop.permute.xlu0 %96
  %98 = vrot.lane.b32.xlu0 %v79, 16
  %v99 = vpop.permute.xlu0 %98
  %100 = vrot.lane.b32.xlu0 %v80, 16
  %v101 = vpop.permute.xlu0 %100
  %vm102 = vcmask 130048
  %v103 = vsel %vm102, %v93, %v95
  %v104 = vsel %vm102, %v95, %v97
  %v105 = vsel %vm102, %v97, %v99
  %v106 = vsel %vm102, %v99, %v101
  %vm107 = vcmask 31744
  %v108 = vsel %vm107, %v84, 0
  %v110 = vsel %vm107, %v86, 0
  %vm112 = vcmask 1043456
  %v113 = vsel %vm112, %v103, 0
  %v115 = vsel %vm112, %v104, 0
  %v117 = vsel %vm112, %v105, 0
  %v119 = vsel %vm112, %v106, 0
  %121 = vmatpush.msra.mxu0 0.0
  %122 = vmatpush.msra.mxu0 0.0
  %123 = vmatpush.msra.mxu0 0.0
  %124 = vmatpush.msra.mxu0 0.0
  %125 = vmatpush.msra.mxu0 0.0
  %126 = vmatpush.msra.mxu0 0.0
  %127 = vmatpush.msra.mxu0 0.0
  %128 = vmatpush.msra.mxu0 0.0
  %129 = vmatpush.msra.mxu0 0.0
  %130 = vmatpush.msra.mxu0 0.0
  %131 = vmatpush.msra.mxu0 0.0
  %132 = vmatpush.msra.mxu0 0.0
  %133 = vmatpush.msra.mxu0 0.0
  %134 = vmatpush.msra.mxu0 0.0
  %135 = vmatpush.msra.mxu0 0.0
  %136 = vmatpush.msra.mxu0 %v113
  %137 = vmatmul.f32.gmra.mxu0 %v108
  %v138 = vpop.f32.mrf.mxu0
  %v139 = vadd.f32 0.0, %v138
  %140 = vmatmul.f32.gmra.mxu0 %v110
  %v141 = vpop.f32.mrf.mxu0
  %v142 = vadd.f32 0.0, %v141
  %143 = vdwg.mxu0
  %144 = vmatpush.msra.mxu0 0.0
  %145 = vmatpush.msra.mxu0 0.0
  %146 = vmatpush.msra.mxu0 0.0
  %147 = vmatpush.msra.mxu0 0.0
  %148 = vmatpush.msra.mxu0 0.0
  %149 = vmatpush.msra.mxu0 0.0
  %150 = vmatpush.msra.mxu0 0.0
  %151 = vmatpush.msra.mxu0 0.0
  %152 = vmatpush.msra.mxu0 0.0
  %153 = vmatpush.msra.mxu0 0.0
  %154 = vmatpush.msra.mxu0 0.0
  %155 = vmatpush.msra.mxu0 0.0
  %156 = vmatpush.msra.mxu0 0.0
  %157 = vmatpush.msra.mxu0 0.0
  %158 = vmatpush.msra.mxu0 0.0
  %159 = vmatpush.msra.mxu0 %v115
  %160 = vmatmul.f32.gmra.mxu0 %v108
  %v161 = vpop.f32.mrf.mxu0
  %v162 = vadd.f32 0.0, %v161
  %163 = vmatmul.f32.gmra.mxu0 %v110
  %v164 = vpop.f32.mrf.mxu0
  %v165 = vadd.f32 0.0, %v164
  %166 = vdwg.mxu0
  %167 = vmatpush.msra.mxu0 0.0
  %168 = vmatpush.msra.mxu0 0.0
  %169 = vmatpush.msra.mxu0 0.0
  %170 = vmatpush.msra.mxu0 0.0
  %171 = vmatpush.msra.mxu0 0.0
  %172 = vmatpush.msra.mxu0 0.0
  %173 = vmatpush.msra.mxu0 0.0
  %174 = vmatpush.msra.mxu0 0.0
  %175 = vmatpush.msra.mxu0 0.0
  %176 = vmatpush.msra.mxu0 0.0
  %177 = vmatpush.msra.mxu0 0.0
  %178 = vmatpush.msra.mxu0 0.0
  %179 = vmatpush.msra.mxu0 0.0
  %180 = vmatpush.msra.mxu0 0.0
  %181 = vmatpush.msra.mxu0 0.0
  %182 = vmatpush.msra.mxu0 %v117
  %183 = vmatmul.f32.gmra.mxu0 %v108
  %v184 = vpop.f32.mrf.mxu0
  %v185 = vadd.f32 0.0, %v184
  %186 = vmatmul.f32.gmra.mxu0 %v110
  %v187 = vpop.f32.mrf.mxu0
  %v188 = vadd.f32 0.0, %v187
  %189 = vdwg.mxu0
  %190 = vmatpush.msra.mxu0 0.0
  %191 = vmatpush.msra.mxu0 0.0
  %192 = vmatpush.msra.mxu0 0.0
  %193 = vmatpush.msra.mxu0 0.0
  %194 = vmatpush.msra.mxu0 0.0
  %195 = vmatpush.msra.mxu0 0.0
  %196 = vmatpush.msra.mxu0 0.0
  %197 = vmatpush.msra.mxu0 0.0
  %198 = vmatpush.msra.mxu0 0.0
  %199 = vmatpush.msra.mxu0 0.0
  %200 = vmatpush.msra.mxu0 0.0
  %201 = vmatpush.msra.mxu0 0.0
  %202 = vmatpush.msra.mxu0 0.0
  %203 = vmatpush.msra.mxu0 0.0
  %204 = vmatpush.msra.mxu0 0.0
  %205 = vmatpush.msra.mxu0 %v119
  %206 = vmatmul.f32.gmra.mxu0 %v108
  %v207 = vpop.f32.mrf.mxu0
  %v208 = vadd.f32 0.0, %v207
  %209 = vmatmul.f32.gmra.mxu0 %v110
  %v210 = vpop.f32.mrf.mxu0
  %v211 = vadd.f32 0.0, %v210
  %212 = vdwg.mxu0
  %218 = vrot.lane.b32.xlu0 %v47, 17
  %v219 = vpop.permute.xlu0 %218
  %220 = vrot.lane.b32.xlu0 %v48, 17
  %v221 = vpop.permute.xlu0 %220
  %222 = vrot.lane.b32.xlu0 %v49, 17
  %v223 = vpop.permute.xlu0 %222
  %224 = vrot.lane.b32.xlu0 %v50, 17
  %v225 = vpop.permute.xlu0 %224
  %226 = vrot.lane.b32.xlu0 %v51, 17
  %v227 = vpop.permute.xlu0 %226
  %vm228 = vcmask 138240
  %v229 = vsel %vm228, %v219, %v221
  %v230 = vsel %vm228, %v221, %v223
  %v231 = vsel %vm228, %v223, %v225
  %v232 = vsel %vm228, %v225, %v227
  %v233 = vsel %vm107, %v52, 0
  %v235 = vsel %vm107, %v53, 0
  %v237 = vsel %vm112, %v229, 0
  %v239 = vsel %vm112, %v230, 0
  %v241 = vsel %vm112, %v231, 0
  %v243 = vsel %vm112, %v232, 0
  %245 = vmatpush.msra.mxu0 0.0
  %246 = vmatpush.msra.mxu0 0.0
  %247 = vmatpush.msra.mxu0 0.0
  %248 = vmatpush.msra.mxu0 0.0
  %249 = vmatpush.msra.mxu0 0.0
  %250 = vmatpush.msra.mxu0 0.0
  %251 = vmatpush.msra.mxu0 0.0
  %252 = vmatpush.msra.mxu0 0.0
  %253 = vmatpush.msra.mxu0 0.0
  %254 = vmatpush.msra.mxu0 0.0
  %255 = vmatpush.msra.mxu0 0.0
  %256 = vmatpush.msra.mxu0 0.0
  %257 = vmatpush.msra.mxu0 0.0
  %258 = vmatpush.msra.mxu0 0.0
  %259 = vmatpush.msra.mxu0 0.0
  %260 = vmatpush.msra.mxu0 %v237
  %261 = vmatmul.f32.gmra.mxu0 %v233
  %v262 = vpop.f32.mrf.mxu0
  %v263 = vadd.f32 %v139, %v262
  %264 = vmatmul.f32.gmra.mxu0 %v235
  %v265 = vpop.f32.mrf.mxu0
  %v266 = vadd.f32 %v142, %v265
  %267 = vdwg.mxu0
  %268 = vmatpush.msra.mxu0 0.0
  %269 = vmatpush.msra.mxu0 0.0
  %270 = vmatpush.msra.mxu0 0.0
  %271 = vmatpush.msra.mxu0 0.0
  %272 = vmatpush.msra.mxu0 0.0
  %273 = vmatpush.msra.mxu0 0.0
  %274 = vmatpush.msra.mxu0 0.0
  %275 = vmatpush.msra.mxu0 0.0
  %276 = vmatpush.msra.mxu0 0.0
  %277 = vmatpush.msra.mxu0 0.0
  %278 = vmatpush.msra.mxu0 0.0
  %279 = vmatpush.msra.mxu0 0.0
  %280 = vmatpush.msra.mxu0 0.0
  %281 = vmatpush.msra.mxu0 0.0
  %282 = vmatpush.msra.mxu0 0.0
  %283 = vmatpush.msra.mxu0 %v239
  %284 = vmatmul.f32.gmra.mxu0 %v233
  %v285 = vpop.f32.mrf.mxu0
  %v286 = vadd.f32 %v162, %v285
  %287 = vmatmul.f32.gmra.mxu0 %v235
  %v288 = vpop.f32.mrf.mxu0
  %v289 = vadd.f32 %v165, %v288
  %290 = vdwg.mxu0
  %291 = vmatpush.msra.mxu0 0.0
  %292 = vmatpush.msra.mxu0 0.0
  %293 = vmatpush.msra.mxu0 0.0
  %294 = vmatpush.msra.mxu0 0.0
  %295 = vmatpush.msra.mxu0 0.0
  %296 = vmatpush.msra.mxu0 0.0
  %297 = vmatpush.msra.mxu0 0.0
  %298 = vmatpush.msra.mxu0 0.0
  %299 = vmatpush.msra.mxu0 0.0
  %300 = vmatpush.msra.mxu0 0.0
  %301 = vmatpush.msra.mxu0 0.0
  %302 = vmatpush.msra.mxu0 0.0
  %303 = vmatpush.msra.mxu0 0.0
  %304 = vmatpush.msra.mxu0 0.0
  %305 = vmatpush.msra.mxu0 0.0
  %306 = vmatpush.msra.mxu0 %v241
  %307 = vmatmul.f32.gmra.mxu0 %v233
  %v308 = vpop.f32.mrf.mxu0
  %v309 = vadd.f32 %v185, %v308
  %310 = vmatmul.f32.gmra.mxu0 %v235
  %v311 = vpop.f32.mrf.mxu0
  %v312 = vadd.f32 %v188, %v311
  %313 = vdwg.mxu0
  %314 = vmatpush.msra.mxu0 0.0
  %315 = vmatpush.msra.mxu0 0.0
  %316 = vmatpush.msra.mxu0 0.0
  %317 = vmatpush.msra.mxu0 0.0
  %318 = vmatpush.msra.mxu0 0.0
  %319 = vmatpush.msra.mxu0 0.0
  %320 = vmatpush.msra.mxu0 0.0
  %321 = vmatpush.msra.mxu0 0.0
  %322 = vmatpush.msra.mxu0 0.0
  %323 = vmatpush.msra.mxu0 0.0
  %324 = vmatpush.msra.mxu0 0.0
  %325 = vmatpush.msra.mxu0 0.0
  %326 = vmatpush.msra.mxu0 0.0
  %327 = vmatpush.msra.mxu0 0.0
  %328 = vmatpush.msra.mxu0 0.0
  %329 = vmatpush.msra.mxu0 %v243
  %330 = vmatmul.f32.gmra.mxu0 %v233
  %v331 = vpop.f32.mrf.mxu0
  %v332 = vadd.f32 %v208, %v331
  %333 = vmatmul.f32.gmra.mxu0 %v235
  %v334 = vpop.f32.mrf.mxu0
  %v335 = vadd.f32 %v211, %v334
  %336 = vdwg.mxu0
  %v337 = vmul.f32 %v12, %v18
  %v339 = vperm.slane %v337, 0
  %v340 = vperm.slane %v337, 1
  %v341 = vperm.slane %v337, 2
  %v342 = vperm.slane %v337, 3
  %343 = vrot.lane.b32.xlu0 %v339, 113
  %v344 = vpop.permute.xlu0 %343
  %345 = vrot.lane.b32.xlu0 %v340, 113
  %v346 = vpop.permute.xlu0 %345
  %347 = vrot.lane.b32.xlu0 %v341, 113
  %v348 = vpop.permute.xlu0 %347
  %349 = vrot.lane.b32.xlu0 %v342, 113
  %v350 = vpop.permute.xlu0 %349
  %vm351 = vcmask 924672
  %v352 = vsel %vm351, %v344, %v346
  %v353 = vsel %vm351, %v346, %v348
  %v354 = vsel %vm351, %v348, %v350
  %v360 = vmul.f32 %v19, %v344
  %v361 = vmul.f32 %v20, %v352
  %v362 = vmul.f32 %v21, %v353
  %v363 = vmul.f32 %v22, %v354
  %v364 = vmul.f32 %v23, %v350
  %365 = vrot.lane.b32.xlu0 %v52, 120
  %v366 = vpop.permute.xlu0 %365
  %367 = vrot.lane.b32.xlu0 %v53, 120
  %v368 = vpop.permute.xlu0 %367
  %374 = vrot.lane.b32.xlu0 %v360, 15
  %v375 = vpop.permute.xlu0 %374
  %376 = vrot.lane.b32.xlu0 %v361, 15
  %v377 = vpop.permute.xlu0 %376
  %378 = vrot.lane.b32.xlu0 %v362, 15
  %v379 = vpop.permute.xlu0 %378
  %380 = vrot.lane.b32.xlu0 %v363, 15
  %v381 = vpop.permute.xlu0 %380
  %382 = vrot.lane.b32.xlu0 %v364, 15
  %v383 = vpop.permute.xlu0 %382
  %vm384 = vcmask 121856
  %v385 = vsel %vm384, %v375, %v377
  %v386 = vsel %vm384, %v377, %v379
  %v387 = vsel %vm384, %v379, %v381
  %v388 = vsel %vm384, %v381, %v383
  %v389 = vsel %vm107, %v366, 0
  %v391 = vsel %vm107, %v368, 0
  %v393 = vsel %vm112, %v385, 0
  %v395 = vsel %vm112, %v386, 0
  %v397 = vsel %vm112, %v387, 0
  %v399 = vsel %vm112, %v388, 0
  %401 = vmatpush.msra.mxu0 0.0
  %402 = vmatpush.msra.mxu0 0.0
  %403 = vmatpush.msra.mxu0 0.0
  %404 = vmatpush.msra.mxu0 0.0
  %405 = vmatpush.msra.mxu0 0.0
  %406 = vmatpush.msra.mxu0 0.0
  %407 = vmatpush.msra.mxu0 0.0
  %408 = vmatpush.msra.mxu0 0.0
  %409 = vmatpush.msra.mxu0 0.0
  %410 = vmatpush.msra.mxu0 0.0
  %411 = vmatpush.msra.mxu0 0.0
  %412 = vmatpush.msra.mxu0 0.0
  %413 = vmatpush.msra.mxu0 0.0
  %414 = vmatpush.msra.mxu0 0.0
  %415 = vmatpush.msra.mxu0 0.0
  %416 = vmatpush.msra.mxu0 %v393
  %417 = vmatmul.f32.gmra.mxu0 %v389
  %v418 = vpop.f32.mrf.mxu0
  %v419 = vadd.f32 0.0, %v418
  %420 = vmatmul.f32.gmra.mxu0 %v391
  %v421 = vpop.f32.mrf.mxu0
  %v422 = vadd.f32 0.0, %v421
  %423 = vdwg.mxu0
  %424 = vmatpush.msra.mxu0 0.0
  %425 = vmatpush.msra.mxu0 0.0
  %426 = vmatpush.msra.mxu0 0.0
  %427 = vmatpush.msra.mxu0 0.0
  %428 = vmatpush.msra.mxu0 0.0
  %429 = vmatpush.msra.mxu0 0.0
  %430 = vmatpush.msra.mxu0 0.0
  %431 = vmatpush.msra.mxu0 0.0
  %432 = vmatpush.msra.mxu0 0.0
  %433 = vmatpush.msra.mxu0 0.0
  %434 = vmatpush.msra.mxu0 0.0
  %435 = vmatpush.msra.mxu0 0.0
  %436 = vmatpush.msra.mxu0 0.0
  %437 = vmatpush.msra.mxu0 0.0
  %438 = vmatpush.msra.mxu0 0.0
  %439 = vmatpush.msra.mxu0 %v395
  %440 = vmatmul.f32.gmra.mxu0 %v389
  %v441 = vpop.f32.mrf.mxu0
  %v442 = vadd.f32 0.0, %v441
  %443 = vmatmul.f32.gmra.mxu0 %v391
  %v444 = vpop.f32.mrf.mxu0
  %v445 = vadd.f32 0.0, %v444
  %446 = vdwg.mxu0
  %447 = vmatpush.msra.mxu0 0.0
  %448 = vmatpush.msra.mxu0 0.0
  %449 = vmatpush.msra.mxu0 0.0
  %450 = vmatpush.msra.mxu0 0.0
  %451 = vmatpush.msra.mxu0 0.0
  %452 = vmatpush.msra.mxu0 0.0
  %453 = vmatpush.msra.mxu0 0.0
  %454 = vmatpush.msra.mxu0 0.0
  %455 = vmatpush.msra.mxu0 0.0
  %456 = vmatpush.msra.mxu0 0.0
  %457 = vmatpush.msra.mxu0 0.0
  %458 = vmatpush.msra.mxu0 0.0
  %459 = vmatpush.msra.mxu0 0.0
  %460 = vmatpush.msra.mxu0 0.0
  %461 = vmatpush.msra.mxu0 0.0
  %462 = vmatpush.msra.mxu0 %v397
  %463 = vmatmul.f32.gmra.mxu0 %v389
  %v464 = vpop.f32.mrf.mxu0
  %v465 = vadd.f32 0.0, %v464
  %466 = vmatmul.f32.gmra.mxu0 %v391
  %v467 = vpop.f32.mrf.mxu0
  %v468 = vadd.f32 0.0, %v467
  %469 = vdwg.mxu0
  %470 = vmatpush.msra.mxu0 0.0
  %471 = vmatpush.msra.mxu0 0.0
  %472 = vmatpush.msra.mxu0 0.0
  %473 = vmatpush.msra.mxu0 0.0
  %474 = vmatpush.msra.mxu0 0.0
  %475 = vmatpush.msra.mxu0 0.0
  %476 = vmatpush.msra.mxu0 0.0
  %477 = vmatpush.msra.mxu0 0.0
  %478 = vmatpush.msra.mxu0 0.0
  %479 = vmatpush.msra.mxu0 0.0
  %480 = vmatpush.msra.mxu0 0.0
  %481 = vmatpush.msra.mxu0 0.0
  %482 = vmatpush.msra.mxu0 0.0
  %483 = vmatpush.msra.mxu0 0.0
  %484 = vmatpush.msra.mxu0 0.0
  %485 = vmatpush.msra.mxu0 %v399
  %486 = vmatmul.f32.gmra.mxu0 %v389
  %v487 = vpop.f32.mrf.mxu0
  %v488 = vadd.f32 0.0, %v487
  %489 = vmatmul.f32.gmra.mxu0 %v391
  %v490 = vpop.f32.mrf.mxu0
  %v491 = vadd.f32 0.0, %v490
  %492 = vdwg.mxu0
  %v493 = vadd.f32 %v263, %v419
  %v494 = vadd.f32 %v286, %v442
  %v495 = vadd.f32 %v309, %v465
  %v496 = vadd.f32 %v332, %v488
  %v497 = vadd.f32 %v266, %v422
  %v498 = vadd.f32 %v289, %v445
  %v499 = vadd.f32 %v312, %v468
  %v500 = vadd.f32 %v335, %v491
  %v502 = vperm.slane %v16, 0
  %v503 = vperm.slane %v16, 1
  %v504 = vperm.slane %v16, 2
  %v505 = vperm.slane %v16, 3
  %506 = vrot.lane.b32.xlu0 %v502, 127
  %v507 = vpop.permute.xlu0 %506
  %508 = vrot.lane.b32.xlu0 %v503, 127
  %v509 = vpop.permute.xlu0 %508
  %510 = vrot.lane.b32.xlu0 %v504, 127
  %v511 = vpop.permute.xlu0 %510
  %512 = vrot.lane.b32.xlu0 %v505, 127
  %v513 = vpop.permute.xlu0 %512
  %vm514 = vcmask 1039360
  %v515 = vsel %vm514, %v507, %v509
  %v516 = vsel %vm514, %v509, %v511
  %v517 = vsel %vm514, %v511, %v513
  %v523 = vmul.f32 %v19, %v507
  %v524 = vmul.f32 %v20, %v515
  %v525 = vmul.f32 %v21, %v516
  %v526 = vmul.f32 %v22, %v517
  %v527 = vmul.f32 %v23, %v513
  %528 = vrot.lane.b32.xlu0 %v52, 116
  %v529 = vpop.permute.xlu0 %528
  %530 = vrot.lane.b32.xlu0 %v53, 116
  %v531 = vpop.permute.xlu0 %530
  %537 = vrot.lane.b32.xlu0 %v523, 1
  %v538 = vpop.permute.xlu0 %537
  %539 = vrot.lane.b32.xlu0 %v524, 1
  %v540 = vpop.permute.xlu0 %539
  %541 = vrot.lane.b32.xlu0 %v525, 1
  %v542 = vpop.permute.xlu0 %541
  %543 = vrot.lane.b32.xlu0 %v526, 1
  %v544 = vpop.permute.xlu0 %543
  %545 = vrot.lane.b32.xlu0 %v527, 1
  %v546 = vpop.permute.xlu0 %545
  %vm547 = vcmask 7168
  %v548 = vsel %vm547, %v538, %v540
  %v549 = vsel %vm547, %v540, %v542
  %v550 = vsel %vm547, %v542, %v544
  %v551 = vsel %vm547, %v544, %v546
  %v552 = vsel %vm107, %v529, 0
  %v554 = vsel %vm107, %v531, 0
  %v556 = vsel %vm112, %v548, 0
  %v558 = vsel %vm112, %v549, 0
  %v560 = vsel %vm112, %v550, 0
  %v562 = vsel %vm112, %v551, 0
  %564 = vmatpush.msra.mxu0 0.0
  %565 = vmatpush.msra.mxu0 0.0
  %566 = vmatpush.msra.mxu0 0.0
  %567 = vmatpush.msra.mxu0 0.0
  %568 = vmatpush.msra.mxu0 0.0
  %569 = vmatpush.msra.mxu0 0.0
  %570 = vmatpush.msra.mxu0 0.0
  %571 = vmatpush.msra.mxu0 0.0
  %572 = vmatpush.msra.mxu0 0.0
  %573 = vmatpush.msra.mxu0 0.0
  %574 = vmatpush.msra.mxu0 0.0
  %575 = vmatpush.msra.mxu0 0.0
  %576 = vmatpush.msra.mxu0 0.0
  %577 = vmatpush.msra.mxu0 0.0
  %578 = vmatpush.msra.mxu0 0.0
  %579 = vmatpush.msra.mxu0 %v556
  %580 = vmatmul.f32.gmra.mxu0 %v552
  %v581 = vpop.f32.mrf.mxu0
  %v582 = vadd.f32 0.0, %v581
  %583 = vmatmul.f32.gmra.mxu0 %v554
  %v584 = vpop.f32.mrf.mxu0
  %v585 = vadd.f32 0.0, %v584
  %586 = vdwg.mxu0
  %587 = vmatpush.msra.mxu0 0.0
  %588 = vmatpush.msra.mxu0 0.0
  %589 = vmatpush.msra.mxu0 0.0
  %590 = vmatpush.msra.mxu0 0.0
  %591 = vmatpush.msra.mxu0 0.0
  %592 = vmatpush.msra.mxu0 0.0
  %593 = vmatpush.msra.mxu0 0.0
  %594 = vmatpush.msra.mxu0 0.0
  %595 = vmatpush.msra.mxu0 0.0
  %596 = vmatpush.msra.mxu0 0.0
  %597 = vmatpush.msra.mxu0 0.0
  %598 = vmatpush.msra.mxu0 0.0
  %599 = vmatpush.msra.mxu0 0.0
  %600 = vmatpush.msra.mxu0 0.0
  %601 = vmatpush.msra.mxu0 0.0
  %602 = vmatpush.msra.mxu0 %v558
  %603 = vmatmul.f32.gmra.mxu0 %v552
  %v604 = vpop.f32.mrf.mxu0
  %v605 = vadd.f32 0.0, %v604
  %606 = vmatmul.f32.gmra.mxu0 %v554
  %v607 = vpop.f32.mrf.mxu0
  %v608 = vadd.f32 0.0, %v607
  %609 = vdwg.mxu0
  %610 = vmatpush.msra.mxu0 0.0
  %611 = vmatpush.msra.mxu0 0.0
  %612 = vmatpush.msra.mxu0 0.0
  %613 = vmatpush.msra.mxu0 0.0
  %614 = vmatpush.msra.mxu0 0.0
  %615 = vmatpush.msra.mxu0 0.0
  %616 = vmatpush.msra.mxu0 0.0
  %617 = vmatpush.msra.mxu0 0.0
  %618 = vmatpush.msra.mxu0 0.0
  %619 = vmatpush.msra.mxu0 0.0
  %620 = vmatpush.msra.mxu0 0.0
  %621 = vmatpush.msra.mxu0 0.0
  %622 = vmatpush.msra.mxu0 0.0
  %623 = vmatpush.msra.mxu0 0.0
  %624 = vmatpush.msra.mxu0 0.0
  %625 = vmatpush.msra.mxu0 %v560
  %626 = vmatmul.f32.gmra.mxu0 %v552
  %v627 = vpop.f32.mrf.mxu0
  %v628 = vadd.f32 0.0, %v627
  %629 = vmatmul.f32.gmra.mxu0 %v554
  %v630 = vpop.f32.mrf.mxu0
  %v631 = vadd.f32 0.0, %v630
  %632 = vdwg.mxu0
  %633 = vmatpush.msra.mxu0 0.0
  %634 = vmatpush.msra.mxu0 0.0
  %635 = vmatpush.msra.mxu0 0.0
  %636 = vmatpush.msra.mxu0 0.0
  %637 = vmatpush.msra.mxu0 0.0
  %638 = vmatpush.msra.mxu0 0.0
  %639 = vmatpush.msra.mxu0 0.0
  %640 = vmatpush.msra.mxu0 0.0
  %641 = vmatpush.msra.mxu0 0.0
  %642 = vmatpush.msra.mxu0 0.0
  %643 = vmatpush.msra.mxu0 0.0
  %644 = vmatpush.msra.mxu0 0.0
  %645 = vmatpush.msra.mxu0 0.0
  %646 = vmatpush.msra.mxu0 0.0
  %647 = vmatpush.msra.mxu0 0.0
  %648 = vmatpush.msra.mxu0 %v562
  %649 = vmatmul.f32.gmra.mxu0 %v552
  %v650 = vpop.f32.mrf.mxu0
  %v651 = vadd.f32 0.0, %v650
  %652 = vmatmul.f32.gmra.mxu0 %v554
  %v653 = vpop.f32.mrf.mxu0
  %v654 = vadd.f32 0.0, %v653
  %655 = vdwg.mxu0
  %v656 = vadd.f32 %v493, %v582
  %v657 = vadd.f32 %v494, %v605
  %v658 = vadd.f32 %v495, %v628
  %v659 = vadd.f32 %v496, %v651
  %v660 = vadd.f32 %v497, %v585
  %v661 = vadd.f32 %v498, %v608
  %v662 = vadd.f32 %v499, %v631
  %v663 = vadd.f32 %v500, %v654
  %664 = vrot.lane.b32.xlu0 %v52, 112
  %v665 = vpop.permute.xlu0 %664
  %666 = vrot.lane.b32.xlu0 %v53, 112
  %v667 = vpop.permute.xlu0 %666
  %v668 = vsel %vm107, %v665, 0
  %v670 = vsel %vm107, %v667, 0
  %v673 = vsel %vm112, %v20, 0
  %v676 = vsel %vm112, %v21, 0
  %v679 = vsel %vm112, %v22, 0
  %v682 = vsel %vm112, %v23, 0
  %684 = vmatpush.msra.mxu0 0.0
  %685 = vmatpush.msra.mxu0 0.0
  %686 = vmatpush.msra.mxu0 0.0
  %687 = vmatpush.msra.mxu0 0.0
  %688 = vmatpush.msra.mxu0 0.0
  %689 = vmatpush.msra.mxu0 0.0
  %690 = vmatpush.msra.mxu0 0.0
  %691 = vmatpush.msra.mxu0 0.0
  %692 = vmatpush.msra.mxu0 0.0
  %693 = vmatpush.msra.mxu0 0.0
  %694 = vmatpush.msra.mxu0 0.0
  %695 = vmatpush.msra.mxu0 0.0
  %696 = vmatpush.msra.mxu0 0.0
  %697 = vmatpush.msra.mxu0 0.0
  %698 = vmatpush.msra.mxu0 0.0
  %699 = vmatpush.msra.mxu0 %v673
  %700 = vmatmul.f32.gmra.mxu0 %v668
  %v701 = vpop.f32.mrf.mxu0
  %v702 = vadd.f32 0.0, %v701
  %703 = vmatmul.f32.gmra.mxu0 %v670
  %v704 = vpop.f32.mrf.mxu0
  %v705 = vadd.f32 0.0, %v704
  %706 = vdwg.mxu0
  %707 = vmatpush.msra.mxu0 0.0
  %708 = vmatpush.msra.mxu0 0.0
  %709 = vmatpush.msra.mxu0 0.0
  %710 = vmatpush.msra.mxu0 0.0
  %711 = vmatpush.msra.mxu0 0.0
  %712 = vmatpush.msra.mxu0 0.0
  %713 = vmatpush.msra.mxu0 0.0
  %714 = vmatpush.msra.mxu0 0.0
  %715 = vmatpush.msra.mxu0 0.0
  %716 = vmatpush.msra.mxu0 0.0
  %717 = vmatpush.msra.mxu0 0.0
  %718 = vmatpush.msra.mxu0 0.0
  %719 = vmatpush.msra.mxu0 0.0
  %720 = vmatpush.msra.mxu0 0.0
  %721 = vmatpush.msra.mxu0 0.0
  %722 = vmatpush.msra.mxu0 %v676
  %723 = vmatmul.f32.gmra.mxu0 %v668
  %v724 = vpop.f32.mrf.mxu0
  %v725 = vadd.f32 0.0, %v724
  %726 = vmatmul.f32.gmra.mxu0 %v670
  %v727 = vpop.f32.mrf.mxu0
  %v728 = vadd.f32 0.0, %v727
  %729 = vdwg.mxu0
  %730 = vmatpush.msra.mxu0 0.0
  %731 = vmatpush.msra.mxu0 0.0
  %732 = vmatpush.msra.mxu0 0.0
  %733 = vmatpush.msra.mxu0 0.0
  %734 = vmatpush.msra.mxu0 0.0
  %735 = vmatpush.msra.mxu0 0.0
  %736 = vmatpush.msra.mxu0 0.0
  %737 = vmatpush.msra.mxu0 0.0
  %738 = vmatpush.msra.mxu0 0.0
  %739 = vmatpush.msra.mxu0 0.0
  %740 = vmatpush.msra.mxu0 0.0
  %741 = vmatpush.msra.mxu0 0.0
  %742 = vmatpush.msra.mxu0 0.0
  %743 = vmatpush.msra.mxu0 0.0
  %744 = vmatpush.msra.mxu0 0.0
  %745 = vmatpush.msra.mxu0 %v679
  %746 = vmatmul.f32.gmra.mxu0 %v668
  %v747 = vpop.f32.mrf.mxu0
  %v748 = vadd.f32 0.0, %v747
  %749 = vmatmul.f32.gmra.mxu0 %v670
  %v750 = vpop.f32.mrf.mxu0
  %v751 = vadd.f32 0.0, %v750
  %752 = vdwg.mxu0
  %753 = vmatpush.msra.mxu0 0.0
  %754 = vmatpush.msra.mxu0 0.0
  %755 = vmatpush.msra.mxu0 0.0
  %756 = vmatpush.msra.mxu0 0.0
  %757 = vmatpush.msra.mxu0 0.0
  %758 = vmatpush.msra.mxu0 0.0
  %759 = vmatpush.msra.mxu0 0.0
  %760 = vmatpush.msra.mxu0 0.0
  %761 = vmatpush.msra.mxu0 0.0
  %762 = vmatpush.msra.mxu0 0.0
  %763 = vmatpush.msra.mxu0 0.0
  %764 = vmatpush.msra.mxu0 0.0
  %765 = vmatpush.msra.mxu0 0.0
  %766 = vmatpush.msra.mxu0 0.0
  %767 = vmatpush.msra.mxu0 0.0
  %768 = vmatpush.msra.mxu0 %v682
  %769 = vmatmul.f32.gmra.mxu0 %v668
  %v770 = vpop.f32.mrf.mxu0
  %v771 = vadd.f32 0.0, %v770
  %772 = vmatmul.f32.gmra.mxu0 %v670
  %v773 = vpop.f32.mrf.mxu0
  %v774 = vadd.f32 0.0, %v773
  %775 = vdwg.mxu0
  %v776 = vadd.f32 %v656, %v702
  %v777 = vadd.f32 %v657, %v725
  %v778 = vadd.f32 %v658, %v748
  %v779 = vadd.f32 %v659, %v771
  %v780 = vadd.f32 %v660, %v705
  %v781 = vadd.f32 %v661, %v728
  %v782 = vadd.f32 %v662, %v751
  %v783 = vadd.f32 %v663, %v774
  %v784 = vld [vmem:[%s0 + $0x8] sm:$0xf]
  %v785 = vld [vmem:[%s0 + $0x10] sm:$0xf]
  %v786 = vld [vmem:[%s0 + $0x18] sm:$0xf]
  %v787 = vld [vmem:[%s0 + $0x20] sm:$0xf]
  %v788 = vld [vmem:[%s0 + $0x28] sm:$0xf]
  %v790 = vperm.slane %v18, 0
  %v791 = vperm.slane %v18, 1
  %v792 = vperm.slane %v18, 2
  %v793 = vperm.slane %v18, 3
  %794 = vrot.lane.b32.xlu0 %v790, 1
  %v795 = vpop.permute.xlu0 %794
  %796 = vrot.lane.b32.xlu0 %v791, 1
  %v797 = vpop.permute.xlu0 %796
  %798 = vrot.lane.b32.xlu0 %v792, 1
  %v799 = vpop.permute.xlu0 %798
  %800 = vrot.lane.b32.xlu0 %v793, 1
  %v801 = vpop.permute.xlu0 %800
  %v802 = vsel %vm547, %v795, %v797
  %v803 = vsel %vm547, %v797, %v799
  %v804 = vsel %vm547, %v799, %v801
  %v810 = vmul.f32 %v784, %v795
  %v811 = vmul.f32 %v785, %v802
  %v812 = vmul.f32 %v786, %v803
  %v813 = vmul.f32 %v787, %v804
  %v814 = vmul.f32 %v788, %v801
  %815 = vrot.lane.b32.xlu0 %v52, 108
  %v816 = vpop.permute.xlu0 %815
  %817 = vrot.lane.b32.xlu0 %v53, 108
  %v818 = vpop.permute.xlu0 %817
  %824 = vrot.lane.b32.xlu0 %v810, 127
  %v825 = vpop.permute.xlu0 %824
  %826 = vrot.lane.b32.xlu0 %v811, 127
  %v827 = vpop.permute.xlu0 %826
  %828 = vrot.lane.b32.xlu0 %v812, 127
  %v829 = vpop.permute.xlu0 %828
  %830 = vrot.lane.b32.xlu0 %v813, 127
  %v831 = vpop.permute.xlu0 %830
  %832 = vrot.lane.b32.xlu0 %v814, 127
  %v833 = vpop.permute.xlu0 %832
  %v834 = vsel %vm514, %v825, %v827
  %v835 = vsel %vm514, %v827, %v829
  %v836 = vsel %vm514, %v829, %v831
  %v837 = vsel %vm514, %v831, %v833
  %v838 = vsel %vm107, %v816, 0
  %v840 = vsel %vm107, %v818, 0
  %v842 = vsel %vm112, %v834, 0
  %v844 = vsel %vm112, %v835, 0
  %v846 = vsel %vm112, %v836, 0
  %v848 = vsel %vm112, %v837, 0
  %850 = vmatpush.msra.mxu0 0.0
  %851 = vmatpush.msra.mxu0 0.0
  %852 = vmatpush.msra.mxu0 0.0
  %853 = vmatpush.msra.mxu0 0.0
  %854 = vmatpush.msra.mxu0 0.0
  %855 = vmatpush.msra.mxu0 0.0
  %856 = vmatpush.msra.mxu0 0.0
  %857 = vmatpush.msra.mxu0 0.0
  %858 = vmatpush.msra.mxu0 0.0
  %859 = vmatpush.msra.mxu0 0.0
  %860 = vmatpush.msra.mxu0 0.0
  %861 = vmatpush.msra.mxu0 0.0
  %862 = vmatpush.msra.mxu0 0.0
  %863 = vmatpush.msra.mxu0 0.0
  %864 = vmatpush.msra.mxu0 0.0
  %865 = vmatpush.msra.mxu0 %v842
  %866 = vmatmul.f32.gmra.mxu0 %v838
  %v867 = vpop.f32.mrf.mxu0
  %v868 = vadd.f32 0.0, %v867
  %869 = vmatmul.f32.gmra.mxu0 %v840
  %v870 = vpop.f32.mrf.mxu0
  %v871 = vadd.f32 0.0, %v870
  %872 = vdwg.mxu0
  %873 = vmatpush.msra.mxu0 0.0
  %874 = vmatpush.msra.mxu0 0.0
  %875 = vmatpush.msra.mxu0 0.0
  %876 = vmatpush.msra.mxu0 0.0
  %877 = vmatpush.msra.mxu0 0.0
  %878 = vmatpush.msra.mxu0 0.0
  %879 = vmatpush.msra.mxu0 0.0
  %880 = vmatpush.msra.mxu0 0.0
  %881 = vmatpush.msra.mxu0 0.0
  %882 = vmatpush.msra.mxu0 0.0
  %883 = vmatpush.msra.mxu0 0.0
  %884 = vmatpush.msra.mxu0 0.0
  %885 = vmatpush.msra.mxu0 0.0
  %886 = vmatpush.msra.mxu0 0.0
  %887 = vmatpush.msra.mxu0 0.0
  %888 = vmatpush.msra.mxu0 %v844
  %889 = vmatmul.f32.gmra.mxu0 %v838
  %v890 = vpop.f32.mrf.mxu0
  %v891 = vadd.f32 0.0, %v890
  %892 = vmatmul.f32.gmra.mxu0 %v840
  %v893 = vpop.f32.mrf.mxu0
  %v894 = vadd.f32 0.0, %v893
  %895 = vdwg.mxu0
  %896 = vmatpush.msra.mxu0 0.0
  %897 = vmatpush.msra.mxu0 0.0
  %898 = vmatpush.msra.mxu0 0.0
  %899 = vmatpush.msra.mxu0 0.0
  %900 = vmatpush.msra.mxu0 0.0
  %901 = vmatpush.msra.mxu0 0.0
  %902 = vmatpush.msra.mxu0 0.0
  %903 = vmatpush.msra.mxu0 0.0
  %904 = vmatpush.msra.mxu0 0.0
  %905 = vmatpush.msra.mxu0 0.0
  %906 = vmatpush.msra.mxu0 0.0
  %907 = vmatpush.msra.mxu0 0.0
  %908 = vmatpush.msra.mxu0 0.0
  %909 = vmatpush.msra.mxu0 0.0
  %910 = vmatpush.msra.mxu0 0.0
  %911 = vmatpush.msra.mxu0 %v846
  %912 = vmatmul.f32.gmra.mxu0 %v838
  %v913 = vpop.f32.mrf.mxu0
  %v914 = vadd.f32 0.0, %v913
  %915 = vmatmul.f32.gmra.mxu0 %v840
  %v916 = vpop.f32.mrf.mxu0
  %v917 = vadd.f32 0.0, %v916
  %918 = vdwg.mxu0
  %919 = vmatpush.msra.mxu0 0.0
  %920 = vmatpush.msra.mxu0 0.0
  %921 = vmatpush.msra.mxu0 0.0
  %922 = vmatpush.msra.mxu0 0.0
  %923 = vmatpush.msra.mxu0 0.0
  %924 = vmatpush.msra.mxu0 0.0
  %925 = vmatpush.msra.mxu0 0.0
  %926 = vmatpush.msra.mxu0 0.0
  %927 = vmatpush.msra.mxu0 0.0
  %928 = vmatpush.msra.mxu0 0.0
  %929 = vmatpush.msra.mxu0 0.0
  %930 = vmatpush.msra.mxu0 0.0
  %931 = vmatpush.msra.mxu0 0.0
  %932 = vmatpush.msra.mxu0 0.0
  %933 = vmatpush.msra.mxu0 0.0
  %934 = vmatpush.msra.mxu0 %v848
  %935 = vmatmul.f32.gmra.mxu0 %v838
  %v936 = vpop.f32.mrf.mxu0
  %v937 = vadd.f32 0.0, %v936
  %938 = vmatmul.f32.gmra.mxu0 %v840
  %v939 = vpop.f32.mrf.mxu0
  %v940 = vadd.f32 0.0, %v939
  %941 = vdwg.mxu0
  %v942 = vadd.f32 %v776, %v868
  %v943 = vadd.f32 %v777, %v891
  %v944 = vadd.f32 %v778, %v914
  %v945 = vadd.f32 %v779, %v937
  %v946 = vadd.f32 %v780, %v871
  %v947 = vadd.f32 %v781, %v894
  %v948 = vadd.f32 %v782, %v917
  %v949 = vadd.f32 %v783, %v940
  %v950 = vmul.f32 %v14, %v16
  %v952 = vperm.slane %v950, 0
  %v953 = vperm.slane %v950, 1
  %v954 = vperm.slane %v950, 2
  %v955 = vperm.slane %v950, 3
  %956 = vrot.lane.b32.xlu0 %v952, 15
  %v957 = vpop.permute.xlu0 %956
  %958 = vrot.lane.b32.xlu0 %v953, 15
  %v959 = vpop.permute.xlu0 %958
  %960 = vrot.lane.b32.xlu0 %v954, 15
  %v961 = vpop.permute.xlu0 %960
  %962 = vrot.lane.b32.xlu0 %v955, 15
  %v963 = vpop.permute.xlu0 %962
  %v964 = vsel %vm384, %v957, %v959
  %v965 = vsel %vm384, %v959, %v961
  %v966 = vsel %vm384, %v961, %v963
  %v972 = vmul.f32 %v784, %v957
  %v973 = vmul.f32 %v785, %v964
  %v974 = vmul.f32 %v786, %v965
  %v975 = vmul.f32 %v787, %v966
  %v976 = vmul.f32 %v788, %v963
  %977 = vrot.lane.b32.xlu0 %v52, 104
  %v978 = vpop.permute.xlu0 %977
  %979 = vrot.lane.b32.xlu0 %v53, 104
  %v980 = vpop.permute.xlu0 %979
  %986 = vrot.lane.b32.xlu0 %v972, 113
  %v987 = vpop.permute.xlu0 %986
  %988 = vrot.lane.b32.xlu0 %v973, 113
  %v989 = vpop.permute.xlu0 %988
  %990 = vrot.lane.b32.xlu0 %v974, 113
  %v991 = vpop.permute.xlu0 %990
  %992 = vrot.lane.b32.xlu0 %v975, 113
  %v993 = vpop.permute.xlu0 %992
  %994 = vrot.lane.b32.xlu0 %v976, 113
  %v995 = vpop.permute.xlu0 %994
  %v996 = vsel %vm351, %v987, %v989
  %v997 = vsel %vm351, %v989, %v991
  %v998 = vsel %vm351, %v991, %v993
  %v999 = vsel %vm351, %v993, %v995
  %v1000 = vsel %vm107, %v978, 0
  %v1002 = vsel %vm107, %v980, 0
  %v1004 = vsel %vm112, %v996, 0
  %v1006 = vsel %vm112, %v997, 0
  %v1008 = vsel %vm112, %v998, 0
  %v1010 = vsel %vm112, %v999, 0
  %1012 = vmatpush.msra.mxu0 0.0
  %1013 = vmatpush.msra.mxu0 0.0
  %1014 = vmatpush.msra.mxu0 0.0
  %1015 = vmatpush.msra.mxu0 0.0
  %1016 = vmatpush.msra.mxu0 0.0
  %1017 = vmatpush.msra.mxu0 0.0
  %1018 = vmatpush.msra.mxu0 0.0
  %1019 = vmatpush.msra.mxu0 0.0
  %1020 = vmatpush.msra.mxu0 0.0
  %1021 = vmatpush.msra.mxu0 0.0
  %1022 = vmatpush.msra.mxu0 0.0
  %1023 = vmatpush.msra.mxu0 0.0
  %1024 = vmatpush.msra.mxu0 0.0
  %1025 = vmatpush.msra.mxu0 0.0
  %1026 = vmatpush.msra.mxu0 0.0
  %1027 = vmatpush.msra.mxu0 %v1004
  %1028 = vmatmul.f32.gmra.mxu0 %v1000
  %v1029 = vpop.f32.mrf.mxu0
  %v1030 = vadd.f32 0.0, %v1029
  %1031 = vmatmul.f32.gmra.mxu0 %v1002
  %v1032 = vpop.f32.mrf.mxu0
  %v1033 = vadd.f32 0.0, %v1032
  %1034 = vdwg.mxu0
  %1035 = vmatpush.msra.mxu0 0.0
  %1036 = vmatpush.msra.mxu0 0.0
  %1037 = vmatpush.msra.mxu0 0.0
  %1038 = vmatpush.msra.mxu0 0.0
  %1039 = vmatpush.msra.mxu0 0.0
  %1040 = vmatpush.msra.mxu0 0.0
  %1041 = vmatpush.msra.mxu0 0.0
  %1042 = vmatpush.msra.mxu0 0.0
  %1043 = vmatpush.msra.mxu0 0.0
  %1044 = vmatpush.msra.mxu0 0.0
  %1045 = vmatpush.msra.mxu0 0.0
  %1046 = vmatpush.msra.mxu0 0.0
  %1047 = vmatpush.msra.mxu0 0.0
  %1048 = vmatpush.msra.mxu0 0.0
  %1049 = vmatpush.msra.mxu0 0.0
  %1050 = vmatpush.msra.mxu0 %v1006
  %1051 = vmatmul.f32.gmra.mxu0 %v1000
  %v1052 = vpop.f32.mrf.mxu0
  %v1053 = vadd.f32 0.0, %v1052
  %1054 = vmatmul.f32.gmra.mxu0 %v1002
  %v1055 = vpop.f32.mrf.mxu0
  %v1056 = vadd.f32 0.0, %v1055
  %1057 = vdwg.mxu0
  %1058 = vmatpush.msra.mxu0 0.0
  %1059 = vmatpush.msra.mxu0 0.0
  %1060 = vmatpush.msra.mxu0 0.0
  %1061 = vmatpush.msra.mxu0 0.0
  %1062 = vmatpush.msra.mxu0 0.0
  %1063 = vmatpush.msra.mxu0 0.0
  %1064 = vmatpush.msra.mxu0 0.0
  %1065 = vmatpush.msra.mxu0 0.0
  %1066 = vmatpush.msra.mxu0 0.0
  %1067 = vmatpush.msra.mxu0 0.0
  %1068 = vmatpush.msra.mxu0 0.0
  %1069 = vmatpush.msra.mxu0 0.0
  %1070 = vmatpush.msra.mxu0 0.0
  %1071 = vmatpush.msra.mxu0 0.0
  %1072 = vmatpush.msra.mxu0 0.0
  %1073 = vmatpush.msra.mxu0 %v1008
  %1074 = vmatmul.f32.gmra.mxu0 %v1000
  %v1075 = vpop.f32.mrf.mxu0
  %v1076 = vadd.f32 0.0, %v1075
  %1077 = vmatmul.f32.gmra.mxu0 %v1002
  %v1078 = vpop.f32.mrf.mxu0
  %v1079 = vadd.f32 0.0, %v1078
  %1080 = vdwg.mxu0
  %1081 = vmatpush.msra.mxu0 0.0
  %1082 = vmatpush.msra.mxu0 0.0
  %1083 = vmatpush.msra.mxu0 0.0
  %1084 = vmatpush.msra.mxu0 0.0
  %1085 = vmatpush.msra.mxu0 0.0
  %1086 = vmatpush.msra.mxu0 0.0
  %1087 = vmatpush.msra.mxu0 0.0
  %1088 = vmatpush.msra.mxu0 0.0
  %1089 = vmatpush.msra.mxu0 0.0
  %1090 = vmatpush.msra.mxu0 0.0
  %1091 = vmatpush.msra.mxu0 0.0
  %1092 = vmatpush.msra.mxu0 0.0
  %1093 = vmatpush.msra.mxu0 0.0
  %1094 = vmatpush.msra.mxu0 0.0
  %1095 = vmatpush.msra.mxu0 0.0
  %1096 = vmatpush.msra.mxu0 %v1010
  %1097 = vmatmul.f32.gmra.mxu0 %v1000
  %v1098 = vpop.f32.mrf.mxu0
  %v1099 = vadd.f32 0.0, %v1098
  %1100 = vmatmul.f32.gmra.mxu0 %v1002
  %v1101 = vpop.f32.mrf.mxu0
  %v1102 = vadd.f32 0.0, %v1101
  %1103 = vdwg.mxu0
  %v1104 = vadd.f32 %v942, %v1030
  %v1105 = vadd.f32 %v943, %v1053
  %v1106 = vadd.f32 %v944, %v1076
  %v1107 = vadd.f32 %v945, %v1099
  %v1108 = vadd.f32 %v946, %v1033
  %v1109 = vadd.f32 %v947, %v1056
  %v1110 = vadd.f32 %v948, %v1079
  %v1111 = vadd.f32 %v949, %v1102
  %v1113 = vperm.slane %v14, 0
  %v1114 = vperm.slane %v14, 1
  %v1115 = vperm.slane %v14, 2
  %v1116 = vperm.slane %v14, 3
  %1117 = vrot.lane.b32.xlu0 %v1113, 16
  %v1118 = vpop.permute.xlu0 %1117
  %1119 = vrot.lane.b32.xlu0 %v1114, 16
  %v1120 = vpop.permute.xlu0 %1119
  %1121 = vrot.lane.b32.xlu0 %v1115, 16
  %v1122 = vpop.permute.xlu0 %1121
  %1123 = vrot.lane.b32.xlu0 %v1116, 16
  %v1124 = vpop.permute.xlu0 %1123
  %v1125 = vsel %vm102, %v1118, %v1120
  %v1126 = vsel %vm102, %v1120, %v1122
  %v1127 = vsel %vm102, %v1122, %v1124
  %v1133 = vmul.f32 %v784, %v1118
  %v1134 = vmul.f32 %v785, %v1125
  %v1135 = vmul.f32 %v786, %v1126
  %v1136 = vmul.f32 %v787, %v1127
  %v1137 = vmul.f32 %v788, %v1124
  %1138 = vrot.lane.b32.xlu0 %v52, 100
  %v1139 = vpop.permute.xlu0 %1138
  %1140 = vrot.lane.b32.xlu0 %v53, 100
  %v1141 = vpop.permute.xlu0 %1140
  %1147 = vrot.lane.b32.xlu0 %v1133, 112
  %v1148 = vpop.permute.xlu0 %1147
  %1149 = vrot.lane.b32.xlu0 %v1134, 112
  %v1150 = vpop.permute.xlu0 %1149
  %1151 = vrot.lane.b32.xlu0 %v1135, 112
  %v1152 = vpop.permute.xlu0 %1151
  %1153 = vrot.lane.b32.xlu0 %v1136, 112
  %v1154 = vpop.permute.xlu0 %1153
  %1155 = vrot.lane.b32.xlu0 %v1137, 112
  %v1156 = vpop.permute.xlu0 %1155
  %v1157 = vsel %vm67, %v1148, %v1150
  %v1158 = vsel %vm67, %v1150, %v1152
  %v1159 = vsel %vm67, %v1152, %v1154
  %v1160 = vsel %vm67, %v1154, %v1156
  %v1161 = vsel %vm107, %v1139, 0
  %v1163 = vsel %vm107, %v1141, 0
  %v1165 = vsel %vm112, %v1157, 0
  %v1167 = vsel %vm112, %v1158, 0
  %v1169 = vsel %vm112, %v1159, 0
  %v1171 = vsel %vm112, %v1160, 0
  %1173 = vmatpush.msra.mxu0 0.0
  %1174 = vmatpush.msra.mxu0 0.0
  %1175 = vmatpush.msra.mxu0 0.0
  %1176 = vmatpush.msra.mxu0 0.0
  %1177 = vmatpush.msra.mxu0 0.0
  %1178 = vmatpush.msra.mxu0 0.0
  %1179 = vmatpush.msra.mxu0 0.0
  %1180 = vmatpush.msra.mxu0 0.0
  %1181 = vmatpush.msra.mxu0 0.0
  %1182 = vmatpush.msra.mxu0 0.0
  %1183 = vmatpush.msra.mxu0 0.0
  %1184 = vmatpush.msra.mxu0 0.0
  %1185 = vmatpush.msra.mxu0 0.0
  %1186 = vmatpush.msra.mxu0 0.0
  %1187 = vmatpush.msra.mxu0 0.0
  %1188 = vmatpush.msra.mxu0 %v1165
  %1189 = vmatmul.f32.gmra.mxu0 %v1161
  %v1190 = vpop.f32.mrf.mxu0
  %v1191 = vadd.f32 0.0, %v1190
  %1192 = vmatmul.f32.gmra.mxu0 %v1163
  %v1193 = vpop.f32.mrf.mxu0
  %v1194 = vadd.f32 0.0, %v1193
  %1195 = vdwg.mxu0
  %1196 = vmatpush.msra.mxu0 0.0
  %1197 = vmatpush.msra.mxu0 0.0
  %1198 = vmatpush.msra.mxu0 0.0
  %1199 = vmatpush.msra.mxu0 0.0
  %1200 = vmatpush.msra.mxu0 0.0
  %1201 = vmatpush.msra.mxu0 0.0
  %1202 = vmatpush.msra.mxu0 0.0
  %1203 = vmatpush.msra.mxu0 0.0
  %1204 = vmatpush.msra.mxu0 0.0
  %1205 = vmatpush.msra.mxu0 0.0
  %1206 = vmatpush.msra.mxu0 0.0
  %1207 = vmatpush.msra.mxu0 0.0
  %1208 = vmatpush.msra.mxu0 0.0
  %1209 = vmatpush.msra.mxu0 0.0
  %1210 = vmatpush.msra.mxu0 0.0
  %1211 = vmatpush.msra.mxu0 %v1167
  %1212 = vmatmul.f32.gmra.mxu0 %v1161
  %v1213 = vpop.f32.mrf.mxu0
  %v1214 = vadd.f32 0.0, %v1213
  %1215 = vmatmul.f32.gmra.mxu0 %v1163
  %v1216 = vpop.f32.mrf.mxu0
  %v1217 = vadd.f32 0.0, %v1216
  %1218 = vdwg.mxu0
  %1219 = vmatpush.msra.mxu0 0.0
  %1220 = vmatpush.msra.mxu0 0.0
  %1221 = vmatpush.msra.mxu0 0.0
  %1222 = vmatpush.msra.mxu0 0.0
  %1223 = vmatpush.msra.mxu0 0.0
  %1224 = vmatpush.msra.mxu0 0.0
  %1225 = vmatpush.msra.mxu0 0.0
  %1226 = vmatpush.msra.mxu0 0.0
  %1227 = vmatpush.msra.mxu0 0.0
  %1228 = vmatpush.msra.mxu0 0.0
  %1229 = vmatpush.msra.mxu0 0.0
  %1230 = vmatpush.msra.mxu0 0.0
  %1231 = vmatpush.msra.mxu0 0.0
  %1232 = vmatpush.msra.mxu0 0.0
  %1233 = vmatpush.msra.mxu0 0.0
  %1234 = vmatpush.msra.mxu0 %v1169
  %1235 = vmatmul.f32.gmra.mxu0 %v1161
  %v1236 = vpop.f32.mrf.mxu0
  %v1237 = vadd.f32 0.0, %v1236
  %1238 = vmatmul.f32.gmra.mxu0 %v1163
  %v1239 = vpop.f32.mrf.mxu0
  %v1240 = vadd.f32 0.0, %v1239
  %1241 = vdwg.mxu0
  %1242 = vmatpush.msra.mxu0 0.0
  %1243 = vmatpush.msra.mxu0 0.0
  %1244 = vmatpush.msra.mxu0 0.0
  %1245 = vmatpush.msra.mxu0 0.0
  %1246 = vmatpush.msra.mxu0 0.0
  %1247 = vmatpush.msra.mxu0 0.0
  %1248 = vmatpush.msra.mxu0 0.0
  %1249 = vmatpush.msra.mxu0 0.0
  %1250 = vmatpush.msra.mxu0 0.0
  %1251 = vmatpush.msra.mxu0 0.0
  %1252 = vmatpush.msra.mxu0 0.0
  %1253 = vmatpush.msra.mxu0 0.0
  %1254 = vmatpush.msra.mxu0 0.0
  %1255 = vmatpush.msra.mxu0 0.0
  %1256 = vmatpush.msra.mxu0 0.0
  %1257 = vmatpush.msra.mxu0 %v1171
  %1258 = vmatmul.f32.gmra.mxu0 %v1161
  %v1259 = vpop.f32.mrf.mxu0
  %v1260 = vadd.f32 0.0, %v1259
  %1261 = vmatmul.f32.gmra.mxu0 %v1163
  %v1262 = vpop.f32.mrf.mxu0
  %v1263 = vadd.f32 0.0, %v1262
  %1264 = vdwg.mxu0
  %v1265 = vadd.f32 %v1104, %v1191
  %v1266 = vadd.f32 %v1105, %v1214
  %v1267 = vadd.f32 %v1106, %v1237
  %v1268 = vadd.f32 %v1107, %v1260
  %v1269 = vadd.f32 %v1108, %v1194
  %v1270 = vadd.f32 %v1109, %v1217
  %v1271 = vadd.f32 %v1110, %v1240
  %v1272 = vadd.f32 %v1111, %v1263
  %v1273 = vmul.f32 %v14, %v18
  %v1275 = vperm.slane %v1273, 0
  %v1276 = vperm.slane %v1273, 1
  %v1277 = vperm.slane %v1273, 2
  %v1278 = vperm.slane %v1273, 3
  %1279 = vrot.lane.b32.xlu0 %v1275, 17
  %v1280 = vpop.permute.xlu0 %1279
  %1281 = vrot.lane.b32.xlu0 %v1276, 17
  %v1282 = vpop.permute.xlu0 %1281
  %1283 = vrot.lane.b32.xlu0 %v1277, 17
  %v1284 = vpop.permute.xlu0 %1283
  %1285 = vrot.lane.b32.xlu0 %v1278, 17
  %v1286 = vpop.permute.xlu0 %1285
  %v1287 = vsel %vm228, %v1280, %v1282
  %v1288 = vsel %vm228, %v1282, %v1284
  %v1289 = vsel %vm228, %v1284, %v1286
  %v1295 = vmul.f32 %v784, %v1280
  %v1296 = vmul.f32 %v785, %v1287
  %v1297 = vmul.f32 %v786, %v1288
  %v1298 = vmul.f32 %v787, %v1289
  %v1299 = vmul.f32 %v788, %v1286
  %1300 = vrot.lane.b32.xlu0 %v52, 96
  %v1301 = vpop.permute.xlu0 %1300
  %1302 = vrot.lane.b32.xlu0 %v53, 96
  %v1303 = vpop.permute.xlu0 %1302
  %1309 = vrot.lane.b32.xlu0 %v1295, 111
  %v1310 = vpop.permute.xlu0 %1309
  %1311 = vrot.lane.b32.xlu0 %v1296, 111
  %v1312 = vpop.permute.xlu0 %1311
  %1313 = vrot.lane.b32.xlu0 %v1297, 111
  %v1314 = vpop.permute.xlu0 %1313
  %1315 = vrot.lane.b32.xlu0 %v1298, 111
  %v1316 = vpop.permute.xlu0 %1315
  %1317 = vrot.lane.b32.xlu0 %v1299, 111
  %v1318 = vpop.permute.xlu0 %1317
  %v1319 = vsel %vm38, %v1310, %v1312
  %v1320 = vsel %vm38, %v1312, %v1314
  %v1321 = vsel %vm38, %v1314, %v1316
  %v1322 = vsel %vm38, %v1316, %v1318
  %v1323 = vsel %vm107, %v1301, 0
  %v1325 = vsel %vm107, %v1303, 0
  %v1327 = vsel %vm112, %v1319, 0
  %v1329 = vsel %vm112, %v1320, 0
  %v1331 = vsel %vm112, %v1321, 0
  %v1333 = vsel %vm112, %v1322, 0
  %1335 = vmatpush.msra.mxu0 0.0
  %1336 = vmatpush.msra.mxu0 0.0
  %1337 = vmatpush.msra.mxu0 0.0
  %1338 = vmatpush.msra.mxu0 0.0
  %1339 = vmatpush.msra.mxu0 0.0
  %1340 = vmatpush.msra.mxu0 0.0
  %1341 = vmatpush.msra.mxu0 0.0
  %1342 = vmatpush.msra.mxu0 0.0
  %1343 = vmatpush.msra.mxu0 0.0
  %1344 = vmatpush.msra.mxu0 0.0
  %1345 = vmatpush.msra.mxu0 0.0
  %1346 = vmatpush.msra.mxu0 0.0
  %1347 = vmatpush.msra.mxu0 0.0
  %1348 = vmatpush.msra.mxu0 0.0
  %1349 = vmatpush.msra.mxu0 0.0
  %1350 = vmatpush.msra.mxu0 %v1327
  %1351 = vmatmul.f32.gmra.mxu0 %v1323
  %v1352 = vpop.f32.mrf.mxu0
  %v1353 = vadd.f32 0.0, %v1352
  %1354 = vmatmul.f32.gmra.mxu0 %v1325
  %v1355 = vpop.f32.mrf.mxu0
  %v1356 = vadd.f32 0.0, %v1355
  %1357 = vdwg.mxu0
  %1358 = vmatpush.msra.mxu0 0.0
  %1359 = vmatpush.msra.mxu0 0.0
  %1360 = vmatpush.msra.mxu0 0.0
  %1361 = vmatpush.msra.mxu0 0.0
  %1362 = vmatpush.msra.mxu0 0.0
  %1363 = vmatpush.msra.mxu0 0.0
  %1364 = vmatpush.msra.mxu0 0.0
  %1365 = vmatpush.msra.mxu0 0.0
  %1366 = vmatpush.msra.mxu0 0.0
  %1367 = vmatpush.msra.mxu0 0.0
  %1368 = vmatpush.msra.mxu0 0.0
  %1369 = vmatpush.msra.mxu0 0.0
  %1370 = vmatpush.msra.mxu0 0.0
  %1371 = vmatpush.msra.mxu0 0.0
  %1372 = vmatpush.msra.mxu0 0.0
  %1373 = vmatpush.msra.mxu0 %v1329
  %1374 = vmatmul.f32.gmra.mxu0 %v1323
  %v1375 = vpop.f32.mrf.mxu0
  %v1376 = vadd.f32 0.0, %v1375
  %1377 = vmatmul.f32.gmra.mxu0 %v1325
  %v1378 = vpop.f32.mrf.mxu0
  %v1379 = vadd.f32 0.0, %v1378
  %1380 = vdwg.mxu0
  %1381 = vmatpush.msra.mxu0 0.0
  %1382 = vmatpush.msra.mxu0 0.0
  %1383 = vmatpush.msra.mxu0 0.0
  %1384 = vmatpush.msra.mxu0 0.0
  %1385 = vmatpush.msra.mxu0 0.0
  %1386 = vmatpush.msra.mxu0 0.0
  %1387 = vmatpush.msra.mxu0 0.0
  %1388 = vmatpush.msra.mxu0 0.0
  %1389 = vmatpush.msra.mxu0 0.0
  %1390 = vmatpush.msra.mxu0 0.0
  %1391 = vmatpush.msra.mxu0 0.0
  %1392 = vmatpush.msra.mxu0 0.0
  %1393 = vmatpush.msra.mxu0 0.0
  %1394 = vmatpush.msra.mxu0 0.0
  %1395 = vmatpush.msra.mxu0 0.0
  %1396 = vmatpush.msra.mxu0 %v1331
  %1397 = vmatmul.f32.gmra.mxu0 %v1323
  %v1398 = vpop.f32.mrf.mxu0
  %v1399 = vadd.f32 0.0, %v1398
  %1400 = vmatmul.f32.gmra.mxu0 %v1325
  %v1401 = vpop.f32.mrf.mxu0
  %v1402 = vadd.f32 0.0, %v1401
  %1403 = vdwg.mxu0
  %1404 = vmatpush.msra.mxu0 0.0
  %1405 = vmatpush.msra.mxu0 0.0
  %1406 = vmatpush.msra.mxu0 0.0
  %1407 = vmatpush.msra.mxu0 0.0
  %1408 = vmatpush.msra.mxu0 0.0
  %1409 = vmatpush.msra.mxu0 0.0
  %1410 = vmatpush.msra.mxu0 0.0
  %1411 = vmatpush.msra.mxu0 0.0
  %1412 = vmatpush.msra.mxu0 0.0
  %1413 = vmatpush.msra.mxu0 0.0
  %1414 = vmatpush.msra.mxu0 0.0
  %1415 = vmatpush.msra.mxu0 0.0
  %1416 = vmatpush.msra.mxu0 0.0
  %1417 = vmatpush.msra.mxu0 0.0
  %1418 = vmatpush.msra.mxu0 0.0
  %1419 = vmatpush.msra.mxu0 %v1333
  %1420 = vmatmul.f32.gmra.mxu0 %v1323
  %v1421 = vpop.f32.mrf.mxu0
  %v1422 = vadd.f32 0.0, %v1421
  %1423 = vmatmul.f32.gmra.mxu0 %v1325
  %v1424 = vpop.f32.mrf.mxu0
  %v1425 = vadd.f32 0.0, %v1424
  %1426 = vdwg.mxu0
  %v1427 = vadd.f32 %v1265, %v1353
  %v1428 = vadd.f32 %v1266, %v1376
  %v1429 = vadd.f32 %v1267, %v1399
  %v1430 = vadd.f32 %v1268, %v1422
  %v1431 = vadd.f32 %v1269, %v1356
  %v1432 = vadd.f32 %v1270, %v1379
  %v1433 = vadd.f32 %v1271, %v1402
  %v1434 = vadd.f32 %v1272, %v1425
  %v1435 = vadd.f32 %v1427, %v1428
  %v1436 = vadd.f32 %v1435, %v1429
  %v1437 = vadd.f32 %v1436, %v1430
  %1438 = vadd.xlane.f32.xlu0 %v1437
  %v1439 = vpop.xlane.xlu0 %1438
  %v1440 = vadd.f32 %v1431, %v1432
  %v1441 = vadd.f32 %v1440, %v1433
  %v1442 = vadd.f32 %v1441, %v1434
  %1443 = vadd.xlane.f32.xlu0 %v1442
  %v1444 = vpop.xlane.xlu0 %1443
  %v1445 = vmul.f32 %v1439, 0.001953125
  %v1446 = vmul.f32 %v1444, 0.001953125
  %v1447 = vmul.f32 %v1427, %v1427
  %v1448 = vmul.f32 %v1428, %v1428
  %v1449 = vmul.f32 %v1429, %v1429
  %v1450 = vmul.f32 %v1430, %v1430
  %v1451 = vmul.f32 %v1431, %v1431
  %v1452 = vmul.f32 %v1432, %v1432
  %v1453 = vmul.f32 %v1433, %v1433
  %v1454 = vmul.f32 %v1434, %v1434
  %v1455 = vadd.f32 %v1447, %v1448
  %v1456 = vadd.f32 %v1455, %v1449
  %v1457 = vadd.f32 %v1456, %v1450
  %1458 = vadd.xlane.f32.xlu0 %v1457
  %v1459 = vpop.xlane.xlu0 %1458
  %v1460 = vadd.f32 %v1451, %v1452
  %v1461 = vadd.f32 %v1460, %v1453
  %v1462 = vadd.f32 %v1461, %v1454
  %1463 = vadd.xlane.f32.xlu0 %v1462
  %v1464 = vpop.xlane.xlu0 %1463
  %v1465 = vmul.f32 %v1459, 0.001953125
  %v1466 = vmul.f32 %v1464, 0.001953125
  %v1467 = vmul.f32 %v1445, %v1445
  %v1468 = vmul.f32 %v1446, %v1446
  %v1469 = vsub.f32 %v1465, %v1467
  %v1470 = vsub.f32 %v1466, %v1468
  %v1471 = vmax.f32 %v1469, 0.0
  %v1472 = vmax.f32 %v1470, 0.0
  %v1473 = vadd.f32 %v1471, 1e-05
  %v1474 = vadd.f32 %v1472, 1e-05
  %v1475 = vrsqrt.pop %v1473
  %v1476 = vmul.f32 %v1475, %v1473
  %v1477 = vmul.f32 %v1476, %v1475
  %v1478 = vmul.f32 0.5, %v1477
  %v1479 = vsub.f32 1.5, %v1478
  %v1480 = vmul.f32 %v1475, %v1479
  %vm1481 = vweird.f32 %v1473
  %vm1482 = vweird.f32 %v1475
  %vm1483 = vmor %vm1481, %vm1482
  %v1484 = vsel %vm1483, %v1475, %v1480
  %v1485 = vrsqrt.pop %v1474
  %v1486 = vmul.f32 %v1485, %v1474
  %v1487 = vmul.f32 %v1486, %v1485
  %v1488 = vmul.f32 0.5, %v1487
  %v1489 = vsub.f32 1.5, %v1488
  %v1490 = vmul.f32 %v1485, %v1489
  %vm1491 = vweird.f32 %v1474
  %vm1492 = vweird.f32 %v1485
  %vm1493 = vmor %vm1491, %vm1492
  %v1494 = vsel %vm1493, %v1485, %v1490
  %v1495 = vmul.f32 %v52, %v1484
  %v1496 = vmul.f32 %v53, %v1494
  %v1497 = vmul.f32 %v1445, %v1495
  %v1498 = vmul.f32 %v1446, %v1496
  %1501 = vrot.lane.b32.xlu0 %v1497, 1
  %v1502 = vpop.permute.xlu0 %1501
  %1503 = vrot.lane.b32.xlu0 %v1498, 1
  %v1504 = vpop.permute.xlu0 %1503
  %v1507 = vsub.f32 %v52, %v1502
  %v1508 = vsub.f32 %v53, %v1504
  %1510 = vset.pattern.permute.xlu0 36
  %1511 = vperm.xlu0 %1510, %v1495
  %v1512 = vpop.permute.xlu0 %1511
  %1515 = vset.pattern.permute.xlu0 36
  %1516 = vperm.xlu0 %1515, %v1496
  %v1517 = vpop.permute.xlu0 %1516
  %v1519 = vmul.f32 %v1427, %v1512
  %v1520 = vmul.f32 %v1428, %v1512
  %v1521 = vmul.f32 %v1429, %v1512
  %v1522 = vmul.f32 %v1430, %v1512
  %v1523 = vmul.f32 %v1431, %v1517
  %v1524 = vmul.f32 %v1432, %v1517
  %v1525 = vmul.f32 %v1433, %v1517
  %v1526 = vmul.f32 %v1434, %v1517
  %1528 = vset.pattern.permute.xlu0 37
  %1529 = vperm.xlu0 %1528, %v1507
  %v1530 = vpop.permute.xlu0 %1529
  %1533 = vset.pattern.permute.xlu0 37
  %1534 = vperm.xlu0 %1533, %v1508
  %v1535 = vpop.permute.xlu0 %1534
  %v1537 = vadd.f32 %v1519, %v1530
  %v1538 = vadd.f32 %v1520, %v1530
  %v1539 = vadd.f32 %v1521, %v1530
  %v1540 = vadd.f32 %v1522, %v1530
  %v1541 = vadd.f32 %v1523, %v1535
  %v1542 = vadd.f32 %v1524, %v1535
  %v1543 = vadd.f32 %v1525, %v1535
  %v1544 = vadd.f32 %v1526, %v1535
  %v1545 = vmax.f32 %v1537, 0.0
  %v1546 = vmax.f32 %v1538, 0.0
  %v1547 = vmax.f32 %v1539, 0.0
  %v1548 = vmax.f32 %v1540, 0.0
  %v1549 = vmax.f32 %v1541, 0.0
  %v1550 = vmax.f32 %v1542, 0.0
  %v1551 = vmax.f32 %v1543, 0.0
  %v1552 = vmax.f32 %v1544, 0.0
  %v1553 = vadd.f32 %v1545, %v1546
  %v1554 = vadd.f32 %v1553, %v1547
  %v1555 = vadd.f32 %v1554, %v1548
  %1556 = vadd.xlane.f32.xlu0 %v1555
  %v1557 = vpop.xlane.xlu0 %1556
  %v1558 = vadd.f32 %v1549, %v1550
  %v1559 = vadd.f32 %v1558, %v1551
  %v1560 = vadd.f32 %v1559, %v1552
  %1561 = vadd.xlane.f32.xlu0 %v1560
  %v1562 = vpop.xlane.xlu0 %1561
  %v1563 = vmul.f32 %v1545, %v1545
  %v1564 = vmul.f32 %v1546, %v1546
  %v1565 = vmul.f32 %v1547, %v1547
  %v1566 = vmul.f32 %v1548, %v1548
  %v1567 = vmul.f32 %v1549, %v1549
  %v1568 = vmul.f32 %v1550, %v1550
  %v1569 = vmul.f32 %v1551, %v1551
  %v1570 = vmul.f32 %v1552, %v1552
  %v1571 = vadd.f32 %v1563, %v1564
  %v1572 = vadd.f32 %v1571, %v1565
  %v1573 = vadd.f32 %v1572, %v1566
  %1574 = vadd.xlane.f32.xlu0 %v1573
  %v1575 = vpop.xlane.xlu0 %1574
  %v1576 = vadd.f32 %v1567, %v1568
  %v1577 = vadd.f32 %v1576, %v1569
  %v1578 = vadd.f32 %v1577, %v1570
  %1579 = vadd.xlane.f32.xlu0 %v1578
  %v1580 = vpop.xlane.xlu0 %1579
  %1581 = vrot.lane.b32.xlu0 %v52, 88
  %v1582 = vpop.permute.xlu0 %1581
  %1583 = vrot.lane.b32.xlu0 %v53, 88
  %v1584 = vpop.permute.xlu0 %1583
  %v1585 = vsel %vm102, %v1582, 0
  %v1587 = vsel %vm102, %v1584, 0
  %1589 = vmatpush.msra.mxu0 0.0
  %1590 = vmatpush.msra.mxu0 0.0
  %1591 = vmatpush.msra.mxu0 0.0
  %1592 = vmatpush.msra.mxu0 0.0
  %1593 = vmatpush.msra.mxu0 0.0
  %1594 = vmatpush.msra.mxu0 0.0
  %1595 = vmatpush.msra.mxu0 0.0
  %1596 = vmatpush.msra.mxu0 0.0
  %1597 = vmatpush.msra.mxu0 0.0
  %1598 = vmatpush.msra.mxu0 0.0
  %1599 = vmatpush.msra.mxu0 0.0
  %1600 = vmatpush.msra.mxu0 0.0
  %1601 = vmatpush.msra.mxu0 0.0
  %1602 = vmatpush.msra.mxu0 0.0
  %1603 = vmatpush.msra.mxu0 %v1562
  %1604 = vmatpush.msra.mxu0 %v1557
  %1605 = vmatmul.f32.gmra.mxu0 %v1585
  %v1606 = vpop.f32.mrf.mxu0
  %v1607 = vadd.f32 0.0, %v1606
  %1608 = vmatmul.f32.gmra.mxu0 %v1587
  %v1609 = vpop.f32.mrf.mxu0
  %v1610 = vadd.f32 0.0, %v1609
  %1611 = vdwg.mxu0
  %1612 = vmatpush.msra.mxu0 0.0
  %1613 = vmatpush.msra.mxu0 0.0
  %1614 = vmatpush.msra.mxu0 0.0
  %1615 = vmatpush.msra.mxu0 0.0
  %1616 = vmatpush.msra.mxu0 0.0
  %1617 = vmatpush.msra.mxu0 0.0
  %1618 = vmatpush.msra.mxu0 0.0
  %1619 = vmatpush.msra.mxu0 0.0
  %1620 = vmatpush.msra.mxu0 0.0
  %1621 = vmatpush.msra.mxu0 0.0
  %1622 = vmatpush.msra.mxu0 0.0
  %1623 = vmatpush.msra.mxu0 0.0
  %1624 = vmatpush.msra.mxu0 0.0
  %1625 = vmatpush.msra.mxu0 0.0
  %1626 = vmatpush.msra.mxu0 %v1580
  %1627 = vmatpush.msra.mxu0 %v1575
  %1628 = vmatmul.f32.gmra.mxu0 %v1585
  %v1629 = vpop.f32.mrf.mxu0
  %v1630 = vadd.f32 0.0, %v1629
  %1631 = vmatmul.f32.gmra.mxu0 %v1587
  %v1632 = vpop.f32.mrf.mxu0
  %v1633 = vadd.f32 0.0, %v1632
  %1634 = vdwg.mxu0
  %v1635 = vmul.f32 %v1607, %v1607
  %v1636 = vmul.f32 %v1610, %v1610
  %v1637 = vsub.f32 %v1630, %v1635
  %v1638 = vsub.f32 %v1633, %v1636
  %v1639 = vmax.f32 %v1637, 0.0
  %v1640 = vmax.f32 %v1638, 0.0
  %v1641 = vadd.f32 %v1639, 1e-05
  %v1642 = vadd.f32 %v1640, 1e-05
  %v1643 = vrsqrt.pop %v1641
  %v1644 = vmul.f32 %v1643, %v1641
  %v1645 = vmul.f32 %v1644, %v1643
  %v1646 = vmul.f32 0.5, %v1645
  %v1647 = vsub.f32 1.5, %v1646
  %v1648 = vmul.f32 %v1643, %v1647
  %vm1649 = vweird.f32 %v1641
  %vm1650 = vweird.f32 %v1643
  %vm1651 = vmor %vm1649, %vm1650
  %v1652 = vsel %vm1651, %v1643, %v1648
  %v1653 = vrsqrt.pop %v1642
  %v1654 = vmul.f32 %v1653, %v1642
  %v1655 = vmul.f32 %v1654, %v1653
  %v1656 = vmul.f32 0.5, %v1655
  %v1657 = vsub.f32 1.5, %v1656
  %v1658 = vmul.f32 %v1653, %v1657
  %vm1659 = vweird.f32 %v1642
  %vm1660 = vweird.f32 %v1653
  %vm1661 = vmor %vm1659, %vm1660
  %v1662 = vsel %vm1661, %v1653, %v1658
  %1665 = vrot.lane.b32.xlu0 %v1652, 38
  %v1666 = vpop.permute.xlu0 %1665
  %1667 = vrot.lane.b32.xlu0 %v1662, 38
  %v1668 = vpop.permute.xlu0 %1667
  %v1671 = vmul.f32 %v52, %v1666
  %v1672 = vmul.f32 %v53, %v1668
  %1675 = vrot.lane.b32.xlu0 %v1671, 90
  %v1676 = vpop.permute.xlu0 %1675
  %1677 = vrot.lane.b32.xlu0 %v1672, 90
  %v1678 = vpop.permute.xlu0 %1677
  %v1681 = vmul.f32 %v1607, %v1676
  %v1682 = vmul.f32 %v1610, %v1678
  %1685 = vrot.lane.b32.xlu0 %v1681, 39
  %v1686 = vpop.permute.xlu0 %1685
  %1687 = vrot.lane.b32.xlu0 %v1682, 39
  %v1688 = vpop.permute.xlu0 %1687
  %v1691 = vsub.f32 %v52, %v1686
  %v1692 = vsub.f32 %v53, %v1688
  %1693 = vset.pattern.permute.xlu0 38
  %1694 = vperm.xlu0 %1693, %v1671
  %v1695 = vpop.permute.xlu0 %1694
  %1697 = vset.pattern.permute.xlu0 38
  %1698 = vperm.xlu0 %1697, %v1672
  %v1699 = vpop.permute.xlu0 %1698
  %v1701 = vmul.f32 %v1545, %v1695
  %v1702 = vmul.f32 %v1546, %v1695
  %v1703 = vmul.f32 %v1547, %v1695
  %v1704 = vmul.f32 %v1548, %v1695
  %v1705 = vmul.f32 %v1549, %v1699
  %v1706 = vmul.f32 %v1550, %v1699
  %v1707 = vmul.f32 %v1551, %v1699
  %v1708 = vmul.f32 %v1552, %v1699
  %1710 = vset.pattern.permute.xlu0 39
  %1711 = vperm.xlu0 %1710, %v1691
  %v1712 = vpop.permute.xlu0 %1711
  %1715 = vset.pattern.permute.xlu0 39
  %1716 = vperm.xlu0 %1715, %v1692
  %v1717 = vpop.permute.xlu0 %1716
  %v1719 = vadd.f32 %v1701, %v1712
  %v1720 = vadd.f32 %v1702, %v1712
  %v1721 = vadd.f32 %v1703, %v1712
  %v1722 = vadd.f32 %v1704, %v1712
  %v1723 = vadd.f32 %v1705, %v1717
  %v1724 = vadd.f32 %v1706, %v1717
  %v1725 = vadd.f32 %v1707, %v1717
  %v1726 = vadd.f32 %v1708, %v1717
  %v1727 = vmax.f32 %v1719, 0.0
  %v1728 = vmax.f32 %v1720, 0.0
  %v1729 = vmax.f32 %v1721, 0.0
  %v1730 = vmax.f32 %v1722, 0.0
  %v1731 = vmax.f32 %v1723, 0.0
  %v1732 = vmax.f32 %v1724, 0.0
  %v1733 = vmax.f32 %v1725, 0.0
  %v1734 = vmax.f32 %v1726, 0.0
  %1735 = vst [vmem:[%s2] sm:$0xff] %v1727
  %1736 = vst [vmem:[%s2 + $0x8] sm:$0xff] %v1728
  %1737 = vst [vmem:[%s2 + $0x10] sm:$0xff] %v1729
  %1738 = vst [vmem:[%s2 + $0x18] sm:$0xff] %v1730
  %1739 = vst [vmem:[%s2 + $0x20] sm:$0xff] %v1731
  %1740 = vst [vmem:[%s2 + $0x28] sm:$0xff] %v1732
  %1741 = vst [vmem:[%s2 + $0x30] sm:$0xff] %v1733
  %1742 = vst [vmem:[%s2 + $0x38] sm:$0xff] %v1734
  // Predicated region
  $region10: #{conv_pixel_shuf_forward.2} parent=0 // pred_check
    _
  $region11: #{conv_pixel_shuf_forward.2} parent=0 // pred_check_branch
    %1744 = sbr.rel (0) target = $region13
  $region12: #{conv_pixel_shuf_forward.2} parent=0 // pred_region
    _
  $region13: #{conv_pixel_shuf_forward.2} parent=0 // pred_fallthru
    _
  // Predicated region
  $region14: #{conv_pixel_shuf_forward.2} parent=0 // pred_check
    _
  $region15: #{conv_pixel_shuf_forward.2} parent=0 // pred_check_branch
    %1746 = sbr.rel (0) target = $region17
  $region16: #{conv_pixel_shuf_forward.2} parent=0 // pred_region
    _
  $region17: #{conv_pixel_shuf_forward.2} parent=0 // pred_fallthru
    _

// kernel: conv_pixel_shuf_forward.3
$region0: #{conv_pixel_shuf_forward.3}
  #allocation0 [shape = 'u32[]', space=smem, size = 0x4, offset = 0x4, fixed_abs, tag = 'smem constant byte address 0x4 - core index']
  #allocation1 [shape = 'u32[72,128]{1,0:T(1,128)}', space=vmem, size = 0x9000, scoped, tag = 'internal scratch']
  %s0 = inlined_call_operand.vmem [shape: f32[8,2304], index: 0, kind: input, shape index: {}]
  %s1 = inlined_call_operand.vmem [shape: f32[16,56], index: 1, kind: input, shape index: {}]
  %s2 = inlined_call_operand.vmem [shape: f32[16,2048], index: 2, kind: output, shape index: {}]
  %s3 = sld [smem:[#allocation0]]
  $region18: #{conv_pixel_shuf_forward.3} parent=0
    _
  %s5 = ssub.s32 1, %s3
  %s6 = scalar_select 0, %s5, %s3
  // Predicated region
  $region2: #{conv_pixel_shuf_forward.3} parent=0 // pred_check
    _
  $region3: #{conv_pixel_shuf_forward.3} parent=0 // pred_check_branch
    %8 = sbr.rel (0) target = $region5
  $region4: #{conv_pixel_shuf_forward.3} parent=0 // pred_region
    _
  $region5: #{conv_pixel_shuf_forward.3} parent=0 // pred_fallthru
    _
  // Predicated region
  $region6: #{conv_pixel_shuf_forward.3} parent=0 // pred_check
    _
  $region7: #{conv_pixel_shuf_forward.3} parent=0 // pred_check_branch
    %10 = sbr.rel (0) target = $region9
  $region8: #{conv_pixel_shuf_forward.3} parent=0 // pred_region
    _
  $region9: #{conv_pixel_shuf_forward.3} parent=0 // pred_fallthru
    _
  %s11 = scalar_lea.vmem %s0, 12
  %v12 = vld [vmem:[%s11] ss:$8 sm:$0xf]
  %v13 = vld [vmem:[%s11] ss:$8 sm:$0xf0]
  %v14 = vor.u32 %v12, %v13
  %s15 = scalar_lea.vmem %s0, 76
  %v16 = vld [vmem:[%s15] ss:$8 sm:$0xf]
  %v17 = vld [vmem:[%s15] ss:$8 sm:$0xf0]
  %v18 = vor.u32 %v16, %v17
  %s19 = scalar_lea.vmem %s0, 13
  %v20 = vld [vmem:[%s19] ss:$8 sm:$0xf]
  %v21 = vld [vmem:[%s19] ss:$8 sm:$0xf0]
  %v22 = vor.u32 %v20, %v21
  %s23 = scalar_lea.vmem %s0, 77
  %v24 = vld [vmem:[%s23] ss:$8 sm:$0xf]
  %v25 = vld [vmem:[%s23] ss:$8 sm:$0xf0]
  %v26 = vor.u32 %v24, %v25
  %s27 = scalar_lea.vmem %s0, 14
  %v28 = vld [vmem:[%s27] ss:$8 sm:$0xf]
  %v29 = vld [vmem:[%s27] ss:$8 sm:$0xf0]
  %v30 = vor.u32 %v28, %v29
  %s31 = scalar_lea.vmem %s0, 78
  %v32 = vld [vmem:[%s31] ss:$8 sm:$0xf]
  %v33 = vld [vmem:[%s31] ss:$8 sm:$0xf0]
  %v34 = vor.u32 %v32, %v33
  %s35 = scalar_lea.vmem %s0, 15
  %v36 = vld [vmem:[%s35] ss:$8 sm:$0xf]
  %v37 = vld [vmem:[%s35] ss:$8 sm:$0xf0]
  %v38 = vor.u32 %v36, %v37
  %s39 = scalar_lea.vmem %s0, 79
  %v40 = vld [vmem:[%s39] ss:$8 sm:$0xf]
  %v41 = vld [vmem:[%s39] ss:$8 sm:$0xf0]
  %v42 = vor.u32 %v40, %v41
  %v43 = vld [vmem:[%s0] sm:$0xf]
  %v44 = vld [vmem:[%s0 + $0x8] sm:$0xf]
  %v45 = vld [vmem:[%s0 + $0x10] sm:$0xf]
  %v46 = vld [vmem:[%s0 + $0x18] sm:$0xf]
  %v47 = vld [vmem:[%s0 + $0x20] sm:$0xf]
  %v48 = vld [vmem:[%s0 + $0x28] sm:$0xf]
  %v49 = vld [vmem:[%s0 + $0x30] sm:$0xf]
  %v50 = vld [vmem:[%s0 + $0x38] sm:$0xf]
  %v51 = vld [vmem:[%s0 + $0x40] sm:$0xf]
  %v52 = vld [vmem:[%s0 + $0x48] sm:$0xf]
  %v53 = vld [vmem:[%s0 + $0x50] sm:$0xf]
  %v54 = vld [vmem:[%s0 + $0x58] sm:$0xf]
  %v55 = vld [vmem:[%s0 + $0x60] sm:$0xf]
  %v56 = vld [vmem:[%s0 + $0x68] sm:$0xf]
  %v57 = vld [vmem:[%s0 + $0x70] sm:$0xf]
  %v58 = vld [vmem:[%s0 + $0x78] sm:$0xf]
  %v59 = vld [vmem:[%s0 + $0x80] sm:$0xf]
  %v60 = vmul.f32 %v14, %v30
  %v61 = vmul.f32 %v18, %v34
  %v64 = vperm.slane %v60, 0
  %v65 = vperm.slane %v60, 1
  %v66 = vperm.slane %v60, 2
  %v67 = vperm.slane %v60, 3
  %v68 = vperm.slane %v60, 4
  %v69 = vperm.slane %v60, 5
  %v70 = vperm.slane %v60, 6
  %v71 = vperm.slane %v60, 7
  %v72 = vperm.slane %v61, 0
  %v73 = vperm.slane %v61, 1
  %v74 = vperm.slane %v61, 2
  %v75 = vperm.slane %v61, 3
  %v76 = vperm.slane %v61, 4
  %v77 = vperm.slane %v61, 5
  %v78 = vperm.slane %v61, 6
  %v79 = vperm.slane %v61, 7
  %80 = vrot.lane.b32.xlu0 %v64, 95
  %v81 = vpop.permute.xlu0 %80
  %82 = vrot.lane.b32.xlu0 %v65, 95
  %v83 = vpop.permute.xlu0 %82
  %84 = vrot.lane.b32.xlu0 %v66, 95
  %v85 = vpop.permute.xlu0 %84
  %86 = vrot.lane.b32.xlu0 %v67, 95
  %v87 = vpop.permute.xlu0 %86
  %88 = vrot.lane.b32.xlu0 %v68, 95
  %v89 = vpop.permute.xlu0 %88
  %90 = vrot.lane.b32.xlu0 %v69, 95
  %v91 = vpop.permute.xlu0 %90
  %92 = vrot.lane.b32.xlu0 %v70, 95
  %v93 = vpop.permute.xlu0 %92
  %94 = vrot.lane.b32.xlu0 %v71, 95
  %v95 = vpop.permute.xlu0 %94
  %96 = vrot.lane.b32.xlu0 %v72, 95
  %v97 = vpop.permute.xlu0 %96
  %98 = vrot.lane.b32.xlu0 %v73, 95
  %v99 = vpop.permute.xlu0 %98
  %100 = vrot.lane.b32.xlu0 %v74, 95
  %v101 = vpop.permute.xlu0 %100
  %102 = vrot.lane.b32.xlu0 %v75, 95
  %v103 = vpop.permute.xlu0 %102
  %104 = vrot.lane.b32.xlu0 %v76, 95
  %v105 = vpop.permute.xlu0 %104
  %106 = vrot.lane.b32.xlu0 %v77, 95
  %v107 = vpop.permute.xlu0 %106
  %108 = vrot.lane.b32.xlu0 %v78, 95
  %v109 = vpop.permute.xlu0 %108
  %110 = vrot.lane.b32.xlu0 %v79, 95
  %v111 = vpop.permute.xlu0 %110
  %vm112 = vcmask 777216
  %v113 = vsel %vm112, %v81, %v83
  %v114 = vsel %vm112, %v83, %v85
  %v115 = vsel %vm112, %v85, %v87
  %v116 = vsel %vm112, %v87, %v89
  %v117 = vsel %vm112, %v89, %v91
  %v118 = vsel %vm112, %v91, %v93
  %v119 = vsel %vm112, %v93, %v95
  %v120 = vsel %vm112, %v95, %v97
  %v121 = vsel %vm112, %v97, %v99
  %v122 = vsel %vm112, %v99, %v101
  %v123 = vsel %vm112, %v101, %v103
  %v124 = vsel %vm112, %v103, %v105
  %v125 = vsel %vm112, %v105, %v107
  %v126 = vsel %vm112, %v107, %v109
  %v127 = vsel %vm112, %v109, %v111
  %v145 = vmul.f32 %v43, %v81
  %v146 = vmul.f32 %v44, %v113
  %v147 = vmul.f32 %v45, %v114
  %v148 = vmul.f32 %v46, %v115
  %v149 = vmul.f32 %v47, %v116
  %v150 = vmul.f32 %v48, %v117
  %v151 = vmul.f32 %v49, %v118
  %v152 = vmul.f32 %v50, %v119
  %v153 = vmul.f32 %v51, %v120
  %v154 = vmul.f32 %v52, %v121
  %v155 = vmul.f32 %v53, %v122
  %v156 = vmul.f32 %v54, %v123
  %v157 = vmul.f32 %v55, %v124
  %v158 = vmul.f32 %v56, %v125
  %v159 = vmul.f32 %v57, %v126
  %v160 = vmul.f32 %v58, %v127
  %v161 = vmul.f32 %v59, %v111
  %v162 = vld [vmem:[%s1] sm:$0xff]
  %v163 = vld [vmem:[%s1 + $0x8] sm:$0xff]
  %v166 = vperm.slane %v14, 0
  %v167 = vperm.slane %v14, 1
  %v168 = vperm.slane %v14, 2
  %v169 = vperm.slane %v14, 3
  %v170 = vperm.slane %v14, 4
  %v171 = vperm.slane %v14, 5
  %v172 = vperm.slane %v14, 6
  %v173 = vperm.slane %v14, 7
  %v174 = vperm.slane %v18, 0
  %v175 = vperm.slane %v18, 1
  %v176 = vperm.slane %v18, 2
  %v177 = vperm.slane %v18, 3
  %v178 = vperm.slane %v18, 4
  %v179 = vperm.slane %v18, 5
  %v180 = vperm.slane %v18, 6
  %v181 = vperm.slane %v18, 7
  %182 = vrot.lane.b32.xlu0 %v166, 96
  %v183 = vpop.permute.xlu0 %182
  %184 = vrot.lane.b32.xlu0 %v167, 96
  %v185 = vpop.permute.xlu0 %184
  %186 = vrot.lane.b32.xlu0 %v168, 96
  %v187 = vpop.permute.xlu0 %186
  %188 = vrot.lane.b32.xlu0 %v169, 96
  %v189 = vpop.permute.xlu0 %188
  %190 = vrot.lane.b32.xlu0 %v170, 96
  %v191 = vpop.permute.xlu0 %190
  %192 = vrot.lane.b32.xlu0 %v171, 96
  %v193 = vpop.permute.xlu0 %192
  %194 = vrot.lane.b32.xlu0 %v172, 96
  %v195 = vpop.permute.xlu0 %194
  %196 = vrot.lane.b32.xlu0 %v173, 96
  %v197 = vpop.permute.xlu0 %196
  %198 = vrot.lane.b32.xlu0 %v174, 96
  %v199 = vpop.permute.xlu0 %198
  %200 = vrot.lane.b32.xlu0 %v175, 96
  %v201 = vpop.permute.xlu0 %200
  %202 = vrot.lane.b32.xlu0 %v176, 96
  %v203 = vpop.permute.xlu0 %202
  %204 = vrot.lane.b32.xlu0 %v177, 96
  %v205 = vpop.permute.xlu0 %204
  %206 = vrot.lane.b32.xlu0 %v178, 96
  %v207 = vpop.permute.xlu0 %206
  %208 = vrot.lane.b32.xlu0 %v179, 96
  %v209 = vpop.permute.xlu0 %208
  %210 = vrot.lane.b32.xlu0 %v180, 96
  %v211 = vpop.permute.xlu0 %210
  %212 = vrot.lane.b32.xlu0 %v181, 96
  %v213 = vpop.permute.xlu0 %212
  %vm214 = vcmask 785408
  %v215 = vsel %vm214, %v183, %v185
  %v216 = vsel %vm214, %v185, %v187
  %v217 = vsel %vm214, %v187, %v189
  %v218 = vsel %vm214, %v189, %v191
  %v219 = vsel %vm214, %v191, %v193
  %v220 = vsel %vm214, %v193, %v195
  %v221 = vsel %vm214, %v195, %v197
  %v222 = vsel %vm214, %v197, %v199
  %v223 = vsel %vm214, %v199, %v201
  %v224 = vsel %vm214, %v201, %v203
  %v225 = vsel %vm214, %v203, %v205
  %v226 = vsel %vm214, %v205, %v207
  %v227 = vsel %vm214, %v207, %v209
  %v228 = vsel %vm214, %v209, %v211
  %v229 = vsel %vm214, %v211, %v213
  %v247 = vmul.f32 %v43, %v183
  %v248 = vmul.f32 %v44, %v215
  %v249 = vmul.f32 %v45, %v216
  %v250 = vmul.f32 %v46, %v217
  %v251 = vmul.f32 %v47, %v218
  %v252 = vmul.f32 %v48, %v219
  %v253 = vmul.f32 %v49, %v220
  %v254 = vmul.f32 %v50, %v221
  %v255 = vmul.f32 %v51, %v222
  %v256 = vmul.f32 %v52, %v223
  %v257 = vmul.f32 %v53, %v224
  %v258 = vmul.f32 %v54, %v225
  %v259 = vmul.f32 %v55, %v226
  %v260 = vmul.f32 %v56, %v227
  %v261 = vmul.f32 %v57, %v228
  %v262 = vmul.f32 %v58, %v229
  %v263 = vmul.f32 %v59, %v213
  %266 = vrot.lane.b32.xlu0 %v162, 124
  %v267 = vpop.permute.xlu0 %266
  %268 = vrot.lane.b32.xlu0 %v163, 124
  %v269 = vpop.permute.xlu0 %268
  %287 = vrot.lane.b32.xlu0 %v247, 32
  %v288 = vpop.permute.xlu0 %287
  %289 = vrot.lane.b32.xlu0 %v248, 32
  %v290 = vpop.permute.xlu0 %289
  %291 = vrot.lane.b32.xlu0 %v249, 32
  %v292 = vpop.permute.xlu0 %291
  %293 = vrot.lane.b32.xlu0 %v250, 32
  %v294 = vpop.permute.xlu0 %293
  %295 = vrot.lane.b32.xlu0 %v251, 32
  %v296 = vpop.permute.xlu0 %295
  %297 = vrot.lane.b32.xlu0 %v252, 32
  %v298 = vpop.permute.xlu0 %297
  %299 = vrot.lane.b32.xlu0 %v253, 32
  %v300 = vpop.permute.xlu0 %299
  %301 = vrot.lane.b32.xlu0 %v254, 32
  %v302 = vpop.permute.xlu0 %301
  %303 = vrot.lane.b32.xlu0 %v255, 32
  %v304 = vpop.permute.xlu0 %303
  %305 = vrot.lane.b32.xlu0 %v256, 32
  %v306 = vpop.permute.xlu0 %305
  %307 = vrot.lane.b32.xlu0 %v257, 32
  %v308 = vpop.permute.xlu0 %307
  %309 = vrot.lane.b32.xlu0 %v258, 32
  %v310 = vpop.permute.xlu0 %309
  %311 = vrot.lane.b32.xlu0 %v259, 32
  %v312 = vpop.permute.xlu0 %311
  %313 = vrot.lane.b32.xlu0 %v260, 32
  %v314 = vpop.permute.xlu0 %313
  %315 = vrot.lane.b32.xlu0 %v261, 32
  %v316 = vpop.permute.xlu0 %315
  %317 = vrot.lane.b32.xlu0 %v262, 32
  %v318 = vpop.permute.xlu0 %317
  %319 = vrot.lane.b32.xlu0 %v263, 32
  %v320 = vpop.permute.xlu0 %319
  %vm321 = vcmask 261120
  %v322 = vsel %vm321, %v288, %v290
  %v323 = vsel %vm321, %v290, %v292
  %v324 = vsel %vm321, %v292, %v294
  %v325 = vsel %vm321, %v294, %v296
  %v326 = vsel %vm321, %v296, %v298
  %v327 = vsel %vm321, %v298, %v300
  %v328 = vsel %vm321, %v300, %v302
  %v329 = vsel %vm321, %v302, %v304
  %v330 = vsel %vm321, %v304, %v306
  %v331 = vsel %vm321, %v306, %v308
  %v332 = vsel %vm321, %v308, %v310
  %v333 = vsel %vm321, %v310, %v312
  %v334 = vsel %vm321, %v312, %v314
  %v335 = vsel %vm321, %v314, %v316
  %v336 = vsel %vm321, %v316, %v318
  %v337 = vsel %vm321, %v318, %v320
  %vm338 = vcmask 31744
  %v339 = vsel %vm338, %v267, 0
  %v341 = vsel %vm338, %v269, 0
  %vm343 = vcmask 1043456
  %v344 = vsel %vm343, %v322, 0
  %v346 = vsel %vm343, %v323, 0
  %v348 = vsel %vm343, %v324, 0
  %v350 = vsel %vm343, %v325, 0
  %v352 = vsel %vm343, %v326, 0
  %v354 = vsel %vm343, %v327, 0
  %v356 = vsel %vm343, %v328, 0
  %v358 = vsel %vm343, %v329, 0
  %v360 = vsel %vm343, %v330, 0
  %v362 = vsel %vm343, %v331, 0
  %v364 = vsel %vm343, %v332, 0
  %v366 = vsel %vm343, %v333, 0
  %v368 = vsel %vm343, %v334, 0
  %v370 = vsel %vm343, %v335, 0
  %v372 = vsel %vm343, %v336, 0
  %v374 = vsel %vm343, %v337, 0
  %376 = vmatpush.msra.mxu0 0.0
  %377 = vmatpush.msra.mxu0 0.0
  %378 = vmatpush.msra.mxu0 0.0
  %379 = vmatpush.msra.mxu0 0.0
  %380 = vmatpush.msra.mxu0 0.0
  %381 = vmatpush.msra.mxu0 0.0
  %382 = vmatpush.msra.mxu0 0.0
  %383 = vmatpush.msra.mxu0 0.0
  %384 = vmatpush.msra.mxu0 0.0
  %385 = vmatpush.msra.mxu0 0.0
  %386 = vmatpush.msra.mxu0 0.0
  %387 = vmatpush.msra.mxu0 0.0
  %388 = vmatpush.msra.mxu0 0.0
  %389 = vmatpush.msra.mxu0 0.0
  %390 = vmatpush.msra.mxu0 0.0
  %391 = vmatpush.msra.mxu0 %v344
  %392 = vmatmul.f32.gmra.mxu0 %v339
  %v393 = vpop.f32.mrf.mxu0
  %v394 = vadd.f32 0.0, %v393
  %395 = vmatmul.f32.gmra.mxu0 %v341
  %v396 = vpop.f32.mrf.mxu0
  %v397 = vadd.f32 0.0, %v396
  %398 = vdwg.mxu0
  %399 = vmatpush.msra.mxu0 0.0
  %400 = vmatpush.msra.mxu0 0.0
  %401 = vmatpush.msra.mxu0 0.0
  %402 = vmatpush.msra.mxu0 0.0
  %403 = vmatpush.msra.mxu0 0.0
  %404 = vmatpush.msra.mxu0 0.0
  %405 = vmatpush.msra.mxu0 0.0
  %406 = vmatpush.msra.mxu0 0.0
  %407 = vmatpush.msra.mxu0 0.0
  %408 = vmatpush.msra.mxu0 0.0
  %409 = vmatpush.msra.mxu0 0.0
  %410 = vmatpush.msra.mxu0 0.0
  %411 = vmatpush.msra.mxu0 0.0
  %412 = vmatpush.msra.mxu0 0.0
  %413 = vmatpush.msra.mxu0 0.0
  %414 = vmatpush.msra.mxu0 %v346
  %415 = vmatmul.f32.gmra.mxu0 %v339
  %v416 = vpop.f32.mrf.mxu0
  %v417 = vadd.f32 0.0, %v416
  %418 = vmatmul.f32.gmra.mxu0 %v341
  %v419 = vpop.f32.mrf.mxu0
  %v420 = vadd.f32 0.0, %v419
  %421 = vdwg.mxu0
  %422 = vmatpush.msra.mxu0 0.0
  %423 = vmatpush.msra.mxu0 0.0
  %424 = vmatpush.msra.mxu0 0.0
  %425 = vmatpush.msra.mxu0 0.0
  %426 = vmatpush.msra.mxu0 0.0
  %427 = vmatpush.msra.mxu0 0.0
  %428 = vmatpush.msra.mxu0 0.0
  %429 = vmatpush.msra.mxu0 0.0
  %430 = vmatpush.msra.mxu0 0.0
  %431 = vmatpush.msra.mxu0 0.0
  %432 = vmatpush.msra.mxu0 0.0
  %433 = vmatpush.msra.mxu0 0.0
  %434 = vmatpush.msra.mxu0 0.0
  %435 = vmatpush.msra.mxu0 0.0
  %436 = vmatpush.msra.mxu0 0.0
  %437 = vmatpush.msra.mxu0 %v348
  %438 = vmatmul.f32.gmra.mxu0 %v339
  %v439 = vpop.f32.mrf.mxu0
  %v440 = vadd.f32 0.0, %v439
  %441 = vmatmul.f32.gmra.mxu0 %v341
  %v442 = vpop.f32.mrf.mxu0
  %v443 = vadd.f32 0.0, %v442
  %444 = vdwg.mxu0
  %445 = vmatpush.msra.mxu0 0.0
  %446 = vmatpush.msra.mxu0 0.0
  %447 = vmatpush.msra.mxu0 0.0
  %448 = vmatpush.msra.mxu0 0.0
  %449 = vmatpush.msra.mxu0 0.0
  %450 = vmatpush.msra.mxu0 0.0
  %451 = vmatpush.msra.mxu0 0.0
  %452 = vmatpush.msra.mxu0 0.0
  %453 = vmatpush.msra.mxu0 0.0
  %454 = vmatpush.msra.mxu0 0.0
  %455 = vmatpush.msra.mxu0 0.0
  %456 = vmatpush.msra.mxu0 0.0
  %457 = vmatpush.msra.mxu0 0.0
  %458 = vmatpush.msra.mxu0 0.0
  %459 = vmatpush.msra.mxu0 0.0
  %460 = vmatpush.msra.mxu0 %v350
  %461 = vmatmul.f32.gmra.mxu0 %v339
  %v462 = vpop.f32.mrf.mxu0
  %v463 = vadd.f32 0.0, %v462
  %464 = vmatmul.f32.gmra.mxu0 %v341
  %v465 = vpop.f32.mrf.mxu0
  %v466 = vadd.f32 0.0, %v465
  %467 = vdwg.mxu0
  %468 = vmatpush.msra.mxu0 0.0
  %469 = vmatpush.msra.mxu0 0.0
  %470 = vmatpush.msra.mxu0 0.0
  %471 = vmatpush.msra.mxu0 0.0
  %472 = vmatpush.msra.mxu0 0.0
  %473 = vmatpush.msra.mxu0 0.0
  %474 = vmatpush.msra.mxu0 0.0
  %475 = vmatpush.msra.mxu0 0.0
  %476 = vmatpush.msra.mxu0 0.0
  %477 = vmatpush.msra.mxu0 0.0
  %478 = vmatpush.msra.mxu0 0.0
  %479 = vmatpush.msra.mxu0 0.0
  %480 = vmatpush.msra.mxu0 0.0
  %481 = vmatpush.msra.mxu0 0.0
  %482 = vmatpush.msra.mxu0 0.0
  %483 = vmatpush.msra.mxu0 %v352
  %484 = vmatmul.f32.gmra.mxu0 %v339
  %v485 = vpop.f32.mrf.mxu0
  %v486 = vadd.f32 0.0, %v485
  %487 = vmatmul.f32.gmra.mxu0 %v341
  %v488 = vpop.f32.mrf.mxu0
  %v489 = vadd.f32 0.0, %v488
  %490 = vdwg.mxu0
  %491 = vmatpush.msra.mxu0 0.0
  %492 = vmatpush.msra.mxu0 0.0
  %493 = vmatpush.msra.mxu0 0.0
  %494 = vmatpush.msra.mxu0 0.0
  %495 = vmatpush.msra.mxu0 0.0
  %496 = vmatpush.msra.mxu0 0.0
  %497 = vmatpush.msra.mxu0 0.0
  %498 = vmatpush.msra.mxu0 0.0
  %499 = vmatpush.msra.mxu0 0.0
  %500 = vmatpush.msra.mxu0 0.0
  %501 = vmatpush.msra.mxu0 0.0
  %502 = vmatpush.msra.mxu0 0.0
  %503 = vmatpush.msra.mxu0 0.0
  %504 = vmatpush.msra.mxu0 0.0
  %505 = vmatpush.msra.mxu0 0.0
  %506 = vmatpush.msra.mxu0 %v354
  %507 = vmatmul.f32.gmra.mxu0 %v339
  %v508 = vpop.f32.mrf.mxu0
  %v509 = vadd.f32 0.0, %v508
  %510 = vmatmul.f32.gmra.mxu0 %v341
  %v511 = vpop.f32.mrf.mxu0
  %v512 = vadd.f32 0.0, %v511
  %513 = vdwg.mxu0
  %514 = vmatpush.msra.mxu0 0.0
  %515 = vmatpush.msra.mxu0 0.0
  %516 = vmatpush.msra.mxu0 0.0
  %517 = vmatpush.msra.mxu0 0.0
  %518 = vmatpush.msra.mxu0 0.0
  %519 = vmatpush.msra.mxu0 0.0
  %520 = vmatpush.msra.mxu0 0.0
  %521 = vmatpush.msra.mxu0 0.0
  %522 = vmatpush.msra.mxu0 0.0
  %523 = vmatpush.msra.mxu0 0.0
  %524 = vmatpush.msra.mxu0 0.0
  %525 = vmatpush.msra.mxu0 0.0
  %526 = vmatpush.msra.mxu0 0.0
  %527 = vmatpush.msra.mxu0 0.0
  %528 = vmatpush.msra.mxu0 0.0
  %529 = vmatpush.msra.mxu0 %v356
  %530 = vmatmul.f32.gmra.mxu0 %v339
  %v531 = vpop.f32.mrf.mxu0
  %v532 = vadd.f32 0.0, %v531
  %533 = vmatmul.f32.gmra.mxu0 %v341
  %v534 = vpop.f32.mrf.mxu0
  %v535 = vadd.f32 0.0, %v534
  %536 = vdwg.mxu0
  %537 = vmatpush.msra.mxu0 0.0
  %538 = vmatpush.msra.mxu0 0.0
  %539 = vmatpush.msra.mxu0 0.0
  %540 = vmatpush.msra.mxu0 0.0
  %541 = vmatpush.msra.mxu0 0.0
  %542 = vmatpush.msra.mxu0 0.0
  %543 = vmatpush.msra.mxu0 0.0
  %544 = vmatpush.msra.mxu0 0.0
  %545 = vmatpush.msra.mxu0 0.0
  %546 = vmatpush.msra.mxu0 0.0
  %547 = vmatpush.msra.mxu0 0.0
  %548 = vmatpush.msra.mxu0 0.0
  %549 = vmatpush.msra.mxu0 0.0
  %550 = vmatpush.msra.mxu0 0.0
  %551 = vmatpush.msra.mxu0 0.0
  %552 = vmatpush.msra.mxu0 %v358
  %553 = vmatmul.f32.gmra.mxu0 %v339
  %v554 = vpop.f32.mrf.mxu0
  %v555 = vadd.f32 0.0, %v554
  %556 = vmatmul.f32.gmra.mxu0 %v341
  %v557 = vpop.f32.mrf.mxu0
  %v558 = vadd.f32 0.0, %v557
  %559 = vdwg.mxu0
  %560 = vmatpush.msra.mxu0 0.0
  %561 = vmatpush.msra.mxu0 0.0
  %562 = vmatpush.msra.mxu0 0.0
  %563 = vmatpush.msra.mxu0 0.0
  %564 = vmatpush.msra.mxu0 0.0
  %565 = vmatpush.msra.mxu0 0.0
  %566 = vmatpush.msra.mxu0 0.0
  %567 = vmatpush.msra.mxu0 0.0
  %568 = vmatpush.msra.mxu0 0.0
  %569 = vmatpush.msra.mxu0 0.0
  %570 = vmatpush.msra.mxu0 0.0
  %571 = vmatpush.msra.mxu0 0.0
  %572 = vmatpush.msra.mxu0 0.0
  %573 = vmatpush.msra.mxu0 0.0
  %574 = vmatpush.msra.mxu0 0.0
  %575 = vmatpush.msra.mxu0 %v360
  %576 = vmatmul.f32.gmra.mxu0 %v339
  %v577 = vpop.f32.mrf.mxu0
  %v578 = vadd.f32 0.0, %v577
  %579 = vmatmul.f32.gmra.mxu0 %v341
  %v580 = vpop.f32.mrf.mxu0
  %v581 = vadd.f32 0.0, %v580
  %582 = vdwg.mxu0
  %583 = vmatpush.msra.mxu0 0.0
  %584 = vmatpush.msra.mxu0 0.0
  %585 = vmatpush.msra.mxu0 0.0
  %586 = vmatpush.msra.mxu0 0.0
  %587 = vmatpush.msra.mxu0 0.0
  %588 = vmatpush.msra.mxu0 0.0
  %589 = vmatpush.msra.mxu0 0.0
  %590 = vmatpush.msra.mxu0 0.0
  %591 = vmatpush.msra.mxu0 0.0
  %592 = vmatpush.msra.mxu0 0.0
  %593 = vmatpush.msra.mxu0 0.0
  %594 = vmatpush.msra.mxu0 0.0
  %595 = vmatpush.msra.mxu0 0.0
  %596 = vmatpush.msra.mxu0 0.0
  %597 = vmatpush.msra.mxu0 0.0
  %598 = vmatpush.msra.mxu0 %v362
  %599 = vmatmul.f32.gmra.mxu0 %v339
  %v600 = vpop.f32.mrf.mxu0
  %v601 = vadd.f32 0.0, %v600
  %602 = vmatmul.f32.gmra.mxu0 %v341
  %v603 = vpop.f32.mrf.mxu0
  %v604 = vadd.f32 0.0, %v603
  %605 = vdwg.mxu0
  %606 = vmatpush.msra.mxu0 0.0
  %607 = vmatpush.msra.mxu0 0.0
  %608 = vmatpush.msra.mxu0 0.0
  %609 = vmatpush.msra.mxu0 0.0
  %610 = vmatpush.msra.mxu0 0.0
  %611 = vmatpush.msra.mxu0 0.0
  %612 = vmatpush.msra.mxu0 0.0
  %613 = vmatpush.msra.mxu0 0.0
  %614 = vmatpush.msra.mxu0 0.0
  %615 = vmatpush.msra.mxu0 0.0
  %616 = vmatpush.msra.mxu0 0.0
  %617 = vmatpush.msra.mxu0 0.0
  %618 = vmatpush.msra.mxu0 0.0
  %619 = vmatpush.msra.mxu0 0.0
  %620 = vmatpush.msra.mxu0 0.0
  %621 = vmatpush.msra.mxu0 %v364
  %622 = vmatmul.f32.gmra.mxu0 %v339
  %v623 = vpop.f32.mrf.mxu0
  %v624 = vadd.f32 0.0, %v623
  %625 = vmatmul.f32.gmra.mxu0 %v341
  %v626 = vpop.f32.mrf.mxu0
  %v627 = vadd.f32 0.0, %v626
  %628 = vdwg.mxu0
  %629 = vmatpush.msra.mxu0 0.0
  %630 = vmatpush.msra.mxu0 0.0
  %631 = vmatpush.msra.mxu0 0.0
  %632 = vmatpush.msra.mxu0 0.0
  %633 = vmatpush.msra.mxu0 0.0
  %634 = vmatpush.msra.mxu0 0.0
  %635 = vmatpush.msra.mxu0 0.0
  %636 = vmatpush.msra.mxu0 0.0
  %637 = vmatpush.msra.mxu0 0.0
  %638 = vmatpush.msra.mxu0 0.0
  %639 = vmatpush.msra.mxu0 0.0
  %640 = vmatpush.msra.mxu0 0.0
  %641 = vmatpush.msra.mxu0 0.0
  %642 = vmatpush.msra.mxu0 0.0
  %643 = vmatpush.msra.mxu0 0.0
  %644 = vmatpush.msra.mxu0 %v366
  %645 = vmatmul.f32.gmra.mxu0 %v339
  %v646 = vpop.f32.mrf.mxu0
  %v647 = vadd.f32 0.0, %v646
  %648 = vmatmul.f32.gmra.mxu0 %v341
  %v649 = vpop.f32.mrf.mxu0
  %v650 = vadd.f32 0.0, %v649
  %651 = vdwg.mxu0
  %652 = vmatpush.msra.mxu0 0.0
  %653 = vmatpush.msra.mxu0 0.0
  %654 = vmatpush.msra.mxu0 0.0
  %655 = vmatpush.msra.mxu0 0.0
  %656 = vmatpush.msra.mxu0 0.0
  %657 = vmatpush.msra.mxu0 0.0
  %658 = vmatpush.msra.mxu0 0.0
  %659 = vmatpush.msra.mxu0 0.0
  %660 = vmatpush.msra.mxu0 0.0
  %661 = vmatpush.msra.mxu0 0.0
  %662 = vmatpush.msra.mxu0 0.0
  %663 = vmatpush.msra.mxu0 0.0
  %664 = vmatpush.msra.mxu0 0.0
  %665 = vmatpush.msra.mxu0 0.0
  %666 = vmatpush.msra.mxu0 0.0
  %667 = vmatpush.msra.mxu0 %v368
  %668 = vmatmul.f32.gmra.mxu0 %v339
  %v669 = vpop.f32.mrf.mxu0
  %v670 = vadd.f32 0.0, %v669
  %671 = vmatmul.f32.gmra.mxu0 %v341
  %v672 = vpop.f32.mrf.mxu0
  %v673 = vadd.f32 0.0, %v672
  %674 = vdwg.mxu0
  %675 = vmatpush.msra.mxu0 0.0
  %676 = vmatpush.msra.mxu0 0.0
  %677 = vmatpush.msra.mxu0 0.0
  %678 = vmatpush.msra.mxu0 0.0
  %679 = vmatpush.msra.mxu0 0.0
  %680 = vmatpush.msra.mxu0 0.0
  %681 = vmatpush.msra.mxu0 0.0
  %682 = vmatpush.msra.mxu0 0.0
  %683 = vmatpush.msra.mxu0 0.0
  %684 = vmatpush.msra.mxu0 0.0
  %685 = vmatpush.msra.mxu0 0.0
  %686 = vmatpush.msra.mxu0 0.0
  %687 = vmatpush.msra.mxu0 0.0
  %688 = vmatpush.msra.mxu0 0.0
  %689 = vmatpush.msra.mxu0 0.0
  %690 = vmatpush.msra.mxu0 %v370
  %691 = vmatmul.f32.gmra.mxu0 %v339
  %v692 = vpop.f32.mrf.mxu0
  %v693 = vadd.f32 0.0, %v692
  %694 = vmatmul.f32.gmra.mxu0 %v341
  %v695 = vpop.f32.mrf.mxu0
  %v696 = vadd.f32 0.0, %v695
  %697 = vdwg.mxu0
  %698 = vmatpush.msra.mxu0 0.0
  %699 = vmatpush.msra.mxu0 0.0
  %700 = vmatpush.msra.mxu0 0.0
  %701 = vmatpush.msra.mxu0 0.0
  %702 = vmatpush.msra.mxu0 0.0
  %703 = vmatpush.msra.mxu0 0.0
  %704 = vmatpush.msra.mxu0 0.0
  %705 = vmatpush.msra.mxu0 0.0
  %706 = vmatpush.msra.mxu0 0.0
  %707 = vmatpush.msra.mxu0 0.0
  %708 = vmatpush.msra.mxu0 0.0
  %709 = vmatpush.msra.mxu0 0.0
  %710 = vmatpush.msra.mxu0 0.0
  %711 = vmatpush.msra.mxu0 0.0
  %712 = vmatpush.msra.mxu0 0.0
  %713 = vmatpush.msra.mxu0 %v372
  %714 = vmatmul.f32.gmra.mxu0 %v339
  %v715 = vpop.f32.mrf.mxu0
  %v716 = vadd.f32 0.0, %v715
  %717 = vmatmul.f32.gmra.mxu0 %v341
  %v718 = vpop.f32.mrf.mxu0
  %v719 = vadd.f32 0.0, %v718
  %720 = vdwg.mxu0
  %721 = vmatpush.msra.mxu0 0.0
  %722 = vmatpush.msra.mxu0 0.0
  %723 = vmatpush.msra.mxu0 0.0
  %724 = vmatpush.msra.mxu0 0.0
  %725 = vmatpush.msra.mxu0 0.0
  %726 = vmatpush.msra.mxu0 0.0
  %727 = vmatpush.msra.mxu0 0.0
  %728 = vmatpush.msra.mxu0 0.0
  %729 = vmatpush.msra.mxu0 0.0
  %730 = vmatpush.msra.mxu0 0.0
  %731 = vmatpush.msra.mxu0 0.0
  %732 = vmatpush.msra.mxu0 0.0
  %733 = vmatpush.msra.mxu0 0.0
  %734 = vmatpush.msra.mxu0 0.0
  %735 = vmatpush.msra.mxu0 0.0
  %736 = vmatpush.msra.mxu0 %v374
  %737 = vmatmul.f32.gmra.mxu0 %v339
  %v738 = vpop.f32.mrf.mxu0
  %v739 = vadd.f32 0.0, %v738
  %740 = vmatmul.f32.gmra.mxu0 %v341
  %v741 = vpop.f32.mrf.mxu0
  %v742 = vadd.f32 0.0, %v741
  %743 = vdwg.mxu0
  %761 = vrot.lane.b32.xlu0 %v145, 33
  %v762 = vpop.permute.xlu0 %761
  %763 = vrot.lane.b32.xlu0 %v146, 33
  %v764 = vpop.permute.xlu0 %763
  %765 = vrot.lane.b32.xlu0 %v147, 33
  %v766 = vpop.permute.xlu0 %765
  %767 = vrot.lane.b32.xlu0 %v148, 33
  %v768 = vpop.permute.xlu0 %767
  %769 = vrot.lane.b32.xlu0 %v149, 33
  %v770 = vpop.permute.xlu0 %769
  %771 = vrot.lane.b32.xlu0 %v150, 33
  %v772 = vpop.permute.xlu0 %771
  %773 = vrot.lane.b32.xlu0 %v151, 33
  %v774 = vpop.permute.xlu0 %773
  %775 = vrot.lane.b32.xlu0 %v152, 33
  %v776 = vpop.permute.xlu0 %775
  %777 = vrot.lane.b32.xlu0 %v153, 33
  %v778 = vpop.permute.xlu0 %777
  %779 = vrot.lane.b32.xlu0 %v154, 33
  %v780 = vpop.permute.xlu0 %779
  %781 = vrot.lane.b32.xlu0 %v155, 33
  %v782 = vpop.permute.xlu0 %781
  %783 = vrot.lane.b32.xlu0 %v156, 33
  %v784 = vpop.permute.xlu0 %783
  %785 = vrot.lane.b32.xlu0 %v157, 33
  %v786 = vpop.permute.xlu0 %785
  %787 = vrot.lane.b32.xlu0 %v158, 33
  %v788 = vpop.permute.xlu0 %787
  %789 = vrot.lane.b32.xlu0 %v159, 33
  %v790 = vpop.permute.xlu0 %789
  %791 = vrot.lane.b32.xlu0 %v160, 33
  %v792 = vpop.permute.xlu0 %791
  %793 = vrot.lane.b32.xlu0 %v161, 33
  %v794 = vpop.permute.xlu0 %793
  %vm795 = vcmask 269312
  %v796 = vsel %vm795, %v762, %v764
  %v797 = vsel %vm795, %v764, %v766
  %v798 = vsel %vm795, %v766, %v768
  %v799 = vsel %vm795, %v768, %v770
  %v800 = vsel %vm795, %v770, %v772
  %v801 = vsel %vm795, %v772, %v774
  %v802 = vsel %vm795, %v774, %v776
  %v803 = vsel %vm795, %v776, %v778
  %v804 = vsel %vm795, %v778, %v780
  %v805 = vsel %vm795, %v780, %v782
  %v806 = vsel %vm795, %v782, %v784
  %v807 = vsel %vm795, %v784, %v786
  %v808 = vsel %vm795, %v786, %v788
  %v809 = vsel %vm795, %v788, %v790
  %v810 = vsel %vm795, %v790, %v792
  %v811 = vsel %vm795, %v792, %v794
  %v812 = vsel %vm338, %v162, 0
  %v814 = vsel %vm338, %v163, 0
  %v816 = vsel %vm343, %v796, 0
  %v818 = vsel %vm343, %v797, 0
  %v820 = vsel %vm343, %v798, 0
  %v822 = vsel %vm343, %v799, 0
  %v824 = vsel %vm343, %v800, 0
  %v826 = vsel %vm343, %v801, 0
  %v828 = vsel %vm343, %v802, 0
  %v830 = vsel %vm343, %v803, 0
  %v832 = vsel %vm343, %v804, 0
  %v834 = vsel %vm343, %v805, 0
  %v836 = vsel %vm343, %v806, 0
  %v838 = vsel %vm343, %v807, 0
  %v840 = vsel %vm343, %v808, 0
  %v842 = vsel %vm343, %v809, 0
  %v844 = vsel %vm343, %v810, 0
  %v846 = vsel %vm343, %v811, 0
  %848 = vmatpush.msra.mxu0 0.0
  %849 = vmatpush.msra.mxu0 0.0
  %850 = vmatpush.msra.mxu0 0.0
  %851 = vmatpush.msra.mxu0 0.0
  %852 = vmatpush.msra.mxu0 0.0
  %853 = vmatpush.msra.mxu0 0.0
  %854 = vmatpush.msra.mxu0 0.0
  %855 = vmatpush.msra.mxu0 0.0
  %856 = vmatpush.msra.mxu0 0.0
  %857 = vmatpush.msra.mxu0 0.0
  %858 = vmatpush.msra.mxu0 0.0
  %859 = vmatpush.msra.mxu0 0.0
  %860 = vmatpush.msra.mxu0 0.0
  %861 = vmatpush.msra.mxu0 0.0
  %862 = vmatpush.msra.mxu0 0.0
  %863 = vmatpush.msra.mxu0 %v816
  %864 = vmatmul.f32.gmra.mxu0 %v812
  %v865 = vpop.f32.mrf.mxu0
  %v866 = vadd.f32 %v394, %v865
  %867 = vmatmul.f32.gmra.mxu0 %v814
  %v868 = vpop.f32.mrf.mxu0
  %v869 = vadd.f32 %v397, %v868
  %870 = vdwg.mxu0
  %871 = vmatpush.msra.mxu0 0.0
  %872 = vmatpush.msra.mxu0 0.0
  %873 = vmatpush.msra.mxu0 0.0
  %874 = vmatpush.msra.mxu0 0.0
  %875 = vmatpush.msra.mxu0 0.0
  %876 = vmatpush.msra.mxu0 0.0
  %877 = vmatpush.msra.mxu0 0.0
  %878 = vmatpush.msra.mxu0 0.0
  %879 = vmatpush.msra.mxu0 0.0
  %880 = vmatpush.msra.mxu0 0.0
  %881 = vmatpush.msra.mxu0 0.0
  %882 = vmatpush.msra.mxu0 0.0
  %883 = vmatpush.msra.mxu0 0.0
  %884 = vmatpush.msra.mxu0 0.0
  %885 = vmatpush.msra.mxu0 0.0
  %886 = vmatpush.msra.mxu0 %v818
  %887 = vmatmul.f32.gmra.mxu0 %v812
  %v888 = vpop.f32.mrf.mxu0
  %v889 = vadd.f32 %v417, %v888
  %890 = vmatmul.f32.gmra.mxu0 %v814
  %v891 = vpop.f32.mrf.mxu0
  %v892 = vadd.f32 %v420, %v891
  %893 = vdwg.mxu0
  %894 = vmatpush.msra.mxu0 0.0
  %895 = vmatpush.msra.mxu0 0.0
  %896 = vmatpush.msra.mxu0 0.0
  %897 = vmatpush.msra.mxu0 0.0
  %898 = vmatpush.msra.mxu0 0.0
  %899 = vmatpush.msra.mxu0 0.0
  %900 = vmatpush.msra.mxu0 0.0
  %901 = vmatpush.msra.mxu0 0.0
  %902 = vmatpush.msra.mxu0 0.0
  %903 = vmatpush.msra.mxu0 0.0
  %904 = vmatpush.msra.mxu0 0.0
  %905 = vmatpush.msra.mxu0 0.0
  %906 = vmatpush.msra.mxu0 0.0
  %907 = vmatpush.msra.mxu0 0.0
  %908 = vmatpush.msra.mxu0 0.0
  %909 = vmatpush.msra.mxu0 %v820
  %910 = vmatmul.f32.gmra.mxu0 %v812
  %v911 = vpop.f32.mrf.mxu0
  %v912 = vadd.f32 %v440, %v911
  %913 = vmatmul.f32.gmra.mxu0 %v814
  %v914 = vpop.f32.mrf.mxu0
  %v915 = vadd.f32 %v443, %v914
  %916 = vdwg.mxu0
  %917 = vmatpush.msra.mxu0 0.0
  %918 = vmatpush.msra.mxu0 0.0
  %919 = vmatpush.msra.mxu0 0.0
  %920 = vmatpush.msra.mxu0 0.0
  %921 = vmatpush.msra.mxu0 0.0
  %922 = vmatpush.msra.mxu0 0.0
  %923 = vmatpush.msra.mxu0 0.0
  %924 = vmatpush.msra.mxu0 0.0
  %925 = vmatpush.msra.mxu0 0.0
  %926 = vmatpush.msra.mxu0 0.0
  %927 = vmatpush.msra.mxu0 0.0
  %928 = vmatpush.msra.mxu0 0.0
  %929 = vmatpush.msra.mxu0 0.0
  %930 = vmatpush.msra.mxu0 0.0
  %931 = vmatpush.msra.mxu0 0.0
  %932 = vmatpush.msra.mxu0 %v822
  %933 = vmatmul.f32.gmra.mxu0 %v812
  %v934 = vpop.f32.mrf.mxu0
  %v935 = vadd.f32 %v463, %v934
  %936 = vmatmul.f32.gmra.mxu0 %v814
  %v937 = vpop.f32.mrf.mxu0
  %v938 = vadd.f32 %v466, %v937
  %939 = vdwg.mxu0
  %940 = vmatpush.msra.mxu0 0.0
  %941 = vmatpush.msra.mxu0 0.0
  %942 = vmatpush.msra.mxu0 0.0
  %943 = vmatpush.msra.mxu0 0.0
  %944 = vmatpush.msra.mxu0 0.0
  %945 = vmatpush.msra.mxu0 0.0
  %946 = vmatpush.msra.mxu0 0.0
  %947 = vmatpush.msra.mxu0 0.0
  %948 = vmatpush.msra.mxu0 0.0
  %949 = vmatpush.msra.mxu0 0.0
  %950 = vmatpush.msra.mxu0 0.0
  %951 = vmatpush.msra.mxu0 0.0
  %952 = vmatpush.msra.mxu0 0.0
  %953 = vmatpush.msra.mxu0 0.0
  %954 = vmatpush.msra.mxu0 0.0
  %955 = vmatpush.msra.mxu0 %v824
  %956 = vmatmul.f32.gmra.mxu0 %v812
  %v957 = vpop.f32.mrf.mxu0
  %v958 = vadd.f32 %v486, %v957
  %959 = vmatmul.f32.gmra.mxu0 %v814
  %v960 = vpop.f32.mrf.mxu0
  %v961 = vadd.f32 %v489, %v960
  %962 = vdwg.mxu0
  %963 = vmatpush.msra.mxu0 0.0
  %964 = vmatpush.msra.mxu0 0.0
  %965 = vmatpush.msra.mxu0 0.0
  %966 = vmatpush.msra.mxu0 0.0
  %967 = vmatpush.msra.mxu0 0.0
  %968 = vmatpush.msra.mxu0 0.0
  %969 = vmatpush.msra.mxu0 0.0
  %970 = vmatpush.msra.mxu0 0.0
  %971 = vmatpush.msra.mxu0 0.0
  %972 = vmatpush.msra.mxu0 0.0
  %973 = vmatpush.msra.mxu0 0.0
  %974 = vmatpush.msra.mxu0 0.0
  %975 = vmatpush.msra.mxu0 0.0
  %976 = vmatpush.msra.mxu0 0.0
  %977 = vmatpush.msra.mxu0 0.0
  %978 = vmatpush.msra.mxu0 %v826
  %979 = vmatmul.f32.gmra.mxu0 %v812
  %v980 = vpop.f32.mrf.mxu0
  %v981 = vadd.f32 %v509, %v980
  %982 = vmatmul.f32.gmra.mxu0 %v814
  %v983 = vpop.f32.mrf.mxu0
  %v984 = vadd.f32 %v512, %v983
  %985 = vdwg.mxu0
  %986 = vmatpush.msra.mxu0 0.0
  %987 = vmatpush.msra.mxu0 0.0
  %988 = vmatpush.msra.mxu0 0.0
  %989 = vmatpush.msra.mxu0 0.0
  %990 = vmatpush.msra.mxu0 0.0
  %991 = vmatpush.msra.mxu0 0.0
  %992 = vmatpush.msra.mxu0 0.0
  %993 = vmatpush.msra.mxu0 0.0
  %994 = vmatpush.msra.mxu0 0.0
  %995 = vmatpush.msra.mxu0 0.0
  %996 = vmatpush.msra.mxu0 0.0
  %997 = vmatpush.msra.mxu0 0.0
  %998 = vmatpush.msra.mxu0 0.0
  %999 = vmatpush.msra.mxu0 0.0
  %1000 = vmatpush.msra.mxu0 0.0
  %1001 = vmatpush.msra.mxu0 %v828
  %1002 = vmatmul.f32.gmra.mxu0 %v812
  %v1003 = vpop.f32.mrf.mxu0
  %v1004 = vadd.f32 %v532, %v1003
  %1005 = vmatmul.f32.gmra.mxu0 %v814
  %v1006 = vpop.f32.mrf.mxu0
  %v1007 = vadd.f32 %v535, %v1006
  %1008 = vdwg.mxu0
  %1009 = vmatpush.msra.mxu0 0.0
  %1010 = vmatpush.msra.mxu0 0.0
  %1011 = vmatpush.msra.mxu0 0.0
  %1012 = vmatpush.msra.mxu0 0.0
  %1013 = vmatpush.msra.mxu0 0.0
  %1014 = vmatpush.msra.mxu0 0.0
  %1015 = vmatpush.msra.mxu0 0.0
  %1016 = vmatpush.msra.mxu0 0.0
  %1017 = vmatpush.msra.mxu0 0.0
  %1018 = vmatpush.msra.mxu0 0.0
  %1019 = vmatpush.msra.mxu0 0.0
  %1020 = vmatpush.msra.mxu0 0.0
  %1021 = vmatpush.msra.mxu0 0.0
  %1022 = vmatpush.msra.mxu0 0.0
  %1023 = vmatpush.msra.mxu0 0.0
  %1024 = vmatpush.msra.mxu0 %v830
  %1025 = vmatmul.f32.gmra.mxu0 %v812
  %v1026 = vpop.f32.mrf.mxu0
  %v1027 = vadd.f32 %v555, %v1026
  %1028 = vmatmul.f32.gmra.mxu0 %v814
  %v1029 = vpop.f32.mrf.mxu0
  %v1030 = vadd.f32 %v558, %v1029
  %1031 = vdwg.mxu0
  %1032 = vmatpush.msra.mxu0 0.0
  %1033 = vmatpush.msra.mxu0 0.0
  %1034 = vmatpush.msra.mxu0 0.0
  %1035 = vmatpush.msra.mxu0 0.0
  %1036 = vmatpush.msra.mxu0 0.0
  %1037 = vmatpush.msra.mxu0 0.0
  %1038 = vmatpush.msra.mxu0 0.0
  %1039 = vmatpush.msra.mxu0 0.0
  %1040 = vmatpush.msra.mxu0 0.0
  %1041 = vmatpush.msra.mxu0 0.0
  %1042 = vmatpush.msra.mxu0 0.0
  %1043 = vmatpush.msra.mxu0 0.0
  %1044 = vmatpush.msra.mxu0 0.0
  %1045 = vmatpush.msra.mxu0 0.0
  %1046 = vmatpush.msra.mxu0 0.0
  %1047 = vmatpush.msra.mxu0 %v832
  %1048 = vmatmul.f32.gmra.mxu0 %v812
  %v1049 = vpop.f32.mrf.mxu0
  %v1050 = vadd.f32 %v578, %v1049
  %1051 = vmatmul.f32.gmra.mxu0 %v814
  %v1052 = vpop.f32.mrf.mxu0
  %v1053 = vadd.f32 %v581, %v1052
  %1054 = vdwg.mxu0
  %1055 = vmatpush.msra.mxu0 0.0
  %1056 = vmatpush.msra.mxu0 0.0
  %1057 = vmatpush.msra.mxu0 0.0
  %1058 = vmatpush.msra.mxu0 0.0
  %1059 = vmatpush.msra.mxu0 0.0
  %1060 = vmatpush.msra.mxu0 0.0
  %1061 = vmatpush.msra.mxu0 0.0
  %1062 = vmatpush.msra.mxu0 0.0
  %1063 = vmatpush.msra.mxu0 0.0
  %1064 = vmatpush.msra.mxu0 0.0
  %1065 = vmatpush.msra.mxu0 0.0
  %1066 = vmatpush.msra.mxu0 0.0
  %1067 = vmatpush.msra.mxu0 0.0
  %1068 = vmatpush.msra.mxu0 0.0
  %1069 = vmatpush.msra.mxu0 0.0
  %1070 = vmatpush.msra.mxu0 %v834
  %1071 = vmatmul.f32.gmra.mxu0 %v812
  %v1072 = vpop.f32.mrf.mxu0
  %v1073 = vadd.f32 %v601, %v1072
  %1074 = vmatmul.f32.gmra.mxu0 %v814
  %v1075 = vpop.f32.mrf.mxu0
  %v1076 = vadd.f32 %v604, %v1075
  %1077 = vdwg.mxu0
  %1078 = vmatpush.msra.mxu0 0.0
  %1079 = vmatpush.msra.mxu0 0.0
  %1080 = vmatpush.msra.mxu0 0.0
  %1081 = vmatpush.msra.mxu0 0.0
  %1082 = vmatpush.msra.mxu0 0.0
  %1083 = vmatpush.msra.mxu0 0.0
  %1084 = vmatpush.msra.mxu0 0.0
  %1085 = vmatpush.msra.mxu0 0.0
  %1086 = vmatpush.msra.mxu0 0.0
  %1087 = vmatpush.msra.mxu0 0.0
  %1088 = vmatpush.msra.mxu0 0.0
  %1089 = vmatpush.msra.mxu0 0.0
  %1090 = vmatpush.msra.mxu0 0.0
  %1091 = vmatpush.msra.mxu0 0.0
  %1092 = vmatpush.msra.mxu0 0.0
  %1093 = vmatpush.msra.mxu0 %v836
  %1094 = vmatmul.f32.gmra.mxu0 %v812
  %v1095 = vpop.f32.mrf.mxu0
  %v1096 = vadd.f32 %v624, %v1095
  %1097 = vmatmul.f32.gmra.mxu0 %v814
  %v1098 = vpop.f32.mrf.mxu0
  %v1099 = vadd.f32 %v627, %v1098
  %1100 = vdwg.mxu0
  %1101 = vmatpush.msra.mxu0 0.0
  %1102 = vmatpush.msra.mxu0 0.0
  %1103 = vmatpush.msra.mxu0 0.0
  %1104 = vmatpush.msra.mxu0 0.0
  %1105 = vmatpush.msra.mxu0 0.0
  %1106 = vmatpush.msra.mxu0 0.0
  %1107 = vmatpush.msra.mxu0 0.0
  %1108 = vmatpush.msra.mxu0 0.0
  %1109 = vmatpush.msra.mxu0 0.0
  %1110 = vmatpush.msra.mxu0 0.0
  %1111 = vmatpush.msra.mxu0 0.0
  %1112 = vmatpush.msra.mxu0 0.0
  %1113 = vmatpush.msra.mxu0 0.0
  %1114 = vmatpush.msra.mxu0 0.0
  %1115 = vmatpush.msra.mxu0 0.0
  %1116 = vmatpush.msra.mxu0 %v838
  %1117 = vmatmul.f32.gmra.mxu0 %v812
  %v1118 = vpop.f32.mrf.mxu0
  %v1119 = vadd.f32 %v647, %v1118
  %1120 = vmatmul.f32.gmra.mxu0 %v814
  %v1121 = vpop.f32.mrf.mxu0
  %v1122 = vadd.f32 %v650, %v1121
  %1123 = vdwg.mxu0
  %1124 = vmatpush.msra.mxu0 0.0
  %1125 = vmatpush.msra.mxu0 0.0
  %1126 = vmatpush.msra.mxu0 0.0
  %1127 = vmatpush.msra.mxu0 0.0
  %1128 = vmatpush.msra.mxu0 0.0
  %1129 = vmatpush.msra.mxu0 0.0
  %1130 = vmatpush.msra.mxu0 0.0
  %1131 = vmatpush.msra.mxu0 0.0
  %1132 = vmatpush.msra.mxu0 0.0
  %1133 = vmatpush.msra.mxu0 0.0
  %1134 = vmatpush.msra.mxu0 0.0
  %1135 = vmatpush.msra.mxu0 0.0
  %1136 = vmatpush.msra.mxu0 0.0
  %1137 = vmatpush.msra.mxu0 0.0
  %1138 = vmatpush.msra.mxu0 0.0
  %1139 = vmatpush.msra.mxu0 %v840
  %1140 = vmatmul.f32.gmra.mxu0 %v812
  %v1141 = vpop.f32.mrf.mxu0
  %v1142 = vadd.f32 %v670, %v1141
  %1143 = vmatmul.f32.gmra.mxu0 %v814
  %v1144 = vpop.f32.mrf.mxu0
  %v1145 = vadd.f32 %v673, %v1144
  %1146 = vdwg.mxu0
  %1147 = vmatpush.msra.mxu0 0.0
  %1148 = vmatpush.msra.mxu0 0.0
  %1149 = vmatpush.msra.mxu0 0.0
  %1150 = vmatpush.msra.mxu0 0.0
  %1151 = vmatpush.msra.mxu0 0.0
  %1152 = vmatpush.msra.mxu0 0.0
  %1153 = vmatpush.msra.mxu0 0.0
  %1154 = vmatpush.msra.mxu0 0.0
  %1155 = vmatpush.msra.mxu0 0.0
  %1156 = vmatpush.msra.mxu0 0.0
  %1157 = vmatpush.msra.mxu0 0.0
  %1158 = vmatpush.msra.mxu0 0.0
  %1159 = vmatpush.msra.mxu0 0.0
  %1160 = vmatpush.msra.mxu0 0.0
  %1161 = vmatpush.msra.mxu0 0.0
  %1162 = vmatpush.msra.mxu0 %v842
  %1163 = vmatmul.f32.gmra.mxu0 %v812
  %v1164 = vpop.f32.mrf.mxu0
  %v1165 = vadd.f32 %v693, %v1164
  %1166 = vmatmul.f32.gmra.mxu0 %v814
  %v1167 = vpop.f32.mrf.mxu0
  %v1168 = vadd.f32 %v696, %v1167
  %1169 = vdwg.mxu0
  %1170 = vmatpush.msra.mxu0 0.0
  %1171 = vmatpush.msra.mxu0 0.0
  %1172 = vmatpush.msra.mxu0 0.0
  %1173 = vmatpush.msra.mxu0 0.0
  %1174 = vmatpush.msra.mxu0 0.0
  %1175 = vmatpush.msra.mxu0 0.0
  %1176 = vmatpush.msra.mxu0 0.0
  %1177 = vmatpush.msra.mxu0 0.0
  %1178 = vmatpush.msra.mxu0 0.0
  %1179 = vmatpush.msra.mxu0 0.0
  %1180 = vmatpush.msra.mxu0 0.0
  %1181 = vmatpush.msra.mxu0 0.0
  %1182 = vmatpush.msra.mxu0 0.0
  %1183 = vmatpush.msra.mxu0 0.0
  %1184 = vmatpush.msra.mxu0 0.0
  %1185 = vmatpush.msra.mxu0 %v844
  %1186 = vmatmul.f32.gmra.mxu0 %v812
  %v1187 = vpop.f32.mrf.mxu0
  %v1188 = vadd.f32 %v716, %v1187
  %1189 = vmatmul.f32.gmra.mxu0 %v814
  %v1190 = vpop.f32.mrf.mxu0
  %v1191 = vadd.f32 %v719, %v1190
  %1192 = vdwg.mxu0
  %1193 = vmatpush.msra.mxu0 0.0
  %1194 = vmatpush.msra.mxu0 0.0
  %1195 = vmatpush.msra.mxu0 0.0
  %1196 = vmatpush.msra.mxu0 0.0
  %1197 = vmatpush.msra.mxu0 0.0
  %1198 = vmatpush.msra.mxu0 0.0
  %1199 = vmatpush.msra.mxu0 0.0
  %1200 = vmatpush.msra.mxu0 0.0
  %1201 = vmatpush.msra.mxu0 0.0
  %1202 = vmatpush.msra.mxu0 0.0
  %1203 = vmatpush.msra.mxu0 0.0
  %1204 = vmatpush.msra.mxu0 0.0
  %1205 = vmatpush.msra.mxu0 0.0
  %1206 = vmatpush.msra.mxu0 0.0
  %1207 = vmatpush.msra.mxu0 0.0
  %1208 = vmatpush.msra.mxu0 %v846
  %1209 = vmatmul.f32.gmra.mxu0 %v812
  %v1210 = vpop.f32.mrf.mxu0
  %v1211 = vadd.f32 %v739, %v1210
  %1212 = vmatmul.f32.gmra.mxu0 %v814
  %v1213 = vpop.f32.mrf.mxu0
  %v1214 = vadd.f32 %v742, %v1213
  %1215 = vdwg.mxu0
  %v1216 = vmul.f32 %v14, %v38
  %v1217 = vmul.f32 %v18, %v42
  %v1220 = vperm.slane %v1216, 0
  %v1221 = vperm.slane %v1216, 1
  %v1222 = vperm.slane %v1216, 2
  %v1223 = vperm.slane %v1216, 3
  %v1224 = vperm.slane %v1216, 4
  %v1225 = vperm.slane %v1216, 5
  %v1226 = vperm.slane %v1216, 6
  %v1227 = vperm.slane %v1216, 7
  %v1228 = vperm.slane %v1217, 0
  %v1229 = vperm.slane %v1217, 1
  %v1230 = vperm.slane %v1217, 2
  %v1231 = vperm.slane %v1217, 3
  %v1232 = vperm.slane %v1217, 4
  %v1233 = vperm.slane %v1217, 5
  %v1234 = vperm.slane %v1217, 6
  %v1235 = vperm.slane %v1217, 7
  %1236 = vrot.lane.b32.xlu0 %v1220, 97
  %v1237 = vpop.permute.xlu0 %1236
  %1238 = vrot.lane.b32.xlu0 %v1221, 97
  %v1239 = vpop.permute.xlu0 %1238
  %1240 = vrot.lane.b32.xlu0 %v1222, 97
  %v1241 = vpop.permute.xlu0 %1240
  %1242 = vrot.lane.b32.xlu0 %v1223, 97
  %v1243 = vpop.permute.xlu0 %1242
  %1244 = vrot.lane.b32.xlu0 %v1224, 97
  %v1245 = vpop.permute.xlu0 %1244
  %1246 = vrot.lane.b32.xlu0 %v1225, 97
  %v1247 = vpop.permute.xlu0 %1246
  %1248 = vrot.lane.b32.xlu0 %v1226, 97
  %v1249 = vpop.permute.xlu0 %1248
  %1250 = vrot.lane.b32.xlu0 %v1227, 97
  %v1251 = vpop.permute.xlu0 %1250
  %1252 = vrot.lane.b32.xlu0 %v1228, 97
  %v1253 = vpop.permute.xlu0 %1252
  %1254 = vrot.lane.b32.xlu0 %v1229, 97
  %v1255 = vpop.permute.xlu0 %1254
  %1256 = vrot.lane.b32.xlu0 %v1230, 97
  %v1257 = vpop.permute.xlu0 %1256
  %1258 = vrot.lane.b32.xlu0 %v1231, 97
  %v1259 = vpop.permute.xlu0 %1258
  %1260 = vrot.lane.b32.xlu0 %v1232, 97
  %v1261 = vpop.permute.xlu0 %1260
  %1262 = vrot.lane.b32.xlu0 %v1233, 97
  %v1263 = vpop.permute.xlu0 %1262
  %1264 = vrot.lane.b32.xlu0 %v1234, 97
  %v1265 = vpop.permute.xlu0 %1264
  %1266 = vrot.lane.b32.xlu0 %v1235, 97
  %v1267 = vpop.permute.xlu0 %1266
  %vm1268 = vcmask 793600
  %v1269 = vsel %vm1268, %v1237, %v1239
  %v1270 = vsel %vm1268, %v1239, %v1241
  %v1271 = vsel %vm1268, %v1241, %v1243
  %v1272 = vsel %vm1268, %v1243, %v1245
  %v1273 = vsel %vm1268, %v1245, %v1247
  %v1274 = vsel %vm1268, %v1247, %v1249
  %v1275 = vsel %vm1268, %v1249, %v1251
  %v1276 = vsel %vm1268, %v1251, %v1253
  %v1277 = vsel %vm1268, %v1253, %v1255
  %v1278 = vsel %vm1268, %v1255, %v1257
  %v1279 = vsel %vm1268, %v1257, %v1259
  %v1280 = vsel %vm1268, %v1259, %v1261
  %v1281 = vsel %vm1268, %v1261, %v1263
  %v1282 = vsel %vm1268, %v1263, %v1265
  %v1283 = vsel %vm1268, %v1265, %v1267
  %v1301 = vmul.f32 %v43, %v1237
  %v1302 = vmul.f32 %v44, %v1269
  %v1303 = vmul.f32 %v45, %v1270
  %v1304 = vmul.f32 %v46, %v1271
  %v1305 = vmul.f32 %v47, %v1272
  %v1306 = vmul.f32 %v48, %v1273
  %v1307 = vmul.f32 %v49, %v1274
  %v1308 = vmul.f32 %v50, %v1275
  %v1309 = vmul.f32 %v51, %v1276
  %v1310 = vmul.f32 %v52, %v1277
  %v1311 = vmul.f32 %v53, %v1278
  %v1312 = vmul.f32 %v54, %v1279
  %v1313 = vmul.f32 %v55, %v1280
  %v1314 = vmul.f32 %v56, %v1281
  %v1315 = vmul.f32 %v57, %v1282
  %v1316 = vmul.f32 %v58, %v1283
  %v1317 = vmul.f32 %v59, %v1267
  %1318 = vrot.lane.b32.xlu0 %v162, 120
  %v1319 = vpop.permute.xlu0 %1318
  %1320 = vrot.lane.b32.xlu0 %v163, 120
  %v1321 = vpop.permute.xlu0 %1320
  %1339 = vrot.lane.b32.xlu0 %v1301, 31
  %v1340 = vpop.permute.xlu0 %1339
  %1341 = vrot.lane.b32.xlu0 %v1302, 31
  %v1342 = vpop.permute.xlu0 %1341
  %1343 = vrot.lane.b32.xlu0 %v1303, 31
  %v1344 = vpop.permute.xlu0 %1343
  %1345 = vrot.lane.b32.xlu0 %v1304, 31
  %v1346 = vpop.permute.xlu0 %1345
  %1347 = vrot.lane.b32.xlu0 %v1305, 31
  %v1348 = vpop.permute.xlu0 %1347
  %1349 = vrot.lane.b32.xlu0 %v1306, 31
  %v1350 = vpop.permute.xlu0 %1349
  %1351 = vrot.lane.b32.xlu0 %v1307, 31
  %v1352 = vpop.permute.xlu0 %1351
  %1353 = vrot.lane.b32.xlu0 %v1308, 31
  %v1354 = vpop.permute.xlu0 %1353
  %1355 = vrot.lane.b32.xlu0 %v1309, 31
  %v1356 = vpop.permute.xlu0 %1355
  %1357 = vrot.lane.b32.xlu0 %v1310, 31
  %v1358 = vpop.permute.xlu0 %1357
  %1359 = vrot.lane.b32.xlu0 %v1311, 31
  %v1360 = vpop.permute.xlu0 %1359
  %1361 = vrot.lane.b32.xlu0 %v1312, 31
  %v1362 = vpop.permute.xlu0 %1361
  %1363 = vrot.lane.b32.xlu0 %v1313, 31
  %v1364 = vpop.permute.xlu0 %1363
  %1365 = vrot.lane.b32.xlu0 %v1314, 31
  %v1366 = vpop.permute.xlu0 %1365
  %1367 = vrot.lane.b32.xlu0 %v1315, 31
  %v1368 = vpop.permute.xlu0 %1367
  %1369 = vrot.lane.b32.xlu0 %v1316, 31
  %v1370 = vpop.permute.xlu0 %1369
  %1371 = vrot.lane.b32.xlu0 %v1317, 31
  %v1372 = vpop.permute.xlu0 %1371
  %vm1373 = vcmask 252928
  %v1374 = vsel %vm1373, %v1340, %v1342
  %v1375 = vsel %vm1373, %v1342, %v1344
  %v1376 = vsel %vm1373, %v1344, %v1346
  %v1377 = vsel %vm1373, %v1346, %v1348
  %v1378 = vsel %vm1373, %v1348, %v1350
  %v1379 = vsel %vm1373, %v1350, %v1352
  %v1380 = vsel %vm1373, %v1352, %v1354
  %v1381 = vsel %vm1373, %v1354, %v1356
  %v1382 = vsel %vm1373, %v1356, %v1358
  %v1383 = vsel %vm1373, %v1358, %v1360
  %v1384 = vsel %vm1373, %v1360, %v1362
  %v1385 = vsel %vm1373, %v1362, %v1364
  %v1386 = vsel %vm1373, %v1364, %v1366
  %v1387 = vsel %vm1373, %v1366, %v1368
  %v1388 = vsel %vm1373, %v1368, %v1370
  %v1389 = vsel %vm1373, %v1370, %v1372
  %v1390 = vsel %vm338, %v1319, 0
  %v1392 = vsel %vm338, %v1321, 0
  %v1394 = vsel %vm343, %v1374, 0
  %v1396 = vsel %vm343, %v1375, 0
  %v1398 = vsel %vm343, %v1376, 0
  %v1400 = vsel %vm343, %v1377, 0
  %v1402 = vsel %vm343, %v1378, 0
  %v1404 = vsel %vm343, %v1379, 0
  %v1406 = vsel %vm343, %v1380, 0
  %v1408 = vsel %vm343, %v1381, 0
  %v1410 = vsel %vm343, %v1382, 0
  %v1412 = vsel %vm343, %v1383, 0
  %v1414 = vsel %vm343, %v1384, 0
  %v1416 = vsel %vm343, %v1385, 0
  %v1418 = vsel %vm343, %v1386, 0
  %v1420 = vsel %vm343, %v1387, 0
  %v1422 = vsel %vm343, %v1388, 0
  %v1424 = vsel %vm343, %v1389, 0
  %1426 = vmatpush.msra.mxu0 0.0
  %1427 = vmatpush.msra.mxu0 0.0
  %1428 = vmatpush.msra.mxu0 0.0
  %1429 = vmatpush.msra.mxu0 0.0
  %1430 = vmatpush.msra.mxu0 0.0
  %1431 = vmatpush.msra.mxu0 0.0
  %1432 = vmatpush.msra.mxu0 0.0
  %1433 = vmatpush.msra.mxu0 0.0
  %1434 = vmatpush.msra.mxu0 0.0
  %1435 = vmatpush.msra.mxu0 0.0
  %1436 = vmatpush.msra.mxu0 0.0
  %1437 = vmatpush.msra.mxu0 0.0
  %1438 = vmatpush.msra.mxu0 0.0
  %1439 = vmatpush.msra.mxu0 0.0
  %1440 = vmatpush.msra.mxu0 0.0
  %1441 = vmatpush.msra.mxu0 %v1394
  %1442 = vmatmul.f32.gmra.mxu0 %v1390
  %v1443 = vpop.f32.mrf.mxu0
  %v1444 = vadd.f32 0.0, %v1443
  %1445 = vmatmul.f32.gmra.mxu0 %v1392
  %v1446 = vpop.f32.mrf.mxu0
  %v1447 = vadd.f32 0.0, %v1446
  %1448 = vdwg.mxu0
  %1449 = vmatpush.msra.mxu0 0.0
  %1450 = vmatpush.msra.mxu0 0.0
  %1451 = vmatpush.msra.mxu0 0.0
  %1452 = vmatpush.msra.mxu0 0.0
  %1453 = vmatpush.msra.mxu0 0.0
  %1454 = vmatpush.msra.mxu0 0.0
  %1455 = vmatpush.msra.mxu0 0.0
  %1456 = vmatpush.msra.mxu0 0.0
  %1457 = vmatpush.msra.mxu0 0.0
  %1458 = vmatpush.msra.mxu0 0.0
  %1459 = vmatpush.msra.mxu0 0.0
  %1460 = vmatpush.msra.mxu0 0.0
  %1461 = vmatpush.msra.mxu0 0.0
  %1462 = vmatpush.msra.mxu0 0.0
  %1463 = vmatpush.msra.mxu0 0.0
  %1464 = vmatpush.msra.mxu0 %v1396
  %1465 = vmatmul.f32.gmra.mxu0 %v1390
  %v1466 = vpop.f32.mrf.mxu0
  %v1467 = vadd.f32 0.0, %v1466
  %1468 = vmatmul.f32.gmra.mxu0 %v1392
  %v1469 = vpop.f32.mrf.mxu0
  %v1470 = vadd.f32 0.0, %v1469
  %1471 = vdwg.mxu0
  %1472 = vmatpush.msra.mxu0 0.0
  %1473 = vmatpush.msra.mxu0 0.0
  %1474 = vmatpush.msra.mxu0 0.0
  %1475 = vmatpush.msra.mxu0 0.0
  %1476 = vmatpush.msra.mxu0 0.0
  %1477 = vmatpush.msra.mxu0 0.0
  %1478 = vmatpush.msra.mxu0 0.0
  %1479 = vmatpush.msra.mxu0 0.0
  %1480 = vmatpush.msra.mxu0 0.0
  %1481 = vmatpush.msra.mxu0 0.0
  %1482 = vmatpush.msra.mxu0 0.0
  %1483 = vmatpush.msra.mxu0 0.0
  %1484 = vmatpush.msra.mxu0 0.0
  %1485 = vmatpush.msra.mxu0 0.0
  %1486 = vmatpush.msra.mxu0 0.0
  %1487 = vmatpush.msra.mxu0 %v1398
  %1488 = vmatmul.f32.gmra.mxu0 %v1390
  %v1489 = vpop.f32.mrf.mxu0
  %v1490 = vadd.f32 0.0, %v1489
  %1491 = vmatmul.f32.gmra.mxu0 %v1392
  %v1492 = vpop.f32.mrf.mxu0
  %v1493 = vadd.f32 0.0, %v1492
  %1494 = vdwg.mxu0
  %1495 = vmatpush.msra.mxu0 0.0
  %1496 = vmatpush.msra.mxu0 0.0
  %1497 = vmatpush.msra.mxu0 0.0
  %1498 = vmatpush.msra.mxu0 0.0
  %1499 = vmatpush.msra.mxu0 0.0
  %1500 = vmatpush.msra.mxu0 0.0
  %1501 = vmatpush.msra.mxu0 0.0
  %1502 = vmatpush.msra.mxu0 0.0
  %1503 = vmatpush.msra.mxu0 0.0
  %1504 = vmatpush.msra.mxu0 0.0
  %1505 = vmatpush.msra.mxu0 0.0
  %1506 = vmatpush.msra.mxu0 0.0
  %1507 = vmatpush.msra.mxu0 0.0
  %1508 = vmatpush.msra.mxu0 0.0
  %1509 = vmatpush.msra.mxu0 0.0
  %1510 = vmatpush.msra.mxu0 %v1400
  %1511 = vmatmul.f32.gmra.mxu0 %v1390
  %v1512 = vpop.f32.mrf.mxu0
  %v1513 = vadd.f32 0.0, %v1512
  %1514 = vmatmul.f32.gmra.mxu0 %v1392
  %v1515 = vpop.f32.mrf.mxu0
  %v1516 = vadd.f32 0.0, %v1515
  %1517 = vdwg.mxu0
  %1518 = vmatpush.msra.mxu0 0.0
  %1519 = vmatpush.msra.mxu0 0.0
  %1520 = vmatpush.msra.mxu0 0.0
  %1521 = vmatpush.msra.mxu0 0.0
  %1522 = vmatpush.msra.mxu0 0.0
  %1523 = vmatpush.msra.mxu0 0.0
  %1524 = vmatpush.msra.mxu0 0.0
  %1525 = vmatpush.msra.mxu0 0.0
  %1526 = vmatpush.msra.mxu0 0.0
  %1527 = vmatpush.msra.mxu0 0.0
  %1528 = vmatpush.msra.mxu0 0.0
  %1529 = vmatpush.msra.mxu0 0.0
  %1530 = vmatpush.msra.mxu0 0.0
  %1531 = vmatpush.msra.mxu0 0.0
  %1532 = vmatpush.msra.mxu0 0.0
  %1533 = vmatpush.msra.mxu0 %v1402
  %1534 = vmatmul.f32.gmra.mxu0 %v1390
  %v1535 = vpop.f32.mrf.mxu0
  %v1536 = vadd.f32 0.0, %v1535
  %1537 = vmatmul.f32.gmra.mxu0 %v1392
  %v1538 = vpop.f32.mrf.mxu0
  %v1539 = vadd.f32 0.0, %v1538
  %1540 = vdwg.mxu0
  %1541 = vmatpush.msra.mxu0 0.0
  %1542 = vmatpush.msra.mxu0 0.0
  %1543 = vmatpush.msra.mxu0 0.0
  %1544 = vmatpush.msra.mxu0 0.0
  %1545 = vmatpush.msra.mxu0 0.0
  %1546 = vmatpush.msra.mxu0 0.0
  %1547 = vmatpush.msra.mxu0 0.0
  %1548 = vmatpush.msra.mxu0 0.0
  %1549 = vmatpush.msra.mxu0 0.0
  %1550 = vmatpush.msra.mxu0 0.0
  %1551 = vmatpush.msra.mxu0 0.0
  %1552 = vmatpush.msra.mxu0 0.0
  %1553 = vmatpush.msra.mxu0 0.0
  %1554 = vmatpush.msra.mxu0 0.0
  %1555 = vmatpush.msra.mxu0 0.0
  %1556 = vmatpush.msra.mxu0 %v1404
  %1557 = vmatmul.f32.gmra.mxu0 %v1390
  %v1558 = vpop.f32.mrf.mxu0
  %v1559 = vadd.f32 0.0, %v1558
  %1560 = vmatmul.f32.gmra.mxu0 %v1392
  %v1561 = vpop.f32.mrf.mxu0
  %v1562 = vadd.f32 0.0, %v1561
  %1563 = vdwg.mxu0
  %1564 = vmatpush.msra.mxu0 0.0
  %1565 = vmatpush.msra.mxu0 0.0
  %1566 = vmatpush.msra.mxu0 0.0
  %1567 = vmatpush.msra.mxu0 0.0
  %1568 = vmatpush.msra.mxu0 0.0
  %1569 = vmatpush.msra.mxu0 0.0
  %1570 = vmatpush.msra.mxu0 0.0
  %1571 = vmatpush.msra.mxu0 0.0
  %1572 = vmatpush.msra.mxu0 0.0
  %1573 = vmatpush.msra.mxu0 0.0
  %1574 = vmatpush.msra.mxu0 0.0
  %1575 = vmatpush.msra.mxu0 0.0
  %1576 = vmatpush.msra.mxu0 0.0
  %1577 = vmatpush.msra.mxu0 0.0
  %1578 = vmatpush.msra.mxu0 0.0
  %1579 = vmatpush.msra.mxu0 %v1406
  %1580 = vmatmul.f32.gmra.mxu0 %v1390
  %v1581 = vpop.f32.mrf.mxu0
  %v1582 = vadd.f32 0.0, %v1581
  %1583 = vmatmul.f32.gmra.mxu0 %v1392
  %v1584 = vpop.f32.mrf.mxu0
  %v1585 = vadd.f32 0.0, %v1584
  %1586 = vdwg.mxu0
  %1587 = vmatpush.msra.mxu0 0.0
  %1588 = vmatpush.msra.mxu0 0.0
  %1589 = vmatpush.msra.mxu0 0.0
  %1590 = vmatpush.msra.mxu0 0.0
  %1591 = vmatpush.msra.mxu0 0.0
  %1592 = vmatpush.msra.mxu0 0.0
  %1593 = vmatpush.msra.mxu0 0.0
  %1594 = vmatpush.msra.mxu0 0.0
  %1595 = vmatpush.msra.mxu0 0.0
  %1596 = vmatpush.msra.mxu0 0.0
  %1597 = vmatpush.msra.mxu0 0.0
  %1598 = vmatpush.msra.mxu0 0.0
  %1599 = vmatpush.msra.mxu0 0.0
  %1600 = vmatpush.msra.mxu0 0.0
  %1601 = vmatpush.msra.mxu0 0.0
  %1602 = vmatpush.msra.mxu0 %v1408
  %1603 = vmatmul.f32.gmra.mxu0 %v1390
  %v1604 = vpop.f32.mrf.mxu0
  %v1605 = vadd.f32 0.0, %v1604
  %1606 = vmatmul.f32.gmra.mxu0 %v1392
  %v1607 = vpop.f32.mrf.mxu0
  %v1608 = vadd.f32 0.0, %v1607
  %1609 = vdwg.mxu0
  %1610 = vmatpush.msra.mxu0 0.0
  %1611 = vmatpush.msra.mxu0 0.0
  %1612 = vmatpush.msra.mxu0 0.0
  %1613 = vmatpush.msra.mxu0 0.0
  %1614 = vmatpush.msra.mxu0 0.0
  %1615 = vmatpush.msra.mxu0 0.0
  %1616 = vmatpush.msra.mxu0 0.0
  %1617 = vmatpush.msra.mxu0 0.0
  %1618 = vmatpush.msra.mxu0 0.0
  %1619 = vmatpush.msra.mxu0 0.0
  %1620 = vmatpush.msra.mxu0 0.0
  %1621 = vmatpush.msra.mxu0 0.0
  %1622 = vmatpush.msra.mxu0 0.0
  %1623 = vmatpush.msra.mxu0 0.0
  %1624 = vmatpush.msra.mxu0 0.0
  %1625 = vmatpush.msra.mxu0 %v1410
  %1626 = vmatmul.f32.gmra.mxu0 %v1390
  %v1627 = vpop.f32.mrf.mxu0
  %v1628 = vadd.f32 0.0, %v1627
  %1629 = vmatmul.f32.gmra.mxu0 %v1392
  %v1630 = vpop.f32.mrf.mxu0
  %v1631 = vadd.f32 0.0, %v1630
  %1632 = vdwg.mxu0
  %1633 = vmatpush.msra.mxu0 0.0
  %1634 = vmatpush.msra.mxu0 0.0
  %1635 = vmatpush.msra.mxu0 0.0
  %1636 = vmatpush.msra.mxu0 0.0
  %1637 = vmatpush.msra.mxu0 0.0
  %1638 = vmatpush.msra.mxu0 0.0
  %1639 = vmatpush.msra.mxu0 0.0
  %1640 = vmatpush.msra.mxu0 0.0
  %1641 = vmatpush.msra.mxu0 0.0
  %1642 = vmatpush.msra.mxu0 0.0
  %1643 = vmatpush.msra.mxu0 0.0
  %1644 = vmatpush.msra.mxu0 0.0
  %1645 = vmatpush.msra.mxu0 0.0
  %1646 = vmatpush.msra.mxu0 0.0
  %1647 = vmatpush.msra.mxu0 0.0
  %1648 = vmatpush.msra.mxu0 %v1412
  %1649 = vmatmul.f32.gmra.mxu0 %v1390
  %v1650 = vpop.f32.mrf.mxu0
  %v1651 = vadd.f32 0.0, %v1650
  %1652 = vmatmul.f32.gmra.mxu0 %v1392
  %v1653 = vpop.f32.mrf.mxu0
  %v1654 = vadd.f32 0.0, %v1653
  %1655 = vdwg.mxu0
  %1656 = vmatpush.msra.mxu0 0.0
  %1657 = vmatpush.msra.mxu0 0.0
  %1658 = vmatpush.msra.mxu0 0.0
  %1659 = vmatpush.msra.mxu0 0.0
  %1660 = vmatpush.msra.mxu0 0.0
  %1661 = vmatpush.msra.mxu0 0.0
  %1662 = vmatpush.msra.mxu0 0.0
  %1663 = vmatpush.msra.mxu0 0.0
  %1664 = vmatpush.msra.mxu0 0.0
  %1665 = vmatpush.msra.mxu0 0.0
  %1666 = vmatpush.msra.mxu0 0.0
  %1667 = vmatpush.msra.mxu0 0.0
  %1668 = vmatpush.msra.mxu0 0.0
  %1669 = vmatpush.msra.mxu0 0.0
  %1670 = vmatpush.msra.mxu0 0.0
  %1671 = vmatpush.msra.mxu0 %v1414
  %1672 = vmatmul.f32.gmra.mxu0 %v1390
  %v1673 = vpop.f32.mrf.mxu0
  %v1674 = vadd.f32 0.0, %v1673
  %1675 = vmatmul.f32.gmra.mxu0 %v1392
  %v1676 = vpop.f32.mrf.mxu0
  %v1677 = vadd.f32 0.0, %v1676
  %1678 = vdwg.mxu0
  %1679 = vmatpush.msra.mxu0 0.0
  %1680 = vmatpush.msra.mxu0 0.0
  %1681 = vmatpush.msra.mxu0 0.0
  %1682 = vmatpush.msra.mxu0 0.0
  %1683 = vmatpush.msra.mxu0 0.0
  %1684 = vmatpush.msra.mxu0 0.0
  %1685 = vmatpush.msra.mxu0 0.0
  %1686 = vmatpush.msra.mxu0 0.0
  %1687 = vmatpush.msra.mxu0 0.0
  %1688 = vmatpush.msra.mxu0 0.0
  %1689 = vmatpush.msra.mxu0 0.0
  %1690 = vmatpush.msra.mxu0 0.0
  %1691 = vmatpush.msra.mxu0 0.0
  %1692 = vmatpush.msra.mxu0 0.0
  %1693 = vmatpush.msra.mxu0 0.0
  %1694 = vmatpush.msra.mxu0 %v1416
  %1695 = vmatmul.f32.gmra.mxu0 %v1390
  %v1696 = vpop.f32.mrf.mxu0
  %v1697 = vadd.f32 0.0, %v1696
  %1698 = vmatmul.f32.gmra.mxu0 %v1392
  %v1699 = vpop.f32.mrf.mxu0
  %v1700 = vadd.f32 0.0, %v1699
  %1701 = vdwg.mxu0
  %1702 = vmatpush.msra.mxu0 0.0
  %1703 = vmatpush.msra.mxu0 0.0
  %1704 = vmatpush.msra.mxu0 0.0
  %1705 = vmatpush.msra.mxu0 0.0
  %1706 = vmatpush.msra.mxu0 0.0
  %1707 = vmatpush.msra.mxu0 0.0
  %1708 = vmatpush.msra.mxu0 0.0
  %1709 = vmatpush.msra.mxu0 0.0
  %1710 = vmatpush.msra.mxu0 0.0
  %1711 = vmatpush.msra.mxu0 0.0
  %1712 = vmatpush.msra.mxu0 0.0
  %1713 = vmatpush.msra.mxu0 0.0
  %1714 = vmatpush.msra.mxu0 0.0
  %1715 = vmatpush.msra.mxu0 0.0
  %1716 = vmatpush.msra.mxu0 0.0
  %1717 = vmatpush.msra.mxu0 %v1418
  %1718 = vmatmul.f32.gmra.mxu0 %v1390
  %v1719 = vpop.f32.mrf.mxu0
  %v1720 = vadd.f32 0.0, %v1719
  %1721 = vmatmul.f32.gmra.mxu0 %v1392
  %v1722 = vpop.f32.mrf.mxu0
  %v1723 = vadd.f32 0.0, %v1722
  %1724 = vdwg.mxu0
  %1725 = vmatpush.msra.mxu0 0.0
  %1726 = vmatpush.msra.mxu0 0.0
  %1727 = vmatpush.msra.mxu0 0.0
  %1728 = vmatpush.msra.mxu0 0.0
  %1729 = vmatpush.msra.mxu0 0.0
  %1730 = vmatpush.msra.mxu0 0.0
  %1731 = vmatpush.msra.mxu0 0.0
  %1732 = vmatpush.msra.mxu0 0.0
  %1733 = vmatpush.msra.mxu0 0.0
  %1734 = vmatpush.msra.mxu0 0.0
  %1735 = vmatpush.msra.mxu0 0.0
  %1736 = vmatpush.msra.mxu0 0.0
  %1737 = vmatpush.msra.mxu0 0.0
  %1738 = vmatpush.msra.mxu0 0.0
  %1739 = vmatpush.msra.mxu0 0.0
  %1740 = vmatpush.msra.mxu0 %v1420
  %1741 = vmatmul.f32.gmra.mxu0 %v1390
  %v1742 = vpop.f32.mrf.mxu0
  %v1743 = vadd.f32 0.0, %v1742
  %1744 = vmatmul.f32.gmra.mxu0 %v1392
  %v1745 = vpop.f32.mrf.mxu0
  %v1746 = vadd.f32 0.0, %v1745
  %1747 = vdwg.mxu0
  %1748 = vmatpush.msra.mxu0 0.0
  %1749 = vmatpush.msra.mxu0 0.0
  %1750 = vmatpush.msra.mxu0 0.0
  %1751 = vmatpush.msra.mxu0 0.0
  %1752 = vmatpush.msra.mxu0 0.0
  %1753 = vmatpush.msra.mxu0 0.0
  %1754 = vmatpush.msra.mxu0 0.0
  %1755 = vmatpush.msra.mxu0 0.0
  %1756 = vmatpush.msra.mxu0 0.0
  %1757 = vmatpush.msra.mxu0 0.0
  %1758 = vmatpush.msra.mxu0 0.0
  %1759 = vmatpush.msra.mxu0 0.0
  %1760 = vmatpush.msra.mxu0 0.0
  %1761 = vmatpush.msra.mxu0 0.0
  %1762 = vmatpush.msra.mxu0 0.0
  %1763 = vmatpush.msra.mxu0 %v1422
  %1764 = vmatmul.f32.gmra.mxu0 %v1390
  %v1765 = vpop.f32.mrf.mxu0
  %v1766 = vadd.f32 0.0, %v1765
  %1767 = vmatmul.f32.gmra.mxu0 %v1392
  %v1768 = vpop.f32.mrf.mxu0
  %v1769 = vadd.f32 0.0, %v1768
  %1770 = vdwg.mxu0
  %1771 = vmatpush.msra.mxu0 0.0
  %1772 = vmatpush.msra.mxu0 0.0
  %1773 = vmatpush.msra.mxu0 0.0
  %1774 = vmatpush.msra.mxu0 0.0
  %1775 = vmatpush.msra.mxu0 0.0
  %1776 = vmatpush.msra.mxu0 0.0
  %1777 = vmatpush.msra.mxu0 0.0
  %1778 = vmatpush.msra.mxu0 0.0
  %1779 = vmatpush.msra.mxu0 0.0
  %1780 = vmatpush.msra.mxu0 0.0
  %1781 = vmatpush.msra.mxu0 0.0
  %1782 = vmatpush.msra.mxu0 0.0
  %1783 = vmatpush.msra.mxu0 0.0
  %1784 = vmatpush.msra.mxu0 0.0
  %1785 = vmatpush.msra.mxu0 0.0
  %1786 = vmatpush.msra.mxu0 %v1424
  %1787 = vmatmul.f32.gmra.mxu0 %v1390
  %v1788 = vpop.f32.mrf.mxu0
  %v1789 = vadd.f32 0.0, %v1788
  %1790 = vmatmul.f32.gmra.mxu0 %v1392
  %v1791 = vpop.f32.mrf.mxu0
  %v1792 = vadd.f32 0.0, %v1791
  %1793 = vdwg.mxu0
  %v1794 = vadd.f32 %v866, %v1444
  %v1795 = vadd.f32 %v889, %v1467
  %v1796 = vadd.f32 %v912, %v1490
  %v1797 = vadd.f32 %v935, %v1513
  %v1798 = vadd.f32 %v958, %v1536
  %v1799 = vadd.f32 %v981, %v1559
  %v1800 = vadd.f32 %v1004, %v1582
  %v1801 = vadd.f32 %v1027, %v1605
  %v1802 = vadd.f32 %v1050, %v1628
  %v1803 = vadd.f32 %v1073, %v1651
  %v1804 = vadd.f32 %v1096, %v1674
  %v1805 = vadd.f32 %v1119, %v1697
  %v1806 = vadd.f32 %v1142, %v1720
  %v1807 = vadd.f32 %v1165, %v1743
  %v1808 = vadd.f32 %v1188, %v1766
  %v1809 = vadd.f32 %v1211, %v1789
  %v1810 = vadd.f32 %v869, %v1447
  %v1811 = vadd.f32 %v892, %v1470
  %v1812 = vadd.f32 %v915, %v1493
  %v1813 = vadd.f32 %v938, %v1516
  %v1814 = vadd.f32 %v961, %v1539
  %v1815 = vadd.f32 %v984, %v1562
  %v1816 = vadd.f32 %v1007, %v1585
  %v1817 = vadd.f32 %v1030, %v1608
  %v1818 = vadd.f32 %v1053, %v1631
  %v1819 = vadd.f32 %v1076, %v1654
  %v1820 = vadd.f32 %v1099, %v1677
  %v1821 = vadd.f32 %v1122, %v1700
  %v1822 = vadd.f32 %v1145, %v1723
  %v1823 = vadd.f32 %v1168, %v1746
  %v1824 = vadd.f32 %v1191, %v1769
  %v1825 = vadd.f32 %v1214, %v1792
  %v1828 = vperm.slane %v30, 0
  %v1829 = vperm.slane %v30, 1
  %v1830 = vperm.slane %v30, 2
  %v1831 = vperm.slane %v30, 3
  %v1832 = vperm.slane %v30, 4
  %v1833 = vperm.slane %v30, 5
  %v1834 = vperm.slane %v30, 6
  %v1835 = vperm.slane %v30, 7
  %v1836 = vperm.slane %v34, 0
  %v1837 = vperm.slane %v34, 1
  %v1838 = vperm.slane %v34, 2
  %v1839 = vperm.slane %v34, 3
  %v1840 = vperm.slane %v34, 4
  %v1841 = vperm.slane %v34, 5
  %v1842 = vperm.slane %v34, 6
  %v1843 = vperm.slane %v34, 7
  %1844 = vrot.lane.b32.xlu0 %v1828, 127
  %v1845 = vpop.permute.xlu0 %1844
  %1846 = vrot.lane.b32.xlu0 %v1829, 127
  %v1847 = vpop.permute.xlu0 %1846
  %1848 = vrot.lane.b32.xlu0 %v1830, 127
  %v1849 = vpop.permute.xlu0 %1848
  %1850 = vrot.lane.b32.xlu0 %v1831, 127
  %v1851 = vpop.permute.xlu0 %1850
  %1852 = vrot.lane.b32.xlu0 %v1832, 127
  %v1853 = vpop.permute.xlu0 %1852
  %1854 = vrot.lane.b32.xlu0 %v1833, 127
  %v1855 = vpop.permute.xlu0 %1854
  %1856 = vrot.lane.b32.xlu0 %v1834, 127
  %v1857 = vpop.permute.xlu0 %1856
  %1858 = vrot.lane.b32.xlu0 %v1835, 127
  %v1859 = vpop.permute.xlu0 %1858
  %1860 = vrot.lane.b32.xlu0 %v1836, 127
  %v1861 = vpop.permute.xlu0 %1860
  %1862 = vrot.lane.b32.xlu0 %v1837, 127
  %v1863 = vpop.permute.xlu0 %1862
  %1864 = vrot.lane.b32.xlu0 %v1838, 127
  %v1865 = vpop.permute.xlu0 %1864
  %1866 = vrot.lane.b32.xlu0 %v1839, 127
  %v1867 = vpop.permute.xlu0 %1866
  %1868 = vrot.lane.b32.xlu0 %v1840, 127
  %v1869 = vpop.permute.xlu0 %1868
  %1870 = vrot.lane.b32.xlu0 %v1841, 127
  %v1871 = vpop.permute.xlu0 %1870
  %1872 = vrot.lane.b32.xlu0 %v1842, 127
  %v1873 = vpop.permute.xlu0 %1872
  %1874 = vrot.lane.b32.xlu0 %v1843, 127
  %v1875 = vpop.permute.xlu0 %1874
  %vm1876 = vcmask 1039360
  %v1877 = vsel %vm1876, %v1845, %v1847
  %v1878 = vsel %vm1876, %v1847, %v1849
  %v1879 = vsel %vm1876, %v1849, %v1851
  %v1880 = vsel %vm1876, %v1851, %v1853
  %v1881 = vsel %vm1876, %v1853, %v1855
  %v1882 = vsel %vm1876, %v1855, %v1857
  %v1883 = vsel %vm1876, %v1857, %v1859
  %v1884 = vsel %vm1876, %v1859, %v1861
  %v1885 = vsel %vm1876, %v1861, %v1863
  %v1886 = vsel %vm1876, %v1863, %v1865
  %v1887 = vsel %vm1876, %v1865, %v1867
  %v1888 = vsel %vm1876, %v1867, %v1869
  %v1889 = vsel %vm1876, %v1869, %v1871
  %v1890 = vsel %vm1876, %v1871, %v1873
  %v1891 = vsel %vm1876, %v1873, %v1875
  %v1909 = vmul.f32 %v43, %v1845
  %v1910 = vmul.f32 %v44, %v1877
  %v1911 = vmul.f32 %v45, %v1878
  %v1912 = vmul.f32 %v46, %v1879
  %v1913 = vmul.f32 %v47, %v1880
  %v1914 = vmul.f32 %v48, %v1881
  %v1915 = vmul.f32 %v49, %v1882
  %v1916 = vmul.f32 %v50, %v1883
  %v1917 = vmul.f32 %v51, %v1884
  %v1918 = vmul.f32 %v52, %v1885
  %v1919 = vmul.f32 %v53, %v1886
  %v1920 = vmul.f32 %v54, %v1887
  %v1921 = vmul.f32 %v55, %v1888
  %v1922 = vmul.f32 %v56, %v1889
  %v1923 = vmul.f32 %v57, %v1890
  %v1924 = vmul.f32 %v58, %v1891
  %v1925 = vmul.f32 %v59, %v1875
  %1926 = vrot.lane.b32.xlu0 %v162, 116
  %v1927 = vpop.permute.xlu0 %1926
  %1928 = vrot.lane.b32.xlu0 %v163, 116
  %v1929 = vpop.permute.xlu0 %1928
  %1947 = vrot.lane.b32.xlu0 %v1909, 1
  %v1948 = vpop.permute.xlu0 %1947
  %1949 = vrot.lane.b32.xlu0 %v1910, 1
  %v1950 = vpop.permute.xlu0 %1949
  %1951 = vrot.lane.b32.xlu0 %v1911, 1
  %v1952 = vpop.permute.xlu0 %1951
  %1953 = vrot.lane.b32.xlu0 %v1912, 1
  %v1954 = vpop.permute.xlu0 %1953
  %1955 = vrot.lane.b32.xlu0 %v1913, 1
  %v1956 = vpop.permute.xlu0 %1955
  %1957 = vrot.lane.b32.xlu0 %v1914, 1
  %v1958 = vpop.permute.xlu0 %1957
  %1959 = vrot.lane.b32.xlu0 %v1915, 1
  %v1960 = vpop.permute.xlu0 %1959
  %1961 = vrot.lane.b32.xlu0 %v1916, 1
  %v1962 = vpop.permute.xlu0 %1961
  %1963 = vrot.lane.b32.xlu0 %v1917, 1
  %v1964 = vpop.permute.xlu0 %1963
  %1965 = vrot.lane.b32.xlu0 %v1918, 1
  %v1966 = vpop.permute.xlu0 %1965
  %1967 = vrot.lane.b32.xlu0 %v1919, 1
  %v1968 = vpop.permute.xlu0 %1967
  %1969 = vrot.lane.b32.xlu0 %v1920, 1
  %v1970 = vpop.permute.xlu0 %1969
  %1971 = vrot.lane.b32.xlu0 %v1921, 1
  %v1972 = vpop.permute.xlu0 %1971
  %1973 = vrot.lane.b32.xlu0 %v1922, 1
  %v1974 = vpop.permute.xlu0 %1973
  %1975 = vrot.lane.b32.xlu0 %v1923, 1
  %v1976 = vpop.permute.xlu0 %1975
  %1977 = vrot.lane.b32.xlu0 %v1924, 1
  %v1978 = vpop.permute.xlu0 %1977
  %1979 = vrot.lane.b32.xlu0 %v1925, 1
  %v1980 = vpop.permute.xlu0 %1979
  %vm1981 = vcmask 7168
  %v1982 = vsel %vm1981, %v1948, %v1950
  %v1983 = vsel %vm1981, %v1950, %v1952
  %v1984 = vsel %vm1981, %v1952, %v1954
  %v1985 = vsel %vm1981, %v1954, %v1956
  %v1986 = vsel %vm1981, %v1956, %v1958
  %v1987 = vsel %vm1981, %v1958, %v1960
  %v1988 = vsel %vm1981, %v1960, %v1962
  %v1989 = vsel %vm1981, %v1962, %v1964
  %v1990 = vsel %vm1981, %v1964, %v1966
  %v1991 = vsel %vm1981, %v1966, %v1968
  %v1992 = vsel %vm1981, %v1968, %v1970
  %v1993 = vsel %vm1981, %v1970, %v1972
  %v1994 = vsel %vm1981, %v1972, %v1974
  %v1995 = vsel %vm1981, %v1974, %v1976
  %v1996 = vsel %vm1981, %v1976, %v1978
  %v1997 = vsel %vm1981, %v1978, %v1980
  %v1998 = vsel %vm338, %v1927, 0
  %v2000 = vsel %vm338, %v1929, 0
  %v2002 = vsel %vm343, %v1982, 0
  %v2004 = vsel %vm343, %v1983, 0
  %v2006 = vsel %vm343, %v1984, 0
  %v2008 = vsel %vm343, %v1985, 0
  %v2010 = vsel %vm343, %v1986, 0
  %v2012 = vsel %vm343, %v1987, 0
  %v2014 = vsel %vm343, %v1988, 0
  %v2016 = vsel %vm343, %v1989, 0
  %v2018 = vsel %vm343, %v1990, 0
  %v2020 = vsel %vm343, %v1991, 0
  %v2022 = vsel %vm343, %v1992, 0
  %v2024 = vsel %vm343, %v1993, 0
  %v2026 = vsel %vm343, %v1994, 0
  %v2028 = vsel %vm343, %v1995, 0
  %v2030 = vsel %vm343, %v1996, 0
  %v2032 = vsel %vm343, %v1997, 0
  %2034 = vmatpush.msra.mxu0 0.0
  %2035 = vmatpush.msra.mxu0 0.0
  %2036 = vmatpush.msra.mxu0 0.0
  %2037 = vmatpush.msra.mxu0 0.0
  %2038 = vmatpush.msra.mxu0 0.0
  %2039 = vmatpush.msra.mxu0 0.0
  %2040 = vmatpush.msra.mxu0 0.0
  %2041 = vmatpush.msra.mxu0 0.0
  %2042 = vmatpush.msra.mxu0 0.0
  %2043 = vmatpush.msra.mxu0 0.0
  %2044 = vmatpush.msra.mxu0 0.0
  %2045 = vmatpush.msra.mxu0 0.0
  %2046 = vmatpush.msra.mxu0 0.0
  %2047 = vmatpush.msra.mxu0 0.0
  %2048 = vmatpush.msra.mxu0 0.0
  %2049 = vmatpush.msra.mxu0 %v2002
  %2050 = vmatmul.f32.gmra.mxu0 %v1998
  %v2051 = vpop.f32.mrf.mxu0
  %v2052 = vadd.f32 0.0, %v2051
  %2053 = vmatmul.f32.gmra.mxu0 %v2000
  %v2054 = vpop.f32.mrf.mxu0
  %v2055 = vadd.f32 0.0, %v2054
  %2056 = vdwg.mxu0
  %2057 = vmatpush.msra.mxu0 0.0
  %2058 = vmatpush.msra.mxu0 0.0
  %2059 = vmatpush.msra.mxu0 0.0
  %2060 = vmatpush.msra.mxu0 0.0
  %2061 = vmatpush.msra.mxu0 0.0
  %2062 = vmatpush.msra.mxu0 0.0
  %2063 = vmatpush.msra.mxu0 0.0
  %2064 = vmatpush.msra.mxu0 0.0
  %2065 = vmatpush.msra.mxu0 0.0
  %2066 = vmatpush.msra.mxu0 0.0
  %2067 = vmatpush.msra.mxu0 0.0
  %2068 = vmatpush.msra.mxu0 0.0
  %2069 = vmatpush.msra.mxu0 0.0
  %2070 = vmatpush.msra.mxu0 0.0
  %2071 = vmatpush.msra.mxu0 0.0
  %2072 = vmatpush.msra.mxu0 %v2004
  %2073 = vmatmul.f32.gmra.mxu0 %v1998
  %v2074 = vpop.f32.mrf.mxu0
  %v2075 = vadd.f32 0.0, %v2074
  %2076 = vmatmul.f32.gmra.mxu0 %v2000
  %v2077 = vpop.f32.mrf.mxu0
  %v2078 = vadd.f32 0.0, %v2077
  %2079 = vdwg.mxu0
  %2080 = vmatpush.msra.mxu0 0.0
  %2081 = vmatpush.msra.mxu0 0.0
  %2082 = vmatpush.msra.mxu0 0.0
  %2083 = vmatpush.msra.mxu0 0.0
  %2084 = vmatpush.msra.mxu0 0.0
  %2085 = vmatpush.msra.mxu0 0.0
  %2086 = vmatpush.msra.mxu0 0.0
  %2087 = vmatpush.msra.mxu0 0.0
  %2088 = vmatpush.msra.mxu0 0.0
  %2089 = vmatpush.msra.mxu0 0.0
  %2090 = vmatpush.msra.mxu0 0.0
  %2091 = vmatpush.msra.mxu0 0.0
  %2092 = vmatpush.msra.mxu0 0.0
  %2093 = vmatpush.msra.mxu0 0.0
  %2094 = vmatpush.msra.mxu0 0.0
  %2095 = vmatpush.msra.mxu0 %v2006
  %2096 = vmatmul.f32.gmra.mxu0 %v1998
  %v2097 = vpop.f32.mrf.mxu0
  %v2098 = vadd.f32 0.0, %v2097
  %2099 = vmatmul.f32.gmra.mxu0 %v2000
  %v2100 = vpop.f32.mrf.mxu0
  %v2101 = vadd.f32 0.0, %v2100
  %2102 = vdwg.mxu0
  %2103 = vmatpush.msra.mxu0 0.0
  %2104 = vmatpush.msra.mxu0 0.0
  %2105 = vmatpush.msra.mxu0 0.0
  %2106 = vmatpush.msra.mxu0 0.0
  %2107 = vmatpush.msra.mxu0 0.0
  %2108 = vmatpush.msra.mxu0 0.0
  %2109 = vmatpush.msra.mxu0 0.0
  %2110 = vmatpush.msra.mxu0 0.0
  %2111 = vmatpush.msra.mxu0 0.0
  %2112 = vmatpush.msra.mxu0 0.0
  %2113 = vmatpush.msra.mxu0 0.0
  %2114 = vmatpush.msra.mxu0 0.0
  %2115 = vmatpush.msra.mxu0 0.0
  %2116 = vmatpush.msra.mxu0 0.0
  %2117 = vmatpush.msra.mxu0 0.0
  %2118 = vmatpush.msra.mxu0 %v2008
  %2119 = vmatmul.f32.gmra.mxu0 %v1998
  %v2120 = vpop.f32.mrf.mxu0
  %v2121 = vadd.f32 0.0, %v2120
  %2122 = vmatmul.f32.gmra.mxu0 %v2000
  %v2123 = vpop.f32.mrf.mxu0
  %v2124 = vadd.f32 0.0, %v2123
  %2125 = vdwg.mxu0
  %2126 = vmatpush.msra.mxu0 0.0
  %2127 = vmatpush.msra.mxu0 0.0
  %2128 = vmatpush.msra.mxu0 0.0
  %2129 = vmatpush.msra.mxu0 0.0
  %2130 = vmatpush.msra.mxu0 0.0
  %2131 = vmatpush.msra.mxu0 0.0
  %2132 = vmatpush.msra.mxu0 0.0
  %2133 = vmatpush.msra.mxu0 0.0
  %2134 = vmatpush.msra.mxu0 0.0
  %2135 = vmatpush.msra.mxu0 0.0
  %2136 = vmatpush.msra.mxu0 0.0
  %2137 = vmatpush.msra.mxu0 0.0
  %2138 = vmatpush.msra.mxu0 0.0
  %2139 = vmatpush.msra.mxu0 0.0
  %2140 = vmatpush.msra.mxu0 0.0
  %2141 = vmatpush.msra.mxu0 %v2010
  %2142 = vmatmul.f32.gmra.mxu0 %v1998
  %v2143 = vpop.f32.mrf.mxu0
  %v2144 = vadd.f32 0.0, %v2143
  %2145 = vmatmul.f32.gmra.mxu0 %v2000
  %v2146 = vpop.f32.mrf.mxu0
  %v2147 = vadd.f32 0.0, %v2146
  %2148 = vdwg.mxu0
  %2149 = vmatpush.msra.mxu0 0.0
  %2150 = vmatpush.msra.mxu0 0.0
  %2151 = vmatpush.msra.mxu0 0.0
  %2152 = vmatpush.msra.mxu0 0.0
  %2153 = vmatpush.msra.mxu0 0.0
  %2154 = vmatpush.msra.mxu0 0.0
  %2155 = vmatpush.msra.mxu0 0.0
  %2156 = vmatpush.msra.mxu0 0.0
  %2157 = vmatpush.msra.mxu0 0.0
  %2158 = vmatpush.msra.mxu0 0.0
  %2159 = vmatpush.msra.mxu0 0.0
  %2160 = vmatpush.msra.mxu0 0.0
  %2161 = vmatpush.msra.mxu0 0.0
  %2162 = vmatpush.msra.mxu0 0.0
  %2163 = vmatpush.msra.mxu0 0.0
  %2164 = vmatpush.msra.mxu0 %v2012
  %2165 = vmatmul.f32.gmra.mxu0 %v1998
  %v2166 = vpop.f32.mrf.mxu0
  %v2167 = vadd.f32 0.0, %v2166
  %2168 = vmatmul.f32.gmra.mxu0 %v2000
  %v2169 = vpop.f32.mrf.mxu0
  %v2170 = vadd.f32 0.0, %v2169
  %2171 = vdwg.mxu0
  %2172 = vmatpush.msra.mxu0 0.0
  %2173 = vmatpush.msra.mxu0 0.0
  %2174 = vmatpush.msra.mxu0 0.0
  %2175 = vmatpush.msra.mxu0 0.0
  %2176 = vmatpush.msra.mxu0 0.0
  %2177 = vmatpush.msra.mxu0 0.0
  %2178 = vmatpush.msra.mxu0 0.0
  %2179 = vmatpush.msra.mxu0 0.0
  %2180 = vmatpush.msra.mxu0 0.0
  %2181 = vmatpush.msra.mxu0 0.0
  %2182 = vmatpush.msra.mxu0 0.0
  %2183 = vmatpush.msra.mxu0 0.0
  %2184 = vmatpush.msra.mxu0 0.0
  %2185 = vmatpush.msra.mxu0 0.0
  %2186 = vmatpush.msra.mxu0 0.0
  %2187 = vmatpush.msra.mxu0 %v2014
  %2188 = vmatmul.f32.gmra.mxu0 %v1998
  %v2189 = vpop.f32.mrf.mxu0
  %v2190 = vadd.f32 0.0, %v2189
  %2191 = vmatmul.f32.gmra.mxu0 %v2000
  %v2192 = vpop.f32.mrf.mxu0
  %v2193 = vadd.f32 0.0, %v2192
  %2194 = vdwg.mxu0
  %2195 = vmatpush.msra.mxu0 0.0
  %2196 = vmatpush.msra.mxu0 0.0
  %2197 = vmatpush.msra.mxu0 0.0
  %2198 = vmatpush.msra.mxu0 0.0
  %2199 = vmatpush.msra.mxu0 0.0
  %2200 = vmatpush.msra.mxu0 0.0
  %2201 = vmatpush.msra.mxu0 0.0
  %2202 = vmatpush.msra.mxu0 0.0
  %2203 = vmatpush.msra.mxu0 0.0
  %2204 = vmatpush.msra.mxu0 0.0
  %2205 = vmatpush.msra.mxu0 0.0
  %2206 = vmatpush.msra.mxu0 0.0
  %2207 = vmatpush.msra.mxu0 0.0
  %2208 = vmatpush.msra.mxu0 0.0
  %2209 = vmatpush.msra.mxu0 0.0
  %2210 = vmatpush.msra.mxu0 %v2016
  %2211 = vmatmul.f32.gmra.mxu0 %v1998
  %v2212 = vpop.f32.mrf.mxu0
  %v2213 = vadd.f32 0.0, %v2212
  %2214 = vmatmul.f32.gmra.mxu0 %v2000
  %v2215 = vpop.f32.mrf.mxu0
  %v2216 = vadd.f32 0.0, %v2215
  %2217 = vdwg.mxu0
  %2218 = vmatpush.msra.mxu0 0.0
  %2219 = vmatpush.msra.mxu0 0.0
  %2220 = vmatpush.msra.mxu0 0.0
  %2221 = vmatpush.msra.mxu0 0.0
  %2222 = vmatpush.msra.mxu0 0.0
  %2223 = vmatpush.msra.mxu0 0.0
  %2224 = vmatpush.msra.mxu0 0.0
  %2225 = vmatpush.msra.mxu0 0.0
  %2226 = vmatpush.msra.mxu0 0.0
  %2227 = vmatpush.msra.mxu0 0.0
  %2228 = vmatpush.msra.mxu0 0.0
  %2229 = vmatpush.msra.mxu0 0.0
  %2230 = vmatpush.msra.mxu0 0.0
  %2231 = vmatpush.msra.mxu0 0.0
  %2232 = vmatpush.msra.mxu0 0.0
  %2233 = vmatpush.msra.mxu0 %v2018
  %2234 = vmatmul.f32.gmra.mxu0 %v1998
  %v2235 = vpop.f32.mrf.mxu0
  %v2236 = vadd.f32 0.0, %v2235
  %2237 = vmatmul.f32.gmra.mxu0 %v2000
  %v2238 = vpop.f32.mrf.mxu0
  %v2239 = vadd.f32 0.0, %v2238
  %2240 = vdwg.mxu0
  %2241 = vmatpush.msra.mxu0 0.0
  %2242 = vmatpush.msra.mxu0 0.0
  %2243 = vmatpush.msra.mxu0 0.0
  %2244 = vmatpush.msra.mxu0 0.0
  %2245 = vmatpush.msra.mxu0 0.0
  %2246 = vmatpush.msra.mxu0 0.0
  %2247 = vmatpush.msra.mxu0 0.0
  %2248 = vmatpush.msra.mxu0 0.0
  %2249 = vmatpush.msra.mxu0 0.0
  %2250 = vmatpush.msra.mxu0 0.0
  %2251 = vmatpush.msra.mxu0 0.0
  %2252 = vmatpush.msra.mxu0 0.0
  %2253 = vmatpush.msra.mxu0 0.0
  %2254 = vmatpush.msra.mxu0 0.0
  %2255 = vmatpush.msra.mxu0 0.0
  %2256 = vmatpush.msra.mxu0 %v2020
  %2257 = vmatmul.f32.gmra.mxu0 %v1998
  %v2258 = vpop.f32.mrf.mxu0
  %v2259 = vadd.f32 0.0, %v2258
  %2260 = vmatmul.f32.gmra.mxu0 %v2000
  %v2261 = vpop.f32.mrf.mxu0
  %v2262 = vadd.f32 0.0, %v2261
  %2263 = vdwg.mxu0
  %2264 = vmatpush.msra.mxu0 0.0
  %2265 = vmatpush.msra.mxu0 0.0
  %2266 = vmatpush.msra.mxu0 0.0
  %2267 = vmatpush.msra.mxu0 0.0
  %2268 = vmatpush.msra.mxu0 0.0
  %2269 = vmatpush.msra.mxu0 0.0
  %2270 = vmatpush.msra.mxu0 0.0
  %2271 = vmatpush.msra.mxu0 0.0
  %2272 = vmatpush.msra.mxu0 0.0
  %2273 = vmatpush.msra.mxu0 0.0
  %2274 = vmatpush.msra.mxu0 0.0
  %2275 = vmatpush.msra.mxu0 0.0
  %2276 = vmatpush.msra.mxu0 0.0
  %2277 = vmatpush.msra.mxu0 0.0
  %2278 = vmatpush.msra.mxu0 0.0
  %2279 = vmatpush.msra.mxu0 %v2022
  %2280 = vmatmul.f32.gmra.mxu0 %v1998
  %v2281 = vpop.f32.mrf.mxu0
  %v2282 = vadd.f32 0.0, %v2281
  %2283 = vmatmul.f32.gmra.mxu0 %v2000
  %v2284 = vpop.f32.mrf.mxu0
  %v2285 = vadd.f32 0.0, %v2284
  %2286 = vdwg.mxu0
  %2287 = vmatpush.msra.mxu0 0.0
  %2288 = vmatpush.msra.mxu0 0.0
  %2289 = vmatpush.msra.mxu0 0.0
  %2290 = vmatpush.msra.mxu0 0.0
  %2291 = vmatpush.msra.mxu0 0.0
  %2292 = vmatpush.msra.mxu0 0.0
  %2293 = vmatpush.msra.mxu0 0.0
  %2294 = vmatpush.msra.mxu0 0.0
  %2295 = vmatpush.msra.mxu0 0.0
  %2296 = vmatpush.msra.mxu0 0.0
  %2297 = vmatpush.msra.mxu0 0.0
  %2298 = vmatpush.msra.mxu0 0.0
  %2299 = vmatpush.msra.mxu0 0.0
  %2300 = vmatpush.msra.mxu0 0.0
  %2301 = vmatpush.msra.mxu0 0.0
  %2302 = vmatpush.msra.mxu0 %v2024
  %2303 = vmatmul.f32.gmra.mxu0 %v1998
  %v2304 = vpop.f32.mrf.mxu0
  %v2305 = vadd.f32 0.0, %v2304
  %2306 = vmatmul.f32.gmra.mxu0 %v2000
  %v2307 = vpop.f32.mrf.mxu0
  %v2308 = vadd.f32 0.0, %v2307
  %2309 = vdwg.mxu0
  %2310 = vmatpush.msra.mxu0 0.0
  %2311 = vmatpush.msra.mxu0 0.0
  %2312 = vmatpush.msra.mxu0 0.0
  %2313 = vmatpush.msra.mxu0 0.0
  %2314 = vmatpush.msra.mxu0 0.0
  %2315 = vmatpush.msra.mxu0 0.0
  %2316 = vmatpush.msra.mxu0 0.0
  %2317 = vmatpush.msra.mxu0 0.0
  %2318 = vmatpush.msra.mxu0 0.0
  %2319 = vmatpush.msra.mxu0 0.0
  %2320 = vmatpush.msra.mxu0 0.0
  %2321 = vmatpush.msra.mxu0 0.0
  %2322 = vmatpush.msra.mxu0 0.0
  %2323 = vmatpush.msra.mxu0 0.0
  %2324 = vmatpush.msra.mxu0 0.0
  %2325 = vmatpush.msra.mxu0 %v2026
  %2326 = vmatmul.f32.gmra.mxu0 %v1998
  %v2327 = vpop.f32.mrf.mxu0
  %v2328 = vadd.f32 0.0, %v2327
  %2329 = vmatmul.f32.gmra.mxu0 %v2000
  %v2330 = vpop.f32.mrf.mxu0
  %v2331 = vadd.f32 0.0, %v2330
  %2332 = vdwg.mxu0
  %2333 = vmatpush.msra.mxu0 0.0
  %2334 = vmatpush.msra.mxu0 0.0
  %2335 = vmatpush.msra.mxu0 0.0
  %2336 = vmatpush.msra.mxu0 0.0
  %2337 = vmatpush.msra.mxu0 0.0
  %2338 = vmatpush.msra.mxu0 0.0
  %2339 = vmatpush.msra.mxu0 0.0
  %2340 = vmatpush.msra.mxu0 0.0
  %2341 = vmatpush.msra.mxu0 0.0
  %2342 = vmatpush.msra.mxu0 0.0
  %2343 = vmatpush.msra.mxu0 0.0
  %2344 = vmatpush.msra.mxu0 0.0
  %2345 = vmatpush.msra.mxu0 0.0
  %2346 = vmatpush.msra.mxu0 0.0
  %2347 = vmatpush.msra.mxu0 0.0
  %2348 = vmatpush.msra.mxu0 %v2028
  %2349 = vmatmul.f32.gmra.mxu0 %v1998
  %v2350 = vpop.f32.mrf.mxu0
  %v2351 = vadd.f32 0.0, %v2350
  %2352 = vmatmul.f32.gmra.mxu0 %v2000
  %v2353 = vpop.f32.mrf.mxu0
  %v2354 = vadd.f32 0.0, %v2353
  %2355 = vdwg.mxu0
  %2356 = vmatpush.msra.mxu0 0.0
  %2357 = vmatpush.msra.mxu0 0.0
  %2358 = vmatpush.msra.mxu0 0.0
  %2359 = vmatpush.msra.mxu0 0.0
  %2360 = vmatpush.msra.mxu0 0.0
  %2361 = vmatpush.msra.mxu0 0.0
  %2362 = vmatpush.msra.mxu0 0.0
  %2363 = vmatpush.msra.mxu0 0.0
  %2364 = vmatpush.msra.mxu0 0.0
  %2365 = vmatpush.msra.mxu0 0.0
  %2366 = vmatpush.msra.mxu0 0.0
  %2367 = vmatpush.msra.mxu0 0.0
  %2368 = vmatpush.msra.mxu0 0.0
  %2369 = vmatpush.msra.mxu0 0.0
  %2370 = vmatpush.msra.mxu0 0.0
  %2371 = vmatpush.msra.mxu0 %v2030
  %2372 = vmatmul.f32.gmra.mxu0 %v1998
  %v2373 = vpop.f32.mrf.mxu0
  %v2374 = vadd.f32 0.0, %v2373
  %2375 = vmatmul.f32.gmra.mxu0 %v2000
  %v2376 = vpop.f32.mrf.mxu0
  %v2377 = vadd.f32 0.0, %v2376
  %2378 = vdwg.mxu0
  %2379 = vmatpush.msra.mxu0 0.0
  %2380 = vmatpush.msra.mxu0 0.0
  %2381 = vmatpush.msra.mxu0 0.0
  %2382 = vmatpush.msra.mxu0 0.0
  %2383 = vmatpush.msra.mxu0 0.0
  %2384 = vmatpush.msra.mxu0 0.0
  %2385 = vmatpush.msra.mxu0 0.0
  %2386 = vmatpush.msra.mxu0 0.0
  %2387 = vmatpush.msra.mxu0 0.0
  %2388 = vmatpush.msra.mxu0 0.0
  %2389 = vmatpush.msra.mxu0 0.0
  %2390 = vmatpush.msra.mxu0 0.0
  %2391 = vmatpush.msra.mxu0 0.0
  %2392 = vmatpush.msra.mxu0 0.0
  %2393 = vmatpush.msra.mxu0 0.0
  %2394 = vmatpush.msra.mxu0 %v2032
  %2395 = vmatmul.f32.gmra.mxu0 %v1998
  %v2396 = vpop.f32.mrf.mxu0
  %v2397 = vadd.f32 0.0, %v2396
  %2398 = vmatmul.f32.gmra.mxu0 %v2000
  %v2399 = vpop.f32.mrf.mxu0
  %v2400 = vadd.f32 0.0, %v2399
  %2401 = vdwg.mxu0
  %v2402 = vadd.f32 %v1794, %v2052
  %v2403 = vadd.f32 %v1795, %v2075
  %v2404 = vadd.f32 %v1796, %v2098
  %v2405 = vadd.f32 %v1797, %v2121
  %v2406 = vadd.f32 %v1798, %v2144
  %v2407 = vadd.f32 %v1799, %v2167
  %v2408 = vadd.f32 %v1800, %v2190
  %v2409 = vadd.f32 %v1801, %v2213
  %v2410 = vadd.f32 %v1802, %v2236
  %v2411 = vadd.f32 %v1803, %v2259
  %v2412 = vadd.f32 %v1804, %v2282
  %v2413 = vadd.f32 %v1805, %v2305
  %v2414 = vadd.f32 %v1806, %v2328
  %v2415 = vadd.f32 %v1807, %v2351
  %v2416 = vadd.f32 %v1808, %v2374
  %v2417 = vadd.f32 %v1809, %v2397
  %v2418 = vadd.f32 %v1810, %v2055
  %v2419 = vadd.f32 %v1811, %v2078
  %v2420 = vadd.f32 %v1812, %v2101
  %v2421 = vadd.f32 %v1813, %v2124
  %v2422 = vadd.f32 %v1814, %v2147
  %v2423 = vadd.f32 %v1815, %v2170
  %v2424 = vadd.f32 %v1816, %v2193
  %v2425 = vadd.f32 %v1817, %v2216
  %v2426 = vadd.f32 %v1818, %v2239
  %v2427 = vadd.f32 %v1819, %v2262
  %v2428 = vadd.f32 %v1820, %v2285
  %v2429 = vadd.f32 %v1821, %v2308
  %v2430 = vadd.f32 %v1822, %v2331
  %v2431 = vadd.f32 %v1823, %v2354
  %v2432 = vadd.f32 %v1824, %v2377
  %v2433 = vadd.f32 %v1825, %v2400
  %2434 = vrot.lane.b32.xlu0 %v162, 112
  %v2435 = vpop.permute.xlu0 %2434
  %2436 = vrot.lane.b32.xlu0 %v163, 112
  %v2437 = vpop.permute.xlu0 %2436
  %v2438 = vsel %vm338, %v2435, 0
  %v2440 = vsel %vm338, %v2437, 0
  %v2443 = vsel %vm343, %v44, 0
  %v2446 = vsel %vm343, %v45, 0
  %v2449 = vsel %vm343, %v46, 0
  %v2452 = vsel %vm343, %v47, 0
  %v2455 = vsel %vm343, %v48, 0
  %v2458 = vsel %vm343, %v49, 0
  %v2461 = vsel %vm343, %v50, 0
  %v2464 = vsel %vm343, %v51, 0
  %v2467 = vsel %vm343, %v52, 0
  %v2470 = vsel %vm343, %v53, 0
  %v2473 = vsel %vm343, %v54, 0
  %v2476 = vsel %vm343, %v55, 0
  %v2479 = vsel %vm343, %v56, 0
  %v2482 = vsel %vm343, %v57, 0
  %v2485 = vsel %vm343, %v58, 0
  %v2488 = vsel %vm343, %v59, 0
  %2490 = vmatpush.msra.mxu0 0.0
  %2491 = vmatpush.msra.mxu0 0.0
  %2492 = vmatpush.msra.mxu0 0.0
  %2493 = vmatpush.msra.mxu0 0.0
  %2494 = vmatpush.msra.mxu0 0.0
  %2495 = vmatpush.msra.mxu0 0.0
  %2496 = vmatpush.msra.mxu0 0.0
  %2497 = vmatpush.msra.mxu0 0.0
  %2498 = vmatpush.msra.mxu0 0.0
  %2499 = vmatpush.msra.mxu0 0.0
  %2500 = vmatpush.msra.mxu0 0.0
  %2501 = vmatpush.msra.mxu0 0.0
  %2502 = vmatpush.msra.mxu0 0.0
  %2503 = vmatpush.msra.mxu0 0.0
  %2504 = vmatpush.msra.mxu0 0.0
  %2505 = vmatpush.msra.mxu0 %v2443
  %2506 = vmatmul.f32.gmra.mxu0 %v2438
  %v2507 = vpop.f32.mrf.mxu0
  %v2508 = vadd.f32 0.0, %v2507
  %2509 = vmatmul.f32.gmra.mxu0 %v2440
  %v2510 = vpop.f32.mrf.mxu0
  %v2511 = vadd.f32 0.0, %v2510
  %2512 = vdwg.mxu0
  %2513 = vmatpush.msra.mxu0 0.0
  %2514 = vmatpush.msra.mxu0 0.0
  %2515 = vmatpush.msra.mxu0 0.0
  %2516 = vmatpush.msra.mxu0 0.0
  %2517 = vmatpush.msra.mxu0 0.0
  %2518 = vmatpush.msra.mxu0 0.0
  %2519 = vmatpush.msra.mxu0 0.0
  %2520 = vmatpush.msra.mxu0 0.0
  %2521 = vmatpush.msra.mxu0 0.0
  %2522 = vmatpush.msra.mxu0 0.0
  %2523 = vmatpush.msra.mxu0 0.0
  %2524 = vmatpush.msra.mxu0 0.0
  %2525 = vmatpush.msra.mxu0 0.0
  %2526 = vmatpush.msra.mxu0 0.0
  %2527 = vmatpush.msra.mxu0 0.0
  %2528 = vmatpush.msra.mxu0 %v2446
  %2529 = vmatmul.f32.gmra.mxu0 %v2438
  %v2530 = vpop.f32.mrf.mxu0
  %v2531 = vadd.f32 0.0, %v2530
  %2532 = vmatmul.f32.gmra.mxu0 %v2440
  %v2533 = vpop.f32.mrf.mxu0
  %v2534 = vadd.f32 0.0, %v2533
  %2535 = vdwg.mxu0
  %2536 = vmatpush.msra.mxu0 0.0
  %2537 = vmatpush.msra.mxu0 0.0
  %2538 = vmatpush.msra.mxu0 0.0
  %2539 = vmatpush.msra.mxu0 0.0
  %2540 = vmatpush.msra.mxu0 0.0
  %2541 = vmatpush.msra.mxu0 0.0
  %2542 = vmatpush.msra.mxu0 0.0
  %2543 = vmatpush.msra.mxu0 0.0
  %2544 = vmatpush.msra.mxu0 0.0
  %2545 = vmatpush.msra.mxu0 0.0
  %2546 = vmatpush.msra.mxu0 0.0
  %2547 = vmatpush.msra.mxu0 0.0
  %2548 = vmatpush.msra.mxu0 0.0
  %2549 = vmatpush.msra.mxu0 0.0
  %2550 = vmatpush.msra.mxu0 0.0
  %2551 = vmatpush.msra.mxu0 %v2449
  %2552 = vmatmul.f32.gmra.mxu0 %v2438
  %v2553 = vpop.f32.mrf.mxu0
  %v2554 = vadd.f32 0.0, %v2553
  %2555 = vmatmul.f32.gmra.mxu0 %v2440
  %v2556 = vpop.f32.mrf.mxu0
  %v2557 = vadd.f32 0.0, %v2556
  %2558 = vdwg.mxu0
  %2559 = vmatpush.msra.mxu0 0.0
  %2560 = vmatpush.msra.mxu0 0.0
  %2561 = vmatpush.msra.mxu0 0.0
  %2562 = vmatpush.msra.mxu0 0.0
  %2563 = vmatpush.msra.mxu0 0.0
  %2564 = vmatpush.msra.mxu0 0.0
  %2565 = vmatpush.msra.mxu0 0.0
  %2566 = vmatpush.msra.mxu0 0.0
  %2567 = vmatpush.msra.mxu0 0.0
  %2568 = vmatpush.msra.mxu0 0.0
  %2569 = vmatpush.msra.mxu0 0.0
  %2570 = vmatpush.msra.mxu0 0.0
  %2571 = vmatpush.msra.mxu0 0.0
  %2572 = vmatpush.msra.mxu0 0.0
  %2573 = vmatpush.msra.mxu0 0.0
  %2574 = vmatpush.msra.mxu0 %v2452
  %2575 = vmatmul.f32.gmra.mxu0 %v2438
  %v2576 = vpop.f32.mrf.mxu0
  %v2577 = vadd.f32 0.0, %v2576
  %2578 = vmatmul.f32.gmra.mxu0 %v2440
  %v2579 = vpop.f32.mrf.mxu0
  %v2580 = vadd.f32 0.0, %v2579
  %2581 = vdwg.mxu0
  %2582 = vmatpush.msra.mxu0 0.0
  %2583 = vmatpush.msra.mxu0 0.0
  %2584 = vmatpush.msra.mxu0 0.0
  %2585 = vmatpush.msra.mxu0 0.0
  %2586 = vmatpush.msra.mxu0 0.0
  %2587 = vmatpush.msra.mxu0 0.0
  %2588 = vmatpush.msra.mxu0 0.0
  %2589 = vmatpush.msra.mxu0 0.0
  %2590 = vmatpush.msra.mxu0 0.0
  %2591 = vmatpush.msra.mxu0 0.0
  %2592 = vmatpush.msra.mxu0 0.0
  %2593 = vmatpush.msra.mxu0 0.0
  %2594 = vmatpush.msra.mxu0 0.0
  %2595 = vmatpush.msra.mxu0 0.0
  %2596 = vmatpush.msra.mxu0 0.0
  %2597 = vmatpush.msra.mxu0 %v2455
  %2598 = vmatmul.f32.gmra.mxu0 %v2438
  %v2599 = vpop.f32.mrf.mxu0
  %v2600 = vadd.f32 0.0, %v2599
  %2601 = vmatmul.f32.gmra.mxu0 %v2440
  %v2602 = vpop.f32.mrf.mxu0
  %v2603 = vadd.f32 0.0, %v2602
  %2604 = vdwg.mxu0
  %2605 = vmatpush.msra.mxu0 0.0
  %2606 = vmatpush.msra.mxu0 0.0
  %2607 = vmatpush.msra.mxu0 0.0
  %2608 = vmatpush.msra.mxu0 0.0
  %2609 = vmatpush.msra.mxu0 0.0
  %2610 = vmatpush.msra.mxu0 0.0
  %2611 = vmatpush.msra.mxu0 0.0
  %2612 = vmatpush.msra.mxu0 0.0
  %2613 = vmatpush.msra.mxu0 0.0
  %2614 = vmatpush.msra.mxu0 0.0
  %2615 = vmatpush.msra.mxu0 0.0
  %2616 = vmatpush.msra.mxu0 0.0
  %2617 = vmatpush.msra.mxu0 0.0
  %2618 = vmatpush.msra.mxu0 0.0
  %2619 = vmatpush.msra.mxu0 0.0
  %2620 = vmatpush.msra.mxu0 %v2458
  %2621 = vmatmul.f32.gmra.mxu0 %v2438
  %v2622 = vpop.f32.mrf.mxu0
  %v2623 = vadd.f32 0.0, %v2622
  %2624 = vmatmul.f32.gmra.mxu0 %v2440
  %v2625 = vpop.f32.mrf.mxu0
  %v2626 = vadd.f32 0.0, %v2625
  %2627 = vdwg.mxu0
  %2628 = vmatpush.msra.mxu0 0.0
  %2629 = vmatpush.msra.mxu0 0.0
  %2630 = vmatpush.msra.mxu0 0.0
  %2631 = vmatpush.msra.mxu0 0.0
  %2632 = vmatpush.msra.mxu0 0.0
  %2633 = vmatpush.msra.mxu0 0.0
  %2634 = vmatpush.msra.mxu0 0.0
  %2635 = vmatpush.msra.mxu0 0.0
  %2636 = vmatpush.msra.mxu0 0.0
  %2637 = vmatpush.msra.mxu0 0.0
  %2638 = vmatpush.msra.mxu0 0.0
  %2639 = vmatpush.msra.mxu0 0.0
  %2640 = vmatpush.msra.mxu0 0.0
  %2641 = vmatpush.msra.mxu0 0.0
  %2642 = vmatpush.msra.mxu0 0.0
  %2643 = vmatpush.msra.mxu0 %v2461
  %2644 = vmatmul.f32.gmra.mxu0 %v2438
  %v2645 = vpop.f32.mrf.mxu0
  %v2646 = vadd.f32 0.0, %v2645
  %2647 = vmatmul.f32.gmra.mxu0 %v2440
  %v2648 = vpop.f32.mrf.mxu0
  %v2649 = vadd.f32 0.0, %v2648
  %2650 = vdwg.mxu0
  %2651 = vmatpush.msra.mxu0 0.0
  %2652 = vmatpush.msra.mxu0 0.0
  %2653 = vmatpush.msra.mxu0 0.0
  %2654 = vmatpush.msra.mxu0 0.0
  %2655 = vmatpush.msra.mxu0 0.0
  %2656 = vmatpush.msra.mxu0 0.0
  %2657 = vmatpush.msra.mxu0 0.0
  %2658 = vmatpush.msra.mxu0 0.0
  %2659 = vmatpush.msra.mxu0 0.0
  %2660 = vmatpush.msra.mxu0 0.0
  %2661 = vmatpush.msra.mxu0 0.0
  %2662 = vmatpush.msra.mxu0 0.0
  %2663 = vmatpush.msra.mxu0 0.0
  %2664 = vmatpush.msra.mxu0 0.0
  %2665 = vmatpush.msra.mxu0 0.0
  %2666 = vmatpush.msra.mxu0 %v2464
  %2667 = vmatmul.f32.gmra.mxu0 %v2438
  %v2668 = vpop.f32.mrf.mxu0
  %v2669 = vadd.f32 0.0, %v2668
  %2670 = vmatmul.f32.gmra.mxu0 %v2440
  %v2671 = vpop.f32.mrf.mxu0
  %v2672 = vadd.f32 0.0, %v2671
  %2673 = vdwg.mxu0
  %2674 = vmatpush.msra.mxu0 0.0
  %2675 = vmatpush.msra.mxu0 0.0
  %2676 = vmatpush.msra.mxu0 0.0
  %2677 = vmatpush.msra.mxu0 0.0
  %2678 = vmatpush.msra.mxu0 0.0
  %2679 = vmatpush.msra.mxu0 0.0
  %2680 = vmatpush.msra.mxu0 0.0
  %2681 = vmatpush.msra.mxu0 0.0
  %2682 = vmatpush.msra.mxu0 0.0
  %2683 = vmatpush.msra.mxu0 0.0
  %2684 = vmatpush.msra.mxu0 0.0
  %2685 = vmatpush.msra.mxu0 0.0
  %2686 = vmatpush.msra.mxu0 0.0
  %2687 = vmatpush.msra.mxu0 0.0
  %2688 = vmatpush.msra.mxu0 0.0
  %2689 = vmatpush.msra.mxu0 %v2467
  %2690 = vmatmul.f32.gmra.mxu0 %v2438
  %v2691 = vpop.f32.mrf.mxu0
  %v2692 = vadd.f32 0.0, %v2691
  %2693 = vmatmul.f32.gmra.mxu0 %v2440
  %v2694 = vpop.f32.mrf.mxu0
  %v2695 = vadd.f32 0.0, %v2694
  %2696 = vdwg.mxu0
  %2697 = vmatpush.msra.mxu0 0.0
  %2698 = vmatpush.msra.mxu0 0.0
  %2699 = vmatpush.msra.mxu0 0.0
  %2700 = vmatpush.msra.mxu0 0.0
  %2701 = vmatpush.msra.mxu0 0.0
  %2702 = vmatpush.msra.mxu0 0.0
  %2703 = vmatpush.msra.mxu0 0.0
  %2704 = vmatpush.msra.mxu0 0.0
  %2705 = vmatpush.msra.mxu0 0.0
  %2706 = vmatpush.msra.mxu0 0.0
  %2707 = vmatpush.msra.mxu0 0.0
  %2708 = vmatpush.msra.mxu0 0.0
  %2709 = vmatpush.msra.mxu0 0.0
  %2710 = vmatpush.msra.mxu0 0.0
  %2711 = vmatpush.msra.mxu0 0.0
  %2712 = vmatpush.msra.mxu0 %v2470
  %2713 = vmatmul.f32.gmra.mxu0 %v2438
  %v2714 = vpop.f32.mrf.mxu0
  %v2715 = vadd.f32 0.0, %v2714
  %2716 = vmatmul.f32.gmra.mxu0 %v2440
  %v2717 = vpop.f32.mrf.mxu0
  %v2718 = vadd.f32 0.0, %v2717
  %2719 = vdwg.mxu0
  %2720 = vmatpush.msra.mxu0 0.0
  %2721 = vmatpush.msra.mxu0 0.0
  %2722 = vmatpush.msra.mxu0 0.0
  %2723 = vmatpush.msra.mxu0 0.0
  %2724 = vmatpush.msra.mxu0 0.0
  %2725 = vmatpush.msra.mxu0 0.0
  %2726 = vmatpush.msra.mxu0 0.0
  %2727 = vmatpush.msra.mxu0 0.0
  %2728 = vmatpush.msra.mxu0 0.0
  %2729 = vmatpush.msra.mxu0 0.0
  %2730 = vmatpush.msra.mxu0 0.0
  %2731 = vmatpush.msra.mxu0 0.0
  %2732 = vmatpush.msra.mxu0 0.0
  %2733 = vmatpush.msra.mxu0 0.0
  %2734 = vmatpush.msra.mxu0 0.0
  %2735 = vmatpush.msra.mxu0 %v2473
  %2736 = vmatmul.f32.gmra.mxu0 %v2438
  %v2737 = vpop.f32.mrf.mxu0
  %v2738 = vadd.f32 0.0, %v2737
  %2739 = vmatmul.f32.gmra.mxu0 %v2440
  %v2740 = vpop.f32.mrf.mxu0
  %v2741 = vadd.f32 0.0, %v2740
  %2742 = vdwg.mxu0
  %2743 = vmatpush.msra.mxu0 0.0
  %2744 = vmatpush.msra.mxu0 0.0
  %2745 = vmatpush.msra.mxu0 0.0
  %2746 = vmatpush.msra.mxu0 0.0
  %2747 = vmatpush.msra.mxu0 0.0
  %2748 = vmatpush.msra.mxu0 0.0
  %2749 = vmatpush.msra.mxu0 0.0
  %2750 = vmatpush.msra.mxu0 0.0
  %2751 = vmatpush.msra.mxu0 0.0
  %2752 = vmatpush.msra.mxu0 0.0
  %2753 = vmatpush.msra.mxu0 0.0
  %2754 = vmatpush.msra.mxu0 0.0
  %2755 = vmatpush.msra.mxu0 0.0
  %2756 = vmatpush.msra.mxu0 0.0
  %2757 = vmatpush.msra.mxu0 0.0
  %2758 = vmatpush.msra.mxu0 %v2476
  %2759 = vmatmul.f32.gmra.mxu0 %v2438
  %v2760 = vpop.f32.mrf.mxu0
  %v2761 = vadd.f32 0.0, %v2760
  %2762 = vmatmul.f32.gmra.mxu0 %v2440
  %v2763 = vpop.f32.mrf.mxu0
  %v2764 = vadd.f32 0.0, %v2763
  %2765 = vdwg.mxu0
  %2766 = vmatpush.msra.mxu0 0.0
  %2767 = vmatpush.msra.mxu0 0.0
  %2768 = vmatpush.msra.mxu0 0.0
  %2769 = vmatpush.msra.mxu0 0.0
  %2770 = vmatpush.msra.mxu0 0.0
  %2771 = vmatpush.msra.mxu0 0.0
  %2772 = vmatpush.msra.mxu0 0.0
  %2773 = vmatpush.msra.mxu0 0.0
  %2774 = vmatpush.msra.mxu0 0.0
  %2775 = vmatpush.msra.mxu0 0.0
  %2776 = vmatpush.msra.mxu0 0.0
  %2777 = vmatpush.msra.mxu0 0.0
  %2778 = vmatpush.msra.mxu0 0.0
  %2779 = vmatpush.msra.mxu0 0.0
  %2780 = vmatpush.msra.mxu0 0.0
  %2781 = vmatpush.msra.mxu0 %v2479
  %2782 = vmatmul.f32.gmra.mxu0 %v2438
  %v2783 = vpop.f32.mrf.mxu0
  %v2784 = vadd.f32 0.0, %v2783
  %2785 = vmatmul.f32.gmra.mxu0 %v2440
  %v2786 = vpop.f32.mrf.mxu0
  %v2787 = vadd.f32 0.0, %v2786
  %2788 = vdwg.mxu0
  %2789 = vmatpush.msra.mxu0 0.0
  %2790 = vmatpush.msra.mxu0 0.0
  %2791 = vmatpush.msra.mxu0 0.0
  %2792 = vmatpush.msra.mxu0 0.0
  %2793 = vmatpush.msra.mxu0 0.0
  %2794 = vmatpush.msra.mxu0 0.0
  %2795 = vmatpush.msra.mxu0 0.0
  %2796 = vmatpush.msra.mxu0 0.0
  %2797 = vmatpush.msra.mxu0 0.0
  %2798 = vmatpush.msra.mxu0 0.0
  %2799 = vmatpush.msra.mxu0 0.0
  %2800 = vmatpush.msra.mxu0 0.0
  %2801 = vmatpush.msra.mxu0 0.0
  %2802 = vmatpush.msra.mxu0 0.0
  %2803 = vmatpush.msra.mxu0 0.0
  %2804 = vmatpush.msra.mxu0 %v2482
  %2805 = vmatmul.f32.gmra.mxu0 %v2438
  %v2806 = vpop.f32.mrf.mxu0
  %v2807 = vadd.f32 0.0, %v2806
  %2808 = vmatmul.f32.gmra.mxu0 %v2440
  %v2809 = vpop.f32.mrf.mxu0
  %v2810 = vadd.f32 0.0, %v2809
  %2811 = vdwg.mxu0
  %2812 = vmatpush.msra.mxu0 0.0
  %2813 = vmatpush.msra.mxu0 0.0
  %2814 = vmatpush.msra.mxu0 0.0
  %2815 = vmatpush.msra.mxu0 0.0
  %2816 = vmatpush.msra.mxu0 0.0
  %2817 = vmatpush.msra.mxu0 0.0
  %2818 = vmatpush.msra.mxu0 0.0
  %2819 = vmatpush.msra.mxu0 0.0
  %2820 = vmatpush.msra.mxu0 0.0
  %2821 = vmatpush.msra.mxu0 0.0
  %2822 = vmatpush.msra.mxu0 0.0
  %2823 = vmatpush.msra.mxu0 0.0
  %2824 = vmatpush.msra.mxu0 0.0
  %2825 = vmatpush.msra.mxu0 0.0
  %2826 = vmatpush.msra.mxu0 0.0
  %2827 = vmatpush.msra.mxu0 %v2485
  %2828 = vmatmul.f32.gmra.mxu0 %v2438
  %v2829 = vpop.f32.mrf.mxu0
  %v2830 = vadd.f32 0.0, %v2829
  %2831 = vmatmul.f32.gmra.mxu0 %v2440
  %v2832 = vpop.f32.mrf.mxu0
  %v2833 = vadd.f32 0.0, %v2832
  %2834 = vdwg.mxu0
  %2835 = vmatpush.msra.mxu0 0.0
  %2836 = vmatpush.msra.mxu0 0.0
  %2837 = vmatpush.msra.mxu0 0.0
  %2838 = vmatpush.msra.mxu0 0.0
  %2839 = vmatpush.msra.mxu0 0.0
  %2840 = vmatpush.msra.mxu0 0.0
  %2841 = vmatpush.msra.mxu0 0.0
  %2842 = vmatpush.msra.mxu0 0.0
  %2843 = vmatpush.msra.mxu0 0.0
  %2844 = vmatpush.msra.mxu0 0.0
  %2845 = vmatpush.msra.mxu0 0.0
  %2846 = vmatpush.msra.mxu0 0.0
  %2847 = vmatpush.msra.mxu0 0.0
  %2848 = vmatpush.msra.mxu0 0.0
  %2849 = vmatpush.msra.mxu0 0.0
  %2850 = vmatpush.msra.mxu0 %v2488
  %2851 = vmatmul.f32.gmra.mxu0 %v2438
  %v2852 = vpop.f32.mrf.mxu0
  %v2853 = vadd.f32 0.0, %v2852
  %2854 = vmatmul.f32.gmra.mxu0 %v2440
  %v2855 = vpop.f32.mrf.mxu0
  %v2856 = vadd.f32 0.0, %v2855
  %2857 = vdwg.mxu0
  %v2858 = vadd.f32 %v2402, %v2508
  %v2859 = vadd.f32 %v2403, %v2531
  %v2860 = vadd.f32 %v2404, %v2554
  %v2861 = vadd.f32 %v2405, %v2577
  %v2862 = vadd.f32 %v2406, %v2600
  %v2863 = vadd.f32 %v2407, %v2623
  %v2864 = vadd.f32 %v2408, %v2646
  %v2865 = vadd.f32 %v2409, %v2669
  %v2866 = vadd.f32 %v2410, %v2692
  %v2867 = vadd.f32 %v2411, %v2715
  %v2868 = vadd.f32 %v2412, %v2738
  %v2869 = vadd.f32 %v2413, %v2761
  %v2870 = vadd.f32 %v2414, %v2784
  %v2871 = vadd.f32 %v2415, %v2807
  %v2872 = vadd.f32 %v2416, %v2830
  %v2873 = vadd.f32 %v2417, %v2853
  %v2874 = vadd.f32 %v2418, %v2511
  %v2875 = vadd.f32 %v2419, %v2534
  %v2876 = vadd.f32 %v2420, %v2557
  %v2877 = vadd.f32 %v2421, %v2580
  %v2878 = vadd.f32 %v2422, %v2603
  %v2879 = vadd.f32 %v2423, %v2626
  %v2880 = vadd.f32 %v2424, %v2649
  %v2881 = vadd.f32 %v2425, %v2672
  %v2882 = vadd.f32 %v2426, %v2695
  %v2883 = vadd.f32 %v2427, %v2718
  %v2884 = vadd.f32 %v2428, %v2741
  %v2885 = vadd.f32 %v2429, %v2764
  %v2886 = vadd.f32 %v2430, %v2787
  %v2887 = vadd.f32 %v2431, %v2810
  %v2888 = vadd.f32 %v2432, %v2833
  %v2889 = vadd.f32 %v2433, %v2856
  %v2890 = vld [vmem:[%s0 + $0x8] sm:$0xf]
  %v2891 = vld [vmem:[%s0 + $0x10] sm:$0xf]
  %v2892 = vld [vmem:[%s0 + $0x18] sm:$0xf]
  %v2893 = vld [vmem:[%s0 + $0x20] sm:$0xf]
  %v2894 = vld [vmem:[%s0 + $0x28] sm:$0xf]
  %v2895 = vld [vmem:[%s0 + $0x30] sm:$0xf]
  %v2896 = vld [vmem:[%s0 + $0x38] sm:$0xf]
  %v2897 = vld [vmem:[%s0 + $0x40] sm:$0xf]
  %v2898 = vld [vmem:[%s0 + $0x48] sm:$0xf]
  %v2899 = vld [vmem:[%s0 + $0x50] sm:$0xf]
  %v2900 = vld [vmem:[%s0 + $0x58] sm:$0xf]
  %v2901 = vld [vmem:[%s0 + $0x60] sm:$0xf]
  %v2902 = vld [vmem:[%s0 + $0x68] sm:$0xf]
  %v2903 = vld [vmem:[%s0 + $0x70] sm:$0xf]
  %v2904 = vld [vmem:[%s0 + $0x78] sm:$0xf]
  %v2905 = vld [vmem:[%s0 + $0x80] sm:$0xf]
  %v2906 = vld [vmem:[%s0 + $0x88] sm:$0xf]
  %v2909 = vperm.slane %v38, 0
  %v2910 = vperm.slane %v38, 1
  %v2911 = vperm.slane %v38, 2
  %v2912 = vperm.slane %v38, 3
  %v2913 = vperm.slane %v38, 4
  %v2914 = vperm.slane %v38, 5
  %v2915 = vperm.slane %v38, 6
  %v2916 = vperm.slane %v38, 7
  %v2917 = vperm.slane %v42, 0
  %v2918 = vperm.slane %v42, 1
  %v2919 = vperm.slane %v42, 2
  %v2920 = vperm.slane %v42, 3
  %v2921 = vperm.slane %v42, 4
  %v2922 = vperm.slane %v42, 5
  %v2923 = vperm.slane %v42, 6
  %v2924 = vperm.slane %v42, 7
  %2925 = vrot.lane.b32.xlu0 %v2909, 1
  %v2926 = vpop.permute.xlu0 %2925
  %2927 = vrot.lane.b32.xlu0 %v2910, 1
  %v2928 = vpop.permute.xlu0 %2927
  %2929 = vrot.lane.b32.xlu0 %v2911, 1
  %v2930 = vpop.permute.xlu0 %2929
  %2931 = vrot.lane.b32.xlu0 %v2912, 1
  %v2932 = vpop.permute.xlu0 %2931
  %2933 = vrot.lane.b32.xlu0 %v2913, 1
  %v2934 = vpop.permute.xlu0 %2933
  %2935 = vrot.lane.b32.xlu0 %v2914, 1
  %v2936 = vpop.permute.xlu0 %2935
  %2937 = vrot.lane.b32.xlu0 %v2915, 1
  %v2938 = vpop.permute.xlu0 %2937
  %2939 = vrot.lane.b32.xlu0 %v2916, 1
  %v2940 = vpop.permute.xlu0 %2939
  %2941 = vrot.lane.b32.xlu0 %v2917, 1
  %v2942 = vpop.permute.xlu0 %2941
  %2943 = vrot.lane.b32.xlu0 %v2918, 1
  %v2944 = vpop.permute.xlu0 %2943
  %2945 = vrot.lane.b32.xlu0 %v2919, 1
  %v2946 = vpop.permute.xlu0 %2945
  %2947 = vrot.lane.b32.xlu0 %v2920, 1
  %v2948 = vpop.permute.xlu0 %2947
  %2949 = vrot.lane.b32.xlu0 %v2921, 1
  %v2950 = vpop.permute.xlu0 %2949
  %2951 = vrot.lane.b32.xlu0 %v2922, 1
  %v2952 = vpop.permute.xlu0 %2951
  %2953 = vrot.lane.b32.xlu0 %v2923, 1
  %v2954 = vpop.permute.xlu0 %2953
  %2955 = vrot.lane.b32.xlu0 %v2924, 1
  %v2956 = vpop.permute.xlu0 %2955
  %v2957 = vsel %vm1981, %v2926, %v2928
  %v2958 = vsel %vm1981, %v2928, %v2930
  %v2959 = vsel %vm1981, %v2930, %v2932
  %v2960 = vsel %vm1981, %v2932, %v2934
  %v2961 = vsel %vm1981, %v2934, %v2936
  %v2962 = vsel %vm1981, %v2936, %v2938
  %v2963 = vsel %vm1981, %v2938, %v2940
  %v2964 = vsel %vm1981, %v2940, %v2942
  %v2965 = vsel %vm1981, %v2942, %v2944
  %v2966 = vsel %vm1981, %v2944, %v2946
  %v2967 = vsel %vm1981, %v2946, %v2948
  %v2968 = vsel %vm1981, %v2948, %v2950
  %v2969 = vsel %vm1981, %v2950, %v2952
  %v2970 = vsel %vm1981, %v2952, %v2954
  %v2971 = vsel %vm1981, %v2954, %v2956
  %v2989 = vmul.f32 %v2890, %v2926
  %v2990 = vmul.f32 %v2891, %v2957
  %v2991 = vmul.f32 %v2892, %v2958
  %v2992 = vmul.f32 %v2893, %v2959
  %v2993 = vmul.f32 %v2894, %v2960
  %v2994 = vmul.f32 %v2895, %v2961
  %v2995 = vmul.f32 %v2896, %v2962
  %v2996 = vmul.f32 %v2897, %v2963
  %v2997 = vmul.f32 %v2898, %v2964
  %v2998 = vmul.f32 %v2899, %v2965
  %v2999 = vmul.f32 %v2900, %v2966
  %v3000 = vmul.f32 %v2901, %v2967
  %v3001 = vmul.f32 %v2902, %v2968
  %v3002 = vmul.f32 %v2903, %v2969
  %v3003 = vmul.f32 %v2904, %v2970
  %v3004 = vmul.f32 %v2905, %v2971
  %v3005 = vmul.f32 %v2906, %v2956
  %3006 = vrot.lane.b32.xlu0 %v162, 108
  %v3007 = vpop.permute.xlu0 %3006
  %3008 = vrot.lane.b32.xlu0 %v163, 108
  %v3009 = vpop.permute.xlu0 %3008
  %3027 = vrot.lane.b32.xlu0 %v2989, 127
  %v3028 = vpop.permute.xlu0 %3027
  %3029 = vrot.lane.b32.xlu0 %v2990, 127
  %v3030 = vpop.permute.xlu0 %3029
  %3031 = vrot.lane.b32.xlu0 %v2991, 127
  %v3032 = vpop.permute.xlu0 %3031
  %3033 = vrot.lane.b32.xlu0 %v2992, 127
  %v3034 = vpop.permute.xlu0 %3033
  %3035 = vrot.lane.b32.xlu0 %v2993, 127
  %v3036 = vpop.permute.xlu0 %3035
  %3037 = vrot.lane.b32.xlu0 %v2994, 127
  %v3038 = vpop.permute.xlu0 %3037
  %3039 = vrot.lane.b32.xlu0 %v2995, 127
  %v3040 = vpop.permute.xlu0 %3039
  %3041 = vrot.lane.b32.xlu0 %v2996, 127
  %v3042 = vpop.permute.xlu0 %3041
  %3043 = vrot.lane.b32.xlu0 %v2997, 127
  %v3044 = vpop.permute.xlu0 %3043
  %3045 = vrot.lane.b32.xlu0 %v2998, 127
  %v3046 = vpop.permute.xlu0 %3045
  %3047 = vrot.lane.b32.xlu0 %v2999, 127
  %v3048 = vpop.permute.xlu0 %3047
  %3049 = vrot.lane.b32.xlu0 %v3000, 127
  %v3050 = vpop.permute.xlu0 %3049
  %3051 = vrot.lane.b32.xlu0 %v3001, 127
  %v3052 = vpop.permute.xlu0 %3051
  %3053 = vrot.lane.b32.xlu0 %v3002, 127
  %v3054 = vpop.permute.xlu0 %3053
  %3055 = vrot.lane.b32.xlu0 %v3003, 127
  %v3056 = vpop.permute.xlu0 %3055
  %3057 = vrot.lane.b32.xlu0 %v3004, 127
  %v3058 = vpop.permute.xlu0 %3057
  %3059 = vrot.lane.b32.xlu0 %v3005, 127
  %v3060 = vpop.permute.xlu0 %3059
  %v3061 = vsel %vm1876, %v3028, %v3030
  %v3062 = vsel %vm1876, %v3030, %v3032
  %v3063 = vsel %vm1876, %v3032, %v3034
  %v3064 = vsel %vm1876, %v3034, %v3036
  %v3065 = vsel %vm1876, %v3036, %v3038
  %v3066 = vsel %vm1876, %v3038, %v3040
  %v3067 = vsel %vm1876, %v3040, %v3042
  %v3068 = vsel %vm1876, %v3042, %v3044
  %v3069 = vsel %vm1876, %v3044, %v3046
  %v3070 = vsel %vm1876, %v3046, %v3048
  %v3071 = vsel %vm1876, %v3048, %v3050
  %v3072 = vsel %vm1876, %v3050, %v3052
  %v3073 = vsel %vm1876, %v3052, %v3054
  %v3074 = vsel %vm1876, %v3054, %v3056
  %v3075 = vsel %vm1876, %v3056, %v3058
  %v3076 = vsel %vm1876, %v3058, %v3060
  %v3077 = vsel %vm338, %v3007, 0
  %v3079 = vsel %vm338, %v3009, 0
  %v3081 = vsel %vm343, %v3061, 0
  %v3083 = vsel %vm343, %v3062, 0
  %v3085 = vsel %vm343, %v3063, 0
  %v3087 = vsel %vm343, %v3064, 0
  %v3089 = vsel %vm343, %v3065, 0
  %v3091 = vsel %vm343, %v3066, 0
  %v3093 = vsel %vm343, %v3067, 0
  %v3095 = vsel %vm343, %v3068, 0
  %v3097 = vsel %vm343, %v3069, 0
  %v3099 = vsel %vm343, %v3070, 0
  %v3101 = vsel %vm343, %v3071, 0
  %v3103 = vsel %vm343, %v3072, 0
  %v3105 = vsel %vm343, %v3073, 0
  %v3107 = vsel %vm343, %v3074, 0
  %v3109 = vsel %vm343, %v3075, 0
  %v3111 = vsel %vm343, %v3076, 0
  %3113 = vmatpush.msra.mxu0 0.0
  %3114 = vmatpush.msra.mxu0 0.0
  %3115 = vmatpush.msra.mxu0 0.0
  %3116 = vmatpush.msra.mxu0 0.0
  %3117 = vmatpush.msra.mxu0 0.0
  %3118 = vmatpush.msra.mxu0 0.0
  %3119 = vmatpush.msra.mxu0 0.0
  %3120 = vmatpush.msra.mxu0 0.0
  %3121 = vmatpush.msra.mxu0 0.0
  %3122 = vmatpush.msra.mxu0 0.0
  %3123 = vmatpush.msra.mxu0 0.0
  %3124 = vmatpush.msra.mxu0 0.0
  %3125 = vmatpush.msra.mxu0 0.0
  %3126 = vmatpush.msra.mxu0 0.0
  %3127 = vmatpush.msra.mxu0 0.0
  %3128 = vmatpush.msra.mxu0 %v3081
  %3129 = vmatmul.f32.gmra.mxu0 %v3077
  %v3130 = vpop.f32.mrf.mxu0
  %v3131 = vadd.f32 0.0, %v3130
  %3132 = vmatmul.f32.gmra.mxu0 %v3079
  %v3133 = vpop.f32.mrf.mxu0
  %v3134 = vadd.f32 0.0, %v3133
  %3135 = vdwg.mxu0
  %3136 = vmatpush.msra.mxu0 0.0
  %3137 = vmatpush.msra.mxu0 0.0
  %3138 = vmatpush.msra.mxu0 0.0
  %3139 = vmatpush.msra.mxu0 0.0
  %3140 = vmatpush.msra.mxu0 0.0
  %3141 = vmatpush.msra.mxu0 0.0
  %3142 = vmatpush.msra.mxu0 0.0
  %3143 = vmatpush.msra.mxu0 0.0
  %3144 = vmatpush.msra.mxu0 0.0
  %3145 = vmatpush.msra.mxu0 0.0
  %3146 = vmatpush.msra.mxu0 0.0
  %3147 = vmatpush.msra.mxu0 0.0
  %3148 = vmatpush.msra.mxu0 0.0
  %3149 = vmatpush.msra.mxu0 0.0
  %3150 = vmatpush.msra.mxu0 0.0
  %3151 = vmatpush.msra.mxu0 %v3083
  %3152 = vmatmul.f32.gmra.mxu0 %v3077
  %v3153 = vpop.f32.mrf.mxu0
  %v3154 = vadd.f32 0.0, %v3153
  %3155 = vmatmul.f32.gmra.mxu0 %v3079
  %v3156 = vpop.f32.mrf.mxu0
  %v3157 = vadd.f32 0.0, %v3156
  %3158 = vdwg.mxu0
  %3159 = vmatpush.msra.mxu0 0.0
  %3160 = vmatpush.msra.mxu0 0.0
  %3161 = vmatpush.msra.mxu0 0.0
  %3162 = vmatpush.msra.mxu0 0.0
  %3163 = vmatpush.msra.mxu0 0.0
  %3164 = vmatpush.msra.mxu0 0.0
  %3165 = vmatpush.msra.mxu0 0.0
  %3166 = vmatpush.msra.mxu0 0.0
  %3167 = vmatpush.msra.mxu0 0.0
  %3168 = vmatpush.msra.mxu0 0.0
  %3169 = vmatpush.msra.mxu0 0.0
  %3170 = vmatpush.msra.mxu0 0.0
  %3171 = vmatpush.msra.mxu0 0.0
  %3172 = vmatpush.msra.mxu0 0.0
  %3173 = vmatpush.msra.mxu0 0.0
  %3174 = vmatpush.msra.mxu0 %v3085
  %3175 = vmatmul.f32.gmra.mxu0 %v3077
  %v3176 = vpop.f32.mrf.mxu0
  %v3177 = vadd.f32 0.0, %v3176
  %3178 = vmatmul.f32.gmra.mxu0 %v3079
  %v3179 = vpop.f32.mrf.mxu0
  %v3180 = vadd.f32 0.0, %v3179
  %3181 = vdwg.mxu0
  %3182 = vmatpush.msra.mxu0 0.0
  %3183 = vmatpush.msra.mxu0 0.0
  %3184 = vmatpush.msra.mxu0 0.0
  %3185 = vmatpush.msra.mxu0 0.0
  %3186 = vmatpush.msra.mxu0 0.0
  %3187 = vmatpush.msra.mxu0 0.0
  %3188 = vmatpush.msra.mxu0 0.0
  %3189 = vmatpush.msra.mxu0 0.0
  %3190 = vmatpush.msra.mxu0 0.0
  %3191 = vmatpush.msra.mxu0 0.0
  %3192 = vmatpush.msra.mxu0 0.0
  %3193 = vmatpush.msra.mxu0 0.0
  %3194 = vmatpush.msra.mxu0 0.0
  %3195 = vmatpush.msra.mxu0 0.0
  %3196 = vmatpush.msra.mxu0 0.0
  %3197 = vmatpush.msra.mxu0 %v3087
  %3198 = vmatmul.f32.gmra.mxu0 %v3077
  %v3199 = vpop.f32.mrf.mxu0
  %v3200 = vadd.f32 0.0, %v3199
  %3201 = vmatmul.f32.gmra.mxu0 %v3079
  %v3202 = vpop.f32.mrf.mxu0
  %v3203 = vadd.f32 0.0, %v3202
  %3204 = vdwg.mxu0
  %3205 = vmatpush.msra.mxu0 0.0
  %3206 = vmatpush.msra.mxu0 0.0
  %3207 = vmatpush.msra.mxu0 0.0
  %3208 = vmatpush.msra.mxu0 0.0
  %3209 = vmatpush.msra.mxu0 0.0
  %3210 = vmatpush.msra.mxu0 0.0
  %3211 = vmatpush.msra.mxu0 0.0
  %3212 = vmatpush.msra.mxu0 0.0
  %3213 = vmatpush.msra.mxu0 0.0
  %3214 = vmatpush.msra.mxu0 0.0
  %3215 = vmatpush.msra.mxu0 0.0
  %3216 = vmatpush.msra.mxu0 0.0
  %3217 = vmatpush.msra.mxu0 0.0
  %3218 = vmatpush.msra.mxu0 0.0
  %3219 = vmatpush.msra.mxu0 0.0
  %3220 = vmatpush.msra.mxu0 %v3089
  %3221 = vmatmul.f32.gmra.mxu0 %v3077
  %v3222 = vpop.f32.mrf.mxu0
  %v3223 = vadd.f32 0.0, %v3222
  %3224 = vmatmul.f32.gmra.mxu0 %v3079
  %v3225 = vpop.f32.mrf.mxu0
  %v3226 = vadd.f32 0.0, %v3225
  %3227 = vdwg.mxu0
  %3228 = vmatpush.msra.mxu0 0.0
  %3229 = vmatpush.msra.mxu0 0.0
  %3230 = vmatpush.msra.mxu0 0.0
  %3231 = vmatpush.msra.mxu0 0.0
  %3232 = vmatpush.msra.mxu0 0.0
  %3233 = vmatpush.msra.mxu0 0.0
  %3234 = vmatpush.msra.mxu0 0.0
  %3235 = vmatpush.msra.mxu0 0.0
  %3236 = vmatpush.msra.mxu0 0.0
  %3237 = vmatpush.msra.mxu0 0.0
  %3238 = vmatpush.msra.mxu0 0.0
  %3239 = vmatpush.msra.mxu0 0.0
  %3240 = vmatpush.msra.mxu0 0.0
  %3241 = vmatpush.msra.mxu0 0.0
  %3242 = vmatpush.msra.mxu0 0.0
  %3243 = vmatpush.msra.mxu0 %v3091
  %3244 = vmatmul.f32.gmra.mxu0 %v3077
  %v3245 = vpop.f32.mrf.mxu0
  %v3246 = vadd.f32 0.0, %v3245
  %3247 = vmatmul.f32.gmra.mxu0 %v3079
  %v3248 = vpop.f32.mrf.mxu0
  %v3249 = vadd.f32 0.0, %v3248
  %3250 = vdwg.mxu0
  %3251 = vmatpush.msra.mxu0 0.0
  %3252 = vmatpush.msra.mxu0 0.0
  %3253 = vmatpush.msra.mxu0 0.0
  %3254 = vmatpush.msra.mxu0 0.0
  %3255 = vmatpush.msra.mxu0 0.0
  %3256 = vmatpush.msra.mxu0 0.0
  %3257 = vmatpush.msra.mxu0 0.0
  %3258 = vmatpush.msra.mxu0 0.0
  %3259 = vmatpush.msra.mxu0 0.0
  %3260 = vmatpush.msra.mxu0 0.0
  %3261 = vmatpush.msra.mxu0 0.0
  %3262 = vmatpush.msra.mxu0 0.0
  %3263 = vmatpush.msra.mxu0 0.0
  %3264 = vmatpush.msra.mxu0 0.0
  %3265 = vmatpush.msra.mxu0 0.0
  %3266 = vmatpush.msra.mxu0 %v3093
  %3267 = vmatmul.f32.gmra.mxu0 %v3077
  %v3268 = vpop.f32.mrf.mxu0
  %v3269 = vadd.f32 0.0, %v3268
  %3270 = vmatmul.f32.gmra.mxu0 %v3079
  %v3271 = vpop.f32.mrf.mxu0
  %v3272 = vadd.f32 0.0, %v3271
  %3273 = vdwg.mxu0
  %3274 = vmatpush.msra.mxu0 0.0
  %3275 = vmatpush.msra.mxu0 0.0
  %3276 = vmatpush.msra.mxu0 0.0
  %3277 = vmatpush.msra.mxu0 0.0
  %3278 = vmatpush.msra.mxu0 0.0
  %3279 = vmatpush.msra.mxu0 0.0
  %3280 = vmatpush.msra.mxu0 0.0
  %3281 = vmatpush.msra.mxu0 0.0
  %3282 = vmatpush.msra.mxu0 0.0
  %3283 = vmatpush.msra.mxu0 0.0
  %3284 = vmatpush.msra.mxu0 0.0
  %3285 = vmatpush.msra.mxu0 0.0
  %3286 = vmatpush.msra.mxu0 0.0
  %3287 = vmatpush.msra.mxu0 0.0
  %3288 = vmatpush.msra.mxu0 0.0
  %3289 = vmatpush.msra.mxu0 %v3095
  %3290 = vmatmul.f32.gmra.mxu0 %v3077
  %v3291 = vpop.f32.mrf.mxu0
  %v3292 = vadd.f32 0.0, %v3291
  %3293 = vmatmul.f32.gmra.mxu0 %v3079
  %v3294 = vpop.f32.mrf.mxu0
  %v3295 = vadd.f32 0.0, %v3294
  %3296 = vdwg.mxu0
  %3297 = vmatpush.msra.mxu0 0.0
  %3298 = vmatpush.msra.mxu0 0.0
  %3299 = vmatpush.msra.mxu0 0.0
  %3300 = vmatpush.msra.mxu0 0.0
  %3301 = vmatpush.msra.mxu0 0.0
  %3302 = vmatpush.msra.mxu0 0.0
  %3303 = vmatpush.msra.mxu0 0.0
  %3304 = vmatpush.msra.mxu0 0.0
  %3305 = vmatpush.msra.mxu0 0.0
  %3306 = vmatpush.msra.mxu0 0.0
  %3307 = vmatpush.msra.mxu0 0.0
  %3308 = vmatpush.msra.mxu0 0.0
  %3309 = vmatpush.msra.mxu0 0.0
  %3310 = vmatpush.msra.mxu0 0.0
  %3311 = vmatpush.msra.mxu0 0.0
  %3312 = vmatpush.msra.mxu0 %v3097
  %3313 = vmatmul.f32.gmra.mxu0 %v3077
  %v3314 = vpop.f32.mrf.mxu0
  %v3315 = vadd.f32 0.0, %v3314
  %3316 = vmatmul.f32.gmra.mxu0 %v3079
  %v3317 = vpop.f32.mrf.mxu0
  %v3318 = vadd.f32 0.0, %v3317
  %3319 = vdwg.mxu0
  %3320 = vmatpush.msra.mxu0 0.0
  %3321 = vmatpush.msra.mxu0 0.0
  %3322 = vmatpush.msra.mxu0 0.0
  %3323 = vmatpush.msra.mxu0 0.0
  %3324 = vmatpush.msra.mxu0 0.0
  %3325 = vmatpush.msra.mxu0 0.0
  %3326 = vmatpush.msra.mxu0 0.0
  %3327 = vmatpush.msra.mxu0 0.0
  %3328 = vmatpush.msra.mxu0 0.0
  %3329 = vmatpush.msra.mxu0 0.0
  %3330 = vmatpush.msra.mxu0 0.0
  %3331 = vmatpush.msra.mxu0 0.0
  %3332 = vmatpush.msra.mxu0 0.0
  %3333 = vmatpush.msra.mxu0 0.0
  %3334 = vmatpush.msra.mxu0 0.0
  %3335 = vmatpush.msra.mxu0 %v3099
  %3336 = vmatmul.f32.gmra.mxu0 %v3077
  %v3337 = vpop.f32.mrf.mxu0
  %v3338 = vadd.f32 0.0, %v3337
  %3339 = vmatmul.f32.gmra.mxu0 %v3079
  %v3340 = vpop.f32.mrf.mxu0
  %v3341 = vadd.f32 0.0, %v3340
  %3342 = vdwg.mxu0
  %3343 = vmatpush.msra.mxu0 0.0
  %3344 = vmatpush.msra.mxu0 0.0
  %3345 = vmatpush.msra.mxu0 0.0
  %3346 = vmatpush.msra.mxu0 0.0
  %3347 = vmatpush.msra.mxu0 0.0
  %3348 = vmatpush.msra.mxu0 0.0
  %3349 = vmatpush.msra.mxu0 0.0
  %3350 = vmatpush.msra.mxu0 0.0
  %3351 = vmatpush.msra.mxu0 0.0
  %3352 = vmatpush.msra.mxu0 0.0
  %3353 = vmatpush.msra.mxu0 0.0
  %3354 = vmatpush.msra.mxu0 0.0
  %3355 = vmatpush.msra.mxu0 0.0
  %3356 = vmatpush.msra.mxu0 0.0
  %3357 = vmatpush.msra.mxu0 0.0
  %3358 = vmatpush.msra.mxu0 %v3101
  %3359 = vmatmul.f32.gmra.mxu0 %v3077
  %v3360 = vpop.f32.mrf.mxu0
  %v3361 = vadd.f32 0.0, %v3360
  %3362 = vmatmul.f32.gmra.mxu0 %v3079
  %v3363 = vpop.f32.mrf.mxu0
  %v3364 = vadd.f32 0.0, %v3363
  %3365 = vdwg.mxu0
  %3366 = vmatpush.msra.mxu0 0.0
  %3367 = vmatpush.msra.mxu0 0.0
  %3368 = vmatpush.msra.mxu0 0.0
  %3369 = vmatpush.msra.mxu0 0.0
  %3370 = vmatpush.msra.mxu0 0.0
  %3371 = vmatpush.msra.mxu0 0.0
  %3372 = vmatpush.msra.mxu0 0.0
  %3373 = vmatpush.msra.mxu0 0.0
  %3374 = vmatpush.msra.mxu0 0.0
  %3375 = vmatpush.msra.mxu0 0.0
  %3376 = vmatpush.msra.mxu0 0.0
  %3377 = vmatpush.msra.mxu0 0.0
  %3378 = vmatpush.msra.mxu0 0.0
  %3379 = vmatpush.msra.mxu0 0.0
  %3380 = vmatpush.msra.mxu0 0.0
  %3381 = vmatpush.msra.mxu0 %v3103
  %3382 = vmatmul.f32.gmra.mxu0 %v3077
  %v3383 = vpop.f32.mrf.mxu0
  %v3384 = vadd.f32 0.0, %v3383
  %3385 = vmatmul.f32.gmra.mxu0 %v3079
  %v3386 = vpop.f32.mrf.mxu0
  %v3387 = vadd.f32 0.0, %v3386
  %3388 = vdwg.mxu0
  %3389 = vmatpush.msra.mxu0 0.0
  %3390 = vmatpush.msra.mxu0 0.0
  %3391 = vmatpush.msra.mxu0 0.0
  %3392 = vmatpush.msra.mxu0 0.0
  %3393 = vmatpush.msra.mxu0 0.0
  %3394 = vmatpush.msra.mxu0 0.0
  %3395 = vmatpush.msra.mxu0 0.0
  %3396 = vmatpush.msra.mxu0 0.0
  %3397 = vmatpush.msra.mxu0 0.0
  %3398 = vmatpush.msra.mxu0 0.0
  %3399 = vmatpush.msra.mxu0 0.0
  %3400 = vmatpush.msra.mxu0 0.0
  %3401 = vmatpush.msra.mxu0 0.0
  %3402 = vmatpush.msra.mxu0 0.0
  %3403 = vmatpush.msra.mxu0 0.0
  %3404 = vmatpush.msra.mxu0 %v3105
  %3405 = vmatmul.f32.gmra.mxu0 %v3077
  %v3406 = vpop.f32.mrf.mxu0
  %v3407 = vadd.f32 0.0, %v3406
  %3408 = vmatmul.f32.gmra.mxu0 %v3079
  %v3409 = vpop.f32.mrf.mxu0
  %v3410 = vadd.f32 0.0, %v3409
  %3411 = vdwg.mxu0
  %3412 = vmatpush.msra.mxu0 0.0
  %3413 = vmatpush.msra.mxu0 0.0
  %3414 = vmatpush.msra.mxu0 0.0
  %3415 = vmatpush.msra.mxu0 0.0
  %3416 = vmatpush.msra.mxu0 0.0
  %3417 = vmatpush.msra.mxu0 0.0
  %3418 = vmatpush.msra.mxu0 0.0
  %3419 = vmatpush.msra.mxu0 0.0
  %3420 = vmatpush.msra.mxu0 0.0
  %3421 = vmatpush.msra.mxu0 0.0
  %3422 = vmatpush.msra.mxu0 0.0
  %3423 = vmatpush.msra.mxu0 0.0
  %3424 = vmatpush.msra.mxu0 0.0
  %3425 = vmatpush.msra.mxu0 0.0
  %3426 = vmatpush.msra.mxu0 0.0
  %3427 = vmatpush.msra.mxu0 %v3107
  %3428 = vmatmul.f32.gmra.mxu0 %v3077
  %v3429 = vpop.f32.mrf.mxu0
  %v3430 = vadd.f32 0.0, %v3429
  %3431 = vmatmul.f32.gmra.mxu0 %v3079
  %v3432 = vpop.f32.mrf.mxu0
  %v3433 = vadd.f32 0.0, %v3432
  %3434 = vdwg.mxu0
  %3435 = vmatpush.msra.mxu0 0.0
  %3436 = vmatpush.msra.mxu0 0.0
  %3437 = vmatpush.msra.mxu0 0.0
  %3438 = vmatpush.msra.mxu0 0.0
  %3439 = vmatpush.msra.mxu0 0.0
  %3440 = vmatpush.msra.mxu0 0.0
  %3441 = vmatpush.msra.mxu0 0.0
  %3442 = vmatpush.msra.mxu0 0.0
  %3443 = vmatpush.msra.mxu0 0.0
  %3444 = vmatpush.msra.mxu0 0.0
  %3445 = vmatpush.msra.mxu0 0.0
  %3446 = vmatpush.msra.mxu0 0.0
  %3447 = vmatpush.msra.mxu0 0.0
  %3448 = vmatpush.msra.mxu0 0.0
  %3449 = vmatpush.msra.mxu0 0.0
  %3450 = vmatpush.msra.mxu0 %v3109
  %3451 = vmatmul.f32.gmra.mxu0 %v3077
  %v3452 = vpop.f32.mrf.mxu0
  %v3453 = vadd.f32 0.0, %v3452
  %3454 = vmatmul.f32.gmra.mxu0 %v3079
  %v3455 = vpop.f32.mrf.mxu0
  %v3456 = vadd.f32 0.0, %v3455
  %3457 = vdwg.mxu0
  %3458 = vmatpush.msra.mxu0 0.0
  %3459 = vmatpush.msra.mxu0 0.0
  %3460 = vmatpush.msra.mxu0 0.0
  %3461 = vmatpush.msra.mxu0 0.0
  %3462 = vmatpush.msra.mxu0 0.0
  %3463 = vmatpush.msra.mxu0 0.0
  %3464 = vmatpush.msra.mxu0 0.0
  %3465 = vmatpush.msra.mxu0 0.0
  %3466 = vmatpush.msra.mxu0 0.0
  %3467 = vmatpush.msra.mxu0 0.0
  %3468 = vmatpush.msra.mxu0 0.0
  %3469 = vmatpush.msra.mxu0 0.0
  %3470 = vmatpush.msra.mxu0 0.0
  %3471 = vmatpush.msra.mxu0 0.0
  %3472 = vmatpush.msra.mxu0 0.0
  %3473 = vmatpush.msra.mxu0 %v3111
  %3474 = vmatmul.f32.gmra.mxu0 %v3077
  %v3475 = vpop.f32.mrf.mxu0
  %v3476 = vadd.f32 0.0, %v3475
  %3477 = vmatmul.f32.gmra.mxu0 %v3079
  %v3478 = vpop.f32.mrf.mxu0
  %v3479 = vadd.f32 0.0, %v3478
  %3480 = vdwg.mxu0
  %v3481 = vadd.f32 %v2858, %v3131
  %v3482 = vadd.f32 %v2859, %v3154
  %v3483 = vadd.f32 %v2860, %v3177
  %v3484 = vadd.f32 %v2861, %v3200
  %v3485 = vadd.f32 %v2862, %v3223
  %v3486 = vadd.f32 %v2863, %v3246
  %v3487 = vadd.f32 %v2864, %v3269
  %v3488 = vadd.f32 %v2865, %v3292
  %v3489 = vadd.f32 %v2866, %v3315
  %v3490 = vadd.f32 %v2867, %v3338
  %v3491 = vadd.f32 %v2868, %v3361
  %v3492 = vadd.f32 %v2869, %v3384
  %v3493 = vadd.f32 %v2870, %v3407
  %v3494 = vadd.f32 %v2871, %v3430
  %v3495 = vadd.f32 %v2872, %v3453
  %v3496 = vadd.f32 %v2873, %v3476
  %v3497 = vadd.f32 %v2874, %v3134
  %v3498 = vadd.f32 %v2875, %v3157
  %v3499 = vadd.f32 %v2876, %v3180
  %v3500 = vadd.f32 %v2877, %v3203
  %v3501 = vadd.f32 %v2878, %v3226
  %v3502 = vadd.f32 %v2879, %v3249
  %v3503 = vadd.f32 %v2880, %v3272
  %v3504 = vadd.f32 %v2881, %v3295
  %v3505 = vadd.f32 %v2882, %v3318
  %v3506 = vadd.f32 %v2883, %v3341
  %v3507 = vadd.f32 %v2884, %v3364
  %v3508 = vadd.f32 %v2885, %v3387
  %v3509 = vadd.f32 %v2886, %v3410
  %v3510 = vadd.f32 %v2887, %v3433
  %v3511 = vadd.f32 %v2888, %v3456
  %v3512 = vadd.f32 %v2889, %v3479
  %v3513 = vmul.f32 %v22, %v30
  %v3514 = vmul.f32 %v26, %v34
  %v3517 = vperm.slane %v3513, 0
  %v3518 = vperm.slane %v3513, 1
  %v3519 = vperm.slane %v3513, 2
  %v3520 = vperm.slane %v3513, 3
  %v3521 = vperm.slane %v3513, 4
  %v3522 = vperm.slane %v3513, 5
  %v3523 = vperm.slane %v3513, 6
  %v3524 = vperm.slane %v3513, 7
  %v3525 = vperm.slane %v3514, 0
  %v3526 = vperm.slane %v3514, 1
  %v3527 = vperm.slane %v3514, 2
  %v3528 = vperm.slane %v3514, 3
  %v3529 = vperm.slane %v3514, 4
  %v3530 = vperm.slane %v3514, 5
  %v3531 = vperm.slane %v3514, 6
  %v3532 = vperm.slane %v3514, 7
  %3533 = vrot.lane.b32.xlu0 %v3517, 31
  %v3534 = vpop.permute.xlu0 %3533
  %3535 = vrot.lane.b32.xlu0 %v3518, 31
  %v3536 = vpop.permute.xlu0 %3535
  %3537 = vrot.lane.b32.xlu0 %v3519, 31
  %v3538 = vpop.permute.xlu0 %3537
  %3539 = vrot.lane.b32.xlu0 %v3520, 31
  %v3540 = vpop.permute.xlu0 %3539
  %3541 = vrot.lane.b32.xlu0 %v3521, 31
  %v3542 = vpop.permute.xlu0 %3541
  %3543 = vrot.lane.b32.xlu0 %v3522, 31
  %v3544 = vpop.permute.xlu0 %3543
  %3545 = vrot.lane.b32.xlu0 %v3523, 31
  %v3546 = vpop.permute.xlu0 %3545
  %3547 = vrot.lane.b32.xlu0 %v3524, 31
  %v3548 = vpop.permute.xlu0 %3547
  %3549 = vrot.lane.b32.xlu0 %v3525, 31
  %v3550 = vpop.permute.xlu0 %3549
  %3551 = vrot.lane.b32.xlu0 %v3526, 31
  %v3552 = vpop.permute.xlu0 %3551
  %3553 = vrot.lane.b32.xlu0 %v3527, 31
  %v3554 = vpop.permute.xlu0 %3553
  %3555 = vrot.lane.b32.xlu0 %v3528, 31
  %v3556 = vpop.permute.xlu0 %3555
  %3557 = vrot.lane.b32.xlu0 %v3529, 31
  %v3558 = vpop.permute.xlu0 %3557
  %3559 = vrot.lane.b32.xlu0 %v3530, 31
  %v3560 = vpop.permute.xlu0 %3559
  %3561 = vrot.lane.b32.xlu0 %v3531, 31
  %v3562 = vpop.permute.xlu0 %3561
  %3563 = vrot.lane.b32.xlu0 %v3532, 31
  %v3564 = vpop.permute.xlu0 %3563
  %v3565 = vsel %vm1373, %v3534, %v3536
  %v3566 = vsel %vm1373, %v3536, %v3538
  %v3567 = vsel %vm1373, %v3538, %v3540
  %v3568 = vsel %vm1373, %v3540, %v3542
  %v3569 = vsel %vm1373, %v3542, %v3544
  %v3570 = vsel %vm1373, %v3544, %v3546
  %v3571 = vsel %vm1373, %v3546, %v3548
  %v3572 = vsel %vm1373, %v3548, %v3550
  %v3573 = vsel %vm1373, %v3550, %v3552
  %v3574 = vsel %vm1373, %v3552, %v3554
  %v3575 = vsel %vm1373, %v3554, %v3556
  %v3576 = vsel %vm1373, %v3556, %v3558
  %v3577 = vsel %vm1373, %v3558, %v3560
  %v3578 = vsel %vm1373, %v3560, %v3562
  %v3579 = vsel %vm1373, %v3562, %v3564
  %v3597 = vmul.f32 %v2890, %v3534
  %v3598 = vmul.f32 %v2891, %v3565
  %v3599 = vmul.f32 %v2892, %v3566
  %v3600 = vmul.f32 %v2893, %v3567
  %v3601 = vmul.f32 %v2894, %v3568
  %v3602 = vmul.f32 %v2895, %v3569
  %v3603 = vmul.f32 %v2896, %v3570
  %v3604 = vmul.f32 %v2897, %v3571
  %v3605 = vmul.f32 %v2898, %v3572
  %v3606 = vmul.f32 %v2899, %v3573
  %v3607 = vmul.f32 %v2900, %v3574
  %v3608 = vmul.f32 %v2901, %v3575
  %v3609 = vmul.f32 %v2902, %v3576
  %v3610 = vmul.f32 %v2903, %v3577
  %v3611 = vmul.f32 %v2904, %v3578
  %v3612 = vmul.f32 %v2905, %v3579
  %v3613 = vmul.f32 %v2906, %v3564
  %3614 = vrot.lane.b32.xlu0 %v162, 104
  %v3615 = vpop.permute.xlu0 %3614
  %3616 = vrot.lane.b32.xlu0 %v163, 104
  %v3617 = vpop.permute.xlu0 %3616
  %3635 = vrot.lane.b32.xlu0 %v3597, 97
  %v3636 = vpop.permute.xlu0 %3635
  %3637 = vrot.lane.b32.xlu0 %v3598, 97
  %v3638 = vpop.permute.xlu0 %3637
  %3639 = vrot.lane.b32.xlu0 %v3599, 97
  %v3640 = vpop.permute.xlu0 %3639
  %3641 = vrot.lane.b32.xlu0 %v3600, 97
  %v3642 = vpop.permute.xlu0 %3641
  %3643 = vrot.lane.b32.xlu0 %v3601, 97
  %v3644 = vpop.permute.xlu0 %3643
  %3645 = vrot.lane.b32.xlu0 %v3602, 97
  %v3646 = vpop.permute.xlu0 %3645
  %3647 = vrot.lane.b32.xlu0 %v3603, 97
  %v3648 = vpop.permute.xlu0 %3647
  %3649 = vrot.lane.b32.xlu0 %v3604, 97
  %v3650 = vpop.permute.xlu0 %3649
  %3651 = vrot.lane.b32.xlu0 %v3605, 97
  %v3652 = vpop.permute.xlu0 %3651
  %3653 = vrot.lane.b32.xlu0 %v3606, 97
  %v3654 = vpop.permute.xlu0 %3653
  %3655 = vrot.lane.b32.xlu0 %v3607, 97
  %v3656 = vpop.permute.xlu0 %3655
  %3657 = vrot.lane.b32.xlu0 %v3608, 97
  %v3658 = vpop.permute.xlu0 %3657
  %3659 = vrot.lane.b32.xlu0 %v3609, 97
  %v3660 = vpop.permute.xlu0 %3659
  %3661 = vrot.lane.b32.xlu0 %v3610, 97
  %v3662 = vpop.permute.xlu0 %3661
  %3663 = vrot.lane.b32.xlu0 %v3611, 97
  %v3664 = vpop.permute.xlu0 %3663
  %3665 = vrot.lane.b32.xlu0 %v3612, 97
  %v3666 = vpop.permute.xlu0 %3665
  %3667 = vrot.lane.b32.xlu0 %v3613, 97
  %v3668 = vpop.permute.xlu0 %3667
  %v3669 = vsel %vm1268, %v3636, %v3638
  %v3670 = vsel %vm1268, %v3638, %v3640
  %v3671 = vsel %vm1268, %v3640, %v3642
  %v3672 = vsel %vm1268, %v3642, %v3644
  %v3673 = vsel %vm1268, %v3644, %v3646
  %v3674 = vsel %vm1268, %v3646, %v3648
  %v3675 = vsel %vm1268, %v3648, %v3650
  %v3676 = vsel %vm1268, %v3650, %v3652
  %v3677 = vsel %vm1268, %v3652, %v3654
  %v3678 = vsel %vm1268, %v3654, %v3656
  %v3679 = vsel %vm1268, %v3656, %v3658
  %v3680 = vsel %vm1268, %v3658, %v3660
  %v3681 = vsel %vm1268, %v3660, %v3662
  %v3682 = vsel %vm1268, %v3662, %v3664
  %v3683 = vsel %vm1268, %v3664, %v3666
  %v3684 = vsel %vm1268, %v3666, %v3668
  %v3685 = vsel %vm338, %v3615, 0
  %v3687 = vsel %vm338, %v3617, 0
  %v3689 = vsel %vm343, %v3669, 0
  %v3691 = vsel %vm343, %v3670, 0
  %v3693 = vsel %vm343, %v3671, 0
  %v3695 = vsel %vm343, %v3672, 0
  %v3697 = vsel %vm343, %v3673, 0
  %v3699 = vsel %vm343, %v3674, 0
  %v3701 = vsel %vm343, %v3675, 0
  %v3703 = vsel %vm343, %v3676, 0
  %v3705 = vsel %vm343, %v3677, 0
  %v3707 = vsel %vm343, %v3678, 0
  %v3709 = vsel %vm343, %v3679, 0
  %v3711 = vsel %vm343, %v3680, 0
  %v3713 = vsel %vm343, %v3681, 0
  %v3715 = vsel %vm343, %v3682, 0
  %v3717 = vsel %vm343, %v3683, 0
  %v3719 = vsel %vm343, %v3684, 0
  %3721 = vmatpush.msra.mxu0 0.0
  %3722 = vmatpush.msra.mxu0 0.0
  %3723 = vmatpush.msra.mxu0 0.0
  %3724 = vmatpush.msra.mxu0 0.0
  %3725 = vmatpush.msra.mxu0 0.0
  %3726 = vmatpush.msra.mxu0 0.0
  %3727 = vmatpush.msra.mxu0 0.0
  %3728 = vmatpush.msra.mxu0 0.0
  %3729 = vmatpush.msra.mxu0 0.0
  %3730 = vmatpush.msra.mxu0 0.0
  %3731 = vmatpush.msra.mxu0 0.0
  %3732 = vmatpush.msra.mxu0 0.0
  %3733 = vmatpush.msra.mxu0 0.0
  %3734 = vmatpush.msra.mxu0 0.0
  %3735 = vmatpush.msra.mxu0 0.0
  %3736 = vmatpush.msra.mxu0 %v3689
  %3737 = vmatmul.f32.gmra.mxu0 %v3685
  %v3738 = vpop.f32.mrf.mxu0
  %v3739 = vadd.f32 0.0, %v3738
  %3740 = vmatmul.f32.gmra.mxu0 %v3687
  %v3741 = vpop.f32.mrf.mxu0
  %v3742 = vadd.f32 0.0, %v3741
  %3743 = vdwg.mxu0
  %3744 = vmatpush.msra.mxu0 0.0
  %3745 = vmatpush.msra.mxu0 0.0
  %3746 = vmatpush.msra.mxu0 0.0
  %3747 = vmatpush.msra.mxu0 0.0
  %3748 = vmatpush.msra.mxu0 0.0
  %3749 = vmatpush.msra.mxu0 0.0
  %3750 = vmatpush.msra.mxu0 0.0
  %3751 = vmatpush.msra.mxu0 0.0
  %3752 = vmatpush.msra.mxu0 0.0
  %3753 = vmatpush.msra.mxu0 0.0
  %3754 = vmatpush.msra.mxu0 0.0
  %3755 = vmatpush.msra.mxu0 0.0
  %3756 = vmatpush.msra.mxu0 0.0
  %3757 = vmatpush.msra.mxu0 0.0
  %3758 = vmatpush.msra.mxu0 0.0
  %3759 = vmatpush.msra.mxu0 %v3691
  %3760 = vmatmul.f32.gmra.mxu0 %v3685
  %v3761 = vpop.f32.mrf.mxu0
  %v3762 = vadd.f32 0.0, %v3761
  %3763 = vmatmul.f32.gmra.mxu0 %v3687
  %v3764 = vpop.f32.mrf.mxu0
  %v3765 = vadd.f32 0.0, %v3764
  %3766 = vdwg.mxu0
  %3767 = vmatpush.msra.mxu0 0.0
  %3768 = vmatpush.msra.mxu0 0.0
  %3769 = vmatpush.msra.mxu0 0.0
  %3770 = vmatpush.msra.mxu0 0.0
  %3771 = vmatpush.msra.mxu0 0.0
  %3772 = vmatpush.msra.mxu0 0.0
  %3773 = vmatpush.msra.mxu0 0.0
  %3774 = vmatpush.msra.mxu0 0.0
  %3775 = vmatpush.msra.mxu0 0.0
  %3776 = vmatpush.msra.mxu0 0.0
  %3777 = vmatpush.msra.mxu0 0.0
  %3778 = vmatpush.msra.mxu0 0.0
  %3779 = vmatpush.msra.mxu0 0.0
  %3780 = vmatpush.msra.mxu0 0.0
  %3781 = vmatpush.msra.mxu0 0.0
  %3782 = vmatpush.msra.mxu0 %v3693
  %3783 = vmatmul.f32.gmra.mxu0 %v3685
  %v3784 = vpop.f32.mrf.mxu0
  %v3785 = vadd.f32 0.0, %v3784
  %3786 = vmatmul.f32.gmra.mxu0 %v3687
  %v3787 = vpop.f32.mrf.mxu0
  %v3788 = vadd.f32 0.0, %v3787
  %3789 = vdwg.mxu0
  %3790 = vmatpush.msra.mxu0 0.0
  %3791 = vmatpush.msra.mxu0 0.0
  %3792 = vmatpush.msra.mxu0 0.0
  %3793 = vmatpush.msra.mxu0 0.0
  %3794 = vmatpush.msra.mxu0 0.0
  %3795 = vmatpush.msra.mxu0 0.0
  %3796 = vmatpush.msra.mxu0 0.0
  %3797 = vmatpush.msra.mxu0 0.0
  %3798 = vmatpush.msra.mxu0 0.0
  %3799 = vmatpush.msra.mxu0 0.0
  %3800 = vmatpush.msra.mxu0 0.0
  %3801 = vmatpush.msra.mxu0 0.0
  %3802 = vmatpush.msra.mxu0 0.0
  %3803 = vmatpush.msra.mxu0 0.0
  %3804 = vmatpush.msra.mxu0 0.0
  %3805 = vmatpush.msra.mxu0 %v3695
  %3806 = vmatmul.f32.gmra.mxu0 %v3685
  %v3807 = vpop.f32.mrf.mxu0
  %v3808 = vadd.f32 0.0, %v3807
  %3809 = vmatmul.f32.gmra.mxu0 %v3687
  %v3810 = vpop.f32.mrf.mxu0
  %v3811 = vadd.f32 0.0, %v3810
  %3812 = vdwg.mxu0
  %3813 = vmatpush.msra.mxu0 0.0
  %3814 = vmatpush.msra.mxu0 0.0
  %3815 = vmatpush.msra.mxu0 0.0
  %3816 = vmatpush.msra.mxu0 0.0
  %3817 = vmatpush.msra.mxu0 0.0
  %3818 = vmatpush.msra.mxu0 0.0
  %3819 = vmatpush.msra.mxu0 0.0
  %3820 = vmatpush.msra.mxu0 0.0
  %3821 = vmatpush.msra.mxu0 0.0
  %3822 = vmatpush.msra.mxu0 0.0
  %3823 = vmatpush.msra.mxu0 0.0
  %3824 = vmatpush.msra.mxu0 0.0
  %3825 = vmatpush.msra.mxu0 0.0
  %3826 = vmatpush.msra.mxu0 0.0
  %3827 = vmatpush.msra.mxu0 0.0
  %3828 = vmatpush.msra.mxu0 %v3697
  %3829 = vmatmul.f32.gmra.mxu0 %v3685
  %v3830 = vpop.f32.mrf.mxu0
  %v3831 = vadd.f32 0.0, %v3830
  %3832 = vmatmul.f32.gmra.mxu0 %v3687
  %v3833 = vpop.f32.mrf.mxu0
  %v3834 = vadd.f32 0.0, %v3833
  %3835 = vdwg.mxu0
  %3836 = vmatpush.msra.mxu0 0.0
  %3837 = vmatpush.msra.mxu0 0.0
  %3838 = vmatpush.msra.mxu0 0.0
  %3839 = vmatpush.msra.mxu0 0.0
  %3840 = vmatpush.msra.mxu0 0.0
  %3841 = vmatpush.msra.mxu0 0.0
  %3842 = vmatpush.msra.mxu0 0.0
  %3843 = vmatpush.msra.mxu0 0.0
  %3844 = vmatpush.msra.mxu0 0.0
  %3845 = vmatpush.msra.mxu0 0.0
  %3846 = vmatpush.msra.mxu0 0.0
  %3847 = vmatpush.msra.mxu0 0.0
  %3848 = vmatpush.msra.mxu0 0.0
  %3849 = vmatpush.msra.mxu0 0.0
  %3850 = vmatpush.msra.mxu0 0.0
  %3851 = vmatpush.msra.mxu0 %v3699
  %3852 = vmatmul.f32.gmra.mxu0 %v3685
  %v3853 = vpop.f32.mrf.mxu0
  %v3854 = vadd.f32 0.0, %v3853
  %3855 = vmatmul.f32.gmra.mxu0 %v3687
  %v3856 = vpop.f32.mrf.mxu0
  %v3857 = vadd.f32 0.0, %v3856
  %3858 = vdwg.mxu0
  %3859 = vmatpush.msra.mxu0 0.0
  %3860 = vmatpush.msra.mxu0 0.0
  %3861 = vmatpush.msra.mxu0 0.0
  %3862 = vmatpush.msra.mxu0 0.0
  %3863 = vmatpush.msra.mxu0 0.0
  %3864 = vmatpush.msra.mxu0 0.0
  %3865 = vmatpush.msra.mxu0 0.0
  %3866 = vmatpush.msra.mxu0 0.0
  %3867 = vmatpush.msra.mxu0 0.0
  %3868 = vmatpush.msra.mxu0 0.0
  %3869 = vmatpush.msra.mxu0 0.0
  %3870 = vmatpush.msra.mxu0 0.0
  %3871 = vmatpush.msra.mxu0 0.0
  %3872 = vmatpush.msra.mxu0 0.0
  %3873 = vmatpush.msra.mxu0 0.0
  %3874 = vmatpush.msra.mxu0 %v3701
  %3875 = vmatmul.f32.gmra.mxu0 %v3685
  %v3876 = vpop.f32.mrf.mxu0
  %v3877 = vadd.f32 0.0, %v3876
  %3878 = vmatmul.f32.gmra.mxu0 %v3687
  %v3879 = vpop.f32.mrf.mxu0
  %v3880 = vadd.f32 0.0, %v3879
  %3881 = vdwg.mxu0
  %3882 = vmatpush.msra.mxu0 0.0
  %3883 = vmatpush.msra.mxu0 0.0
  %3884 = vmatpush.msra.mxu0 0.0
  %3885 = vmatpush.msra.mxu0 0.0
  %3886 = vmatpush.msra.mxu0 0.0
  %3887 = vmatpush.msra.mxu0 0.0
  %3888 = vmatpush.msra.mxu0 0.0
  %3889 = vmatpush.msra.mxu0 0.0
  %3890 = vmatpush.msra.mxu0 0.0
  %3891 = vmatpush.msra.mxu0 0.0
  %3892 = vmatpush.msra.mxu0 0.0
  %3893 = vmatpush.msra.mxu0 0.0
  %3894 = vmatpush.msra.mxu0 0.0
  %3895 = vmatpush.msra.mxu0 0.0
  %3896 = vmatpush.msra.mxu0 0.0
  %3897 = vmatpush.msra.mxu0 %v3703
  %3898 = vmatmul.f32.gmra.mxu0 %v3685
  %v3899 = vpop.f32.mrf.mxu0
  %v3900 = vadd.f32 0.0, %v3899
  %3901 = vmatmul.f32.gmra.mxu0 %v3687
  %v3902 = vpop.f32.mrf.mxu0
  %v3903 = vadd.f32 0.0, %v3902
  %3904 = vdwg.mxu0
  %3905 = vmatpush.msra.mxu0 0.0
  %3906 = vmatpush.msra.mxu0 0.0
  %3907 = vmatpush.msra.mxu0 0.0
  %3908 = vmatpush.msra.mxu0 0.0
  %3909 = vmatpush.msra.mxu0 0.0
  %3910 = vmatpush.msra.mxu0 0.0
  %3911 = vmatpush.msra.mxu0 0.0
  %3912 = vmatpush.msra.mxu0 0.0
  %3913 = vmatpush.msra.mxu0 0.0
  %3914 = vmatpush.msra.mxu0 0.0
  %3915 = vmatpush.msra.mxu0 0.0
  %3916 = vmatpush.msra.mxu0 0.0
  %3917 = vmatpush.msra.mxu0 0.0
  %3918 = vmatpush.msra.mxu0 0.0
  %3919 = vmatpush.msra.mxu0 0.0
  %3920 = vmatpush.msra.mxu0 %v3705
  %3921 = vmatmul.f32.gmra.mxu0 %v3685
  %v3922 = vpop.f32.mrf.mxu0
  %v3923 = vadd.f32 0.0, %v3922
  %3924 = vmatmul.f32.gmra.mxu0 %v3687
  %v3925 = vpop.f32.mrf.mxu0
  %v3926 = vadd.f32 0.0, %v3925
  %3927 = vdwg.mxu0
  %3928 = vmatpush.msra.mxu0 0.0
  %3929 = vmatpush.msra.mxu0 0.0
  %3930 = vmatpush.msra.mxu0 0.0
  %3931 = vmatpush.msra.mxu0 0.0
  %3932 = vmatpush.msra.mxu0 0.0
  %3933 = vmatpush.msra.mxu0 0.0
  %3934 = vmatpush.msra.mxu0 0.0
  %3935 = vmatpush.msra.mxu0 0.0
  %3936 = vmatpush.msra.mxu0 0.0
  %3937 = vmatpush.msra.mxu0 0.0
  %3938 = vmatpush.msra.mxu0 0.0
  %3939 = vmatpush.msra.mxu0 0.0
  %3940 = vmatpush.msra.mxu0 0.0
  %3941 = vmatpush.msra.mxu0 0.0
  %3942 = vmatpush.msra.mxu0 0.0
  %3943 = vmatpush.msra.mxu0 %v3707
  %3944 = vmatmul.f32.gmra.mxu0 %v3685
  %v3945 = vpop.f32.mrf.mxu0
  %v3946 = vadd.f32 0.0, %v3945
  %3947 = vmatmul.f32.gmra.mxu0 %v3687
  %v3948 = vpop.f32.mrf.mxu0
  %v3949 = vadd.f32 0.0, %v3948
  %3950 = vdwg.mxu0
  %3951 = vmatpush.msra.mxu0 0.0
  %3952 = vmatpush.msra.mxu0 0.0
  %3953 = vmatpush.msra.mxu0 0.0
  %3954 = vmatpush.msra.mxu0 0.0
  %3955 = vmatpush.msra.mxu0 0.0
  %3956 = vmatpush.msra.mxu0 0.0
  %3957 = vmatpush.msra.mxu0 0.0
  %3958 = vmatpush.msra.mxu0 0.0
  %3959 = vmatpush.msra.mxu0 0.0
  %3960 = vmatpush.msra.mxu0 0.0
  %3961 = vmatpush.msra.mxu0 0.0
  %3962 = vmatpush.msra.mxu0 0.0
  %3963 = vmatpush.msra.mxu0 0.0
  %3964 = vmatpush.msra.mxu0 0.0
  %3965 = vmatpush.msra.mxu0 0.0
  %3966 = vmatpush.msra.mxu0 %v3709
  %3967 = vmatmul.f32.gmra.mxu0 %v3685
  %v3968 = vpop.f32.mrf.mxu0
  %v3969 = vadd.f32 0.0, %v3968
  %3970 = vmatmul.f32.gmra.mxu0 %v3687
  %v3971 = vpop.f32.mrf.mxu0
  %v3972 = vadd.f32 0.0, %v3971
  %3973 = vdwg.mxu0
  %3974 = vmatpush.msra.mxu0 0.0
  %3975 = vmatpush.msra.mxu0 0.0
  %3976 = vmatpush.msra.mxu0 0.0
  %3977 = vmatpush.msra.mxu0 0.0
  %3978 = vmatpush.msra.mxu0 0.0
  %3979 = vmatpush.msra.mxu0 0.0
  %3980 = vmatpush.msra.mxu0 0.0
  %3981 = vmatpush.msra.mxu0 0.0
  %3982 = vmatpush.msra.mxu0 0.0
  %3983 = vmatpush.msra.mxu0 0.0
  %3984 = vmatpush.msra.mxu0 0.0
  %3985 = vmatpush.msra.mxu0 0.0
  %3986 = vmatpush.msra.mxu0 0.0
  %3987 = vmatpush.msra.mxu0 0.0
  %3988 = vmatpush.msra.mxu0 0.0
  %3989 = vmatpush.msra.mxu0 %v3711
  %3990 = vmatmul.f32.gmra.mxu0 %v3685
  %v3991 = vpop.f32.mrf.mxu0
  %v3992 = vadd.f32 0.0, %v3991
  %3993 = vmatmul.f32.gmra.mxu0 %v3687
  %v3994 = vpop.f32.mrf.mxu0
  %v3995 = vadd.f32 0.0, %v3994
  %3996 = vdwg.mxu0
  %3997 = vmatpush.msra.mxu0 0.0
  %3998 = vmatpush.msra.mxu0 0.0
  %3999 = vmatpush.msra.mxu0 0.0
  %4000 = vmatpush.msra.mxu0 0.0
  %4001 = vmatpush.msra.mxu0 0.0
  %4002 = vmatpush.msra.mxu0 0.0
  %4003 = vmatpush.msra.mxu0 0.0
  %4004 = vmatpush.msra.mxu0 0.0
  %4005 = vmatpush.msra.mxu0 0.0
  %4006 = vmatpush.msra.mxu0 0.0
  %4007 = vmatpush.msra.mxu0 0.0
  %4008 = vmatpush.msra.mxu0 0.0
  %4009 = vmatpush.msra.mxu0 0.0
  %4010 = vmatpush.msra.mxu0 0.0
  %4011 = vmatpush.msra.mxu0 0.0
  %4012 = vmatpush.msra.mxu0 %v3713
  %4013 = vmatmul.f32.gmra.mxu0 %v3685
  %v4014 = vpop.f32.mrf.mxu0
  %v4015 = vadd.f32 0.0, %v4014
  %4016 = vmatmul.f32.gmra.mxu0 %v3687
  %v4017 = vpop.f32.mrf.mxu0
  %v4018 = vadd.f32 0.0, %v4017
  %4019 = vdwg.mxu0
  %4020 = vmatpush.msra.mxu0 0.0
  %4021 = vmatpush.msra.mxu0 0.0
  %4022 = vmatpush.msra.mxu0 0.0
  %4023 = vmatpush.msra.mxu0 0.0
  %4024 = vmatpush.msra.mxu0 0.0
  %4025 = vmatpush.msra.mxu0 0.0
  %4026 = vmatpush.msra.mxu0 0.0
  %4027 = vmatpush.msra.mxu0 0.0
  %4028 = vmatpush.msra.mxu0 0.0
  %4029 = vmatpush.msra.mxu0 0.0
  %4030 = vmatpush.msra.mxu0 0.0
  %4031 = vmatpush.msra.mxu0 0.0
  %4032 = vmatpush.msra.mxu0 0.0
  %4033 = vmatpush.msra.mxu0 0.0
  %4034 = vmatpush.msra.mxu0 0.0
  %4035 = vmatpush.msra.mxu0 %v3715
  %4036 = vmatmul.f32.gmra.mxu0 %v3685
  %v4037 = vpop.f32.mrf.mxu0
  %v4038 = vadd.f32 0.0, %v4037
  %4039 = vmatmul.f32.gmra.mxu0 %v3687
  %v4040 = vpop.f32.mrf.mxu0
  %v4041 = vadd.f32 0.0, %v4040
  %4042 = vdwg.mxu0
  %4043 = vmatpush.msra.mxu0 0.0
  %4044 = vmatpush.msra.mxu0 0.0
  %4045 = vmatpush.msra.mxu0 0.0
  %4046 = vmatpush.msra.mxu0 0.0
  %4047 = vmatpush.msra.mxu0 0.0
  %4048 = vmatpush.msra.mxu0 0.0
  %4049 = vmatpush.msra.mxu0 0.0
  %4050 = vmatpush.msra.mxu0 0.0
  %4051 = vmatpush.msra.mxu0 0.0
  %4052 = vmatpush.msra.mxu0 0.0
  %4053 = vmatpush.msra.mxu0 0.0
  %4054 = vmatpush.msra.mxu0 0.0
  %4055 = vmatpush.msra.mxu0 0.0
  %4056 = vmatpush.msra.mxu0 0.0
  %4057 = vmatpush.msra.mxu0 0.0
  %4058 = vmatpush.msra.mxu0 %v3717
  %4059 = vmatmul.f32.gmra.mxu0 %v3685
  %v4060 = vpop.f32.mrf.mxu0
  %v4061 = vadd.f32 0.0, %v4060
  %4062 = vmatmul.f32.gmra.mxu0 %v3687
  %v4063 = vpop.f32.mrf.mxu0
  %v4064 = vadd.f32 0.0, %v4063
  %4065 = vdwg.mxu0
  %4066 = vmatpush.msra.mxu0 0.0
  %4067 = vmatpush.msra.mxu0 0.0
  %4068 = vmatpush.msra.mxu0 0.0
  %4069 = vmatpush.msra.mxu0 0.0
  %4070 = vmatpush.msra.mxu0 0.0
  %4071 = vmatpush.msra.mxu0 0.0
  %4072 = vmatpush.msra.mxu0 0.0
  %4073 = vmatpush.msra.mxu0 0.0
  %4074 = vmatpush.msra.mxu0 0.0
  %4075 = vmatpush.msra.mxu0 0.0
  %4076 = vmatpush.msra.mxu0 0.0
  %4077 = vmatpush.msra.mxu0 0.0
  %4078 = vmatpush.msra.mxu0 0.0
  %4079 = vmatpush.msra.mxu0 0.0
  %4080 = vmatpush.msra.mxu0 0.0
  %4081 = vmatpush.msra.mxu0 %v3719
  %4082 = vmatmul.f32.gmra.mxu0 %v3685
  %v4083 = vpop.f32.mrf.mxu0
  %v4084 = vadd.f32 0.0, %v4083
  %4085 = vmatmul.f32.gmra.mxu0 %v3687
  %v4086 = vpop.f32.mrf.mxu0
  %v4087 = vadd.f32 0.0, %v4086
  %4088 = vdwg.mxu0
  %v4089 = vadd.f32 %v3481, %v3739
  %v4090 = vadd.f32 %v3482, %v3762
  %v4091 = vadd.f32 %v3483, %v3785
  %v4092 = vadd.f32 %v3484, %v3808
  %v4093 = vadd.f32 %v3485, %v3831
  %v4094 = vadd.f32 %v3486, %v3854
  %v4095 = vadd.f32 %v3487, %v3877
  %v4096 = vadd.f32 %v3488, %v3900
  %v4097 = vadd.f32 %v3489, %v3923
  %v4098 = vadd.f32 %v3490, %v3946
  %v4099 = vadd.f32 %v3491, %v3969
  %v4100 = vadd.f32 %v3492, %v3992
  %v4101 = vadd.f32 %v3493, %v4015
  %v4102 = vadd.f32 %v3494, %v4038
  %v4103 = vadd.f32 %v3495, %v4061
  %v4104 = vadd.f32 %v3496, %v4084
  %v4105 = vadd.f32 %v3497, %v3742
  %v4106 = vadd.f32 %v3498, %v3765
  %v4107 = vadd.f32 %v3499, %v3788
  %v4108 = vadd.f32 %v3500, %v3811
  %v4109 = vadd.f32 %v3501, %v3834
  %v4110 = vadd.f32 %v3502, %v3857
  %v4111 = vadd.f32 %v3503, %v3880
  %v4112 = vadd.f32 %v3504, %v3903
  %v4113 = vadd.f32 %v3505, %v3926
  %v4114 = vadd.f32 %v3506, %v3949
  %v4115 = vadd.f32 %v3507, %v3972
  %v4116 = vadd.f32 %v3508, %v3995
  %v4117 = vadd.f32 %v3509, %v4018
  %v4118 = vadd.f32 %v3510, %v4041
  %v4119 = vadd.f32 %v3511, %v4064
  %v4120 = vadd.f32 %v3512, %v4087
  %v4123 = vperm.slane %v22, 0
  %v4124 = vperm.slane %v22, 1
  %v4125 = vperm.slane %v22, 2
  %v4126 = vperm.slane %v22, 3
  %v4127 = vperm.slane %v22, 4
  %v4128 = vperm.slane %v22, 5
  %v4129 = vperm.slane %v22, 6
  %v4130 = vperm.slane %v22, 7
  %v4131 = vperm.slane %v26, 0
  %v4132 = vperm.slane %v26, 1
  %v4133 = vperm.slane %v26, 2
  %v4134 = vperm.slane %v26, 3
  %v4135 = vperm.slane %v26, 4
  %v4136 = vperm.slane %v26, 5
  %v4137 = vperm.slane %v26, 6
  %v4138 = vperm.slane %v26, 7
  %4139 = vrot.lane.b32.xlu0 %v4123, 32
  %v4140 = vpop.permute.xlu0 %4139
  %4141 = vrot.lane.b32.xlu0 %v4124, 32
  %v4142 = vpop.permute.xlu0 %4141
  %4143 = vrot.lane.b32.xlu0 %v4125, 32
  %v4144 = vpop.permute.xlu0 %4143
  %4145 = vrot.lane.b32.xlu0 %v4126, 32
  %v4146 = vpop.permute.xlu0 %4145
  %4147 = vrot.lane.b32.xlu0 %v4127, 32
  %v4148 = vpop.permute.xlu0 %4147
  %4149 = vrot.lane.b32.xlu0 %v4128, 32
  %v4150 = vpop.permute.xlu0 %4149
  %4151 = vrot.lane.b32.xlu0 %v4129, 32
  %v4152 = vpop.permute.xlu0 %4151
  %4153 = vrot.lane.b32.xlu0 %v4130, 32
  %v4154 = vpop.permute.xlu0 %4153
  %4155 = vrot.lane.b32.xlu0 %v4131, 32
  %v4156 = vpop.permute.xlu0 %4155
  %4157 = vrot.lane.b32.xlu0 %v4132, 32
  %v4158 = vpop.permute.xlu0 %4157
  %4159 = vrot.lane.b32.xlu0 %v4133, 32
  %v4160 = vpop.permute.xlu0 %4159
  %4161 = vrot.lane.b32.xlu0 %v4134, 32
  %v4162 = vpop.permute.xlu0 %4161
  %4163 = vrot.lane.b32.xlu0 %v4135, 32
  %v4164 = vpop.permute.xlu0 %4163
  %4165 = vrot.lane.b32.xlu0 %v4136, 32
  %v4166 = vpop.permute.xlu0 %4165
  %4167 = vrot.lane.b32.xlu0 %v4137, 32
  %v4168 = vpop.permute.xlu0 %4167
  %4169 = vrot.lane.b32.xlu0 %v4138, 32
  %v4170 = vpop.permute.xlu0 %4169
  %v4171 = vsel %vm321, %v4140, %v4142
  %v4172 = vsel %vm321, %v4142, %v4144
  %v4173 = vsel %vm321, %v4144, %v4146
  %v4174 = vsel %vm321, %v4146, %v4148
  %v4175 = vsel %vm321, %v4148, %v4150
  %v4176 = vsel %vm321, %v4150, %v4152
  %v4177 = vsel %vm321, %v4152, %v4154
  %v4178 = vsel %vm321, %v4154, %v4156
  %v4179 = vsel %vm321, %v4156, %v4158
  %v4180 = vsel %vm321, %v4158, %v4160
  %v4181 = vsel %vm321, %v4160, %v4162
  %v4182 = vsel %vm321, %v4162, %v4164
  %v4183 = vsel %vm321, %v4164, %v4166
  %v4184 = vsel %vm321, %v4166, %v4168
  %v4185 = vsel %vm321, %v4168, %v4170
  %v4203 = vmul.f32 %v2890, %v4140
  %v4204 = vmul.f32 %v2891, %v4171
  %v4205 = vmul.f32 %v2892, %v4172
  %v4206 = vmul.f32 %v2893, %v4173
  %v4207 = vmul.f32 %v2894, %v4174
  %v4208 = vmul.f32 %v2895, %v4175
  %v4209 = vmul.f32 %v2896, %v4176
  %v4210 = vmul.f32 %v2897, %v4177
  %v4211 = vmul.f32 %v2898, %v4178
  %v4212 = vmul.f32 %v2899, %v4179
  %v4213 = vmul.f32 %v2900, %v4180
  %v4214 = vmul.f32 %v2901, %v4181
  %v4215 = vmul.f32 %v2902, %v4182
  %v4216 = vmul.f32 %v2903, %v4183
  %v4217 = vmul.f32 %v2904, %v4184
  %v4218 = vmul.f32 %v2905, %v4185
  %v4219 = vmul.f32 %v2906, %v4170
  %4220 = vrot.lane.b32.xlu0 %v162, 100
  %v4221 = vpop.permute.xlu0 %4220
  %4222 = vrot.lane.b32.xlu0 %v163, 100
  %v4223 = vpop.permute.xlu0 %4222
  %4241 = vrot.lane.b32.xlu0 %v4203, 96
  %v4242 = vpop.permute.xlu0 %4241
  %4243 = vrot.lane.b32.xlu0 %v4204, 96
  %v4244 = vpop.permute.xlu0 %4243
  %4245 = vrot.lane.b32.xlu0 %v4205, 96
  %v4246 = vpop.permute.xlu0 %4245
  %4247 = vrot.lane.b32.xlu0 %v4206, 96
  %v4248 = vpop.permute.xlu0 %4247
  %4249 = vrot.lane.b32.xlu0 %v4207, 96
  %v4250 = vpop.permute.xlu0 %4249
  %4251 = vrot.lane.b32.xlu0 %v4208, 96
  %v4252 = vpop.permute.xlu0 %4251
  %4253 = vrot.lane.b32.xlu0 %v4209, 96
  %v4254 = vpop.permute.xlu0 %4253
  %4255 = vrot.lane.b32.xlu0 %v4210, 96
  %v4256 = vpop.permute.xlu0 %4255
  %4257 = vrot.lane.b32.xlu0 %v4211, 96
  %v4258 = vpop.permute.xlu0 %4257
  %4259 = vrot.lane.b32.xlu0 %v4212, 96
  %v4260 = vpop.permute.xlu0 %4259
  %4261 = vrot.lane.b32.xlu0 %v4213, 96
  %v4262 = vpop.permute.xlu0 %4261
  %4263 = vrot.lane.b32.xlu0 %v4214, 96
  %v4264 = vpop.permute.xlu0 %4263
  %4265 = vrot.lane.b32.xlu0 %v4215, 96
  %v4266 = vpop.permute.xlu0 %4265
  %4267 = vrot.lane.b32.xlu0 %v4216, 96
  %v4268 = vpop.permute.xlu0 %4267
  %4269 = vrot.lane.b32.xlu0 %v4217, 96
  %v4270 = vpop.permute.xlu0 %4269
  %4271 = vrot.lane.b32.xlu0 %v4218, 96
  %v4272 = vpop.permute.xlu0 %4271
  %4273 = vrot.lane.b32.xlu0 %v4219, 96
  %v4274 = vpop.permute.xlu0 %4273
  %v4275 = vsel %vm214, %v4242, %v4244
  %v4276 = vsel %vm214, %v4244, %v4246
  %v4277 = vsel %vm214, %v4246, %v4248
  %v4278 = vsel %vm214, %v4248, %v4250
  %v4279 = vsel %vm214, %v4250, %v4252
  %v4280 = vsel %vm214, %v4252, %v4254
  %v4281 = vsel %vm214, %v4254, %v4256
  %v4282 = vsel %vm214, %v4256, %v4258
  %v4283 = vsel %vm214, %v4258, %v4260
  %v4284 = vsel %vm214, %v4260, %v4262
  %v4285 = vsel %vm214, %v4262, %v4264
  %v4286 = vsel %vm214, %v4264, %v4266
  %v4287 = vsel %vm214, %v4266, %v4268
  %v4288 = vsel %vm214, %v4268, %v4270
  %v4289 = vsel %vm214, %v4270, %v4272
  %v4290 = vsel %vm214, %v4272, %v4274
  %v4291 = vsel %vm338, %v4221, 0
  %v4293 = vsel %vm338, %v4223, 0
  %v4295 = vsel %vm343, %v4275, 0
  %v4297 = vsel %vm343, %v4276, 0
  %v4299 = vsel %vm343, %v4277, 0
  %v4301 = vsel %vm343, %v4278, 0
  %v4303 = vsel %vm343, %v4279, 0
  %v4305 = vsel %vm343, %v4280, 0
  %v4307 = vsel %vm343, %v4281, 0
  %v4309 = vsel %vm343, %v4282, 0
  %v4311 = vsel %vm343, %v4283, 0
  %v4313 = vsel %vm343, %v4284, 0
  %v4315 = vsel %vm343, %v4285, 0
  %v4317 = vsel %vm343, %v4286, 0
  %v4319 = vsel %vm343, %v4287, 0
  %v4321 = vsel %vm343, %v4288, 0
  %v4323 = vsel %vm343, %v4289, 0
  %v4325 = vsel %vm343, %v4290, 0
  %4327 = vmatpush.msra.mxu0 0.0
  %4328 = vmatpush.msra.mxu0 0.0
  %4329 = vmatpush.msra.mxu0 0.0
  %4330 = vmatpush.msra.mxu0 0.0
  %4331 = vmatpush.msra.mxu0 0.0
  %4332 = vmatpush.msra.mxu0 0.0
  %4333 = vmatpush.msra.mxu0 0.0
  %4334 = vmatpush.msra.mxu0 0.0
  %4335 = vmatpush.msra.mxu0 0.0
  %4336 = vmatpush.msra.mxu0 0.0
  %4337 = vmatpush.msra.mxu0 0.0
  %4338 = vmatpush.msra.mxu0 0.0
  %4339 = vmatpush.msra.mxu0 0.0
  %4340 = vmatpush.msra.mxu0 0.0
  %4341 = vmatpush.msra.mxu0 0.0
  %4342 = vmatpush.msra.mxu0 %v4295
  %4343 = vmatmul.f32.gmra.mxu0 %v4291
  %v4344 = vpop.f32.mrf.mxu0
  %v4345 = vadd.f32 0.0, %v4344
  %4346 = vmatmul.f32.gmra.mxu0 %v4293
  %v4347 = vpop.f32.mrf.mxu0
  %v4348 = vadd.f32 0.0, %v4347
  %4349 = vdwg.mxu0
  %4350 = vmatpush.msra.mxu0 0.0
  %4351 = vmatpush.msra.mxu0 0.0
  %4352 = vmatpush.msra.mxu0 0.0
  %4353 = vmatpush.msra.mxu0 0.0
  %4354 = vmatpush.msra.mxu0 0.0
  %4355 = vmatpush.msra.mxu0 0.0
  %4356 = vmatpush.msra.mxu0 0.0
  %4357 = vmatpush.msra.mxu0 0.0
  %4358 = vmatpush.msra.mxu0 0.0
  %4359 = vmatpush.msra.mxu0 0.0
  %4360 = vmatpush.msra.mxu0 0.0
  %4361 = vmatpush.msra.mxu0 0.0
  %4362 = vmatpush.msra.mxu0 0.0
  %4363 = vmatpush.msra.mxu0 0.0
  %4364 = vmatpush.msra.mxu0 0.0
  %4365 = vmatpush.msra.mxu0 %v4297
  %4366 = vmatmul.f32.gmra.mxu0 %v4291
  %v4367 = vpop.f32.mrf.mxu0
  %v4368 = vadd.f32 0.0, %v4367
  %4369 = vmatmul.f32.gmra.mxu0 %v4293
  %v4370 = vpop.f32.mrf.mxu0
  %v4371 = vadd.f32 0.0, %v4370
  %4372 = vdwg.mxu0
  %4373 = vmatpush.msra.mxu0 0.0
  %4374 = vmatpush.msra.mxu0 0.0
  %4375 = vmatpush.msra.mxu0 0.0
  %4376 = vmatpush.msra.mxu0 0.0
  %4377 = vmatpush.msra.mxu0 0.0
  %4378 = vmatpush.msra.mxu0 0.0
  %4379 = vmatpush.msra.mxu0 0.0
  %4380 = vmatpush.msra.mxu0 0.0
  %4381 = vmatpush.msra.mxu0 0.0
  %4382 = vmatpush.msra.mxu0 0.0
  %4383 = vmatpush.msra.mxu0 0.0
  %4384 = vmatpush.msra.mxu0 0.0
  %4385 = vmatpush.msra.mxu0 0.0
  %4386 = vmatpush.msra.mxu0 0.0
  %4387 = vmatpush.msra.mxu0 0.0
  %4388 = vmatpush.msra.mxu0 %v4299
  %4389 = vmatmul.f32.gmra.mxu0 %v4291
  %v4390 = vpop.f32.mrf.mxu0
  %v4391 = vadd.f32 0.0, %v4390
  %4392 = vmatmul.f32.gmra.mxu0 %v4293
  %v4393 = vpop.f32.mrf.mxu0
  %v4394 = vadd.f32 0.0, %v4393
  %4395 = vdwg.mxu0
  %4396 = vmatpush.msra.mxu0 0.0
  %4397 = vmatpush.msra.mxu0 0.0
  %4398 = vmatpush.msra.mxu0 0.0
  %4399 = vmatpush.msra.mxu0 0.0
  %4400 = vmatpush.msra.mxu0 0.0
  %4401 = vmatpush.msra.mxu0 0.0
  %4402 = vmatpush.msra.mxu0 0.0
  %4403 = vmatpush.msra.mxu0 0.0
  %4404 = vmatpush.msra.mxu0 0.0
  %4405 = vmatpush.msra.mxu0 0.0
  %4406 = vmatpush.msra.mxu0 0.0
  %4407 = vmatpush.msra.mxu0 0.0
  %4408 = vmatpush.msra.mxu0 0.0
  %4409 = vmatpush.msra.mxu0 0.0
  %4410 = vmatpush.msra.mxu0 0.0
  %4411 = vmatpush.msra.mxu0 %v4301
  %4412 = vmatmul.f32.gmra.mxu0 %v4291
  %v4413 = vpop.f32.mrf.mxu0
  %v4414 = vadd.f32 0.0, %v4413
  %4415 = vmatmul.f32.gmra.mxu0 %v4293
  %v4416 = vpop.f32.mrf.mxu0
  %v4417 = vadd.f32 0.0, %v4416
  %4418 = vdwg.mxu0
  %4419 = vmatpush.msra.mxu0 0.0
  %4420 = vmatpush.msra.mxu0 0.0
  %4421 = vmatpush.msra.mxu0 0.0
  %4422 = vmatpush.msra.mxu0 0.0
  %4423 = vmatpush.msra.mxu0 0.0
  %4424 = vmatpush.msra.mxu0 0.0
  %4425 = vmatpush.msra.mxu0 0.0
  %4426 = vmatpush.msra.mxu0 0.0
  %4427 = vmatpush.msra.mxu0 0.0
  %4428 = vmatpush.msra.mxu0 0.0
  %4429 = vmatpush.msra.mxu0 0.0
  %4430 = vmatpush.msra.mxu0 0.0
  %4431 = vmatpush.msra.mxu0 0.0
  %4432 = vmatpush.msra.mxu0 0.0
  %4433 = vmatpush.msra.mxu0 0.0
  %4434 = vmatpush.msra.mxu0 %v4303
  %4435 = vmatmul.f32.gmra.mxu0 %v4291
  %v4436 = vpop.f32.mrf.mxu0
  %v4437 = vadd.f32 0.0, %v4436
  %4438 = vmatmul.f32.gmra.mxu0 %v4293
  %v4439 = vpop.f32.mrf.mxu0
  %v4440 = vadd.f32 0.0, %v4439
  %4441 = vdwg.mxu0
  %4442 = vmatpush.msra.mxu0 0.0
  %4443 = vmatpush.msra.mxu0 0.0
  %4444 = vmatpush.msra.mxu0 0.0
  %4445 = vmatpush.msra.mxu0 0.0
  %4446 = vmatpush.msra.mxu0 0.0
  %4447 = vmatpush.msra.mxu0 0.0
  %4448 = vmatpush.msra.mxu0 0.0
  %4449 = vmatpush.msra.mxu0 0.0
  %4450 = vmatpush.msra.mxu0 0.0
  %4451 = vmatpush.msra.mxu0 0.0
  %4452 = vmatpush.msra.mxu0 0.0
  %4453 = vmatpush.msra.mxu0 0.0
  %4454 = vmatpush.msra.mxu0 0.0
  %4455 = vmatpush.msra.mxu0 0.0
  %4456 = vmatpush.msra.mxu0 0.0
  %4457 = vmatpush.msra.mxu0 %v4305
  %4458 = vmatmul.f32.gmra.mxu0 %v4291
  %v4459 = vpop.f32.mrf.mxu0
  %v4460 = vadd.f32 0.0, %v4459
  %4461 = vmatmul.f32.gmra.mxu0 %v4293
  %v4462 = vpop.f32.mrf.mxu0
  %v4463 = vadd.f32 0.0, %v4462
  %4464 = vdwg.mxu0
  %4465 = vmatpush.msra.mxu0 0.0
  %4466 = vmatpush.msra.mxu0 0.0
  %4467 = vmatpush.msra.mxu0 0.0
  %4468 = vmatpush.msra.mxu0 0.0
  %4469 = vmatpush.msra.mxu0 0.0
  %4470 = vmatpush.msra.mxu0 0.0
  %4471 = vmatpush.msra.mxu0 0.0
  %4472 = vmatpush.msra.mxu0 0.0
  %4473 = vmatpush.msra.mxu0 0.0
  %4474 = vmatpush.msra.mxu0 0.0
  %4475 = vmatpush.msra.mxu0 0.0
  %4476 = vmatpush.msra.mxu0 0.0
  %4477 = vmatpush.msra.mxu0 0.0
  %4478 = vmatpush.msra.mxu0 0.0
  %4479 = vmatpush.msra.mxu0 0.0
  %4480 = vmatpush.msra.mxu0 %v4307
  %4481 = vmatmul.f32.gmra.mxu0 %v4291
  %v4482 = vpop.f32.mrf.mxu0
  %v4483 = vadd.f32 0.0, %v4482
  %4484 = vmatmul.f32.gmra.mxu0 %v4293
  %v4485 = vpop.f32.mrf.mxu0
  %v4486 = vadd.f32 0.0, %v4485
  %4487 = vdwg.mxu0
  %4488 = vmatpush.msra.mxu0 0.0
  %4489 = vmatpush.msra.mxu0 0.0
  %4490 = vmatpush.msra.mxu0 0.0
  %4491 = vmatpush.msra.mxu0 0.0
  %4492 = vmatpush.msra.mxu0 0.0
  %4493 = vmatpush.msra.mxu0 0.0
  %4494 = vmatpush.msra.mxu0 0.0
  %4495 = vmatpush.msra.mxu0 0.0
  %4496 = vmatpush.msra.mxu0 0.0
  %4497 = vmatpush.msra.mxu0 0.0
  %4498 = vmatpush.msra.mxu0 0.0
  %4499 = vmatpush.msra.mxu0 0.0
  %4500 = vmatpush.msra.mxu0 0.0
  %4501 = vmatpush.msra.mxu0 0.0
  %4502 = vmatpush.msra.mxu0 0.0
  %4503 = vmatpush.msra.mxu0 %v4309
  %4504 = vmatmul.f32.gmra.mxu0 %v4291
  %v4505 = vpop.f32.mrf.mxu0
  %v4506 = vadd.f32 0.0, %v4505
  %4507 = vmatmul.f32.gmra.mxu0 %v4293
  %v4508 = vpop.f32.mrf.mxu0
  %v4509 = vadd.f32 0.0, %v4508
  %4510 = vdwg.mxu0
  %4511 = vmatpush.msra.mxu0 0.0
  %4512 = vmatpush.msra.mxu0 0.0
  %4513 = vmatpush.msra.mxu0 0.0
  %4514 = vmatpush.msra.mxu0 0.0
  %4515 = vmatpush.msra.mxu0 0.0
  %4516 = vmatpush.msra.mxu0 0.0
  %4517 = vmatpush.msra.mxu0 0.0
  %4518 = vmatpush.msra.mxu0 0.0
  %4519 = vmatpush.msra.mxu0 0.0
  %4520 = vmatpush.msra.mxu0 0.0
  %4521 = vmatpush.msra.mxu0 0.0
  %4522 = vmatpush.msra.mxu0 0.0
  %4523 = vmatpush.msra.mxu0 0.0
  %4524 = vmatpush.msra.mxu0 0.0
  %4525 = vmatpush.msra.mxu0 0.0
  %4526 = vmatpush.msra.mxu0 %v4311
  %4527 = vmatmul.f32.gmra.mxu0 %v4291
  %v4528 = vpop.f32.mrf.mxu0
  %v4529 = vadd.f32 0.0, %v4528
  %4530 = vmatmul.f32.gmra.mxu0 %v4293
  %v4531 = vpop.f32.mrf.mxu0
  %v4532 = vadd.f32 0.0, %v4531
  %4533 = vdwg.mxu0
  %4534 = vmatpush.msra.mxu0 0.0
  %4535 = vmatpush.msra.mxu0 0.0
  %4536 = vmatpush.msra.mxu0 0.0
  %4537 = vmatpush.msra.mxu0 0.0
  %4538 = vmatpush.msra.mxu0 0.0
  %4539 = vmatpush.msra.mxu0 0.0
  %4540 = vmatpush.msra.mxu0 0.0
  %4541 = vmatpush.msra.mxu0 0.0
  %4542 = vmatpush.msra.mxu0 0.0
  %4543 = vmatpush.msra.mxu0 0.0
  %4544 = vmatpush.msra.mxu0 0.0
  %4545 = vmatpush.msra.mxu0 0.0
  %4546 = vmatpush.msra.mxu0 0.0
  %4547 = vmatpush.msra.mxu0 0.0
  %4548 = vmatpush.msra.mxu0 0.0
  %4549 = vmatpush.msra.mxu0 %v4313
  %4550 = vmatmul.f32.gmra.mxu0 %v4291
  %v4551 = vpop.f32.mrf.mxu0
  %v4552 = vadd.f32 0.0, %v4551
  %4553 = vmatmul.f32.gmra.mxu0 %v4293
  %v4554 = vpop.f32.mrf.mxu0
  %v4555 = vadd.f32 0.0, %v4554
  %4556 = vdwg.mxu0
  %4557 = vmatpush.msra.mxu0 0.0
  %4558 = vmatpush.msra.mxu0 0.0
  %4559 = vmatpush.msra.mxu0 0.0
  %4560 = vmatpush.msra.mxu0 0.0
  %4561 = vmatpush.msra.mxu0 0.0
  %4562 = vmatpush.msra.mxu0 0.0
  %4563 = vmatpush.msra.mxu0 0.0
  %4564 = vmatpush.msra.mxu0 0.0
  %4565 = vmatpush.msra.mxu0 0.0
  %4566 = vmatpush.msra.mxu0 0.0
  %4567 = vmatpush.msra.mxu0 0.0
  %4568 = vmatpush.msra.mxu0 0.0
  %4569 = vmatpush.msra.mxu0 0.0
  %4570 = vmatpush.msra.mxu0 0.0
  %4571 = vmatpush.msra.mxu0 0.0
  %4572 = vmatpush.msra.mxu0 %v4315
  %4573 = vmatmul.f32.gmra.mxu0 %v4291
  %v4574 = vpop.f32.mrf.mxu0
  %v4575 = vadd.f32 0.0, %v4574
  %4576 = vmatmul.f32.gmra.mxu0 %v4293
  %v4577 = vpop.f32.mrf.mxu0
  %v4578 = vadd.f32 0.0, %v4577
  %4579 = vdwg.mxu0
  %4580 = vmatpush.msra.mxu0 0.0
  %4581 = vmatpush.msra.mxu0 0.0
  %4582 = vmatpush.msra.mxu0 0.0
  %4583 = vmatpush.msra.mxu0 0.0
  %4584 = vmatpush.msra.mxu0 0.0
  %4585 = vmatpush.msra.mxu0 0.0
  %4586 = vmatpush.msra.mxu0 0.0
  %4587 = vmatpush.msra.mxu0 0.0
  %4588 = vmatpush.msra.mxu0 0.0
  %4589 = vmatpush.msra.mxu0 0.0
  %4590 = vmatpush.msra.mxu0 0.0
  %4591 = vmatpush.msra.mxu0 0.0
  %4592 = vmatpush.msra.mxu0 0.0
  %4593 = vmatpush.msra.mxu0 0.0
  %4594 = vmatpush.msra.mxu0 0.0
  %4595 = vmatpush.msra.mxu0 %v4317
  %4596 = vmatmul.f32.gmra.mxu0 %v4291
  %v4597 = vpop.f32.mrf.mxu0
  %v4598 = vadd.f32 0.0, %v4597
  %4599 = vmatmul.f32.gmra.mxu0 %v4293
  %v4600 = vpop.f32.mrf.mxu0
  %v4601 = vadd.f32 0.0, %v4600
  %4602 = vdwg.mxu0
  %4603 = vmatpush.msra.mxu0 0.0
  %4604 = vmatpush.msra.mxu0 0.0
  %4605 = vmatpush.msra.mxu0 0.0
  %4606 = vmatpush.msra.mxu0 0.0
  %4607 = vmatpush.msra.mxu0 0.0
  %4608 = vmatpush.msra.mxu0 0.0
  %4609 = vmatpush.msra.mxu0 0.0
  %4610 = vmatpush.msra.mxu0 0.0
  %4611 = vmatpush.msra.mxu0 0.0
  %4612 = vmatpush.msra.mxu0 0.0
  %4613 = vmatpush.msra.mxu0 0.0
  %4614 = vmatpush.msra.mxu0 0.0
  %4615 = vmatpush.msra.mxu0 0.0
  %4616 = vmatpush.msra.mxu0 0.0
  %4617 = vmatpush.msra.mxu0 0.0
  %4618 = vmatpush.msra.mxu0 %v4319
  %4619 = vmatmul.f32.gmra.mxu0 %v4291
  %v4620 = vpop.f32.mrf.mxu0
  %v4621 = vadd.f32 0.0, %v4620
  %4622 = vmatmul.f32.gmra.mxu0 %v4293
  %v4623 = vpop.f32.mrf.mxu0
  %v4624 = vadd.f32 0.0, %v4623
  %4625 = vdwg.mxu0
  %4626 = vmatpush.msra.mxu0 0.0
  %4627 = vmatpush.msra.mxu0 0.0
  %4628 = vmatpush.msra.mxu0 0.0
  %4629 = vmatpush.msra.mxu0 0.0
  %4630 = vmatpush.msra.mxu0 0.0
  %4631 = vmatpush.msra.mxu0 0.0
  %4632 = vmatpush.msra.mxu0 0.0
  %4633 = vmatpush.msra.mxu0 0.0
  %4634 = vmatpush.msra.mxu0 0.0
  %4635 = vmatpush.msra.mxu0 0.0
  %4636 = vmatpush.msra.mxu0 0.0
  %4637 = vmatpush.msra.mxu0 0.0
  %4638 = vmatpush.msra.mxu0 0.0
  %4639 = vmatpush.msra.mxu0 0.0
  %4640 = vmatpush.msra.mxu0 0.0
  %4641 = vmatpush.msra.mxu0 %v4321
  %4642 = vmatmul.f32.gmra.mxu0 %v4291
  %v4643 = vpop.f32.mrf.mxu0
  %v4644 = vadd.f32 0.0, %v4643
  %4645 = vmatmul.f32.gmra.mxu0 %v4293
  %v4646 = vpop.f32.mrf.mxu0
  %v4647 = vadd.f32 0.0, %v4646
  %4648 = vdwg.mxu0
  %4649 = vmatpush.msra.mxu0 0.0
  %4650 = vmatpush.msra.mxu0 0.0
  %4651 = vmatpush.msra.mxu0 0.0
  %4652 = vmatpush.msra.mxu0 0.0
  %4653 = vmatpush.msra.mxu0 0.0
  %4654 = vmatpush.msra.mxu0 0.0
  %4655 = vmatpush.msra.mxu0 0.0
  %4656 = vmatpush.msra.mxu0 0.0
  %4657 = vmatpush.msra.mxu0 0.0
  %4658 = vmatpush.msra.mxu0 0.0
  %4659 = vmatpush.msra.mxu0 0.0
  %4660 = vmatpush.msra.mxu0 0.0
  %4661 = vmatpush.msra.mxu0 0.0
  %4662 = vmatpush.msra.mxu0 0.0
  %4663 = vmatpush.msra.mxu0 0.0
  %4664 = vmatpush.msra.mxu0 %v4323
  %4665 = vmatmul.f32.gmra.mxu0 %v4291
  %v4666 = vpop.f32.mrf.mxu0
  %v4667 = vadd.f32 0.0, %v4666
  %4668 = vmatmul.f32.gmra.mxu0 %v4293
  %v4669 = vpop.f32.mrf.mxu0
  %v4670 = vadd.f32 0.0, %v4669
  %4671 = vdwg.mxu0
  %4672 = vmatpush.msra.mxu0 0.0
  %4673 = vmatpush.msra.mxu0 0.0
  %4674 = vmatpush.msra.mxu0 0.0
  %4675 = vmatpush.msra.mxu0 0.0
  %4676 = vmatpush.msra.mxu0 0.0
  %4677 = vmatpush.msra.mxu0 0.0
  %4678 = vmatpush.msra.mxu0 0.0
  %4679 = vmatpush.msra.mxu0 0.0
  %4680 = vmatpush.msra.mxu0 0.0
  %4681 = vmatpush.msra.mxu0 0.0
  %4682 = vmatpush.msra.mxu0 0.0
  %4683 = vmatpush.msra.mxu0 0.0
  %4684 = vmatpush.msra.mxu0 0.0
  %4685 = vmatpush.msra.mxu0 0.0
  %4686 = vmatpush.msra.mxu0 0.0
  %4687 = vmatpush.msra.mxu0 %v4325
  %4688 = vmatmul.f32.gmra.mxu0 %v4291
  %v4689 = vpop.f32.mrf.mxu0
  %v4690 = vadd.f32 0.0, %v4689
  %4691 = vmatmul.f32.gmra.mxu0 %v4293
  %v4692 = vpop.f32.mrf.mxu0
  %v4693 = vadd.f32 0.0, %v4692
  %4694 = vdwg.mxu0
  %v4695 = vadd.f32 %v4089, %v4345
  %v4696 = vadd.f32 %v4090, %v4368
  %v4697 = vadd.f32 %v4091, %v4391
  %v4698 = vadd.f32 %v4092, %v4414
  %v4699 = vadd.f32 %v4093, %v4437
  %v4700 = vadd.f32 %v4094, %v4460
  %v4701 = vadd.f32 %v4095, %v4483
  %v4702 = vadd.f32 %v4096, %v4506
  %v4703 = vadd.f32 %v4097, %v4529
  %v4704 = vadd.f32 %v4098, %v4552
  %v4705 = vadd.f32 %v4099, %v4575
  %v4706 = vadd.f32 %v4100, %v4598
  %v4707 = vadd.f32 %v4101, %v4621
  %v4708 = vadd.f32 %v4102, %v4644
  %v4709 = vadd.f32 %v4103, %v4667
  %v4710 = vadd.f32 %v4104, %v4690
  %v4711 = vadd.f32 %v4105, %v4348
  %v4712 = vadd.f32 %v4106, %v4371
  %v4713 = vadd.f32 %v4107, %v4394
  %v4714 = vadd.f32 %v4108, %v4417
  %v4715 = vadd.f32 %v4109, %v4440
  %v4716 = vadd.f32 %v4110, %v4463
  %v4717 = vadd.f32 %v4111, %v4486
  %v4718 = vadd.f32 %v4112, %v4509
  %v4719 = vadd.f32 %v4113, %v4532
  %v4720 = vadd.f32 %v4114, %v4555
  %v4721 = vadd.f32 %v4115, %v4578
  %v4722 = vadd.f32 %v4116, %v4601
  %v4723 = vadd.f32 %v4117, %v4624
  %v4724 = vadd.f32 %v4118, %v4647
  %v4725 = vadd.f32 %v4119, %v4670
  %v4726 = vadd.f32 %v4120, %v4693
  %v4727 = vmul.f32 %v22, %v38
  %v4728 = vmul.f32 %v26, %v42
  %v4731 = vperm.slane %v4727, 0
  %v4732 = vperm.slane %v4727, 1
  %v4733 = vperm.slane %v4727, 2
  %v4734 = vperm.slane %v4727, 3
  %v4735 = vperm.slane %v4727, 4
  %v4736 = vperm.slane %v4727, 5
  %v4737 = vperm.slane %v4727, 6
  %v4738 = vperm.slane %v4727, 7
  %v4739 = vperm.slane %v4728, 0
  %v4740 = vperm.slane %v4728, 1
  %v4741 = vperm.slane %v4728, 2
  %v4742 = vperm.slane %v4728, 3
  %v4743 = vperm.slane %v4728, 4
  %v4744 = vperm.slane %v4728, 5
  %v4745 = vperm.slane %v4728, 6
  %v4746 = vperm.slane %v4728, 7
  %4747 = vrot.lane.b32.xlu0 %v4731, 33
  %v4748 = vpop.permute.xlu0 %4747
  %4749 = vrot.lane.b32.xlu0 %v4732, 33
  %v4750 = vpop.permute.xlu0 %4749
  %4751 = vrot.lane.b32.xlu0 %v4733, 33
  %v4752 = vpop.permute.xlu0 %4751
  %4753 = vrot.lane.b32.xlu0 %v4734, 33
  %v4754 = vpop.permute.xlu0 %4753
  %4755 = vrot.lane.b32.xlu0 %v4735, 33
  %v4756 = vpop.permute.xlu0 %4755
  %4757 = vrot.lane.b32.xlu0 %v4736, 33
  %v4758 = vpop.permute.xlu0 %4757
  %4759 = vrot.lane.b32.xlu0 %v4737, 33
  %v4760 = vpop.permute.xlu0 %4759
  %4761 = vrot.lane.b32.xlu0 %v4738, 33
  %v4762 = vpop.permute.xlu0 %4761
  %4763 = vrot.lane.b32.xlu0 %v4739, 33
  %v4764 = vpop.permute.xlu0 %4763
  %4765 = vrot.lane.b32.xlu0 %v4740, 33
  %v4766 = vpop.permute.xlu0 %4765
  %4767 = vrot.lane.b32.xlu0 %v4741, 33
  %v4768 = vpop.permute.xlu0 %4767
  %4769 = vrot.lane.b32.xlu0 %v4742, 33
  %v4770 = vpop.permute.xlu0 %4769
  %4771 = vrot.lane.b32.xlu0 %v4743, 33
  %v4772 = vpop.permute.xlu0 %4771
  %4773 = vrot.lane.b32.xlu0 %v4744, 33
  %v4774 = vpop.permute.xlu0 %4773
  %4775 = vrot.lane.b32.xlu0 %v4745, 33
  %v4776 = vpop.permute.xlu0 %4775
  %4777 = vrot.lane.b32.xlu0 %v4746, 33
  %v4778 = vpop.permute.xlu0 %4777
  %v4779 = vsel %vm795, %v4748, %v4750
  %v4780 = vsel %vm795, %v4750, %v4752
  %v4781 = vsel %vm795, %v4752, %v4754
  %v4782 = vsel %vm795, %v4754, %v4756
  %v4783 = vsel %vm795, %v4756, %v4758
  %v4784 = vsel %vm795, %v4758, %v4760
  %v4785 = vsel %vm795, %v4760, %v4762
  %v4786 = vsel %vm795, %v4762, %v4764
  %v4787 = vsel %vm795, %v4764, %v4766
  %v4788 = vsel %vm795, %v4766, %v4768
  %v4789 = vsel %vm795, %v4768, %v4770
  %v4790 = vsel %vm795, %v4770, %v4772
  %v4791 = vsel %vm795, %v4772, %v4774
  %v4792 = vsel %vm795, %v4774, %v4776
  %v4793 = vsel %vm795, %v4776, %v4778
  %v4811 = vmul.f32 %v2890, %v4748
  %v4812 = vmul.f32 %v2891, %v4779
  %v4813 = vmul.f32 %v2892, %v4780
  %v4814 = vmul.f32 %v2893, %v4781
  %v4815 = vmul.f32 %v2894, %v4782
  %v4816 = vmul.f32 %v2895, %v4783
  %v4817 = vmul.f32 %v2896, %v4784
  %v4818 = vmul.f32 %v2897, %v4785
  %v4819 = vmul.f32 %v2898, %v4786
  %v4820 = vmul.f32 %v2899, %v4787
  %v4821 = vmul.f32 %v2900, %v4788
  %v4822 = vmul.f32 %v2901, %v4789
  %v4823 = vmul.f32 %v2902, %v4790
  %v4824 = vmul.f32 %v2903, %v4791
  %v4825 = vmul.f32 %v2904, %v4792
  %v4826 = vmul.f32 %v2905, %v4793
  %v4827 = vmul.f32 %v2906, %v4778
  %4828 = vrot.lane.b32.xlu0 %v162, 96
  %v4829 = vpop.permute.xlu0 %4828
  %4830 = vrot.lane.b32.xlu0 %v163, 96
  %v4831 = vpop.permute.xlu0 %4830
  %4849 = vrot.lane.b32.xlu0 %v4811, 95
  %v4850 = vpop.permute.xlu0 %4849
  %4851 = vrot.lane.b32.xlu0 %v4812, 95
  %v4852 = vpop.permute.xlu0 %4851
  %4853 = vrot.lane.b32.xlu0 %v4813, 95
  %v4854 = vpop.permute.xlu0 %4853
  %4855 = vrot.lane.b32.xlu0 %v4814, 95
  %v4856 = vpop.permute.xlu0 %4855
  %4857 = vrot.lane.b32.xlu0 %v4815, 95
  %v4858 = vpop.permute.xlu0 %4857
  %4859 = vrot.lane.b32.xlu0 %v4816, 95
  %v4860 = vpop.permute.xlu0 %4859
  %4861 = vrot.lane.b32.xlu0 %v4817, 95
  %v4862 = vpop.permute.xlu0 %4861
  %4863 = vrot.lane.b32.xlu0 %v4818, 95
  %v4864 = vpop.permute.xlu0 %4863
  %4865 = vrot.lane.b32.xlu0 %v4819, 95
  %v4866 = vpop.permute.xlu0 %4865
  %4867 = vrot.lane.b32.xlu0 %v4820, 95
  %v4868 = vpop.permute.xlu0 %4867
  %4869 = vrot.lane.b32.xlu0 %v4821, 95
  %v4870 = vpop.permute.xlu0 %4869
  %4871 = vrot.lane.b32.xlu0 %v4822, 95
  %v4872 = vpop.permute.xlu0 %4871
  %4873 = vrot.lane.b32.xlu0 %v4823, 95
  %v4874 = vpop.permute.xlu0 %4873
  %4875 = vrot.lane.b32.xlu0 %v4824, 95
  %v4876 = vpop.permute.xlu0 %4875
  %4877 = vrot.lane.b32.xlu0 %v4825, 95
  %v4878 = vpop.permute.xlu0 %4877
  %4879 = vrot.lane.b32.xlu0 %v4826, 95
  %v4880 = vpop.permute.xlu0 %4879
  %4881 = vrot.lane.b32.xlu0 %v4827, 95
  %v4882 = vpop.permute.xlu0 %4881
  %v4883 = vsel %vm112, %v4850, %v4852
  %v4884 = vsel %vm112, %v4852, %v4854
  %v4885 = vsel %vm112, %v4854, %v4856
  %v4886 = vsel %vm112, %v4856, %v4858
  %v4887 = vsel %vm112, %v4858, %v4860
  %v4888 = vsel %vm112, %v4860, %v4862
  %v4889 = vsel %vm112, %v4862, %v4864
  %v4890 = vsel %vm112, %v4864, %v4866
  %v4891 = vsel %vm112, %v4866, %v4868
  %v4892 = vsel %vm112, %v4868, %v4870
  %v4893 = vsel %vm112, %v4870, %v4872
  %v4894 = vsel %vm112, %v4872, %v4874
  %v4895 = vsel %vm112, %v4874, %v4876
  %v4896 = vsel %vm112, %v4876, %v4878
  %v4897 = vsel %vm112, %v4878, %v4880
  %v4898 = vsel %vm112, %v4880, %v4882
  %v4899 = vsel %vm338, %v4829, 0
  %v4901 = vsel %vm338, %v4831, 0
  %v4903 = vsel %vm343, %v4883, 0
  %v4905 = vsel %vm343, %v4884, 0
  %v4907 = vsel %vm343, %v4885, 0
  %v4909 = vsel %vm343, %v4886, 0
  %v4911 = vsel %vm343, %v4887, 0
  %v4913 = vsel %vm343, %v4888, 0
  %v4915 = vsel %vm343, %v4889, 0
  %v4917 = vsel %vm343, %v4890, 0
  %v4919 = vsel %vm343, %v4891, 0
  %v4921 = vsel %vm343, %v4892, 0
  %v4923 = vsel %vm343, %v4893, 0
  %v4925 = vsel %vm343, %v4894, 0
  %v4927 = vsel %vm343, %v4895, 0
  %v4929 = vsel %vm343, %v4896, 0
  %v4931 = vsel %vm343, %v4897, 0
  %v4933 = vsel %vm343, %v4898, 0
  %4935 = vmatpush.msra.mxu0 0.0
  %4936 = vmatpush.msra.mxu0 0.0
  %4937 = vmatpush.msra.mxu0 0.0
  %4938 = vmatpush.msra.mxu0 0.0
  %4939 = vmatpush.msra.mxu0 0.0
  %4940 = vmatpush.msra.mxu0 0.0
  %4941 = vmatpush.msra.mxu0 0.0
  %4942 = vmatpush.msra.mxu0 0.0
  %4943 = vmatpush.msra.mxu0 0.0
  %4944 = vmatpush.msra.mxu0 0.0
  %4945 = vmatpush.msra.mxu0 0.0
  %4946 = vmatpush.msra.mxu0 0.0
  %4947 = vmatpush.msra.mxu0 0.0
  %4948 = vmatpush.msra.mxu0 0.0
  %4949 = vmatpush.msra.mxu0 0.0
  %4950 = vmatpush.msra.mxu0 %v4903
  %4951 = vmatmul.f32.gmra.mxu0 %v4899
  %v4952 = vpop.f32.mrf.mxu0
  %v4953 = vadd.f32 0.0, %v4952
  %4954 = vmatmul.f32.gmra.mxu0 %v4901
  %v4955 = vpop.f32.mrf.mxu0
  %v4956 = vadd.f32 0.0, %v4955
  %4957 = vdwg.mxu0
  %4958 = vmatpush.msra.mxu0 0.0
  %4959 = vmatpush.msra.mxu0 0.0
  %4960 = vmatpush.msra.mxu0 0.0
  %4961 = vmatpush.msra.mxu0 0.0
  %4962 = vmatpush.msra.mxu0 0.0
  %4963 = vmatpush.msra.mxu0 0.0
  %4964 = vmatpush.msra.mxu0 0.0
  %4965 = vmatpush.msra.mxu0 0.0
  %4966 = vmatpush.msra.mxu0 0.0
  %4967 = vmatpush.msra.mxu0 0.0
  %4968 = vmatpush.msra.mxu0 0.0
  %4969 = vmatpush.msra.mxu0 0.0
  %4970 = vmatpush.msra.mxu0 0.0
  %4971 = vmatpush.msra.mxu0 0.0
  %4972 = vmatpush.msra.mxu0 0.0
  %4973 = vmatpush.msra.mxu0 %v4905
  %4974 = vmatmul.f32.gmra.mxu0 %v4899
  %v4975 = vpop.f32.mrf.mxu0
  %v4976 = vadd.f32 0.0, %v4975
  %4977 = vmatmul.f32.gmra.mxu0 %v4901
  %v4978 = vpop.f32.mrf.mxu0
  %v4979 = vadd.f32 0.0, %v4978
  %4980 = vdwg.mxu0
  %4981 = vmatpush.msra.mxu0 0.0
  %4982 = vmatpush.msra.mxu0 0.0
  %4983 = vmatpush.msra.mxu0 0.0
  %4984 = vmatpush.msra.mxu0 0.0
  %4985 = vmatpush.msra.mxu0 0.0
  %4986 = vmatpush.msra.mxu0 0.0
  %4987 = vmatpush.msra.mxu0 0.0
  %4988 = vmatpush.msra.mxu0 0.0
  %4989 = vmatpush.msra.mxu0 0.0
  %4990 = vmatpush.msra.mxu0 0.0
  %4991 = vmatpush.msra.mxu0 0.0
  %4992 = vmatpush.msra.mxu0 0.0
  %4993 = vmatpush.msra.mxu0 0.0
  %4994 = vmatpush.msra.mxu0 0.0
  %4995 = vmatpush.msra.mxu0 0.0
  %4996 = vmatpush.msra.mxu0 %v4907
  %4997 = vmatmul.f32.gmra.mxu0 %v4899
  %v4998 = vpop.f32.mrf.mxu0
  %v4999 = vadd.f32 0.0, %v4998
  %5000 = vmatmul.f32.gmra.mxu0 %v4901
  %v5001 = vpop.f32.mrf.mxu0
  %v5002 = vadd.f32 0.0, %v5001
  %5003 = vdwg.mxu0
  %5004 = vmatpush.msra.mxu0 0.0
  %5005 = vmatpush.msra.mxu0 0.0
  %5006 = vmatpush.msra.mxu0 0.0
  %5007 = vmatpush.msra.mxu0 0.0
  %5008 = vmatpush.msra.mxu0 0.0
  %5009 = vmatpush.msra.mxu0 0.0
  %5010 = vmatpush.msra.mxu0 0.0
  %5011 = vmatpush.msra.mxu0 0.0
  %5012 = vmatpush.msra.mxu0 0.0
  %5013 = vmatpush.msra.mxu0 0.0
  %5014 = vmatpush.msra.mxu0 0.0
  %5015 = vmatpush.msra.mxu0 0.0
  %5016 = vmatpush.msra.mxu0 0.0
  %5017 = vmatpush.msra.mxu0 0.0
  %5018 = vmatpush.msra.mxu0 0.0
  %5019 = vmatpush.msra.mxu0 %v4909
  %5020 = vmatmul.f32.gmra.mxu0 %v4899
  %v5021 = vpop.f32.mrf.mxu0
  %v5022 = vadd.f32 0.0, %v5021
  %5023 = vmatmul.f32.gmra.mxu0 %v4901
  %v5024 = vpop.f32.mrf.mxu0
  %v5025 = vadd.f32 0.0, %v5024
  %5026 = vdwg.mxu0
  %5027 = vmatpush.msra.mxu0 0.0
  %5028 = vmatpush.msra.mxu0 0.0
  %5029 = vmatpush.msra.mxu0 0.0
  %5030 = vmatpush.msra.mxu0 0.0
  %5031 = vmatpush.msra.mxu0 0.0
  %5032 = vmatpush.msra.mxu0 0.0
  %5033 = vmatpush.msra.mxu0 0.0
  %5034 = vmatpush.msra.mxu0 0.0
  %5035 = vmatpush.msra.mxu0 0.0
  %5036 = vmatpush.msra.mxu0 0.0
  %5037 = vmatpush.msra.mxu0 0.0
  %5038 = vmatpush.msra.mxu0 0.0
  %5039 = vmatpush.msra.mxu0 0.0
  %5040 = vmatpush.msra.mxu0 0.0
  %5041 = vmatpush.msra.mxu0 0.0
  %5042 = vmatpush.msra.mxu0 %v4911
  %5043 = vmatmul.f32.gmra.mxu0 %v4899
  %v5044 = vpop.f32.mrf.mxu0
  %v5045 = vadd.f32 0.0, %v5044
  %5046 = vmatmul.f32.gmra.mxu0 %v4901
  %v5047 = vpop.f32.mrf.mxu0
  %v5048 = vadd.f32 0.0, %v5047
  %5049 = vdwg.mxu0
  %5050 = vmatpush.msra.mxu0 0.0
  %5051 = vmatpush.msra.mxu0 0.0
  %5052 = vmatpush.msra.mxu0 0.0
  %5053 = vmatpush.msra.mxu0 0.0
  %5054 = vmatpush.msra.mxu0 0.0
  %5055 = vmatpush.msra.mxu0 0.0
  %5056 = vmatpush.msra.mxu0 0.0
  %5057 = vmatpush.msra.mxu0 0.0
  %5058 = vmatpush.msra.mxu0 0.0
  %5059 = vmatpush.msra.mxu0 0.0
  %5060 = vmatpush.msra.mxu0 0.0
  %5061 = vmatpush.msra.mxu0 0.0
  %5062 = vmatpush.msra.mxu0 0.0
  %5063 = vmatpush.msra.mxu0 0.0
  %5064 = vmatpush.msra.mxu0 0.0
  %5065 = vmatpush.msra.mxu0 %v4913
  %5066 = vmatmul.f32.gmra.mxu0 %v4899
  %v5067 = vpop.f32.mrf.mxu0
  %v5068 = vadd.f32 0.0, %v5067
  %5069 = vmatmul.f32.gmra.mxu0 %v4901
  %v5070 = vpop.f32.mrf.mxu0
  %v5071 = vadd.f32 0.0, %v5070
  %5072 = vdwg.mxu0
  %5073 = vmatpush.msra.mxu0 0.0
  %5074 = vmatpush.msra.mxu0 0.0
  %5075 = vmatpush.msra.mxu0 0.0
  %5076 = vmatpush.msra.mxu0 0.0
  %5077 = vmatpush.msra.mxu0 0.0
  %5078 = vmatpush.msra.mxu0 0.0
  %5079 = vmatpush.msra.mxu0 0.0
  %5080 = vmatpush.msra.mxu0 0.0
  %5081 = vmatpush.msra.mxu0 0.0
  %5082 = vmatpush.msra.mxu0 0.0
  %5083 = vmatpush.msra.mxu0 0.0
  %5084 = vmatpush.msra.mxu0 0.0
  %5085 = vmatpush.msra.mxu0 0.0
  %5086 = vmatpush.msra.mxu0 0.0
  %5087 = vmatpush.msra.mxu0 0.0
  %5088 = vmatpush.msra.mxu0 %v4915
  %5089 = vmatmul.f32.gmra.mxu0 %v4899
  %v5090 = vpop.f32.mrf.mxu0
  %v5091 = vadd.f32 0.0, %v5090
  %5092 = vmatmul.f32.gmra.mxu0 %v4901
  %v5093 = vpop.f32.mrf.mxu0
  %v5094 = vadd.f32 0.0, %v5093
  %5095 = vdwg.mxu0
  %5096 = vmatpush.msra.mxu0 0.0
  %5097 = vmatpush.msra.mxu0 0.0
  %5098 = vmatpush.msra.mxu0 0.0
  %5099 = vmatpush.msra.mxu0 0.0
  %5100 = vmatpush.msra.mxu0 0.0
  %5101 = vmatpush.msra.mxu0 0.0
  %5102 = vmatpush.msra.mxu0 0.0
  %5103 = vmatpush.msra.mxu0 0.0
  %5104 = vmatpush.msra.mxu0 0.0
  %5105 = vmatpush.msra.mxu0 0.0
  %5106 = vmatpush.msra.mxu0 0.0
  %5107 = vmatpush.msra.mxu0 0.0
  %5108 = vmatpush.msra.mxu0 0.0
  %5109 = vmatpush.msra.mxu0 0.0
  %5110 = vmatpush.msra.mxu0 0.0
  %5111 = vmatpush.msra.mxu0 %v4917
  %5112 = vmatmul.f32.gmra.mxu0 %v4899
  %v5113 = vpop.f32.mrf.mxu0
  %v5114 = vadd.f32 0.0, %v5113
  %5115 = vmatmul.f32.gmra.mxu0 %v4901
  %v5116 = vpop.f32.mrf.mxu0
  %v5117 = vadd.f32 0.0, %v5116
  %5118 = vdwg.mxu0
  %5119 = vmatpush.msra.mxu0 0.0
  %5120 = vmatpush.msra.mxu0 0.0
  %5121 = vmatpush.msra.mxu0 0.0
  %5122 = vmatpush.msra.mxu0 0.0
  %5123 = vmatpush.msra.mxu0 0.0
  %5124 = vmatpush.msra.mxu0 0.0
  %5125 = vmatpush.msra.mxu0 0.0
  %5126 = vmatpush.msra.mxu0 0.0
  %5127 = vmatpush.msra.mxu0 0.0
  %5128 = vmatpush.msra.mxu0 0.0
  %5129 = vmatpush.msra.mxu0 0.0
  %5130 = vmatpush.msra.mxu0 0.0
  %5131 = vmatpush.msra.mxu0 0.0
  %5132 = vmatpush.msra.mxu0 0.0
  %5133 = vmatpush.msra.mxu0 0.0
  %5134 = vmatpush.msra.mxu0 %v4919
  %5135 = vmatmul.f32.gmra.mxu0 %v4899
  %v5136 = vpop.f32.mrf.mxu0
  %v5137 = vadd.f32 0.0, %v5136
  %5138 = vmatmul.f32.gmra.mxu0 %v4901
  %v5139 = vpop.f32.mrf.mxu0
  %v5140 = vadd.f32 0.0, %v5139
  %5141 = vdwg.mxu0
  %5142 = vmatpush.msra.mxu0 0.0
  %5143 = vmatpush.msra.mxu0 0.0
  %5144 = vmatpush.msra.mxu0 0.0
  %5145 = vmatpush.msra.mxu0 0.0
  %5146 = vmatpush.msra.mxu0 0.0
  %5147 = vmatpush.msra.mxu0 0.0
  %5148 = vmatpush.msra.mxu0 0.0
  %5149 = vmatpush.msra.mxu0 0.0
  %5150 = vmatpush.msra.mxu0 0.0
  %5151 = vmatpush.msra.mxu0 0.0
  %5152 = vmatpush.msra.mxu0 0.0
  %5153 = vmatpush.msra.mxu0 0.0
  %5154 = vmatpush.msra.mxu0 0.0
  %5155 = vmatpush.msra.mxu0 0.0
  %5156 = vmatpush.msra.mxu0 0.0
  %5157 = vmatpush.msra.mxu0 %v4921
  %5158 = vmatmul.f32.gmra.mxu0 %v4899
  %v5159 = vpop.f32.mrf.mxu0
  %v5160 = vadd.f32 0.0, %v5159
  %5161 = vmatmul.f32.gmra.mxu0 %v4901
  %v5162 = vpop.f32.mrf.mxu0
  %v5163 = vadd.f32 0.0, %v5162
  %5164 = vdwg.mxu0
  %5165 = vmatpush.msra.mxu0 0.0
  %5166 = vmatpush.msra.mxu0 0.0
  %5167 = vmatpush.msra.mxu0 0.0
  %5168 = vmatpush.msra.mxu0 0.0
  %5169 = vmatpush.msra.mxu0 0.0
  %5170 = vmatpush.msra.mxu0 0.0
  %5171 = vmatpush.msra.mxu0 0.0
  %5172 = vmatpush.msra.mxu0 0.0
  %5173 = vmatpush.msra.mxu0 0.0
  %5174 = vmatpush.msra.mxu0 0.0
  %5175 = vmatpush.msra.mxu0 0.0
  %5176 = vmatpush.msra.mxu0 0.0
  %5177 = vmatpush.msra.mxu0 0.0
  %5178 = vmatpush.msra.mxu0 0.0
  %5179 = vmatpush.msra.mxu0 0.0
  %5180 = vmatpush.msra.mxu0 %v4923
  %5181 = vmatmul.f32.gmra.mxu0 %v4899
  %v5182 = vpop.f32.mrf.mxu0
  %v5183 = vadd.f32 0.0, %v5182
  %5184 = vmatmul.f32.gmra.mxu0 %v4901
  %v5185 = vpop.f32.mrf.mxu0
  %v5186 = vadd.f32 0.0, %v5185
  %5187 = vdwg.mxu0
  %5188 = vmatpush.msra.mxu0 0.0
  %5189 = vmatpush.msra.mxu0 0.0
  %5190 = vmatpush.msra.mxu0 0.0
  %5191 = vmatpush.msra.mxu0 0.0
  %5192 = vmatpush.msra.mxu0 0.0
  %5193 = vmatpush.msra.mxu0 0.0
  %5194 = vmatpush.msra.mxu0 0.0
  %5195 = vmatpush.msra.mxu0 0.0
  %5196 = vmatpush.msra.mxu0 0.0
  %5197 = vmatpush.msra.mxu0 0.0
  %5198 = vmatpush.msra.mxu0 0.0
  %5199 = vmatpush.msra.mxu0 0.0
  %5200 = vmatpush.msra.mxu0 0.0
  %5201 = vmatpush.msra.mxu0 0.0
  %5202 = vmatpush.msra.mxu0 0.0
  %5203 = vmatpush.msra.mxu0 %v4925
  %5204 = vmatmul.f32.gmra.mxu0 %v4899
  %v5205 = vpop.f32.mrf.mxu0
  %v5206 = vadd.f32 0.0, %v5205
  %5207 = vmatmul.f32.gmra.mxu0 %v4901
  %v5208 = vpop.f32.mrf.mxu0
  %v5209 = vadd.f32 0.0, %v5208
  %5210 = vdwg.mxu0
  %5211 = vmatpush.msra.mxu0 0.0
  %5212 = vmatpush.msra.mxu0 0.0
  %5213 = vmatpush.msra.mxu0 0.0
  %5214 = vmatpush.msra.mxu0 0.0
  %5215 = vmatpush.msra.mxu0 0.0
  %5216 = vmatpush.msra.mxu0 0.0
  %5217 = vmatpush.msra.mxu0 0.0
  %5218 = vmatpush.msra.mxu0 0.0
  %5219 = vmatpush.msra.mxu0 0.0
  %5220 = vmatpush.msra.mxu0 0.0
  %5221 = vmatpush.msra.mxu0 0.0
  %5222 = vmatpush.msra.mxu0 0.0
  %5223 = vmatpush.msra.mxu0 0.0
  %5224 = vmatpush.msra.mxu0 0.0
  %5225 = vmatpush.msra.mxu0 0.0
  %5226 = vmatpush.msra.mxu0 %v4927
  %5227 = vmatmul.f32.gmra.mxu0 %v4899
  %v5228 = vpop.f32.mrf.mxu0
  %v5229 = vadd.f32 0.0, %v5228
  %5230 = vmatmul.f32.gmra.mxu0 %v4901
  %v5231 = vpop.f32.mrf.mxu0
  %v5232 = vadd.f32 0.0, %v5231
  %5233 = vdwg.mxu0
  %5234 = vmatpush.msra.mxu0 0.0
  %5235 = vmatpush.msra.mxu0 0.0
  %5236 = vmatpush.msra.mxu0 0.0
  %5237 = vmatpush.msra.mxu0 0.0
  %5238 = vmatpush.msra.mxu0 0.0
  %5239 = vmatpush.msra.mxu0 0.0
  %5240 = vmatpush.msra.mxu0 0.0
  %5241 = vmatpush.msra.mxu0 0.0
  %5242 = vmatpush.msra.mxu0 0.0
  %5243 = vmatpush.msra.mxu0 0.0
  %5244 = vmatpush.msra.mxu0 0.0
  %5245 = vmatpush.msra.mxu0 0.0
  %5246 = vmatpush.msra.mxu0 0.0
  %5247 = vmatpush.msra.mxu0 0.0
  %5248 = vmatpush.msra.mxu0 0.0
  %5249 = vmatpush.msra.mxu0 %v4929
  %5250 = vmatmul.f32.gmra.mxu0 %v4899
  %v5251 = vpop.f32.mrf.mxu0
  %v5252 = vadd.f32 0.0, %v5251
  %5253 = vmatmul.f32.gmra.mxu0 %v4901
  %v5254 = vpop.f32.mrf.mxu0
  %v5255 = vadd.f32 0.0, %v5254
  %5256 = vdwg.mxu0
  %5257 = vmatpush.msra.mxu0 0.0
  %5258 = vmatpush.msra.mxu0 0.0
  %5259 = vmatpush.msra.mxu0 0.0
  %5260 = vmatpush.msra.mxu0 0.0
  %5261 = vmatpush.msra.mxu0 0.0
  %5262 = vmatpush.msra.mxu0 0.0
  %5263 = vmatpush.msra.mxu0 0.0
  %5264 = vmatpush.msra.mxu0 0.0
  %5265 = vmatpush.msra.mxu0 0.0
  %5266 = vmatpush.msra.mxu0 0.0
  %5267 = vmatpush.msra.mxu0 0.0
  %5268 = vmatpush.msra.mxu0 0.0
  %5269 = vmatpush.msra.mxu0 0.0
  %5270 = vmatpush.msra.mxu0 0.0
  %5271 = vmatpush.msra.mxu0 0.0
  %5272 = vmatpush.msra.mxu0 %v4931
  %5273 = vmatmul.f32.gmra.mxu0 %v4899
  %v5274 = vpop.f32.mrf.mxu0
  %v5275 = vadd.f32 0.0, %v5274
  %5276 = vmatmul.f32.gmra.mxu0 %v4901
  %v5277 = vpop.f32.mrf.mxu0
  %v5278 = vadd.f32 0.0, %v5277
  %5279 = vdwg.mxu0
  %5280 = vmatpush.msra.mxu0 0.0
  %5281 = vmatpush.msra.mxu0 0.0
  %5282 = vmatpush.msra.mxu0 0.0
  %5283 = vmatpush.msra.mxu0 0.0
  %5284 = vmatpush.msra.mxu0 0.0
  %5285 = vmatpush.msra.mxu0 0.0
  %5286 = vmatpush.msra.mxu0 0.0
  %5287 = vmatpush.msra.mxu0 0.0
  %5288 = vmatpush.msra.mxu0 0.0
  %5289 = vmatpush.msra.mxu0 0.0
  %5290 = vmatpush.msra.mxu0 0.0
  %5291 = vmatpush.msra.mxu0 0.0
  %5292 = vmatpush.msra.mxu0 0.0
  %5293 = vmatpush.msra.mxu0 0.0
  %5294 = vmatpush.msra.mxu0 0.0
  %5295 = vmatpush.msra.mxu0 %v4933
  %5296 = vmatmul.f32.gmra.mxu0 %v4899
  %v5297 = vpop.f32.mrf.mxu0
  %v5298 = vadd.f32 0.0, %v5297
  %5299 = vmatmul.f32.gmra.mxu0 %v4901
  %v5300 = vpop.f32.mrf.mxu0
  %v5301 = vadd.f32 0.0, %v5300
  %5302 = vdwg.mxu0
  %v5303 = vadd.f32 %v4695, %v4953
  %v5304 = vadd.f32 %v4696, %v4976
  %v5305 = vadd.f32 %v4697, %v4999
  %v5306 = vadd.f32 %v4698, %v5022
  %v5307 = vadd.f32 %v4699, %v5045
  %v5308 = vadd.f32 %v4700, %v5068
  %v5309 = vadd.f32 %v4701, %v5091
  %v5310 = vadd.f32 %v4702, %v5114
  %v5311 = vadd.f32 %v4703, %v5137
  %v5312 = vadd.f32 %v4704, %v5160
  %v5313 = vadd.f32 %v4705, %v5183
  %v5314 = vadd.f32 %v4706, %v5206
  %v5315 = vadd.f32 %v4707, %v5229
  %v5316 = vadd.f32 %v4708, %v5252
  %v5317 = vadd.f32 %v4709, %v5275
  %v5318 = vadd.f32 %v4710, %v5298
  %v5319 = vadd.f32 %v4711, %v4956
  %v5320 = vadd.f32 %v4712, %v4979
  %v5321 = vadd.f32 %v4713, %v5002
  %v5322 = vadd.f32 %v4714, %v5025
  %v5323 = vadd.f32 %v4715, %v5048
  %v5324 = vadd.f32 %v4716, %v5071
  %v5325 = vadd.f32 %v4717, %v5094
  %v5326 = vadd.f32 %v4718, %v5117
  %v5327 = vadd.f32 %v4719, %v5140
  %v5328 = vadd.f32 %v4720, %v5163
  %v5329 = vadd.f32 %v4721, %v5186
  %v5330 = vadd.f32 %v4722, %v5209
  %v5331 = vadd.f32 %v4723, %v5232
  %v5332 = vadd.f32 %v4724, %v5255
  %v5333 = vadd.f32 %v4725, %v5278
  %v5334 = vadd.f32 %v4726, %v5301
  %v5335 = vadd.f32 %v5303, %v5304
  %v5336 = vadd.f32 %v5335, %v5305
  %v5337 = vadd.f32 %v5336, %v5306
  %v5338 = vadd.f32 %v5337, %v5307
  %v5339 = vadd.f32 %v5338, %v5308
  %v5340 = vadd.f32 %v5339, %v5309
  %v5341 = vadd.f32 %v5340, %v5310
  %v5342 = vadd.f32 %v5341, %v5311
  %v5343 = vadd.f32 %v5342, %v5312
  %v5344 = vadd.f32 %v5343, %v5313
  %v5345 = vadd.f32 %v5344, %v5314
  %v5346 = vadd.f32 %v5345, %v5315
  %v5347 = vadd.f32 %v5346, %v5316
  %v5348 = vadd.f32 %v5347, %v5317
  %v5349 = vadd.f32 %v5348, %v5318
  %5350 = vadd.xlane.f32.xlu0 %v5349
  %v5351 = vpop.xlane.xlu0 %5350
  %v5352 = vadd.f32 %v5319, %v5320
  %v5353 = vadd.f32 %v5352, %v5321
  %v5354 = vadd.f32 %v5353, %v5322
  %v5355 = vadd.f32 %v5354, %v5323
  %v5356 = vadd.f32 %v5355, %v5324
  %v5357 = vadd.f32 %v5356, %v5325
  %v5358 = vadd.f32 %v5357, %v5326
  %v5359 = vadd.f32 %v5358, %v5327
  %v5360 = vadd.f32 %v5359, %v5328
  %v5361 = vadd.f32 %v5360, %v5329
  %v5362 = vadd.f32 %v5361, %v5330
  %v5363 = vadd.f32 %v5362, %v5331
  %v5364 = vadd.f32 %v5363, %v5332
  %v5365 = vadd.f32 %v5364, %v5333
  %v5366 = vadd.f32 %v5365, %v5334
  %5367 = vadd.xlane.f32.xlu0 %v5366
  %v5368 = vpop.xlane.xlu0 %5367
  %v5369 = vmul.f32 %v5351, 0.00048828125
  %v5370 = vmul.f32 %v5368, 0.00048828125
  %v5371 = vmul.f32 %v5303, %v5303
  %v5372 = vmul.f32 %v5304, %v5304
  %v5373 = vmul.f32 %v5305, %v5305
  %v5374 = vmul.f32 %v5306, %v5306
  %v5375 = vmul.f32 %v5307, %v5307
  %v5376 = vmul.f32 %v5308, %v5308
  %v5377 = vmul.f32 %v5309, %v5309
  %v5378 = vmul.f32 %v5310, %v5310
  %v5379 = vmul.f32 %v5311, %v5311
  %v5380 = vmul.f32 %v5312, %v5312
  %v5381 = vmul.f32 %v5313, %v5313
  %v5382 = vmul.f32 %v5314, %v5314
  %v5383 = vmul.f32 %v5315, %v5315
  %v5384 = vmul.f32 %v5316, %v5316
  %v5385 = vmul.f32 %v5317, %v5317
  %v5386 = vmul.f32 %v5318, %v5318
  %v5387 = vmul.f32 %v5319, %v5319
  %v5388 = vmul.f32 %v5320, %v5320
  %v5389 = vmul.f32 %v5321, %v5321
  %v5390 = vmul.f32 %v5322, %v5322
  %v5391 = vmul.f32 %v5323, %v5323
  %v5392 = vmul.f32 %v5324, %v5324
  %v5393 = vmul.f32 %v5325, %v5325
  %v5394 = vmul.f32 %v5326, %v5326
  %v5395 = vmul.f32 %v5327, %v5327
  %v5396 = vmul.f32 %v5328, %v5328
  %v5397 = vmul.f32 %v5329, %v5329
  %v5398 = vmul.f32 %v5330, %v5330
  %v5399 = vmul.f32 %v5331, %v5331
  %v5400 = vmul.f32 %v5332, %v5332
  %v5401 = vmul.f32 %v5333, %v5333
  %v5402 = vmul.f32 %v5334, %v5334
  %v5403 = vadd.f32 %v5371, %v5372
  %v5404 = vadd.f32 %v5403, %v5373
  %v5405 = vadd.f32 %v5404, %v5374
  %v5406 = vadd.f32 %v5405, %v5375
  %v5407 = vadd.f32 %v5406, %v5376
  %v5408 = vadd.f32 %v5407, %v5377
  %v5409 = vadd.f32 %v5408, %v5378
  %v5410 = vadd.f32 %v5409, %v5379
  %v5411 = vadd.f32 %v5410, %v5380
  %v5412 = vadd.f32 %v5411, %v5381
  %v5413 = vadd.f32 %v5412, %v5382
  %v5414 = vadd.f32 %v5413, %v5383
  %v5415 = vadd.f32 %v5414, %v5384
  %v5416 = vadd.f32 %v5415, %v5385
  %v5417 = vadd.f32 %v5416, %v5386
  %5418 = vadd.xlane.f32.xlu0 %v5417
  %v5419 = vpop.xlane.xlu0 %5418
  %v5420 = vadd.f32 %v5387, %v5388
  %v5421 = vadd.f32 %v5420, %v5389
  %v5422 = vadd.f32 %v5421, %v5390
  %v5423 = vadd.f32 %v5422, %v5391
  %v5424 = vadd.f32 %v5423, %v5392
  %v5425 = vadd.f32 %v5424, %v5393
  %v5426 = vadd.f32 %v5425, %v5394
  %v5427 = vadd.f32 %v5426, %v5395
  %v5428 = vadd.f32 %v5427, %v5396
  %v5429 = vadd.f32 %v5428, %v5397
  %v5430 = vadd.f32 %v5429, %v5398
  %v5431 = vadd.f32 %v5430, %v5399
  %v5432 = vadd.f32 %v5431, %v5400
  %v5433 = vadd.f32 %v5432, %v5401
  %v5434 = vadd.f32 %v5433, %v5402
  %5435 = vadd.xlane.f32.xlu0 %v5434
  %v5436 = vpop.xlane.xlu0 %5435
  %v5437 = vmul.f32 %v5419, 0.00048828125
  %v5438 = vmul.f32 %v5436, 0.00048828125
  %v5439 = vmul.f32 %v5369, %v5369
  %v5440 = vmul.f32 %v5370, %v5370
  %v5441 = vsub.f32 %v5437, %v5439
  %v5442 = vsub.f32 %v5438, %v5440
  %v5443 = vmax.f32 %v5441, 0.0
  %v5444 = vmax.f32 %v5442, 0.0
  %v5445 = vadd.f32 %v5443, 1e-05
  %v5446 = vadd.f32 %v5444, 1e-05
  %v5447 = vrsqrt.pop %v5445
  %v5448 = vmul.f32 %v5447, %v5445
  %v5449 = vmul.f32 %v5448, %v5447
  %v5450 = vmul.f32 0.5, %v5449
  %v5451 = vsub.f32 1.5, %v5450
  %v5452 = vmul.f32 %v5447, %v5451
  %vm5453 = vweird.f32 %v5445
  %vm5454 = vweird.f32 %v5447
  %vm5455 = vmor %vm5453, %vm5454
  %v5456 = vsel %vm5455, %v5447, %v5452
  %v5457 = vrsqrt.pop %v5446
  %v5458 = vmul.f32 %v5457, %v5446
  %v5459 = vmul.f32 %v5458, %v5457
  %v5460 = vmul.f32 0.5, %v5459
  %v5461 = vsub.f32 1.5, %v5460
  %v5462 = vmul.f32 %v5457, %v5461
  %vm5463 = vweird.f32 %v5446
  %vm5464 = vweird.f32 %v5457
  %vm5465 = vmor %vm5463, %vm5464
  %v5466 = vsel %vm5465, %v5457, %v5462
  %v5467 = vmul.f32 %v162, %v5456
  %v5468 = vmul.f32 %v163, %v5466
  %v5469 = vmul.f32 %v5369, %v5467
  %v5470 = vmul.f32 %v5370, %v5468
  %5473 = vrot.lane.b32.xlu0 %v5469, 1
  %v5474 = vpop.permute.xlu0 %5473
  %5475 = vrot.lane.b32.xlu0 %v5470, 1
  %v5476 = vpop.permute.xlu0 %5475
  %v5479 = vsub.f32 %v162, %v5474
  %v5480 = vsub.f32 %v163, %v5476
  %5482 = vset.pattern.permute.xlu0 36
  %5483 = vperm.xlu0 %5482, %v5467
  %v5484 = vpop.permute.xlu0 %5483
  %5487 = vset.pattern.permute.xlu0 36
  %5488 = vperm.xlu0 %5487, %v5468
  %v5489 = vpop.permute.xlu0 %5488
  %v5491 = vmul.f32 %v5303, %v5484
  %v5492 = vmul.f32 %v5304, %v5484
  %v5493 = vmul.f32 %v5305, %v5484
  %v5494 = vmul.f32 %v5306, %v5484
  %v5495 = vmul.f32 %v5307, %v5484
  %v5496 = vmul.f32 %v5308, %v5484
  %v5497 = vmul.f32 %v5309, %v5484
  %v5498 = vmul.f32 %v5310, %v5484
  %v5499 = vmul.f32 %v5311, %v5484
  %v5500 = vmul.f32 %v5312, %v5484
  %v5501 = vmul.f32 %v5313, %v5484
  %v5502 = vmul.f32 %v5314, %v5484
  %v5503 = vmul.f32 %v5315, %v5484
  %v5504 = vmul.f32 %v5316, %v5484
  %v5505 = vmul.f32 %v5317, %v5484
  %v5506 = vmul.f32 %v5318, %v5484
  %v5507 = vmul.f32 %v5319, %v5489
  %v5508 = vmul.f32 %v5320, %v5489
  %v5509 = vmul.f32 %v5321, %v5489
  %v5510 = vmul.f32 %v5322, %v5489
  %v5511 = vmul.f32 %v5323, %v5489
  %v5512 = vmul.f32 %v5324, %v5489
  %v5513 = vmul.f32 %v5325, %v5489
  %v5514 = vmul.f32 %v5326, %v5489
  %v5515 = vmul.f32 %v5327, %v5489
  %v5516 = vmul.f32 %v5328, %v5489
  %v5517 = vmul.f32 %v5329, %v5489
  %v5518 = vmul.f32 %v5330, %v5489
  %v5519 = vmul.f32 %v5331, %v5489
  %v5520 = vmul.f32 %v5332, %v5489
  %v5521 = vmul.f32 %v5333, %v5489
  %v5522 = vmul.f32 %v5334, %v5489
  %5524 = vset.pattern.permute.xlu0 37
  %5525 = vperm.xlu0 %5524, %v5479
  %v5526 = vpop.permute.xlu0 %5525
  %5529 = vset.pattern.permute.xlu0 37
  %5530 = vperm.xlu0 %5529, %v5480
  %v5531 = vpop.permute.xlu0 %5530
  %v5533 = vadd.f32 %v5491, %v5526
  %v5534 = vadd.f32 %v5492, %v5526
  %v5535 = vadd.f32 %v5493, %v5526
  %v5536 = vadd.f32 %v5494, %v5526
  %v5537 = vadd.f32 %v5495, %v5526
  %v5538 = vadd.f32 %v5496, %v5526
  %v5539 = vadd.f32 %v5497, %v5526
  %v5540 = vadd.f32 %v5498, %v5526
  %v5541 = vadd.f32 %v5499, %v5526
  %v5542 = vadd.f32 %v5500, %v5526
  %v5543 = vadd.f32 %v5501, %v5526
  %v5544 = vadd.f32 %v5502, %v5526
  %v5545 = vadd.f32 %v5503, %v5526
  %v5546 = vadd.f32 %v5504, %v5526
  %v5547 = vadd.f32 %v5505, %v5526
  %v5548 = vadd.f32 %v5506, %v5526
  %v5549 = vadd.f32 %v5507, %v5531
  %v5550 = vadd.f32 %v5508, %v5531
  %v5551 = vadd.f32 %v5509, %v5531
  %v5552 = vadd.f32 %v5510, %v5531
  %v5553 = vadd.f32 %v5511, %v5531
  %v5554 = vadd.f32 %v5512, %v5531
  %v5555 = vadd.f32 %v5513, %v5531
  %v5556 = vadd.f32 %v5514, %v5531
  %v5557 = vadd.f32 %v5515, %v5531
  %v5558 = vadd.f32 %v5516, %v5531
  %v5559 = vadd.f32 %v5517, %v5531
  %v5560 = vadd.f32 %v5518, %v5531
  %v5561 = vadd.f32 %v5519, %v5531
  %v5562 = vadd.f32 %v5520, %v5531
  %v5563 = vadd.f32 %v5521, %v5531
  %v5564 = vadd.f32 %v5522, %v5531
  %v5565 = vmax.f32 %v5533, 0.0
  %v5566 = vmax.f32 %v5534, 0.0
  %v5567 = vmax.f32 %v5535, 0.0
  %v5568 = vmax.f32 %v5536, 0.0
  %v5569 = vmax.f32 %v5537, 0.0
  %v5570 = vmax.f32 %v5538, 0.0
  %v5571 = vmax.f32 %v5539, 0.0
  %v5572 = vmax.f32 %v5540, 0.0
  %v5573 = vmax.f32 %v5541, 0.0
  %v5574 = vmax.f32 %v5542, 0.0
  %v5575 = vmax.f32 %v5543, 0.0
  %v5576 = vmax.f32 %v5544, 0.0
  %v5577 = vmax.f32 %v5545, 0.0
  %v5578 = vmax.f32 %v5546, 0.0
  %v5579 = vmax.f32 %v5547, 0.0
  %v5580 = vmax.f32 %v5548, 0.0
  %v5581 = vmax.f32 %v5549, 0.0
  %v5582 = vmax.f32 %v5550, 0.0
  %v5583 = vmax.f32 %v5551, 0.0
  %v5584 = vmax.f32 %v5552, 0.0
  %v5585 = vmax.f32 %v5553, 0.0
  %v5586 = vmax.f32 %v5554, 0.0
  %v5587 = vmax.f32 %v5555, 0.0
  %v5588 = vmax.f32 %v5556, 0.0
  %v5589 = vmax.f32 %v5557, 0.0
  %v5590 = vmax.f32 %v5558, 0.0
  %v5591 = vmax.f32 %v5559, 0.0
  %v5592 = vmax.f32 %v5560, 0.0
  %v5593 = vmax.f32 %v5561, 0.0
  %v5594 = vmax.f32 %v5562, 0.0
  %v5595 = vmax.f32 %v5563, 0.0
  %v5596 = vmax.f32 %v5564, 0.0
  %v5597 = vadd.f32 %v5565, %v5566
  %v5598 = vadd.f32 %v5597, %v5567
  %v5599 = vadd.f32 %v5598, %v5568
  %v5600 = vadd.f32 %v5599, %v5569
  %v5601 = vadd.f32 %v5600, %v5570
  %v5602 = vadd.f32 %v5601, %v5571
  %v5603 = vadd.f32 %v5602, %v5572
  %v5604 = vadd.f32 %v5603, %v5573
  %v5605 = vadd.f32 %v5604, %v5574
  %v5606 = vadd.f32 %v5605, %v5575
  %v5607 = vadd.f32 %v5606, %v5576
  %v5608 = vadd.f32 %v5607, %v5577
  %v5609 = vadd.f32 %v5608, %v5578
  %v5610 = vadd.f32 %v5609, %v5579
  %v5611 = vadd.f32 %v5610, %v5580
  %5612 = vadd.xlane.f32.xlu0 %v5611
  %v5613 = vpop.xlane.xlu0 %5612
  %v5614 = vadd.f32 %v5581, %v5582
  %v5615 = vadd.f32 %v5614, %v5583
  %v5616 = vadd.f32 %v5615, %v5584
  %v5617 = vadd.f32 %v5616, %v5585
  %v5618 = vadd.f32 %v5617, %v5586
  %v5619 = vadd.f32 %v5618, %v5587
  %v5620 = vadd.f32 %v5619, %v5588
  %v5621 = vadd.f32 %v5620, %v5589
  %v5622 = vadd.f32 %v5621, %v5590
  %v5623 = vadd.f32 %v5622, %v5591
  %v5624 = vadd.f32 %v5623, %v5592
  %v5625 = vadd.f32 %v5624, %v5593
  %v5626 = vadd.f32 %v5625, %v5594
  %v5627 = vadd.f32 %v5626, %v5595
  %v5628 = vadd.f32 %v5627, %v5596
  %5629 = vadd.xlane.f32.xlu0 %v5628
  %v5630 = vpop.xlane.xlu0 %5629
  %v5631 = vmul.f32 %v5565, %v5565
  %v5632 = vmul.f32 %v5566, %v5566
  %v5633 = vmul.f32 %v5567, %v5567
  %v5634 = vmul.f32 %v5568, %v5568
  %v5635 = vmul.f32 %v5569, %v5569
  %v5636 = vmul.f32 %v5570, %v5570
  %v5637 = vmul.f32 %v5571, %v5571
  %v5638 = vmul.f32 %v5572, %v5572
  %v5639 = vmul.f32 %v5573, %v5573
  %v5640 = vmul.f32 %v5574, %v5574
  %v5641 = vmul.f32 %v5575, %v5575
  %v5642 = vmul.f32 %v5576, %v5576
  %v5643 = vmul.f32 %v5577, %v5577
  %v5644 = vmul.f32 %v5578, %v5578
  %v5645 = vmul.f32 %v5579, %v5579
  %v5646 = vmul.f32 %v5580, %v5580
  %v5647 = vmul.f32 %v5581, %v5581
  %v5648 = vmul.f32 %v5582, %v5582
  %v5649 = vmul.f32 %v5583, %v5583
  %v5650 = vmul.f32 %v5584, %v5584
  %v5651 = vmul.f32 %v5585, %v5585
  %v5652 = vmul.f32 %v5586, %v5586
  %v5653 = vmul.f32 %v5587, %v5587
  %v5654 = vmul.f32 %v5588, %v5588
  %v5655 = vmul.f32 %v5589, %v5589
  %v5656 = vmul.f32 %v5590, %v5590
  %v5657 = vmul.f32 %v5591, %v5591
  %v5658 = vmul.f32 %v5592, %v5592
  %v5659 = vmul.f32 %v5593, %v5593
  %v5660 = vmul.f32 %v5594, %v5594
  %v5661 = vmul.f32 %v5595, %v5595
  %v5662 = vmul.f32 %v5596, %v5596
  %v5663 = vadd.f32 %v5631, %v5632
  %v5664 = vadd.f32 %v5663, %v5633
  %v5665 = vadd.f32 %v5664, %v5634
  %v5666 = vadd.f32 %v5665, %v5635
  %v5667 = vadd.f32 %v5666, %v5636
  %v5668 = vadd.f32 %v5667, %v5637
  %v5669 = vadd.f32 %v5668, %v5638
  %v5670 = vadd.f32 %v5669, %v5639
  %v5671 = vadd.f32 %v5670, %v5640
  %v5672 = vadd.f32 %v5671, %v5641
  %v5673 = vadd.f32 %v5672, %v5642
  %v5674 = vadd.f32 %v5673, %v5643
  %v5675 = vadd.f32 %v5674, %v5644
  %v5676 = vadd.f32 %v5675, %v5645
  %v5677 = vadd.f32 %v5676, %v5646
  %5678 = vadd.xlane.f32.xlu0 %v5677
  %v5679 = vpop.xlane.xlu0 %5678
  %v5680 = vadd.f32 %v5647, %v5648
  %v5681 = vadd.f32 %v5680, %v5649
  %v5682 = vadd.f32 %v5681, %v5650
  %v5683 = vadd.f32 %v5682, %v5651
  %v5684 = vadd.f32 %v5683, %v5652
  %v5685 = vadd.f32 %v5684, %v5653
  %v5686 = vadd.f32 %v5685, %v5654
  %v5687 = vadd.f32 %v5686, %v5655
  %v5688 = vadd.f32 %v5687, %v5656
  %v5689 = vadd.f32 %v5688, %v5657
  %v5690 = vadd.f32 %v5689, %v5658
  %v5691 = vadd.f32 %v5690, %v5659
  %v5692 = vadd.f32 %v5691, %v5660
  %v5693 = vadd.f32 %v5692, %v5661
  %v5694 = vadd.f32 %v5693, %v5662
  %5695 = vadd.xlane.f32.xlu0 %v5694
  %v5696 = vpop.xlane.xlu0 %5695
  %5697 = vrot.lane.b32.xlu0 %v162, 88
  %v5698 = vpop.permute.xlu0 %5697
  %5699 = vrot.lane.b32.xlu0 %v163, 88
  %v5700 = vpop.permute.xlu0 %5699
  %vm5701 = vcmask 130048
  %v5702 = vsel %vm5701, %v5698, 0
  %v5704 = vsel %vm5701, %v5700, 0
  %5706 = vmatpush.msra.mxu0 0.0
  %5707 = vmatpush.msra.mxu0 0.0
  %5708 = vmatpush.msra.mxu0 0.0
  %5709 = vmatpush.msra.mxu0 0.0
  %5710 = vmatpush.msra.mxu0 0.0
  %5711 = vmatpush.msra.mxu0 0.0
  %5712 = vmatpush.msra.mxu0 0.0
  %5713 = vmatpush.msra.mxu0 0.0
  %5714 = vmatpush.msra.mxu0 0.0
  %5715 = vmatpush.msra.mxu0 0.0
  %5716 = vmatpush.msra.mxu0 0.0
  %5717 = vmatpush.msra.mxu0 0.0
  %5718 = vmatpush.msra.mxu0 0.0
  %5719 = vmatpush.msra.mxu0 0.0
  %5720 = vmatpush.msra.mxu0 %v5630
  %5721 = vmatpush.msra.mxu0 %v5613
  %5722 = vmatmul.f32.gmra.mxu0 %v5702
  %v5723 = vpop.f32.mrf.mxu0
  %v5724 = vadd.f32 0.0, %v5723
  %5725 = vmatmul.f32.gmra.mxu0 %v5704
  %v5726 = vpop.f32.mrf.mxu0
  %v5727 = vadd.f32 0.0, %v5726
  %5728 = vdwg.mxu0
  %5729 = vmatpush.msra.mxu0 0.0
  %5730 = vmatpush.msra.mxu0 0.0
  %5731 = vmatpush.msra.mxu0 0.0
  %5732 = vmatpush.msra.mxu0 0.0
  %5733 = vmatpush.msra.mxu0 0.0
  %5734 = vmatpush.msra.mxu0 0.0
  %5735 = vmatpush.msra.mxu0 0.0
  %5736 = vmatpush.msra.mxu0 0.0
  %5737 = vmatpush.msra.mxu0 0.0
  %5738 = vmatpush.msra.mxu0 0.0
  %5739 = vmatpush.msra.mxu0 0.0
  %5740 = vmatpush.msra.mxu0 0.0
  %5741 = vmatpush.msra.mxu0 0.0
  %5742 = vmatpush.msra.mxu0 0.0
  %5743 = vmatpush.msra.mxu0 %v5696
  %5744 = vmatpush.msra.mxu0 %v5679
  %5745 = vmatmul.f32.gmra.mxu0 %v5702
  %v5746 = vpop.f32.mrf.mxu0
  %v5747 = vadd.f32 0.0, %v5746
  %5748 = vmatmul.f32.gmra.mxu0 %v5704
  %v5749 = vpop.f32.mrf.mxu0
  %v5750 = vadd.f32 0.0, %v5749
  %5751 = vdwg.mxu0
  %v5752 = vmul.f32 %v5724, %v5724
  %v5753 = vmul.f32 %v5727, %v5727
  %v5754 = vsub.f32 %v5747, %v5752
  %v5755 = vsub.f32 %v5750, %v5753
  %v5756 = vmax.f32 %v5754, 0.0
  %v5757 = vmax.f32 %v5755, 0.0
  %v5758 = vadd.f32 %v5756, 1e-05
  %v5759 = vadd.f32 %v5757, 1e-05
  %v5760 = vrsqrt.pop %v5758
  %v5761 = vmul.f32 %v5760, %v5758
  %v5762 = vmul.f32 %v5761, %v5760
  %v5763 = vmul.f32 0.5, %v5762
  %v5764 = vsub.f32 1.5, %v5763
  %v5765 = vmul.f32 %v5760, %v5764
  %vm5766 = vweird.f32 %v5758
  %vm5767 = vweird.f32 %v5760
  %vm5768 = vmor %vm5766, %vm5767
  %v5769 = vsel %vm5768, %v5760, %v5765
  %v5770 = vrsqrt.pop %v5759
  %v5771 = vmul.f32 %v5770, %v5759
  %v5772 = vmul.f32 %v5771, %v5770
  %v5773 = vmul.f32 0.5, %v5772
  %v5774 = vsub.f32 1.5, %v5773
  %v5775 = vmul.f32 %v5770, %v5774
  %vm5776 = vweird.f32 %v5759
  %vm5777 = vweird.f32 %v5770
  %vm5778 = vmor %vm5776, %vm5777
  %v5779 = vsel %vm5778, %v5770, %v5775
  %5782 = vrot.lane.b32.xlu0 %v5769, 38
  %v5783 = vpop.permute.xlu0 %5782
  %5784 = vrot.lane.b32.xlu0 %v5779, 38
  %v5785 = vpop.permute.xlu0 %5784
  %v5788 = vmul.f32 %v162, %v5783
  %v5789 = vmul.f32 %v163, %v5785
  %5792 = vrot.lane.b32.xlu0 %v5788, 90
  %v5793 = vpop.permute.xlu0 %5792
  %5794 = vrot.lane.b32.xlu0 %v5789, 90
  %v5795 = vpop.permute.xlu0 %5794
  %v5798 = vmul.f32 %v5724, %v5793
  %v5799 = vmul.f32 %v5727, %v5795
  %5802 = vrot.lane.b32.xlu0 %v5798, 39
  %v5803 = vpop.permute.xlu0 %5802
  %5804 = vrot.lane.b32.xlu0 %v5799, 39
  %v5805 = vpop.permute.xlu0 %5804
  %v5808 = vsub.f32 %v162, %v5803
  %v5809 = vsub.f32 %v163, %v5805
  %5810 = vset.pattern.permute.xlu0 38
  %5811 = vperm.xlu0 %5810, %v5788
  %v5812 = vpop.permute.xlu0 %5811
  %5814 = vset.pattern.permute.xlu0 38
  %5815 = vperm.xlu0 %5814, %v5789
  %v5816 = vpop.permute.xlu0 %5815
  %v5818 = vmul.f32 %v5565, %v5812
  %v5819 = vmul.f32 %v5566, %v5812
  %v5820 = vmul.f32 %v5567, %v5812
  %v5821 = vmul.f32 %v5568, %v5812
  %v5822 = vmul.f32 %v5569, %v5812
  %v5823 = vmul.f32 %v5570, %v5812
  %v5824 = vmul.f32 %v5571, %v5812
  %v5825 = vmul.f32 %v5572, %v5812
  %v5826 = vmul.f32 %v5573, %v5812
  %v5827 = vmul.f32 %v5574, %v5812
  %v5828 = vmul.f32 %v5575, %v5812
  %v5829 = vmul.f32 %v5576, %v5812
  %v5830 = vmul.f32 %v5577, %v5812
  %v5831 = vmul.f32 %v5578, %v5812
  %v5832 = vmul.f32 %v5579, %v5812
  %v5833 = vmul.f32 %v5580, %v5812
  %v5834 = vmul.f32 %v5581, %v5816
  %v5835 = vmul.f32 %v5582, %v5816
  %v5836 = vmul.f32 %v5583, %v5816
  %v5837 = vmul.f32 %v5584, %v5816
  %v5838 = vmul.f32 %v5585, %v5816
  %v5839 = vmul.f32 %v5586, %v5816
  %v5840 = vmul.f32 %v5587, %v5816
  %v5841 = vmul.f32 %v5588, %v5816
  %v5842 = vmul.f32 %v5589, %v5816
  %v5843 = vmul.f32 %v5590, %v5816
  %v5844 = vmul.f32 %v5591, %v5816
  %v5845 = vmul.f32 %v5592, %v5816
  %v5846 = vmul.f32 %v5593, %v5816
  %v5847 = vmul.f32 %v5594, %v5816
  %v5848 = vmul.f32 %v5595, %v5816
  %v5849 = vmul.f32 %v5596, %v5816
  %5851 = vset.pattern.permute.xlu0 39
  %5852 = vperm.xlu0 %5851, %v5808
  %v5853 = vpop.permute.xlu0 %5852
  %5856 = vset.pattern.permute.xlu0 39
  %5857 = vperm.xlu0 %5856, %v5809
  %v5858 = vpop.permute.xlu0 %5857
  %v5860 = vadd.f32 %v5818, %v5853
  %v5861 = vadd.f32 %v5819, %v5853
  %v5862 = vadd.f32 %v5820, %v5853
  %v5863 = vadd.f32 %v5821, %v5853
  %v5864 = vadd.f32 %v5822, %v5853
  %v5865 = vadd.f32 %v5823, %v5853
  %v5866 = vadd.f32 %v5824, %v5853
  %v5867 = vadd.f32 %v5825, %v5853
  %v5868 = vadd.f32 %v5826, %v5853
  %v5869 = vadd.f32 %v5827, %v5853
  %v5870 = vadd.f32 %v5828, %v5853
  %v5871 = vadd.f32 %v5829, %v5853
  %v5872 = vadd.f32 %v5830, %v5853
  %v5873 = vadd.f32 %v5831, %v5853
  %v5874 = vadd.f32 %v5832, %v5853
  %v5875 = vadd.f32 %v5833, %v5853
  %v5876 = vadd.f32 %v5834, %v5858
  %v5877 = vadd.f32 %v5835, %v5858
  %v5878 = vadd.f32 %v5836, %v5858
  %v5879 = vadd.f32 %v5837, %v5858
  %v5880 = vadd.f32 %v5838, %v5858
  %v5881 = vadd.f32 %v5839, %v5858
  %v5882 = vadd.f32 %v5840, %v5858
  %v5883 = vadd.f32 %v5841, %v5858
  %v5884 = vadd.f32 %v5842, %v5858
  %v5885 = vadd.f32 %v5843, %v5858
  %v5886 = vadd.f32 %v5844, %v5858
  %v5887 = vadd.f32 %v5845, %v5858
  %v5888 = vadd.f32 %v5846, %v5858
  %v5889 = vadd.f32 %v5847, %v5858
  %v5890 = vadd.f32 %v5848, %v5858
  %v5891 = vadd.f32 %v5849, %v5858
  %v5892 = vmax.f32 %v5860, 0.0
  %v5893 = vmax.f32 %v5861, 0.0
  %v5894 = vmax.f32 %v5862, 0.0
  %v5895 = vmax.f32 %v5863, 0.0
  %v5896 = vmax.f32 %v5864, 0.0
  %v5897 = vmax.f32 %v5865, 0.0
  %v5898 = vmax.f32 %v5866, 0.0
  %v5899 = vmax.f32 %v5867, 0.0
  %v5900 = vmax.f32 %v5868, 0.0
  %v5901 = vmax.f32 %v5869, 0.0
  %v5902 = vmax.f32 %v5870, 0.0
  %v5903 = vmax.f32 %v5871, 0.0
  %v5904 = vmax.f32 %v5872, 0.0
  %v5905 = vmax.f32 %v5873, 0.0
  %v5906 = vmax.f32 %v5874, 0.0
  %v5907 = vmax.f32 %v5875, 0.0
  %v5908 = vmax.f32 %v5876, 0.0
  %v5909 = vmax.f32 %v5877, 0.0
  %v5910 = vmax.f32 %v5878, 0.0
  %v5911 = vmax.f32 %v5879, 0.0
  %v5912 = vmax.f32 %v5880, 0.0
  %v5913 = vmax.f32 %v5881, 0.0
  %v5914 = vmax.f32 %v5882, 0.0
  %v5915 = vmax.f32 %v5883, 0.0
  %v5916 = vmax.f32 %v5884, 0.0
  %v5917 = vmax.f32 %v5885, 0.0
  %v5918 = vmax.f32 %v5886, 0.0
  %v5919 = vmax.f32 %v5887, 0.0
  %v5920 = vmax.f32 %v5888, 0.0
  %v5921 = vmax.f32 %v5889, 0.0
  %v5922 = vmax.f32 %v5890, 0.0
  %v5923 = vmax.f32 %v5891, 0.0
  %5924 = vst [vmem:[%s2] sm:$0xff] %v5892
  %5925 = vst [vmem:[%s2 + $0x8] sm:$0xff] %v5893
  %5926 = vst [vmem:[%s2 + $0x10] sm:$0xff] %v5894
  %5927 = vst [vmem:[%s2 + $0x18] sm:$0xff] %v5895
  %5928 = vst [vmem:[%s2 + $0x20] sm:$0xff] %v5896
  %5929 = vst [vmem:[%s2 + $0x28] sm:$0xff] %v5897
  %5930 = vst [vmem:[%s2 + $0x30] sm:$0xff] %v5898
  %5931 = vst [vmem:[%s2 + $0x38] sm:$0xff] %v5899
  %5932 = vst [vmem:[%s2 + $0x40] sm:$0xff] %v5900
  %5933 = vst [vmem:[%s2 + $0x48] sm:$0xff] %v5901
  %5934 = vst [vmem:[%s2 + $0x50] sm:$0xff] %v5902
  %5935 = vst [vmem:[%s2 + $0x58] sm:$0xff] %v5903
  %5936 = vst [vmem:[%s2 + $0x60] sm:$0xff] %v5904
  %5937 = vst [vmem:[%s2 + $0x68] sm:$0xff] %v5905
  %5938 = vst [vmem:[%s2 + $0x70] sm:$0xff] %v5906
  %5939 = vst [vmem:[%s2 + $0x78] sm:$0xff] %v5907
  %5940 = vst [vmem:[%s2 + $0x80] sm:$0xff] %v5908
  %5941 = vst [vmem:[%s2 + $0x88] sm:$0xff] %v5909
  %5942 = vst [vmem:[%s2 + $0x90] sm:$0xff] %v5910
  %5943 = vst [vmem:[%s2 + $0x98] sm:$0xff] %v5911
  %5944 = vst [vmem:[%s2 + $0xa0] sm:$0xff] %v5912
  %5945 = vst [vmem:[%s2 + $0xa8] sm:$0xff] %v5913
  %5946 = vst [vmem:[%s2 + $0xb0] sm:$0xff] %v5914
  %5947 = vst [vmem:[%s2 + $0xb8] sm:$0xff] %v5915
  %5948 = vst [vmem:[%s2 + $0xc0] sm:$0xff] %v5916
  %5949 = vst [vmem:[%s2 + $0xc8] sm:$0xff] %v5917
  %5950 = vst [vmem:[%s2 + $0xd0] sm:$0xff] %v5918
  %5951 = vst [vmem:[%s2 + $0xd8] sm:$0xff] %v5919
  %5952 = vst [vmem:[%s2 + $0xe0] sm:$0xff] %v5920
  %5953 = vst [vmem:[%s2 + $0xe8] sm:$0xff] %v5921
  %5954 = vst [vmem:[%s2 + $0xf0] sm:$0xff] %v5922
  %5955 = vst [vmem:[%s2 + $0xf8] sm:$0xff] %v5923
  // Predicated region
  $region10: #{conv_pixel_shuf_forward.3} parent=0 // pred_check
    _
  $region11: #{conv_pixel_shuf_forward.3} parent=0 // pred_check_branch
    %5957 = sbr.rel (0) target = $region13
  $region12: #{conv_pixel_shuf_forward.3} parent=0 // pred_region
    _
  $region13: #{conv_pixel_shuf_forward.3} parent=0 // pred_fallthru
    _
  // Predicated region
  $region14: #{conv_pixel_shuf_forward.3} parent=0 // pred_check
    _
  $region15: #{conv_pixel_shuf_forward.3} parent=0 // pred_check_branch
    %5959 = sbr.rel (0) target = $region17
  $region16: #{conv_pixel_shuf_forward.3} parent=0 // pred_region
    _
  $region17: #{conv_pixel_shuf_forward.3} parent=0 // pred_fallthru
    _

</llo_original>
